<compile_context>
chip_gen: v6e
topology: v6e:2x2x1
jax: 0.10.0
libtpu: 0.0.40
codegen_flags: <defaults>
</compile_context>

<pallas_src>
import functools
import math

import jax
import jax.numpy as jnp
from jax.experimental import pallas as pl
from jax.experimental.pallas import tpu as pltpu

# ----------------------------- config (small) -----------------------------
D_MODEL = 32
NHEAD = 4
NUM_ENC_LAYERS = 2
NUM_DEC_LAYERS = 2
DIM_FF = 64
LN_EPS = 1e-5
MASK_BIAS = -1e30


# ----------------------------- fused kernel -----------------------------
def _transformer_kernel(src_ref, pos_ref, qpos_ref, bias_ref,
                        attn_w_ref, attn_b_ref,
                        ffn_w1_ref, ffn_b1_ref, ffn_w2_ref, ffn_b2_ref,
                        ln_g_ref, ln_b_ref,
                        mem_ref, hs_ref,
                        *, nhead, n_enc, n_dec, eps):
    """One grid step == one batch element through the full enc+dec stack."""
    x = src_ref[0]          # (S, D)  f32
    pos = pos_ref[0]        # (S, D)
    qpos = qpos_ref[0]      # (NQ, D)
    bias = bias_ref[0]      # (1, S)  additive key-padding bias (f32)

    S, D = x.shape
    NQ = qpos.shape[0]
    Dh = D // nhead
    scale = float(Dh) ** -0.5

    # Per-head lane masks (compile-time constants).  Masked-lane attention keeps
    # full 32-lane MXU operands: no 8-lane slices, no lane concat at the end.
    lane = jax.lax.broadcasted_iota(jnp.int32, (1, D), 1)
    head_masks = [((lane >= h * Dh) & (lane < (h + 1) * Dh)).astype(jnp.bfloat16)
                  for h in range(nhead)]

    def vec(ref, i):                 # static row i of a 2-D slab -> (1, cols)
        return ref[pl.ds(i, 1), :]

    def lin(xin, w, b, act=None):    # bf16 MXU operands, f32 accumulation
        y = jnp.dot(xin.astype(w.dtype), w, preferred_element_type=jnp.float32) + b
        if act == "relu":
            y = jnp.maximum(y, 0.0)
        return y

    def lnorm(xin, i):               # one-pass mean / E[x^2] (less XLU pressure)
        g = vec(ln_g_ref, i)
        b = vec(ln_b_ref, i)
        mu = jnp.mean(xin, axis=-1, keepdims=True)
        ms = jnp.mean(xin * xin, axis=-1, keepdims=True)
        var = jnp.maximum(ms - mu * mu, 0.0)
        return (xin - mu) * jax.lax.rsqrt(var + eps) * g + b

    def mha(q, k, v, b):
        qb = q.astype(jnp.bfloat16)
        kb = k.astype(jnp.bfloat16)
        vb = v.astype(jnp.bfloat16)
        if b is not None:            # hoist bias broadcast out of the head loop
            b = jnp.broadcast_to(b, (q.shape[0], b.shape[-1]))
        out = None
        for m in head_masks:
            kh = kb * m
            vh = vb * m
            s = jax.lax.dot_general(qb, kh, (((1,), (1,)), ((), ())),
                                    preferred_element_type=jnp.float32) * scale
            if b is not None:
                s = s + b
            s = s - jnp.max(s, axis=-1, keepdims=True)
            p = jnp.exp(s)
            p = p * pl.reciprocal(jnp.sum(p, axis=-1, keepdims=True), approx=True)
            o = jnp.dot(p.astype(jnp.bfloat16), vh,
                        preferred_element_type=jnp.float32)
            out = o if out is None else out + o
        return out

    def attn(xq, xk, xv, b, base):   # q/k/v/out projections kept separate
        q = lin(xq, attn_w_ref[base + 0], vec(attn_b_ref, base + 0))
        k = lin(xk, attn_w_ref[base + 1], vec(attn_b_ref, base + 1))
        v = lin(xv, attn_w_ref[base + 2], vec(attn_b_ref, base + 2))
        a = mha(q, k, v, b)
        return lin(a, attn_w_ref[base + 3], vec(attn_b_ref, base + 3))

    def ffn(xin, i):
        h = lin(xin, ffn_w1_ref[i], vec(ffn_b1_ref, i), act="relu")
        return lin(h, ffn_w2_ref[i], vec(ffn_b2_ref, i))

    # ------------------------------ encoder ------------------------------
    for l in range(n_enc):
        aw = 4 * l
        li = 2 * l
        xp = x + pos
        a = attn(xp, xp, x, bias, aw)
        x1 = lnorm(x + a, li)
        x = lnorm(x1 + ffn(x1, l), li + 1)

    mem_ref[0] = x.astype(mem_ref.dtype)   # memory output; also stays live in VMEM

    # ------------------------------ decoder ------------------------------
    mem = x
    mem_pos = mem + pos                    # hoisted: identical for every layer
    tgt = jnp.zeros((NQ, D), jnp.float32)  # tgt = zeros_like(query_embed)
    for l in range(n_dec):
        aw = 4 * n_enc + 8 * l
        fi = n_enc + l
        li = 2 * n_enc + 3 * l
        tq = tgt + qpos
        sa = attn(tq, tq, tgt, None, aw)                    # self-attn (no mask)
        t1 = lnorm(tgt + sa, li)
        ca = attn(t1 + qpos, mem_pos, mem, bias, aw + 4)    # cross-attn
        t2 = lnorm(t1 + ca, li + 1)
        tgt = lnorm(t2 + ffn(t2, fi), li + 2)

    # final decoder LayerNorm folded in
    hs_ref[0] = lnorm(tgt, 2 * n_enc + 3 * n_dec).astype(hs_ref.dtype)


def _transformer_pallas(src_b, pos_b, qpos, bias3, w, *, n_enc, n_dec, nhead, eps):
    B, S, D = src_b.shape
    NQ = qpos.shape[1]
    DFF = w["ffn_w1"].shape[-1]
    NA = w["attn_w"].shape[0]
    NF = w["ffn_w1"].shape[0]
    NL = w["ln_g"].shape[0]

    def per_batch(*shape):
        n = len(shape)
        return pl.BlockSpec((1,) + shape, lambda b, n=n: (b,) + (0,) * n)

    def full(*shape):
        n = len(shape)
        return pl.BlockSpec(shape, lambda b, n=n: (0,) * n)

    in_specs = [
        per_batch(S, D),            # src
        per_batch(S, D),            # pos
        per_batch(NQ, D),           # query_pos
        per_batch(1, S),            # key-padding bias
        full(NA, D, D),             # all attention weight matrices (bf16)
        full(NA, D),                # all attention biases
        full(NF, D, DFF),           # linear1 weights
        full(NF, DFF),              # linear1 biases
        full(NF, DFF, D),           # linear2 weights
        full(NF, D),                # linear2 biases
        full(NL, D),                # LayerNorm gammas
        full(NL, D),                # LayerNorm betas
    ]
    out_specs = (per_batch(S, D), per_batch(NQ, D))
    out_shape = (jax.ShapeDtypeStruct((B, S, D), jnp.float32),
                 jax.ShapeDtypeStruct((B, NQ, D), jnp.float32))

    kernel = functools.partial(_transformer_kernel, nhead=nhead,
                               n_enc=n_enc, n_dec=n_dec, eps=eps)
    return pl.pallas_call(
        kernel,
        out_shape=out_shape,
        grid=(B,),
        in_specs=in_specs,
        out_specs=out_specs,
        compiler_params=pltpu.CompilerParams(
            dimension_semantics=("parallel",)),   # batch across cores on v7x
    )(src_b, pos_b, qpos, bias3,
      w["attn_w"], w["attn_b"], w["ffn_w1"], w["ffn_b1"],
      w["ffn_w2"], w["ffn_b2"], w["ln_g"], w["ln_b"])


# ----------------------------- weight packing -----------------------------
def pack_weights(params):
    """Concatenate all per-layer weights into a few stacked slabs (one DMA each).

    Slab layouts (static indices, mirrored in the kernel):
      attn_w/attn_b: enc layers [wq,wk,wv,wo], then dec layers [sa wq..wo, ca wq..wo]
      ffn_*        : enc layers then dec layers
      ln_g/ln_b    : enc [n1,n2]*L_enc, dec [n1,n2,n3]*L_dec, final decoder norm
    NOTE: weights are assumed (in, out); PyTorch checkpoints store (out, in) with
    a packed in_proj and would need transpose/split at load time.
    """
    attn_w, attn_b = [], []
    ffn_w1, ffn_b1, ffn_w2, ffn_b2 = [], [], [], []
    ln_g, ln_b = [], []

    def add_ffn(lp):
        ffn_w1.append(lp["linear1_w"]); ffn_b1.append(lp["linear1_b"])
        ffn_w2.append(lp["linear2_w"]); ffn_b2.append(lp["linear2_b"])

    def add_ln(lp, name):
        ln_g.append(lp[name + "_g"]); ln_b.append(lp[name + "_b"])

    for lp in params["encoder_layers"]:
        sa = lp["self_attn"]
        attn_w += [sa["wq"], sa["wk"], sa["wv"], sa["wo"]]
        attn_b += [sa["bq"], sa["bk"], sa["bv"], sa["bo"]]
        add_ffn(lp); add_ln(lp, "norm1"); add_ln(lp, "norm2")
    for lp in params["decoder_layers"]:
        sa, ca = lp["self_attn"], lp["cross_attn"]
        attn_w += [sa["wq"], sa["wk"], sa["wv"], sa["wo"],
                   ca["wq"], ca["wk"], ca["wv"], ca["wo"]]
        attn_b += [sa["bq"], sa["bk"], sa["bv"], sa["bo"],
                   ca["bq"], ca["bk"], ca["bv"], ca["bo"]]
        add_ffn(lp); add_ln(lp, "norm1"); add_ln(lp, "norm2"); add_ln(lp, "norm3")
    ln_g.append(params["dec_norm_g"]); ln_b.append(params["dec_norm_b"])

    return {
        "attn_w": jnp.stack(attn_w).astype(jnp.bfloat16),
        "attn_b": jnp.stack(attn_b).astype(jnp.float32),
        "ffn_w1": jnp.stack(ffn_w1).astype(jnp.bfloat16),
        "ffn_b1": jnp.stack(ffn_b1).astype(jnp.float32),
        "ffn_w2": jnp.stack(ffn_w2).astype(jnp.bfloat16),
        "ffn_b2": jnp.stack(ffn_b2).astype(jnp.float32),
        "ln_g": jnp.stack(ln_g).astype(jnp.float32),
        "ln_b": jnp.stack(ln_b).astype(jnp.float32),
    }


# ----------------------------- forward (host glue) -----------------------------
def transformer_forward(params, src, mask, query_embed, pos_embed,
                        *, nhead=NHEAD, eps=LN_EPS):
    bs, c, h, w = src.shape
    hw = h * w
    # NCHW -> (B, HW, C); attention math is layout-independent per (batch, token).
    src_b = src.reshape(bs, c, hw).transpose(0, 2, 1)
    pos_b = pos_embed.reshape(bs, c, hw).transpose(0, 2, 1)
    if query_embed.ndim == 2:
        qpos = jnp.broadcast_to(query_embed[None], (bs,) + query_embed.shape)
    else:  # torch layout (NQ, B, D)
        qpos = query_embed.transpose(1, 0, 2)

    # key-padding mask -> additive bias, computed ONCE on the host (f32).
    bias = jnp.where(mask.reshape(bs, hw), MASK_BIAS, 0.0).astype(jnp.float32)
    bias3 = bias.reshape(bs, 1, hw)

    w_packed = pack_weights(params)
    n_enc = len(params["encoder_layers"])
    n_dec = len(params["decoder_layers"])
    memory, out = _transformer_pallas(src_b, pos_b, qpos, bias3, w_packed,
                                      n_enc=n_enc, n_dec=n_dec,
                                      nhead=nhead, eps=eps)

    hs = out[None]                                                  # (1, B, NQ, D)
    mem_nchw = memory.transpose(0, 2, 1).reshape(bs, c, h, w)       # (B, C, H, W)
    return hs, mem_nchw


# ----------------------------- pure-JAX reference -----------------------------
def _bf16(w):  # simulate bf16 weight storage used by the kernel
    return w.astype(jnp.bfloat16).astype(jnp.float32)


def reference_forward(params, src, mask, query_embed, pos_embed,
                      *, nhead=NHEAD, eps=LN_EPS):
    bs, c, h, w = src.shape
    hw = h * w
    x = src.reshape(bs, c, hw).transpose(0, 2, 1)
    pos = pos_embed.reshape(bs, c, hw).transpose(0, 2, 1)
    qpos = jnp.broadcast_to(query_embed[None], (bs,) + query_embed.shape)
    bias = jnp.where(mask.reshape(bs, hw), MASK_BIAS, 0.0)[:, None, None, :]
    D = c
    Dh = D // nhead
    scale = Dh ** -0.5

    def lnorm(v, g, b):
        mu = v.mean(-1, keepdims=True)
        var = ((v - mu) ** 2).mean(-1, keepdims=True)
        return (v - mu) / jnp.sqrt(var + eps) * g + b

    def mha(q, k, v, p, b):
        B, Lq, _ = q.shape
        Lk = k.shape[1]
        qh = (q @ _bf16(p["wq"]) + p["bq"]).reshape(B, Lq, nhead, Dh)
        kh = (k @ _bf16(p["wk"]) + p["bk"]).reshape(B, Lk, nhead, Dh)
        vh = (v @ _bf16(p["wv"]) + p["bv"]).reshape(B, Lk, nhead, Dh)
        s = jnp.einsum("bqhd,bkhd->bhqk", qh, kh) * scale
        if b is not None:
            s = s + b
        a = jax.nn.softmax(s, axis=-1)
        o = jnp.einsum("bhqk,bkhd->bqhd", a, vh).reshape(B, Lq, D)
        return o @ _bf16(p["wo"]) + p["bo"]

    def ffn(v, lp):
        hdn = jnp.maximum(v @ _bf16(lp["linear1_w"]) + lp["linear1_b"], 0.0)
        return hdn @ _bf16(lp["linear2_w"]) + lp["linear2_b"]

    for lp in params["encoder_layers"]:
        xp = x + pos
        x = lnorm(x + mha(xp, xp, x, lp["self_attn"], bias),
                  lp["norm1_g"], lp["norm1_b"])
        x = lnorm(x + ffn(x, lp), lp["norm2_g"], lp["norm2_b"])
    memory = x

    tgt = jnp.zeros_like(qpos)
    for lp in params["decoder_layers"]:
        tq = tgt + qpos
        tgt = lnorm(tgt + mha(tq, tq, tgt, lp["self_attn"], None),
                    lp["norm1_g"], lp["norm1_b"])
        tgt = lnorm(tgt + mha(tgt + qpos, memory + pos, memory,
                              lp["cross_attn"], bias),
                    lp["norm2_g"], lp["norm2_b"])
        tgt = lnorm(tgt + ffn(tgt, lp), lp["norm3_g"], lp["norm3_b"])
    out = lnorm(tgt, params["dec_norm_g"], params["dec_norm_b"])
    return out[None], memory.transpose(0, 2, 1).reshape(bs, c, h, w)


# ----------------------------- param init -----------------------------
def _xavier(key, shape):
    fan_in, fan_out = shape
    a = math.sqrt(6.0 / (fan_in + fan_out))
    return jax.random.uniform(key, shape, jnp.float32, -a, a)


def _vecn(key, shape, s=0.1):
    return s * jax.random.normal(key, shape, jnp.float32)


def _ln_params(key, d):
    k1, k2 = jax.random.split(key)
    return 1.0 + _vecn(k1, (d,)), _vecn(k2, (d,))


def _mha_params(key, d):
    ks = jax.random.split(key, 8)
    return {
        "wq": _xavier(ks[0], (d, d)), "bq": _vecn(ks[1], (d,)),
        "wk": _xavier(ks[2], (d, d)), "bk": _vecn(ks[3], (d,)),
        "wv": _xavier(ks[4], (d, d)), "bv": _vecn(ks[5], (d,)),
        "wo": _xavier(ks[6], (d, d)), "bo": _vecn(ks[7], (d,)),
    }


def _enc_layer_params(key, d, dff):
    ks = jax.random.split(key, 7)
    n1g, n1b = _ln_params(ks[3], d)
    n2g, n2b = _ln_params(ks[4], d)
    return {
        "self_attn": _mha_params(ks[0], d),
        "linear1_w": _xavier(ks[1], (d, dff)), "linear1_b": _vecn(ks[5], (dff,)),
        "linear2_w": _xavier(ks[2], (dff, d)), "linear2_b": _vecn(ks[6], (d,)),
        "norm1_g": n1g, "norm1_b": n1b,
        "norm2_g": n2g, "norm2_b": n2b,
    }


def _dec_layer_params(key, d, dff):
    ks = jax.random.split(key, 9)
    n1g, n1b = _ln_params(ks[4], d)
    n2g, n2b = _ln_params(ks[5], d)
    n3g, n3b = _ln_params(ks[6], d)
    return {
        "self_attn": _mha_params(ks[0], d),
        "cross_attn": _mha_params(ks[1], d),
        "linear1_w": _xavier(ks[2], (d, dff)), "linear1_b": _vecn(ks[7], (dff,)),
        "linear2_w": _xavier(ks[3], (dff, d)), "linear2_b": _vecn(ks[8], (d,)),
        "norm1_g": n1g, "norm1_b": n1b,
        "norm2_g": n2g, "norm2_b": n2b,
        "norm3_g": n3g, "norm3_b": n3b,
    }


def init_params(key, d=D_MODEL, dff=DIM_FF, n_enc=NUM_ENC_LAYERS, n_dec=NUM_DEC_LAYERS):
    keys = jax.random.split(key, n_enc + n_dec + 1)
    fg, fb = _ln_params(keys[-1], d)
    return {
        "encoder_layers": [_enc_layer_params(keys[i], d, dff) for i in range(n_enc)],
        "decoder_layers": [_dec_layer_params(keys[n_enc + i], d, dff)
                           for i in range(n_dec)],
        "dec_norm_g": fg,
        "dec_norm_b": fb,
    }


# ----------------------------- main -----------------------------
if __name__ == "__main__":
    key = jax.random.PRNGKey(0)
    k_par, k_src, k_pos, k_q = jax.random.split(key, 4)

    bs, h, w = 2, 4, 4
    num_queries = 8

    params = init_params(k_par)
    src = jax.random.normal(k_src, (bs, D_MODEL, h, w), jnp.float32)
    pos_embed = jax.random.normal(k_pos, (bs, D_MODEL, h, w), jnp.float32)
    query_embed = jax.random.normal(k_q, (num_queries, D_MODEL), jnp.float32)
    # no padding except the last spatial column of batch element 1
    mask = jnp.zeros((bs, h, w), jnp.bool_).at[1, :, -1].set(True)

    fwd = jax.jit(transformer_forward)
    hs, mem = fwd(params, src, mask, query_embed, pos_embed)
    jax.block_until_ready((hs, mem))

    assert hs.shape == (1, bs, num_queries, D_MODEL), hs.shape
    assert mem.shape == (bs, D_MODEL, h, w), mem.shape
    assert bool(jnp.all(jnp.isfinite(hs))) and bool(jnp.all(jnp.isfinite(mem)))

    # Loose correctness check vs. a pure-JAX reference (bf16-rounded weights,
    # f32 activations in the reference vs. bf16 attention operands in-kernel).
    hs_ref, mem_ref = reference_forward(params, src, mask, query_embed, pos_embed)
    err = max(float(jnp.max(jnp.abs(hs - hs_ref))),
              float(jnp.max(jnp.abs(mem - mem_ref))))
    assert err < 0.15, f"max abs error vs reference: {err}"

    print("KERNEL_OK")
</pallas_src>

<mosaic_0001>
module attributes {stable_mosaic.version = 11 : i64} {
  func.func @_transformer_kernel(%arg0: i32, %arg1: memref<1x16x32xf32, #tpu.memory_space<vmem>>, %arg2: memref<1x16x32xf32, #tpu.memory_space<vmem>>, %arg3: memref<1x8x32xf32, #tpu.memory_space<vmem>>, %arg4: memref<1x1x16xf32, #tpu.memory_space<vmem>>, %arg5: memref<24x32x32xbf16, #tpu.memory_space<vmem>>, %arg6: memref<24x32xf32, #tpu.memory_space<vmem>>, %arg7: memref<4x32x64xbf16, #tpu.memory_space<vmem>>, %arg8: memref<4x64xf32, #tpu.memory_space<vmem>>, %arg9: memref<4x64x32xbf16, #tpu.memory_space<vmem>>, %arg10: memref<4x32xf32, #tpu.memory_space<vmem>>, %arg11: memref<11x32xf32, #tpu.memory_space<vmem>>, %arg12: memref<11x32xf32, #tpu.memory_space<vmem>>, %arg13: memref<1x16x32xf32, #tpu.memory_space<vmem>>, %arg14: memref<1x8x32xf32, #tpu.memory_space<vmem>>) attributes {dimension_semantics = [#tpu.dimension_semantics<parallel>], iteration_bounds = array<i64: 2>, scalar_prefetch = 0 : i64, scratch_operands = 0 : i64, tpu.core_type = #tpu.core_type<tc>, window_params = [{transform_indices = @transform_0, window_bounds = array<i64: 1, 16, 32>}, {transform_indices = @transform_1, window_bounds = array<i64: 1, 16, 32>}, {transform_indices = @transform_2, window_bounds = array<i64: 1, 8, 32>}, {transform_indices = @transform_3, window_bounds = array<i64: 1, 1, 16>}, {pipeline_mode = #tpu.pipeline_mode<synchronous>, transform_indices = @transform_4, window_bounds = array<i64: 24, 32, 32>}, {pipeline_mode = #tpu.pipeline_mode<synchronous>, transform_indices = @transform_5, window_bounds = array<i64: 24, 32>}, {pipeline_mode = #tpu.pipeline_mode<synchronous>, transform_indices = @transform_6, window_bounds = array<i64: 4, 32, 64>}, {pipeline_mode = #tpu.pipeline_mode<synchronous>, transform_indices = @transform_7, window_bounds = array<i64: 4, 64>}, {pipeline_mode = #tpu.pipeline_mode<synchronous>, transform_indices = @transform_8, window_bounds = array<i64: 4, 64, 32>}, {pipeline_mode = #tpu.pipeline_mode<synchronous>, transform_indices = @transform_9, window_bounds = array<i64: 4, 32>}, {pipeline_mode = #tpu.pipeline_mode<synchronous>, transform_indices = @transform_10, window_bounds = array<i64: 11, 32>}, {pipeline_mode = #tpu.pipeline_mode<synchronous>, transform_indices = @transform_11, window_bounds = array<i64: 11, 32>}, {transform_indices = @transform_12, window_bounds = array<i64: 1, 16, 32>}, {transform_indices = @transform_13, window_bounds = array<i64: 1, 8, 32>}]} {
    %c0 = arith.constant 0 : index
    %c0_0 = arith.constant 0 : index
    %c0_1 = arith.constant 0 : index
    %0 = vector.load %arg1[%c0, %c0_0, %c0_1] : memref<1x16x32xf32, #tpu.memory_space<vmem>>, vector<1x16x32xf32>
    %1 = vector.shape_cast %0 : vector<1x16x32xf32> to vector<16x32xf32>
    %c0_2 = arith.constant 0 : index
    %c0_3 = arith.constant 0 : index
    %c0_4 = arith.constant 0 : index
    %2 = vector.load %arg2[%c0_2, %c0_3, %c0_4] : memref<1x16x32xf32, #tpu.memory_space<vmem>>, vector<1x16x32xf32>
    %3 = vector.shape_cast %2 : vector<1x16x32xf32> to vector<16x32xf32>
    %c0_5 = arith.constant 0 : index
    %c0_6 = arith.constant 0 : index
    %c0_7 = arith.constant 0 : index
    %4 = vector.load %arg3[%c0_5, %c0_6, %c0_7] : memref<1x8x32xf32, #tpu.memory_space<vmem>>, vector<1x8x32xf32>
    %5 = vector.shape_cast %4 : vector<1x8x32xf32> to vector<8x32xf32>
    %c0_8 = arith.constant 0 : index
    %c0_9 = arith.constant 0 : index
    %c0_10 = arith.constant 0 : index
    %6 = vector.load %arg4[%c0_8, %c0_9, %c0_10] : memref<1x1x16xf32, #tpu.memory_space<vmem>>, vector<1x1x16xf32>
    %7 = vector.shape_cast %6 : vector<1x1x16xf32> to vector<1x16xf32>
    %8 = tpu.iota {dimensions = array<i32: 1>} : vector<1x32xi32>
    %c0_i32 = arith.constant 0 : i32
    %9 = vector.broadcast %c0_i32 : i32 to vector<1x32xi32>
    %10 = arith.cmpi sge, %8, %9 : vector<1x32xi32>
    %c8_i32 = arith.constant 8 : i32
    %11 = vector.broadcast %c8_i32 : i32 to vector<1x32xi32>
    %12 = arith.cmpi slt, %8, %11 : vector<1x32xi32>
    %13 = arith.andi %10, %12 : vector<1x32xi1>
    %14 = arith.extui %13 : vector<1x32xi1> to vector<1x32xi32>
    %15 = arith.sitofp %14 : vector<1x32xi32> to vector<1x32xf32>
    %16 = arith.truncf %15 : vector<1x32xf32> to vector<1x32xbf16>
    %c8_i32_11 = arith.constant 8 : i32
    %17 = vector.broadcast %c8_i32_11 : i32 to vector<1x32xi32>
    %18 = arith.cmpi sge, %8, %17 : vector<1x32xi32>
    %c16_i32 = arith.constant 16 : i32
    %19 = vector.broadcast %c16_i32 : i32 to vector<1x32xi32>
    %20 = arith.cmpi slt, %8, %19 : vector<1x32xi32>
    %21 = arith.andi %18, %20 : vector<1x32xi1>
    %22 = arith.extui %21 : vector<1x32xi1> to vector<1x32xi32>
    %23 = arith.sitofp %22 : vector<1x32xi32> to vector<1x32xf32>
    %24 = arith.truncf %23 : vector<1x32xf32> to vector<1x32xbf16>
    %c16_i32_12 = arith.constant 16 : i32
    %25 = vector.broadcast %c16_i32_12 : i32 to vector<1x32xi32>
    %26 = arith.cmpi sge, %8, %25 : vector<1x32xi32>
    %c24_i32 = arith.constant 24 : i32
    %27 = vector.broadcast %c24_i32 : i32 to vector<1x32xi32>
    %28 = arith.cmpi slt, %8, %27 : vector<1x32xi32>
    %29 = arith.andi %26, %28 : vector<1x32xi1>
    %30 = arith.extui %29 : vector<1x32xi1> to vector<1x32xi32>
    %31 = arith.sitofp %30 : vector<1x32xi32> to vector<1x32xf32>
    %32 = arith.truncf %31 : vector<1x32xf32> to vector<1x32xbf16>
    %c24_i32_13 = arith.constant 24 : i32
    %33 = vector.broadcast %c24_i32_13 : i32 to vector<1x32xi32>
    %34 = arith.cmpi sge, %8, %33 : vector<1x32xi32>
    %c32_i32 = arith.constant 32 : i32
    %35 = vector.broadcast %c32_i32 : i32 to vector<1x32xi32>
    %36 = arith.cmpi slt, %8, %35 : vector<1x32xi32>
    %37 = arith.andi %34, %36 : vector<1x32xi1>
    %38 = arith.extui %37 : vector<1x32xi1> to vector<1x32xi32>
    %39 = arith.sitofp %38 : vector<1x32xi32> to vector<1x32xf32>
    %40 = arith.truncf %39 : vector<1x32xf32> to vector<1x32xbf16>
    %41 = arith.addf %1, %3 : vector<16x32xf32>
    %c0_14 = arith.constant 0 : index
    %c0_15 = arith.constant 0 : index
    %c0_16 = arith.constant 0 : index
    %42 = vector.load %arg5[%c0_14, %c0_15, %c0_16] : memref<24x32x32xbf16, #tpu.memory_space<vmem>>, vector<1x32x32xbf16>
    %43 = vector.shape_cast %42 : vector<1x32x32xbf16> to vector<32x32xbf16>
    %c0_17 = arith.constant 0 : index
    %c0_18 = arith.constant 0 : index
    %44 = vector.load %arg6[%c0_17, %c0_18] : memref<24x32xf32, #tpu.memory_space<vmem>>, vector<1x32xf32>
    %45 = arith.truncf %41 : vector<16x32xf32> to vector<16x32xbf16>
    %cst = arith.constant dense<0.000000e+00> : vector<16x32xf32>
    %46 = tpu.matmul %45, %43, %cst {dimension_numbers = #tpu.dot_dimension_numbers<[1], [0], [0], [1], [0, 0, 1, 1], [], []>} : vector<16x32xbf16>, vector<32x32xbf16>, vector<16x32xf32> -> vector<16x32xf32>
    %47 = vector.broadcast %44 : vector<1x32xf32> to vector<16x32xf32>
    %48 = arith.addf %46, %47 : vector<16x32xf32>
    %c1 = arith.constant 1 : index
    %c0_19 = arith.constant 0 : index
    %c0_20 = arith.constant 0 : index
    %49 = vector.load %arg5[%c1, %c0_19, %c0_20] : memref<24x32x32xbf16, #tpu.memory_space<vmem>>, vector<1x32x32xbf16>
    %50 = vector.shape_cast %49 : vector<1x32x32xbf16> to vector<32x32xbf16>
    %c1_21 = arith.constant 1 : index
    %c0_22 = arith.constant 0 : index
    %51 = vector.load %arg6[%c1_21, %c0_22] : memref<24x32xf32, #tpu.memory_space<vmem>>, vector<1x32xf32>
    %52 = arith.truncf %41 : vector<16x32xf32> to vector<16x32xbf16>
    %cst_23 = arith.constant dense<0.000000e+00> : vector<16x32xf32>
    %53 = tpu.matmul %52, %50, %cst_23 {dimension_numbers = #tpu.dot_dimension_numbers<[1], [0], [0], [1], [0, 0, 1, 1], [], []>} : vector<16x32xbf16>, vector<32x32xbf16>, vector<16x32xf32> -> vector<16x32xf32>
    %54 = vector.broadcast %51 : vector<1x32xf32> to vector<16x32xf32>
    %55 = arith.addf %53, %54 : vector<16x32xf32>
    %c2 = arith.constant 2 : index
    %c0_24 = arith.constant 0 : index
    %c0_25 = arith.constant 0 : index
    %56 = vector.load %arg5[%c2, %c0_24, %c0_25] : memref<24x32x32xbf16, #tpu.memory_space<vmem>>, vector<1x32x32xbf16>
    %57 = vector.shape_cast %56 : vector<1x32x32xbf16> to vector<32x32xbf16>
    %c2_26 = arith.constant 2 : index
    %c0_27 = arith.constant 0 : index
    %58 = vector.load %arg6[%c2_26, %c0_27] : memref<24x32xf32, #tpu.memory_space<vmem>>, vector<1x32xf32>
    %59 = arith.truncf %1 : vector<16x32xf32> to vector<16x32xbf16>
    %cst_28 = arith.constant dense<0.000000e+00> : vector<16x32xf32>
    %60 = tpu.matmul %59, %57, %cst_28 {dimension_numbers = #tpu.dot_dimension_numbers<[1], [0], [0], [1], [0, 0, 1, 1], [], []>} : vector<16x32xbf16>, vector<32x32xbf16>, vector<16x32xf32> -> vector<16x32xf32>
    %61 = vector.broadcast %58 : vector<1x32xf32> to vector<16x32xf32>
    %62 = arith.addf %60, %61 : vector<16x32xf32>
    %63 = arith.truncf %48 : vector<16x32xf32> to vector<16x32xbf16>
    %64 = arith.truncf %55 : vector<16x32xf32> to vector<16x32xbf16>
    %65 = arith.truncf %62 : vector<16x32xf32> to vector<16x32xbf16>
    %66 = vector.shape_cast %7 : vector<1x16xf32> to vector<1x16xf32>
    %67 = vector.broadcast %66 : vector<1x16xf32> to vector<16x16xf32>
    %68 = vector.broadcast %16 : vector<1x32xbf16> to vector<16x32xbf16>
    %69 = arith.mulf %64, %68 : vector<16x32xbf16>
    %70 = vector.broadcast %16 : vector<1x32xbf16> to vector<16x32xbf16>
    %71 = arith.mulf %65, %70 : vector<16x32xbf16>
    %cst_29 = arith.constant dense<0.000000e+00> : vector<16x16xf32>
    %72 = tpu.matmul %63, %69, %cst_29 {dimension_numbers = #tpu.dot_dimension_numbers<[1], [1], [0], [0], [0, 0, 1, 0], [], []>} : vector<16x32xbf16>, vector<16x32xbf16>, vector<16x16xf32> -> vector<16x16xf32>
    %cst_30 = arith.constant 0.353553385 : f32
    %73 = vector.broadcast %cst_30 : f32 to vector<16x16xf32>
    %74 = arith.mulf %72, %73 : vector<16x16xf32>
    %75 = arith.addf %74, %67 : vector<16x16xf32>
    %cst_31 = arith.constant dense<0xFF800000> : vector<16xf32>
    %76 = vector.multi_reduction <maximumf>, %75, %cst_31 [1] : vector<16x16xf32> to vector<16xf32>
    %77 = vector.shape_cast %76 : vector<16xf32> to vector<16x1xf32>
    %78 = vector.broadcast %77 : vector<16x1xf32> to vector<16x16xf32>
    %79 = arith.subf %75, %78 : vector<16x16xf32>
    %80 = math.exp %79 : vector<16x16xf32>
    %cst_32 = arith.constant dense<0.000000e+00> : vector<16xf32>
    %81 = vector.multi_reduction <add>, %80, %cst_32 [1] : vector<16x16xf32> to vector<16xf32>
    %82 = vector.shape_cast %81 : vector<16xf32> to vector<16x1xf32>
    %83 = tpu.reciprocal %82 {approx = true} : vector<16x1xf32> -> vector<16x1xf32>
    %84 = vector.broadcast %83 : vector<16x1xf32> to vector<16x16xf32>
    %85 = arith.mulf %80, %84 : vector<16x16xf32>
    %86 = arith.truncf %85 : vector<16x16xf32> to vector<16x16xbf16>
    %cst_33 = arith.constant dense<0.000000e+00> : vector<16x32xf32>
    %87 = tpu.matmul %86, %71, %cst_33 {dimension_numbers = #tpu.dot_dimension_numbers<[1], [0], [0], [1], [0, 0, 1, 1], [], []>} : vector<16x16xbf16>, vector<16x32xbf16>, vector<16x32xf32> -> vector<16x32xf32>
    %88 = vector.broadcast %24 : vector<1x32xbf16> to vector<16x32xbf16>
    %89 = arith.mulf %64, %88 : vector<16x32xbf16>
    %90 = vector.broadcast %24 : vector<1x32xbf16> to vector<16x32xbf16>
    %91 = arith.mulf %65, %90 : vector<16x32xbf16>
    %cst_34 = arith.constant dense<0.000000e+00> : vector<16x16xf32>
    %92 = tpu.matmul %63, %89, %cst_34 {dimension_numbers = #tpu.dot_dimension_numbers<[1], [1], [0], [0], [0, 0, 1, 0], [], []>} : vector<16x32xbf16>, vector<16x32xbf16>, vector<16x16xf32> -> vector<16x16xf32>
    %cst_35 = arith.constant 0.353553385 : f32
    %93 = vector.broadcast %cst_35 : f32 to vector<16x16xf32>
    %94 = arith.mulf %92, %93 : vector<16x16xf32>
    %95 = arith.addf %94, %67 : vector<16x16xf32>
    %cst_36 = arith.constant dense<0xFF800000> : vector<16xf32>
    %96 = vector.multi_reduction <maximumf>, %95, %cst_36 [1] : vector<16x16xf32> to vector<16xf32>
    %97 = vector.shape_cast %96 : vector<16xf32> to vector<16x1xf32>
    %98 = vector.broadcast %97 : vector<16x1xf32> to vector<16x16xf32>
    %99 = arith.subf %95, %98 : vector<16x16xf32>
    %100 = math.exp %99 : vector<16x16xf32>
    %cst_37 = arith.constant dense<0.000000e+00> : vector<16xf32>
    %101 = vector.multi_reduction <add>, %100, %cst_37 [1] : vector<16x16xf32> to vector<16xf32>
    %102 = vector.shape_cast %101 : vector<16xf32> to vector<16x1xf32>
    %103 = tpu.reciprocal %102 {approx = true} : vector<16x1xf32> -> vector<16x1xf32>
    %104 = vector.broadcast %103 : vector<16x1xf32> to vector<16x16xf32>
    %105 = arith.mulf %100, %104 : vector<16x16xf32>
    %106 = arith.truncf %105 : vector<16x16xf32> to vector<16x16xbf16>
    %cst_38 = arith.constant dense<0.000000e+00> : vector<16x32xf32>
    %107 = tpu.matmul %106, %91, %cst_38 {dimension_numbers = #tpu.dot_dimension_numbers<[1], [0], [0], [1], [0, 0, 1, 1], [], []>} : vector<16x16xbf16>, vector<16x32xbf16>, vector<16x32xf32> -> vector<16x32xf32>
    %108 = arith.addf %87, %107 : vector<16x32xf32>
    %109 = vector.broadcast %32 : vector<1x32xbf16> to vector<16x32xbf16>
    %110 = arith.mulf %64, %109 : vector<16x32xbf16>
    %111 = vector.broadcast %32 : vector<1x32xbf16> to vector<16x32xbf16>
    %112 = arith.mulf %65, %111 : vector<16x32xbf16>
    %cst_39 = arith.constant dense<0.000000e+00> : vector<16x16xf32>
    %113 = tpu.matmul %63, %110, %cst_39 {dimension_numbers = #tpu.dot_dimension_numbers<[1], [1], [0], [0], [0, 0, 1, 0], [], []>} : vector<16x32xbf16>, vector<16x32xbf16>, vector<16x16xf32> -> vector<16x16xf32>
    %cst_40 = arith.constant 0.353553385 : f32
    %114 = vector.broadcast %cst_40 : f32 to vector<16x16xf32>
    %115 = arith.mulf %113, %114 : vector<16x16xf32>
    %116 = arith.addf %115, %67 : vector<16x16xf32>
    %cst_41 = arith.constant dense<0xFF800000> : vector<16xf32>
    %117 = vector.multi_reduction <maximumf>, %116, %cst_41 [1] : vector<16x16xf32> to vector<16xf32>
    %118 = vector.shape_cast %117 : vector<16xf32> to vector<16x1xf32>
    %119 = vector.broadcast %118 : vector<16x1xf32> to vector<16x16xf32>
    %120 = arith.subf %116, %119 : vector<16x16xf32>
    %121 = math.exp %120 : vector<16x16xf32>
    %cst_42 = arith.constant dense<0.000000e+00> : vector<16xf32>
    %122 = vector.multi_reduction <add>, %121, %cst_42 [1] : vector<16x16xf32> to vector<16xf32>
    %123 = vector.shape_cast %122 : vector<16xf32> to vector<16x1xf32>
    %124 = tpu.reciprocal %123 {approx = true} : vector<16x1xf32> -> vector<16x1xf32>
    %125 = vector.broadcast %124 : vector<16x1xf32> to vector<16x16xf32>
    %126 = arith.mulf %121, %125 : vector<16x16xf32>
    %127 = arith.truncf %126 : vector<16x16xf32> to vector<16x16xbf16>
    %cst_43 = arith.constant dense<0.000000e+00> : vector<16x32xf32>
    %128 = tpu.matmul %127, %112, %cst_43 {dimension_numbers = #tpu.dot_dimension_numbers<[1], [0], [0], [1], [0, 0, 1, 1], [], []>} : vector<16x16xbf16>, vector<16x32xbf16>, vector<16x32xf32> -> vector<16x32xf32>
    %129 = arith.addf %108, %128 : vector<16x32xf32>
    %130 = vector.broadcast %40 : vector<1x32xbf16> to vector<16x32xbf16>
    %131 = arith.mulf %64, %130 : vector<16x32xbf16>
    %132 = vector.broadcast %40 : vector<1x32xbf16> to vector<16x32xbf16>
    %133 = arith.mulf %65, %132 : vector<16x32xbf16>
    %cst_44 = arith.constant dense<0.000000e+00> : vector<16x16xf32>
    %134 = tpu.matmul %63, %131, %cst_44 {dimension_numbers = #tpu.dot_dimension_numbers<[1], [1], [0], [0], [0, 0, 1, 0], [], []>} : vector<16x32xbf16>, vector<16x32xbf16>, vector<16x16xf32> -> vector<16x16xf32>
    %cst_45 = arith.constant 0.353553385 : f32
    %135 = vector.broadcast %cst_45 : f32 to vector<16x16xf32>
    %136 = arith.mulf %134, %135 : vector<16x16xf32>
    %137 = arith.addf %136, %67 : vector<16x16xf32>
    %cst_46 = arith.constant dense<0xFF800000> : vector<16xf32>
    %138 = vector.multi_reduction <maximumf>, %137, %cst_46 [1] : vector<16x16xf32> to vector<16xf32>
    %139 = vector.shape_cast %138 : vector<16xf32> to vector<16x1xf32>
    %140 = vector.broadcast %139 : vector<16x1xf32> to vector<16x16xf32>
    %141 = arith.subf %137, %140 : vector<16x16xf32>
    %142 = math.exp %141 : vector<16x16xf32>
    %cst_47 = arith.constant dense<0.000000e+00> : vector<16xf32>
    %143 = vector.multi_reduction <add>, %142, %cst_47 [1] : vector<16x16xf32> to vector<16xf32>
    %144 = vector.shape_cast %143 : vector<16xf32> to vector<16x1xf32>
    %145 = tpu.reciprocal %144 {approx = true} : vector<16x1xf32> -> vector<16x1xf32>
    %146 = vector.broadcast %145 : vector<16x1xf32> to vector<16x16xf32>
    %147 = arith.mulf %142, %146 : vector<16x16xf32>
    %148 = arith.truncf %147 : vector<16x16xf32> to vector<16x16xbf16>
    %cst_48 = arith.constant dense<0.000000e+00> : vector<16x32xf32>
    %149 = tpu.matmul %148, %133, %cst_48 {dimension_numbers = #tpu.dot_dimension_numbers<[1], [0], [0], [1], [0, 0, 1, 1], [], []>} : vector<16x16xbf16>, vector<16x32xbf16>, vector<16x32xf32> -> vector<16x32xf32>
    %150 = arith.addf %129, %149 : vector<16x32xf32>
    %c3 = arith.constant 3 : index
    %c0_49 = arith.constant 0 : index
    %c0_50 = arith.constant 0 : index
    %151 = vector.load %arg5[%c3, %c0_49, %c0_50] : memref<24x32x32xbf16, #tpu.memory_space<vmem>>, vector<1x32x32xbf16>
    %152 = vector.shape_cast %151 : vector<1x32x32xbf16> to vector<32x32xbf16>
    %c3_51 = arith.constant 3 : index
    %c0_52 = arith.constant 0 : index
    %153 = vector.load %arg6[%c3_51, %c0_52] : memref<24x32xf32, #tpu.memory_space<vmem>>, vector<1x32xf32>
    %154 = arith.truncf %150 : vector<16x32xf32> to vector<16x32xbf16>
    %cst_53 = arith.constant dense<0.000000e+00> : vector<16x32xf32>
    %155 = tpu.matmul %154, %152, %cst_53 {dimension_numbers = #tpu.dot_dimension_numbers<[1], [0], [0], [1], [0, 0, 1, 1], [], []>} : vector<16x32xbf16>, vector<32x32xbf16>, vector<16x32xf32> -> vector<16x32xf32>
    %156 = vector.broadcast %153 : vector<1x32xf32> to vector<16x32xf32>
    %157 = arith.addf %155, %156 : vector<16x32xf32>
    %158 = arith.addf %1, %157 : vector<16x32xf32>
    %c0_54 = arith.constant 0 : index
    %c0_55 = arith.constant 0 : index
    %159 = vector.load %arg11[%c0_54, %c0_55] : memref<11x32xf32, #tpu.memory_space<vmem>>, vector<1x32xf32>
    %c0_56 = arith.constant 0 : index
    %c0_57 = arith.constant 0 : index
    %160 = vector.load %arg12[%c0_56, %c0_57] : memref<11x32xf32, #tpu.memory_space<vmem>>, vector<1x32xf32>
    %cst_58 = arith.constant dense<0.000000e+00> : vector<16xf32>
    %161 = vector.multi_reduction <add>, %158, %cst_58 [1] : vector<16x32xf32> to vector<16xf32>
    %162 = vector.shape_cast %161 : vector<16xf32> to vector<16x1xf32>
    %cst_59 = arith.constant 3.200000e+01 : f32
    %163 = vector.broadcast %cst_59 : f32 to vector<16x1xf32>
    %164 = arith.divf %162, %163 : vector<16x1xf32>
    %165 = arith.mulf %158, %158 : vector<16x32xf32>
    %cst_60 = arith.constant dense<0.000000e+00> : vector<16xf32>
    %166 = vector.multi_reduction <add>, %165, %cst_60 [1] : vector<16x32xf32> to vector<16xf32>
    %167 = vector.shape_cast %166 : vector<16xf32> to vector<16x1xf32>
    %cst_61 = arith.constant 3.200000e+01 : f32
    %168 = vector.broadcast %cst_61 : f32 to vector<16x1xf32>
    %169 = arith.divf %167, %168 : vector<16x1xf32>
    %170 = arith.mulf %164, %164 : vector<16x1xf32>
    %171 = arith.subf %169, %170 : vector<16x1xf32>
    %cst_62 = arith.constant 0.000000e+00 : f32
    %172 = vector.broadcast %cst_62 : f32 to vector<16x1xf32>
    %173 = arith.maximumf %171, %172 : vector<16x1xf32>
    %174 = vector.broadcast %164 : vector<16x1xf32> to vector<16x32xf32>
    %175 = arith.subf %158, %174 : vector<16x32xf32>
    %cst_63 = arith.constant 9.99999974E-6 : f32
    %176 = vector.broadcast %cst_63 : f32 to vector<16x1xf32>
    %177 = arith.addf %173, %176 : vector<16x1xf32>
    %178 = math.rsqrt %177 : vector<16x1xf32>
    %179 = vector.broadcast %178 : vector<16x1xf32> to vector<16x32xf32>
    %180 = arith.mulf %175, %179 : vector<16x32xf32>
    %181 = vector.broadcast %159 : vector<1x32xf32> to vector<16x32xf32>
    %182 = arith.mulf %180, %181 : vector<16x32xf32>
    %183 = vector.broadcast %160 : vector<1x32xf32> to vector<16x32xf32>
    %184 = arith.addf %182, %183 : vector<16x32xf32>
    %c0_64 = arith.constant 0 : index
    %c0_65 = arith.constant 0 : index
    %c0_66 = arith.constant 0 : index
    %185 = vector.load %arg7[%c0_64, %c0_65, %c0_66] : memref<4x32x64xbf16, #tpu.memory_space<vmem>>, vector<1x32x64xbf16>
    %186 = vector.shape_cast %185 : vector<1x32x64xbf16> to vector<32x64xbf16>
    %c0_67 = arith.constant 0 : index
    %c0_68 = arith.constant 0 : index
    %187 = vector.load %arg8[%c0_67, %c0_68] : memref<4x64xf32, #tpu.memory_space<vmem>>, vector<1x64xf32>
    %188 = arith.truncf %184 : vector<16x32xf32> to vector<16x32xbf16>
    %cst_69 = arith.constant dense<0.000000e+00> : vector<16x64xf32>
    %189 = tpu.matmul %188, %186, %cst_69 {dimension_numbers = #tpu.dot_dimension_numbers<[1], [0], [0], [1], [0, 0, 1, 1], [], []>} : vector<16x32xbf16>, vector<32x64xbf16>, vector<16x64xf32> -> vector<16x64xf32>
    %190 = vector.broadcast %187 : vector<1x64xf32> to vector<16x64xf32>
    %191 = arith.addf %189, %190 : vector<16x64xf32>
    %cst_70 = arith.constant 0.000000e+00 : f32
    %192 = vector.broadcast %cst_70 : f32 to vector<16x64xf32>
    %193 = arith.maximumf %191, %192 : vector<16x64xf32>
    %c0_71 = arith.constant 0 : index
    %c0_72 = arith.constant 0 : index
    %c0_73 = arith.constant 0 : index
    %194 = vector.load %arg9[%c0_71, %c0_72, %c0_73] : memref<4x64x32xbf16, #tpu.memory_space<vmem>>, vector<1x64x32xbf16>
    %195 = vector.shape_cast %194 : vector<1x64x32xbf16> to vector<64x32xbf16>
    %c0_74 = arith.constant 0 : index
    %c0_75 = arith.constant 0 : index
    %196 = vector.load %arg10[%c0_74, %c0_75] : memref<4x32xf32, #tpu.memory_space<vmem>>, vector<1x32xf32>
    %197 = arith.truncf %193 : vector<16x64xf32> to vector<16x64xbf16>
    %cst_76 = arith.constant dense<0.000000e+00> : vector<16x32xf32>
    %198 = tpu.matmul %197, %195, %cst_76 {dimension_numbers = #tpu.dot_dimension_numbers<[1], [0], [0], [1], [0, 0, 1, 1], [], []>} : vector<16x64xbf16>, vector<64x32xbf16>, vector<16x32xf32> -> vector<16x32xf32>
    %199 = vector.broadcast %196 : vector<1x32xf32> to vector<16x32xf32>
    %200 = arith.addf %198, %199 : vector<16x32xf32>
    %201 = arith.addf %184, %200 : vector<16x32xf32>
    %c1_77 = arith.constant 1 : index
    %c0_78 = arith.constant 0 : index
    %202 = vector.load %arg11[%c1_77, %c0_78] : memref<11x32xf32, #tpu.memory_space<vmem>>, vector<1x32xf32>
    %c1_79 = arith.constant 1 : index
    %c0_80 = arith.constant 0 : index
    %203 = vector.load %arg12[%c1_79, %c0_80] : memref<11x32xf32, #tpu.memory_space<vmem>>, vector<1x32xf32>
    %cst_81 = arith.constant dense<0.000000e+00> : vector<16xf32>
    %204 = vector.multi_reduction <add>, %201, %cst_81 [1] : vector<16x32xf32> to vector<16xf32>
    %205 = vector.shape_cast %204 : vector<16xf32> to vector<16x1xf32>
    %cst_82 = arith.constant 3.200000e+01 : f32
    %206 = vector.broadcast %cst_82 : f32 to vector<16x1xf32>
    %207 = arith.divf %205, %206 : vector<16x1xf32>
    %208 = arith.mulf %201, %201 : vector<16x32xf32>
    %cst_83 = arith.constant dense<0.000000e+00> : vector<16xf32>
    %209 = vector.multi_reduction <add>, %208, %cst_83 [1] : vector<16x32xf32> to vector<16xf32>
    %210 = vector.shape_cast %209 : vector<16xf32> to vector<16x1xf32>
    %cst_84 = arith.constant 3.200000e+01 : f32
    %211 = vector.broadcast %cst_84 : f32 to vector<16x1xf32>
    %212 = arith.divf %210, %211 : vector<16x1xf32>
    %213 = arith.mulf %207, %207 : vector<16x1xf32>
    %214 = arith.subf %212, %213 : vector<16x1xf32>
    %cst_85 = arith.constant 0.000000e+00 : f32
    %215 = vector.broadcast %cst_85 : f32 to vector<16x1xf32>
    %216 = arith.maximumf %214, %215 : vector<16x1xf32>
    %217 = vector.broadcast %207 : vector<16x1xf32> to vector<16x32xf32>
    %218 = arith.subf %201, %217 : vector<16x32xf32>
    %cst_86 = arith.constant 9.99999974E-6 : f32
    %219 = vector.broadcast %cst_86 : f32 to vector<16x1xf32>
    %220 = arith.addf %216, %219 : vector<16x1xf32>
    %221 = math.rsqrt %220 : vector<16x1xf32>
    %222 = vector.broadcast %221 : vector<16x1xf32> to vector<16x32xf32>
    %223 = arith.mulf %218, %222 : vector<16x32xf32>
    %224 = vector.broadcast %202 : vector<1x32xf32> to vector<16x32xf32>
    %225 = arith.mulf %223, %224 : vector<16x32xf32>
    %226 = vector.broadcast %203 : vector<1x32xf32> to vector<16x32xf32>
    %227 = arith.addf %225, %226 : vector<16x32xf32>
    %228 = arith.addf %227, %3 : vector<16x32xf32>
    %c4 = arith.constant 4 : index
    %c0_87 = arith.constant 0 : index
    %c0_88 = arith.constant 0 : index
    %229 = vector.load %arg5[%c4, %c0_87, %c0_88] : memref<24x32x32xbf16, #tpu.memory_space<vmem>>, vector<1x32x32xbf16>
    %230 = vector.shape_cast %229 : vector<1x32x32xbf16> to vector<32x32xbf16>
    %c4_89 = arith.constant 4 : index
    %c0_90 = arith.constant 0 : index
    %231 = vector.load %arg6[%c4_89, %c0_90] : memref<24x32xf32, #tpu.memory_space<vmem>>, vector<1x32xf32>
    %232 = arith.truncf %228 : vector<16x32xf32> to vector<16x32xbf16>
    %cst_91 = arith.constant dense<0.000000e+00> : vector<16x32xf32>
    %233 = tpu.matmul %232, %230, %cst_91 {dimension_numbers = #tpu.dot_dimension_numbers<[1], [0], [0], [1], [0, 0, 1, 1], [], []>} : vector<16x32xbf16>, vector<32x32xbf16>, vector<16x32xf32> -> vector<16x32xf32>
    %234 = vector.broadcast %231 : vector<1x32xf32> to vector<16x32xf32>
    %235 = arith.addf %233, %234 : vector<16x32xf32>
    %c5 = arith.constant 5 : index
    %c0_92 = arith.constant 0 : index
    %c0_93 = arith.constant 0 : index
    %236 = vector.load %arg5[%c5, %c0_92, %c0_93] : memref<24x32x32xbf16, #tpu.memory_space<vmem>>, vector<1x32x32xbf16>
    %237 = vector.shape_cast %236 : vector<1x32x32xbf16> to vector<32x32xbf16>
    %c5_94 = arith.constant 5 : index
    %c0_95 = arith.constant 0 : index
    %238 = vector.load %arg6[%c5_94, %c0_95] : memref<24x32xf32, #tpu.memory_space<vmem>>, vector<1x32xf32>
    %239 = arith.truncf %228 : vector<16x32xf32> to vector<16x32xbf16>
    %cst_96 = arith.constant dense<0.000000e+00> : vector<16x32xf32>
    %240 = tpu.matmul %239, %237, %cst_96 {dimension_numbers = #tpu.dot_dimension_numbers<[1], [0], [0], [1], [0, 0, 1, 1], [], []>} : vector<16x32xbf16>, vector<32x32xbf16>, vector<16x32xf32> -> vector<16x32xf32>
    %241 = vector.broadcast %238 : vector<1x32xf32> to vector<16x32xf32>
    %242 = arith.addf %240, %241 : vector<16x32xf32>
    %c6 = arith.constant 6 : index
    %c0_97 = arith.constant 0 : index
    %c0_98 = arith.constant 0 : index
    %243 = vector.load %arg5[%c6, %c0_97, %c0_98] : memref<24x32x32xbf16, #tpu.memory_space<vmem>>, vector<1x32x32xbf16>
    %244 = vector.shape_cast %243 : vector<1x32x32xbf16> to vector<32x32xbf16>
    %c6_99 = arith.constant 6 : index
    %c0_100 = arith.constant 0 : index
    %245 = vector.load %arg6[%c6_99, %c0_100] : memref<24x32xf32, #tpu.memory_space<vmem>>, vector<1x32xf32>
    %246 = arith.truncf %227 : vector<16x32xf32> to vector<16x32xbf16>
    %cst_101 = arith.constant dense<0.000000e+00> : vector<16x32xf32>
    %247 = tpu.matmul %246, %244, %cst_101 {dimension_numbers = #tpu.dot_dimension_numbers<[1], [0], [0], [1], [0, 0, 1, 1], [], []>} : vector<16x32xbf16>, vector<32x32xbf16>, vector<16x32xf32> -> vector<16x32xf32>
    %248 = vector.broadcast %245 : vector<1x32xf32> to vector<16x32xf32>
    %249 = arith.addf %247, %248 : vector<16x32xf32>
    %250 = arith.truncf %235 : vector<16x32xf32> to vector<16x32xbf16>
    %251 = arith.truncf %242 : vector<16x32xf32> to vector<16x32xbf16>
    %252 = arith.truncf %249 : vector<16x32xf32> to vector<16x32xbf16>
    %253 = vector.shape_cast %7 : vector<1x16xf32> to vector<1x16xf32>
    %254 = vector.broadcast %253 : vector<1x16xf32> to vector<16x16xf32>
    %255 = vector.broadcast %16 : vector<1x32xbf16> to vector<16x32xbf16>
    %256 = arith.mulf %251, %255 : vector<16x32xbf16>
    %257 = vector.broadcast %16 : vector<1x32xbf16> to vector<16x32xbf16>
    %258 = arith.mulf %252, %257 : vector<16x32xbf16>
    %cst_102 = arith.constant dense<0.000000e+00> : vector<16x16xf32>
    %259 = tpu.matmul %250, %256, %cst_102 {dimension_numbers = #tpu.dot_dimension_numbers<[1], [1], [0], [0], [0, 0, 1, 0], [], []>} : vector<16x32xbf16>, vector<16x32xbf16>, vector<16x16xf32> -> vector<16x16xf32>
    %cst_103 = arith.constant 0.353553385 : f32
    %260 = vector.broadcast %cst_103 : f32 to vector<16x16xf32>
    %261 = arith.mulf %259, %260 : vector<16x16xf32>
    %262 = arith.addf %261, %254 : vector<16x16xf32>
    %cst_104 = arith.constant dense<0xFF800000> : vector<16xf32>
    %263 = vector.multi_reduction <maximumf>, %262, %cst_104 [1] : vector<16x16xf32> to vector<16xf32>
    %264 = vector.shape_cast %263 : vector<16xf32> to vector<16x1xf32>
    %265 = vector.broadcast %264 : vector<16x1xf32> to vector<16x16xf32>
    %266 = arith.subf %262, %265 : vector<16x16xf32>
    %267 = math.exp %266 : vector<16x16xf32>
    %cst_105 = arith.constant dense<0.000000e+00> : vector<16xf32>
    %268 = vector.multi_reduction <add>, %267, %cst_105 [1] : vector<16x16xf32> to vector<16xf32>
    %269 = vector.shape_cast %268 : vector<16xf32> to vector<16x1xf32>
    %270 = tpu.reciprocal %269 {approx = true} : vector<16x1xf32> -> vector<16x1xf32>
    %271 = vector.broadcast %270 : vector<16x1xf32> to vector<16x16xf32>
    %272 = arith.mulf %267, %271 : vector<16x16xf32>
    %273 = arith.truncf %272 : vector<16x16xf32> to vector<16x16xbf16>
    %cst_106 = arith.constant dense<0.000000e+00> : vector<16x32xf32>
    %274 = tpu.matmul %273, %258, %cst_106 {dimension_numbers = #tpu.dot_dimension_numbers<[1], [0], [0], [1], [0, 0, 1, 1], [], []>} : vector<16x16xbf16>, vector<16x32xbf16>, vector<16x32xf32> -> vector<16x32xf32>
    %275 = vector.broadcast %24 : vector<1x32xbf16> to vector<16x32xbf16>
    %276 = arith.mulf %251, %275 : vector<16x32xbf16>
    %277 = vector.broadcast %24 : vector<1x32xbf16> to vector<16x32xbf16>
    %278 = arith.mulf %252, %277 : vector<16x32xbf16>
    %cst_107 = arith.constant dense<0.000000e+00> : vector<16x16xf32>
    %279 = tpu.matmul %250, %276, %cst_107 {dimension_numbers = #tpu.dot_dimension_numbers<[1], [1], [0], [0], [0, 0, 1, 0], [], []>} : vector<16x32xbf16>, vector<16x32xbf16>, vector<16x16xf32> -> vector<16x16xf32>
    %cst_108 = arith.constant 0.353553385 : f32
    %280 = vector.broadcast %cst_108 : f32 to vector<16x16xf32>
    %281 = arith.mulf %279, %280 : vector<16x16xf32>
    %282 = arith.addf %281, %254 : vector<16x16xf32>
    %cst_109 = arith.constant dense<0xFF800000> : vector<16xf32>
    %283 = vector.multi_reduction <maximumf>, %282, %cst_109 [1] : vector<16x16xf32> to vector<16xf32>
    %284 = vector.shape_cast %283 : vector<16xf32> to vector<16x1xf32>
    %285 = vector.broadcast %284 : vector<16x1xf32> to vector<16x16xf32>
    %286 = arith.subf %282, %285 : vector<16x16xf32>
    %287 = math.exp %286 : vector<16x16xf32>
    %cst_110 = arith.constant dense<0.000000e+00> : vector<16xf32>
    %288 = vector.multi_reduction <add>, %287, %cst_110 [1] : vector<16x16xf32> to vector<16xf32>
    %289 = vector.shape_cast %288 : vector<16xf32> to vector<16x1xf32>
    %290 = tpu.reciprocal %289 {approx = true} : vector<16x1xf32> -> vector<16x1xf32>
    %291 = vector.broadcast %290 : vector<16x1xf32> to vector<16x16xf32>
    %292 = arith.mulf %287, %291 : vector<16x16xf32>
    %293 = arith.truncf %292 : vector<16x16xf32> to vector<16x16xbf16>
    %cst_111 = arith.constant dense<0.000000e+00> : vector<16x32xf32>
    %294 = tpu.matmul %293, %278, %cst_111 {dimension_numbers = #tpu.dot_dimension_numbers<[1], [0], [0], [1], [0, 0, 1, 1], [], []>} : vector<16x16xbf16>, vector<16x32xbf16>, vector<16x32xf32> -> vector<16x32xf32>
    %295 = arith.addf %274, %294 : vector<16x32xf32>
    %296 = vector.broadcast %32 : vector<1x32xbf16> to vector<16x32xbf16>
    %297 = arith.mulf %251, %296 : vector<16x32xbf16>
    %298 = vector.broadcast %32 : vector<1x32xbf16> to vector<16x32xbf16>
    %299 = arith.mulf %252, %298 : vector<16x32xbf16>
    %cst_112 = arith.constant dense<0.000000e+00> : vector<16x16xf32>
    %300 = tpu.matmul %250, %297, %cst_112 {dimension_numbers = #tpu.dot_dimension_numbers<[1], [1], [0], [0], [0, 0, 1, 0], [], []>} : vector<16x32xbf16>, vector<16x32xbf16>, vector<16x16xf32> -> vector<16x16xf32>
    %cst_113 = arith.constant 0.353553385 : f32
    %301 = vector.broadcast %cst_113 : f32 to vector<16x16xf32>
    %302 = arith.mulf %300, %301 : vector<16x16xf32>
    %303 = arith.addf %302, %254 : vector<16x16xf32>
    %cst_114 = arith.constant dense<0xFF800000> : vector<16xf32>
    %304 = vector.multi_reduction <maximumf>, %303, %cst_114 [1] : vector<16x16xf32> to vector<16xf32>
    %305 = vector.shape_cast %304 : vector<16xf32> to vector<16x1xf32>
    %306 = vector.broadcast %305 : vector<16x1xf32> to vector<16x16xf32>
    %307 = arith.subf %303, %306 : vector<16x16xf32>
    %308 = math.exp %307 : vector<16x16xf32>
    %cst_115 = arith.constant dense<0.000000e+00> : vector<16xf32>
    %309 = vector.multi_reduction <add>, %308, %cst_115 [1] : vector<16x16xf32> to vector<16xf32>
    %310 = vector.shape_cast %309 : vector<16xf32> to vector<16x1xf32>
    %311 = tpu.reciprocal %310 {approx = true} : vector<16x1xf32> -> vector<16x1xf32>
    %312 = vector.broadcast %311 : vector<16x1xf32> to vector<16x16xf32>
    %313 = arith.mulf %308, %312 : vector<16x16xf32>
    %314 = arith.truncf %313 : vector<16x16xf32> to vector<16x16xbf16>
    %cst_116 = arith.constant dense<0.000000e+00> : vector<16x32xf32>
    %315 = tpu.matmul %314, %299, %cst_116 {dimension_numbers = #tpu.dot_dimension_numbers<[1], [0], [0], [1], [0, 0, 1, 1], [], []>} : vector<16x16xbf16>, vector<16x32xbf16>, vector<16x32xf32> -> vector<16x32xf32>
    %316 = arith.addf %295, %315 : vector<16x32xf32>
    %317 = vector.broadcast %40 : vector<1x32xbf16> to vector<16x32xbf16>
    %318 = arith.mulf %251, %317 : vector<16x32xbf16>
    %319 = vector.broadcast %40 : vector<1x32xbf16> to vector<16x32xbf16>
    %320 = arith.mulf %252, %319 : vector<16x32xbf16>
    %cst_117 = arith.constant dense<0.000000e+00> : vector<16x16xf32>
    %321 = tpu.matmul %250, %318, %cst_117 {dimension_numbers = #tpu.dot_dimension_numbers<[1], [1], [0], [0], [0, 0, 1, 0], [], []>} : vector<16x32xbf16>, vector<16x32xbf16>, vector<16x16xf32> -> vector<16x16xf32>
    %cst_118 = arith.constant 0.353553385 : f32
    %322 = vector.broadcast %cst_118 : f32 to vector<16x16xf32>
    %323 = arith.mulf %321, %322 : vector<16x16xf32>
    %324 = arith.addf %323, %254 : vector<16x16xf32>
    %cst_119 = arith.constant dense<0xFF800000> : vector<16xf32>
    %325 = vector.multi_reduction <maximumf>, %324, %cst_119 [1] : vector<16x16xf32> to vector<16xf32>
    %326 = vector.shape_cast %325 : vector<16xf32> to vector<16x1xf32>
    %327 = vector.broadcast %326 : vector<16x1xf32> to vector<16x16xf32>
    %328 = arith.subf %324, %327 : vector<16x16xf32>
    %329 = math.exp %328 : vector<16x16xf32>
    %cst_120 = arith.constant dense<0.000000e+00> : vector<16xf32>
    %330 = vector.multi_reduction <add>, %329, %cst_120 [1] : vector<16x16xf32> to vector<16xf32>
    %331 = vector.shape_cast %330 : vector<16xf32> to vector<16x1xf32>
    %332 = tpu.reciprocal %331 {approx = true} : vector<16x1xf32> -> vector<16x1xf32>
    %333 = vector.broadcast %332 : vector<16x1xf32> to vector<16x16xf32>
    %334 = arith.mulf %329, %333 : vector<16x16xf32>
    %335 = arith.truncf %334 : vector<16x16xf32> to vector<16x16xbf16>
    %cst_121 = arith.constant dense<0.000000e+00> : vector<16x32xf32>
    %336 = tpu.matmul %335, %320, %cst_121 {dimension_numbers = #tpu.dot_dimension_numbers<[1], [0], [0], [1], [0, 0, 1, 1], [], []>} : vector<16x16xbf16>, vector<16x32xbf16>, vector<16x32xf32> -> vector<16x32xf32>
    %337 = arith.addf %316, %336 : vector<16x32xf32>
    %c7 = arith.constant 7 : index
    %c0_122 = arith.constant 0 : index
    %c0_123 = arith.constant 0 : index
    %338 = vector.load %arg5[%c7, %c0_122, %c0_123] : memref<24x32x32xbf16, #tpu.memory_space<vmem>>, vector<1x32x32xbf16>
    %339 = vector.shape_cast %338 : vector<1x32x32xbf16> to vector<32x32xbf16>
    %c7_124 = arith.constant 7 : index
    %c0_125 = arith.constant 0 : index
    %340 = vector.load %arg6[%c7_124, %c0_125] : memref<24x32xf32, #tpu.memory_space<vmem>>, vector<1x32xf32>
    %341 = arith.truncf %337 : vector<16x32xf32> to vector<16x32xbf16>
    %cst_126 = arith.constant dense<0.000000e+00> : vector<16x32xf32>
    %342 = tpu.matmul %341, %339, %cst_126 {dimension_numbers = #tpu.dot_dimension_numbers<[1], [0], [0], [1], [0, 0, 1, 1], [], []>} : vector<16x32xbf16>, vector<32x32xbf16>, vector<16x32xf32> -> vector<16x32xf32>
    %343 = vector.broadcast %340 : vector<1x32xf32> to vector<16x32xf32>
    %344 = arith.addf %342, %343 : vector<16x32xf32>
    %345 = arith.addf %227, %344 : vector<16x32xf32>
    %c2_127 = arith.constant 2 : index
    %c0_128 = arith.constant 0 : index
    %346 = vector.load %arg11[%c2_127, %c0_128] : memref<11x32xf32, #tpu.memory_space<vmem>>, vector<1x32xf32>
    %c2_129 = arith.constant 2 : index
    %c0_130 = arith.constant 0 : index
    %347 = vector.load %arg12[%c2_129, %c0_130] : memref<11x32xf32, #tpu.memory_space<vmem>>, vector<1x32xf32>
    %cst_131 = arith.constant dense<0.000000e+00> : vector<16xf32>
    %348 = vector.multi_reduction <add>, %345, %cst_131 [1] : vector<16x32xf32> to vector<16xf32>
    %349 = vector.shape_cast %348 : vector<16xf32> to vector<16x1xf32>
    %cst_132 = arith.constant 3.200000e+01 : f32
    %350 = vector.broadcast %cst_132 : f32 to vector<16x1xf32>
    %351 = arith.divf %349, %350 : vector<16x1xf32>
    %352 = arith.mulf %345, %345 : vector<16x32xf32>
    %cst_133 = arith.constant dense<0.000000e+00> : vector<16xf32>
    %353 = vector.multi_reduction <add>, %352, %cst_133 [1] : vector<16x32xf32> to vector<16xf32>
    %354 = vector.shape_cast %353 : vector<16xf32> to vector<16x1xf32>
    %cst_134 = arith.constant 3.200000e+01 : f32
    %355 = vector.broadcast %cst_134 : f32 to vector<16x1xf32>
    %356 = arith.divf %354, %355 : vector<16x1xf32>
    %357 = arith.mulf %351, %351 : vector<16x1xf32>
    %358 = arith.subf %356, %357 : vector<16x1xf32>
    %cst_135 = arith.constant 0.000000e+00 : f32
    %359 = vector.broadcast %cst_135 : f32 to vector<16x1xf32>
    %360 = arith.maximumf %358, %359 : vector<16x1xf32>
    %361 = vector.broadcast %351 : vector<16x1xf32> to vector<16x32xf32>
    %362 = arith.subf %345, %361 : vector<16x32xf32>
    %cst_136 = arith.constant 9.99999974E-6 : f32
    %363 = vector.broadcast %cst_136 : f32 to vector<16x1xf32>
    %364 = arith.addf %360, %363 : vector<16x1xf32>
    %365 = math.rsqrt %364 : vector<16x1xf32>
    %366 = vector.broadcast %365 : vector<16x1xf32> to vector<16x32xf32>
    %367 = arith.mulf %362, %366 : vector<16x32xf32>
    %368 = vector.broadcast %346 : vector<1x32xf32> to vector<16x32xf32>
    %369 = arith.mulf %367, %368 : vector<16x32xf32>
    %370 = vector.broadcast %347 : vector<1x32xf32> to vector<16x32xf32>
    %371 = arith.addf %369, %370 : vector<16x32xf32>
    %c1_137 = arith.constant 1 : index
    %c0_138 = arith.constant 0 : index
    %c0_139 = arith.constant 0 : index
    %372 = vector.load %arg7[%c1_137, %c0_138, %c0_139] : memref<4x32x64xbf16, #tpu.memory_space<vmem>>, vector<1x32x64xbf16>
    %373 = vector.shape_cast %372 : vector<1x32x64xbf16> to vector<32x64xbf16>
    %c1_140 = arith.constant 1 : index
    %c0_141 = arith.constant 0 : index
    %374 = vector.load %arg8[%c1_140, %c0_141] : memref<4x64xf32, #tpu.memory_space<vmem>>, vector<1x64xf32>
    %375 = arith.truncf %371 : vector<16x32xf32> to vector<16x32xbf16>
    %cst_142 = arith.constant dense<0.000000e+00> : vector<16x64xf32>
    %376 = tpu.matmul %375, %373, %cst_142 {dimension_numbers = #tpu.dot_dimension_numbers<[1], [0], [0], [1], [0, 0, 1, 1], [], []>} : vector<16x32xbf16>, vector<32x64xbf16>, vector<16x64xf32> -> vector<16x64xf32>
    %377 = vector.broadcast %374 : vector<1x64xf32> to vector<16x64xf32>
    %378 = arith.addf %376, %377 : vector<16x64xf32>
    %cst_143 = arith.constant 0.000000e+00 : f32
    %379 = vector.broadcast %cst_143 : f32 to vector<16x64xf32>
    %380 = arith.maximumf %378, %379 : vector<16x64xf32>
    %c1_144 = arith.constant 1 : index
    %c0_145 = arith.constant 0 : index
    %c0_146 = arith.constant 0 : index
    %381 = vector.load %arg9[%c1_144, %c0_145, %c0_146] : memref<4x64x32xbf16, #tpu.memory_space<vmem>>, vector<1x64x32xbf16>
    %382 = vector.shape_cast %381 : vector<1x64x32xbf16> to vector<64x32xbf16>
    %c1_147 = arith.constant 1 : index
    %c0_148 = arith.constant 0 : index
    %383 = vector.load %arg10[%c1_147, %c0_148] : memref<4x32xf32, #tpu.memory_space<vmem>>, vector<1x32xf32>
    %384 = arith.truncf %380 : vector<16x64xf32> to vector<16x64xbf16>
    %cst_149 = arith.constant dense<0.000000e+00> : vector<16x32xf32>
    %385 = tpu.matmul %384, %382, %cst_149 {dimension_numbers = #tpu.dot_dimension_numbers<[1], [0], [0], [1], [0, 0, 1, 1], [], []>} : vector<16x64xbf16>, vector<64x32xbf16>, vector<16x32xf32> -> vector<16x32xf32>
    %386 = vector.broadcast %383 : vector<1x32xf32> to vector<16x32xf32>
    %387 = arith.addf %385, %386 : vector<16x32xf32>
    %388 = arith.addf %371, %387 : vector<16x32xf32>
    %c3_150 = arith.constant 3 : index
    %c0_151 = arith.constant 0 : index
    %389 = vector.load %arg11[%c3_150, %c0_151] : memref<11x32xf32, #tpu.memory_space<vmem>>, vector<1x32xf32>
    %c3_152 = arith.constant 3 : index
    %c0_153 = arith.constant 0 : index
    %390 = vector.load %arg12[%c3_152, %c0_153] : memref<11x32xf32, #tpu.memory_space<vmem>>, vector<1x32xf32>
    %cst_154 = arith.constant dense<0.000000e+00> : vector<16xf32>
    %391 = vector.multi_reduction <add>, %388, %cst_154 [1] : vector<16x32xf32> to vector<16xf32>
    %392 = vector.shape_cast %391 : vector<16xf32> to vector<16x1xf32>
    %cst_155 = arith.constant 3.200000e+01 : f32
    %393 = vector.broadcast %cst_155 : f32 to vector<16x1xf32>
    %394 = arith.divf %392, %393 : vector<16x1xf32>
    %395 = arith.mulf %388, %388 : vector<16x32xf32>
    %cst_156 = arith.constant dense<0.000000e+00> : vector<16xf32>
    %396 = vector.multi_reduction <add>, %395, %cst_156 [1] : vector<16x32xf32> to vector<16xf32>
    %397 = vector.shape_cast %396 : vector<16xf32> to vector<16x1xf32>
    %cst_157 = arith.constant 3.200000e+01 : f32
    %398 = vector.broadcast %cst_157 : f32 to vector<16x1xf32>
    %399 = arith.divf %397, %398 : vector<16x1xf32>
    %400 = arith.mulf %394, %394 : vector<16x1xf32>
    %401 = arith.subf %399, %400 : vector<16x1xf32>
    %cst_158 = arith.constant 0.000000e+00 : f32
    %402 = vector.broadcast %cst_158 : f32 to vector<16x1xf32>
    %403 = arith.maximumf %401, %402 : vector<16x1xf32>
    %404 = vector.broadcast %394 : vector<16x1xf32> to vector<16x32xf32>
    %405 = arith.subf %388, %404 : vector<16x32xf32>
    %cst_159 = arith.constant 9.99999974E-6 : f32
    %406 = vector.broadcast %cst_159 : f32 to vector<16x1xf32>
    %407 = arith.addf %403, %406 : vector<16x1xf32>
    %408 = math.rsqrt %407 : vector<16x1xf32>
    %409 = vector.broadcast %408 : vector<16x1xf32> to vector<16x32xf32>
    %410 = arith.mulf %405, %409 : vector<16x32xf32>
    %411 = vector.broadcast %389 : vector<1x32xf32> to vector<16x32xf32>
    %412 = arith.mulf %410, %411 : vector<16x32xf32>
    %413 = vector.broadcast %390 : vector<1x32xf32> to vector<16x32xf32>
    %414 = arith.addf %412, %413 : vector<16x32xf32>
    %c0_160 = arith.constant 0 : index
    %c0_161 = arith.constant 0 : index
    %c0_162 = arith.constant 0 : index
    %415 = vector.load %arg13[%c0_160, %c0_161, %c0_162] : memref<1x16x32xf32, #tpu.memory_space<vmem>>, vector<1x16x32xf32>
    %416 = vector.shape_cast %415 : vector<1x16x32xf32> to vector<16x32xf32>
    %417 = vector.shape_cast %414 : vector<16x32xf32> to vector<1x16x32xf32>
    tpu.vector_store %arg13[%c0_160, %c0_161, %c0_162], %417 {strides = array<i32>} : memref<1x16x32xf32, #tpu.memory_space<vmem>>, vector<1x16x32xf32>,
    %418 = arith.addf %414, %3 : vector<16x32xf32>
    %cst_163 = arith.constant 0.000000e+00 : f32
    %419 = vector.broadcast %cst_163 : f32 to vector<8x32xf32>
    %420 = arith.addf %419, %5 : vector<8x32xf32>
    %c8 = arith.constant 8 : index
    %c0_164 = arith.constant 0 : index
    %c0_165 = arith.constant 0 : index
    %421 = vector.load %arg5[%c8, %c0_164, %c0_165] : memref<24x32x32xbf16, #tpu.memory_space<vmem>>, vector<1x32x32xbf16>
    %422 = vector.shape_cast %421 : vector<1x32x32xbf16> to vector<32x32xbf16>
    %c8_166 = arith.constant 8 : index
    %c0_167 = arith.constant 0 : index
    %423 = vector.load %arg6[%c8_166, %c0_167] : memref<24x32xf32, #tpu.memory_space<vmem>>, vector<1x32xf32>
    %424 = arith.truncf %420 : vector<8x32xf32> to vector<8x32xbf16>
    %cst_168 = arith.constant dense<0.000000e+00> : vector<8x32xf32>
    %425 = tpu.matmul %424, %422, %cst_168 {dimension_numbers = #tpu.dot_dimension_numbers<[1], [0], [0], [1], [0, 0, 1, 1], [], []>} : vector<8x32xbf16>, vector<32x32xbf16>, vector<8x32xf32> -> vector<8x32xf32>
    %426 = vector.broadcast %423 : vector<1x32xf32> to vector<8x32xf32>
    %427 = arith.addf %425, %426 : vector<8x32xf32>
    %c9 = arith.constant 9 : index
    %c0_169 = arith.constant 0 : index
    %c0_170 = arith.constant 0 : index
    %428 = vector.load %arg5[%c9, %c0_169, %c0_170] : memref<24x32x32xbf16, #tpu.memory_space<vmem>>, vector<1x32x32xbf16>
    %429 = vector.shape_cast %428 : vector<1x32x32xbf16> to vector<32x32xbf16>
    %c9_171 = arith.constant 9 : index
    %c0_172 = arith.constant 0 : index
    %430 = vector.load %arg6[%c9_171, %c0_172] : memref<24x32xf32, #tpu.memory_space<vmem>>, vector<1x32xf32>
    %431 = arith.truncf %420 : vector<8x32xf32> to vector<8x32xbf16>
    %cst_173 = arith.constant dense<0.000000e+00> : vector<8x32xf32>
    %432 = tpu.matmul %431, %429, %cst_173 {dimension_numbers = #tpu.dot_dimension_numbers<[1], [0], [0], [1], [0, 0, 1, 1], [], []>} : vector<8x32xbf16>, vector<32x32xbf16>, vector<8x32xf32> -> vector<8x32xf32>
    %433 = vector.broadcast %430 : vector<1x32xf32> to vector<8x32xf32>
    %434 = arith.addf %432, %433 : vector<8x32xf32>
    %c10 = arith.constant 10 : index
    %c0_174 = arith.constant 0 : index
    %c0_175 = arith.constant 0 : index
    %435 = vector.load %arg5[%c10, %c0_174, %c0_175] : memref<24x32x32xbf16, #tpu.memory_space<vmem>>, vector<1x32x32xbf16>
    %436 = vector.shape_cast %435 : vector<1x32x32xbf16> to vector<32x32xbf16>
    %c10_176 = arith.constant 10 : index
    %c0_177 = arith.constant 0 : index
    %437 = vector.load %arg6[%c10_176, %c0_177] : memref<24x32xf32, #tpu.memory_space<vmem>>, vector<1x32xf32>
    %438 = arith.truncf %419 : vector<8x32xf32> to vector<8x32xbf16>
    %cst_178 = arith.constant dense<0.000000e+00> : vector<8x32xf32>
    %439 = tpu.matmul %438, %436, %cst_178 {dimension_numbers = #tpu.dot_dimension_numbers<[1], [0], [0], [1], [0, 0, 1, 1], [], []>} : vector<8x32xbf16>, vector<32x32xbf16>, vector<8x32xf32> -> vector<8x32xf32>
    %440 = vector.broadcast %437 : vector<1x32xf32> to vector<8x32xf32>
    %441 = arith.addf %439, %440 : vector<8x32xf32>
    %442 = arith.truncf %427 : vector<8x32xf32> to vector<8x32xbf16>
    %443 = arith.truncf %434 : vector<8x32xf32> to vector<8x32xbf16>
    %444 = arith.truncf %441 : vector<8x32xf32> to vector<8x32xbf16>
    %445 = vector.broadcast %16 : vector<1x32xbf16> to vector<8x32xbf16>
    %446 = arith.mulf %443, %445 : vector<8x32xbf16>
    %447 = vector.broadcast %16 : vector<1x32xbf16> to vector<8x32xbf16>
    %448 = arith.mulf %444, %447 : vector<8x32xbf16>
    %cst_179 = arith.constant dense<0.000000e+00> : vector<8x8xf32>
    %449 = tpu.matmul %442, %446, %cst_179 {dimension_numbers = #tpu.dot_dimension_numbers<[1], [1], [0], [0], [0, 0, 1, 0], [], []>} : vector<8x32xbf16>, vector<8x32xbf16>, vector<8x8xf32> -> vector<8x8xf32>
    %cst_180 = arith.constant 0.353553385 : f32
    %450 = vector.broadcast %cst_180 : f32 to vector<8x8xf32>
    %451 = arith.mulf %449, %450 : vector<8x8xf32>
    %cst_181 = arith.constant dense<0xFF800000> : vector<8xf32>
    %452 = vector.multi_reduction <maximumf>, %451, %cst_181 [1] : vector<8x8xf32> to vector<8xf32>
    %453 = vector.shape_cast %452 : vector<8xf32> to vector<8x1xf32>
    %454 = vector.broadcast %453 : vector<8x1xf32> to vector<8x8xf32>
    %455 = arith.subf %451, %454 : vector<8x8xf32>
    %456 = math.exp %455 : vector<8x8xf32>
    %cst_182 = arith.constant dense<0.000000e+00> : vector<8xf32>
    %457 = vector.multi_reduction <add>, %456, %cst_182 [1] : vector<8x8xf32> to vector<8xf32>
    %458 = vector.shape_cast %457 : vector<8xf32> to vector<8x1xf32>
    %459 = tpu.reciprocal %458 {approx = true} : vector<8x1xf32> -> vector<8x1xf32>
    %460 = vector.broadcast %459 : vector<8x1xf32> to vector<8x8xf32>
    %461 = arith.mulf %456, %460 : vector<8x8xf32>
    %462 = arith.truncf %461 : vector<8x8xf32> to vector<8x8xbf16>
    %cst_183 = arith.constant dense<0.000000e+00> : vector<8x32xf32>
    %463 = tpu.matmul %462, %448, %cst_183 {dimension_numbers = #tpu.dot_dimension_numbers<[1], [0], [0], [1], [0, 0, 1, 1], [], []>} : vector<8x8xbf16>, vector<8x32xbf16>, vector<8x32xf32> -> vector<8x32xf32>
    %464 = vector.broadcast %24 : vector<1x32xbf16> to vector<8x32xbf16>
    %465 = arith.mulf %443, %464 : vector<8x32xbf16>
    %466 = vector.broadcast %24 : vector<1x32xbf16> to vector<8x32xbf16>
    %467 = arith.mulf %444, %466 : vector<8x32xbf16>
    %cst_184 = arith.constant dense<0.000000e+00> : vector<8x8xf32>
    %468 = tpu.matmul %442, %465, %cst_184 {dimension_numbers = #tpu.dot_dimension_numbers<[1], [1], [0], [0], [0, 0, 1, 0], [], []>} : vector<8x32xbf16>, vector<8x32xbf16>, vector<8x8xf32> -> vector<8x8xf32>
    %cst_185 = arith.constant 0.353553385 : f32
    %469 = vector.broadcast %cst_185 : f32 to vector<8x8xf32>
    %470 = arith.mulf %468, %469 : vector<8x8xf32>
    %cst_186 = arith.constant dense<0xFF800000> : vector<8xf32>
    %471 = vector.multi_reduction <maximumf>, %470, %cst_186 [1] : vector<8x8xf32> to vector<8xf32>
    %472 = vector.shape_cast %471 : vector<8xf32> to vector<8x1xf32>
    %473 = vector.broadcast %472 : vector<8x1xf32> to vector<8x8xf32>
    %474 = arith.subf %470, %473 : vector<8x8xf32>
    %475 = math.exp %474 : vector<8x8xf32>
    %cst_187 = arith.constant dense<0.000000e+00> : vector<8xf32>
    %476 = vector.multi_reduction <add>, %475, %cst_187 [1] : vector<8x8xf32> to vector<8xf32>
    %477 = vector.shape_cast %476 : vector<8xf32> to vector<8x1xf32>
    %478 = tpu.reciprocal %477 {approx = true} : vector<8x1xf32> -> vector<8x1xf32>
    %479 = vector.broadcast %478 : vector<8x1xf32> to vector<8x8xf32>
    %480 = arith.mulf %475, %479 : vector<8x8xf32>
    %481 = arith.truncf %480 : vector<8x8xf32> to vector<8x8xbf16>
    %cst_188 = arith.constant dense<0.000000e+00> : vector<8x32xf32>
    %482 = tpu.matmul %481, %467, %cst_188 {dimension_numbers = #tpu.dot_dimension_numbers<[1], [0], [0], [1], [0, 0, 1, 1], [], []>} : vector<8x8xbf16>, vector<8x32xbf16>, vector<8x32xf32> -> vector<8x32xf32>
    %483 = arith.addf %463, %482 : vector<8x32xf32>
    %484 = vector.broadcast %32 : vector<1x32xbf16> to vector<8x32xbf16>
    %485 = arith.mulf %443, %484 : vector<8x32xbf16>
    %486 = vector.broadcast %32 : vector<1x32xbf16> to vector<8x32xbf16>
    %487 = arith.mulf %444, %486 : vector<8x32xbf16>
    %cst_189 = arith.constant dense<0.000000e+00> : vector<8x8xf32>
    %488 = tpu.matmul %442, %485, %cst_189 {dimension_numbers = #tpu.dot_dimension_numbers<[1], [1], [0], [0], [0, 0, 1, 0], [], []>} : vector<8x32xbf16>, vector<8x32xbf16>, vector<8x8xf32> -> vector<8x8xf32>
    %cst_190 = arith.constant 0.353553385 : f32
    %489 = vector.broadcast %cst_190 : f32 to vector<8x8xf32>
    %490 = arith.mulf %488, %489 : vector<8x8xf32>
    %cst_191 = arith.constant dense<0xFF800000> : vector<8xf32>
    %491 = vector.multi_reduction <maximumf>, %490, %cst_191 [1] : vector<8x8xf32> to vector<8xf32>
    %492 = vector.shape_cast %491 : vector<8xf32> to vector<8x1xf32>
    %493 = vector.broadcast %492 : vector<8x1xf32> to vector<8x8xf32>
    %494 = arith.subf %490, %493 : vector<8x8xf32>
    %495 = math.exp %494 : vector<8x8xf32>
    %cst_192 = arith.constant dense<0.000000e+00> : vector<8xf32>
    %496 = vector.multi_reduction <add>, %495, %cst_192 [1] : vector<8x8xf32> to vector<8xf32>
    %497 = vector.shape_cast %496 : vector<8xf32> to vector<8x1xf32>
    %498 = tpu.reciprocal %497 {approx = true} : vector<8x1xf32> -> vector<8x1xf32>
    %499 = vector.broadcast %498 : vector<8x1xf32> to vector<8x8xf32>
    %500 = arith.mulf %495, %499 : vector<8x8xf32>
    %501 = arith.truncf %500 : vector<8x8xf32> to vector<8x8xbf16>
    %cst_193 = arith.constant dense<0.000000e+00> : vector<8x32xf32>
    %502 = tpu.matmul %501, %487, %cst_193 {dimension_numbers = #tpu.dot_dimension_numbers<[1], [0], [0], [1], [0, 0, 1, 1], [], []>} : vector<8x8xbf16>, vector<8x32xbf16>, vector<8x32xf32> -> vector<8x32xf32>
    %503 = arith.addf %483, %502 : vector<8x32xf32>
    %504 = vector.broadcast %40 : vector<1x32xbf16> to vector<8x32xbf16>
    %505 = arith.mulf %443, %504 : vector<8x32xbf16>
    %506 = vector.broadcast %40 : vector<1x32xbf16> to vector<8x32xbf16>
    %507 = arith.mulf %444, %506 : vector<8x32xbf16>
    %cst_194 = arith.constant dense<0.000000e+00> : vector<8x8xf32>
    %508 = tpu.matmul %442, %505, %cst_194 {dimension_numbers = #tpu.dot_dimension_numbers<[1], [1], [0], [0], [0, 0, 1, 0], [], []>} : vector<8x32xbf16>, vector<8x32xbf16>, vector<8x8xf32> -> vector<8x8xf32>
    %cst_195 = arith.constant 0.353553385 : f32
    %509 = vector.broadcast %cst_195 : f32 to vector<8x8xf32>
    %510 = arith.mulf %508, %509 : vector<8x8xf32>
    %cst_196 = arith.constant dense<0xFF800000> : vector<8xf32>
    %511 = vector.multi_reduction <maximumf>, %510, %cst_196 [1] : vector<8x8xf32> to vector<8xf32>
    %512 = vector.shape_cast %511 : vector<8xf32> to vector<8x1xf32>
    %513 = vector.broadcast %512 : vector<8x1xf32> to vector<8x8xf32>
    %514 = arith.subf %510, %513 : vector<8x8xf32>
    %515 = math.exp %514 : vector<8x8xf32>
    %cst_197 = arith.constant dense<0.000000e+00> : vector<8xf32>
    %516 = vector.multi_reduction <add>, %515, %cst_197 [1] : vector<8x8xf32> to vector<8xf32>
    %517 = vector.shape_cast %516 : vector<8xf32> to vector<8x1xf32>
    %518 = tpu.reciprocal %517 {approx = true} : vector<8x1xf32> -> vector<8x1xf32>
    %519 = vector.broadcast %518 : vector<8x1xf32> to vector<8x8xf32>
    %520 = arith.mulf %515, %519 : vector<8x8xf32>
    %521 = arith.truncf %520 : vector<8x8xf32> to vector<8x8xbf16>
    %cst_198 = arith.constant dense<0.000000e+00> : vector<8x32xf32>
    %522 = tpu.matmul %521, %507, %cst_198 {dimension_numbers = #tpu.dot_dimension_numbers<[1], [0], [0], [1], [0, 0, 1, 1], [], []>} : vector<8x8xbf16>, vector<8x32xbf16>, vector<8x32xf32> -> vector<8x32xf32>
    %523 = arith.addf %503, %522 : vector<8x32xf32>
    %c11 = arith.constant 11 : index
    %c0_199 = arith.constant 0 : index
    %c0_200 = arith.constant 0 : index
    %524 = vector.load %arg5[%c11, %c0_199, %c0_200] : memref<24x32x32xbf16, #tpu.memory_space<vmem>>, vector<1x32x32xbf16>
    %525 = vector.shape_cast %524 : vector<1x32x32xbf16> to vector<32x32xbf16>
    %c11_201 = arith.constant 11 : index
    %c0_202 = arith.constant 0 : index
    %526 = vector.load %arg6[%c11_201, %c0_202] : memref<24x32xf32, #tpu.memory_space<vmem>>, vector<1x32xf32>
    %527 = arith.truncf %523 : vector<8x32xf32> to vector<8x32xbf16>
    %cst_203 = arith.constant dense<0.000000e+00> : vector<8x32xf32>
    %528 = tpu.matmul %527, %525, %cst_203 {dimension_numbers = #tpu.dot_dimension_numbers<[1], [0], [0], [1], [0, 0, 1, 1], [], []>} : vector<8x32xbf16>, vector<32x32xbf16>, vector<8x32xf32> -> vector<8x32xf32>
    %529 = vector.broadcast %526 : vector<1x32xf32> to vector<8x32xf32>
    %530 = arith.addf %528, %529 : vector<8x32xf32>
    %531 = arith.addf %419, %530 : vector<8x32xf32>
    %c4_204 = arith.constant 4 : index
    %c0_205 = arith.constant 0 : index
    %532 = vector.load %arg11[%c4_204, %c0_205] : memref<11x32xf32, #tpu.memory_space<vmem>>, vector<1x32xf32>
    %c4_206 = arith.constant 4 : index
    %c0_207 = arith.constant 0 : index
    %533 = vector.load %arg12[%c4_206, %c0_207] : memref<11x32xf32, #tpu.memory_space<vmem>>, vector<1x32xf32>
    %cst_208 = arith.constant dense<0.000000e+00> : vector<8xf32>
    %534 = vector.multi_reduction <add>, %531, %cst_208 [1] : vector<8x32xf32> to vector<8xf32>
    %535 = vector.shape_cast %534 : vector<8xf32> to vector<8x1xf32>
    %cst_209 = arith.constant 3.200000e+01 : f32
    %536 = vector.broadcast %cst_209 : f32 to vector<8x1xf32>
    %537 = arith.divf %535, %536 : vector<8x1xf32>
    %538 = arith.mulf %531, %531 : vector<8x32xf32>
    %cst_210 = arith.constant dense<0.000000e+00> : vector<8xf32>
    %539 = vector.multi_reduction <add>, %538, %cst_210 [1] : vector<8x32xf32> to vector<8xf32>
    %540 = vector.shape_cast %539 : vector<8xf32> to vector<8x1xf32>
    %cst_211 = arith.constant 3.200000e+01 : f32
    %541 = vector.broadcast %cst_211 : f32 to vector<8x1xf32>
    %542 = arith.divf %540, %541 : vector<8x1xf32>
    %543 = arith.mulf %537, %537 : vector<8x1xf32>
    %544 = arith.subf %542, %543 : vector<8x1xf32>
    %cst_212 = arith.constant 0.000000e+00 : f32
    %545 = vector.broadcast %cst_212 : f32 to vector<8x1xf32>
    %546 = arith.maximumf %544, %545 : vector<8x1xf32>
    %547 = vector.broadcast %537 : vector<8x1xf32> to vector<8x32xf32>
    %548 = arith.subf %531, %547 : vector<8x32xf32>
    %cst_213 = arith.constant 9.99999974E-6 : f32
    %549 = vector.broadcast %cst_213 : f32 to vector<8x1xf32>
    %550 = arith.addf %546, %549 : vector<8x1xf32>
    %551 = math.rsqrt %550 : vector<8x1xf32>
    %552 = vector.broadcast %551 : vector<8x1xf32> to vector<8x32xf32>
    %553 = arith.mulf %548, %552 : vector<8x32xf32>
    %554 = vector.broadcast %532 : vector<1x32xf32> to vector<8x32xf32>
    %555 = arith.mulf %553, %554 : vector<8x32xf32>
    %556 = vector.broadcast %533 : vector<1x32xf32> to vector<8x32xf32>
    %557 = arith.addf %555, %556 : vector<8x32xf32>
    %558 = arith.addf %557, %5 : vector<8x32xf32>
    %c12 = arith.constant 12 : index
    %c0_214 = arith.constant 0 : index
    %c0_215 = arith.constant 0 : index
    %559 = vector.load %arg5[%c12, %c0_214, %c0_215] : memref<24x32x32xbf16, #tpu.memory_space<vmem>>, vector<1x32x32xbf16>
    %560 = vector.shape_cast %559 : vector<1x32x32xbf16> to vector<32x32xbf16>
    %c12_216 = arith.constant 12 : index
    %c0_217 = arith.constant 0 : index
    %561 = vector.load %arg6[%c12_216, %c0_217] : memref<24x32xf32, #tpu.memory_space<vmem>>, vector<1x32xf32>
    %562 = arith.truncf %558 : vector<8x32xf32> to vector<8x32xbf16>
    %cst_218 = arith.constant dense<0.000000e+00> : vector<8x32xf32>
    %563 = tpu.matmul %562, %560, %cst_218 {dimension_numbers = #tpu.dot_dimension_numbers<[1], [0], [0], [1], [0, 0, 1, 1], [], []>} : vector<8x32xbf16>, vector<32x32xbf16>, vector<8x32xf32> -> vector<8x32xf32>
    %564 = vector.broadcast %561 : vector<1x32xf32> to vector<8x32xf32>
    %565 = arith.addf %563, %564 : vector<8x32xf32>
    %c13 = arith.constant 13 : index
    %c0_219 = arith.constant 0 : index
    %c0_220 = arith.constant 0 : index
    %566 = vector.load %arg5[%c13, %c0_219, %c0_220] : memref<24x32x32xbf16, #tpu.memory_space<vmem>>, vector<1x32x32xbf16>
    %567 = vector.shape_cast %566 : vector<1x32x32xbf16> to vector<32x32xbf16>
    %c13_221 = arith.constant 13 : index
    %c0_222 = arith.constant 0 : index
    %568 = vector.load %arg6[%c13_221, %c0_222] : memref<24x32xf32, #tpu.memory_space<vmem>>, vector<1x32xf32>
    %569 = arith.truncf %418 : vector<16x32xf32> to vector<16x32xbf16>
    %cst_223 = arith.constant dense<0.000000e+00> : vector<16x32xf32>
    %570 = tpu.matmul %569, %567, %cst_223 {dimension_numbers = #tpu.dot_dimension_numbers<[1], [0], [0], [1], [0, 0, 1, 1], [], []>} : vector<16x32xbf16>, vector<32x32xbf16>, vector<16x32xf32> -> vector<16x32xf32>
    %571 = vector.broadcast %568 : vector<1x32xf32> to vector<16x32xf32>
    %572 = arith.addf %570, %571 : vector<16x32xf32>
    %c14 = arith.constant 14 : index
    %c0_224 = arith.constant 0 : index
    %c0_225 = arith.constant 0 : index
    %573 = vector.load %arg5[%c14, %c0_224, %c0_225] : memref<24x32x32xbf16, #tpu.memory_space<vmem>>, vector<1x32x32xbf16>
    %574 = vector.shape_cast %573 : vector<1x32x32xbf16> to vector<32x32xbf16>
    %c14_226 = arith.constant 14 : index
    %c0_227 = arith.constant 0 : index
    %575 = vector.load %arg6[%c14_226, %c0_227] : memref<24x32xf32, #tpu.memory_space<vmem>>, vector<1x32xf32>
    %576 = arith.truncf %414 : vector<16x32xf32> to vector<16x32xbf16>
    %cst_228 = arith.constant dense<0.000000e+00> : vector<16x32xf32>
    %577 = tpu.matmul %576, %574, %cst_228 {dimension_numbers = #tpu.dot_dimension_numbers<[1], [0], [0], [1], [0, 0, 1, 1], [], []>} : vector<16x32xbf16>, vector<32x32xbf16>, vector<16x32xf32> -> vector<16x32xf32>
    %578 = vector.broadcast %575 : vector<1x32xf32> to vector<16x32xf32>
    %579 = arith.addf %577, %578 : vector<16x32xf32>
    %580 = arith.truncf %565 : vector<8x32xf32> to vector<8x32xbf16>
    %581 = arith.truncf %572 : vector<16x32xf32> to vector<16x32xbf16>
    %582 = arith.truncf %579 : vector<16x32xf32> to vector<16x32xbf16>
    %583 = vector.shape_cast %7 : vector<1x16xf32> to vector<1x16xf32>
    %584 = vector.broadcast %583 : vector<1x16xf32> to vector<8x16xf32>
    %585 = vector.broadcast %16 : vector<1x32xbf16> to vector<16x32xbf16>
    %586 = arith.mulf %581, %585 : vector<16x32xbf16>
    %587 = vector.broadcast %16 : vector<1x32xbf16> to vector<16x32xbf16>
    %588 = arith.mulf %582, %587 : vector<16x32xbf16>
    %cst_229 = arith.constant dense<0.000000e+00> : vector<8x16xf32>
    %589 = tpu.matmul %580, %586, %cst_229 {dimension_numbers = #tpu.dot_dimension_numbers<[1], [1], [0], [0], [0, 0, 1, 0], [], []>} : vector<8x32xbf16>, vector<16x32xbf16>, vector<8x16xf32> -> vector<8x16xf32>
    %cst_230 = arith.constant 0.353553385 : f32
    %590 = vector.broadcast %cst_230 : f32 to vector<8x16xf32>
    %591 = arith.mulf %589, %590 : vector<8x16xf32>
    %592 = arith.addf %591, %584 : vector<8x16xf32>
    %cst_231 = arith.constant dense<0xFF800000> : vector<8xf32>
    %593 = vector.multi_reduction <maximumf>, %592, %cst_231 [1] : vector<8x16xf32> to vector<8xf32>
    %594 = vector.shape_cast %593 : vector<8xf32> to vector<8x1xf32>
    %595 = vector.broadcast %594 : vector<8x1xf32> to vector<8x16xf32>
    %596 = arith.subf %592, %595 : vector<8x16xf32>
    %597 = math.exp %596 : vector<8x16xf32>
    %cst_232 = arith.constant dense<0.000000e+00> : vector<8xf32>
    %598 = vector.multi_reduction <add>, %597, %cst_232 [1] : vector<8x16xf32> to vector<8xf32>
    %599 = vector.shape_cast %598 : vector<8xf32> to vector<8x1xf32>
    %600 = tpu.reciprocal %599 {approx = true} : vector<8x1xf32> -> vector<8x1xf32>
    %601 = vector.broadcast %600 : vector<8x1xf32> to vector<8x16xf32>
    %602 = arith.mulf %597, %601 : vector<8x16xf32>
    %603 = arith.truncf %602 : vector<8x16xf32> to vector<8x16xbf16>
    %cst_233 = arith.constant dense<0.000000e+00> : vector<8x32xf32>
    %604 = tpu.matmul %603, %588, %cst_233 {dimension_numbers = #tpu.dot_dimension_numbers<[1], [0], [0], [1], [0, 0, 1, 1], [], []>} : vector<8x16xbf16>, vector<16x32xbf16>, vector<8x32xf32> -> vector<8x32xf32>
    %605 = vector.broadcast %24 : vector<1x32xbf16> to vector<16x32xbf16>
    %606 = arith.mulf %581, %605 : vector<16x32xbf16>
    %607 = vector.broadcast %24 : vector<1x32xbf16> to vector<16x32xbf16>
    %608 = arith.mulf %582, %607 : vector<16x32xbf16>
    %cst_234 = arith.constant dense<0.000000e+00> : vector<8x16xf32>
    %609 = tpu.matmul %580, %606, %cst_234 {dimension_numbers = #tpu.dot_dimension_numbers<[1], [1], [0], [0], [0, 0, 1, 0], [], []>} : vector<8x32xbf16>, vector<16x32xbf16>, vector<8x16xf32> -> vector<8x16xf32>
    %cst_235 = arith.constant 0.353553385 : f32
    %610 = vector.broadcast %cst_235 : f32 to vector<8x16xf32>
    %611 = arith.mulf %609, %610 : vector<8x16xf32>
    %612 = arith.addf %611, %584 : vector<8x16xf32>
    %cst_236 = arith.constant dense<0xFF800000> : vector<8xf32>
    %613 = vector.multi_reduction <maximumf>, %612, %cst_236 [1] : vector<8x16xf32> to vector<8xf32>
    %614 = vector.shape_cast %613 : vector<8xf32> to vector<8x1xf32>
    %615 = vector.broadcast %614 : vector<8x1xf32> to vector<8x16xf32>
    %616 = arith.subf %612, %615 : vector<8x16xf32>
    %617 = math.exp %616 : vector<8x16xf32>
    %cst_237 = arith.constant dense<0.000000e+00> : vector<8xf32>
    %618 = vector.multi_reduction <add>, %617, %cst_237 [1] : vector<8x16xf32> to vector<8xf32>
    %619 = vector.shape_cast %618 : vector<8xf32> to vector<8x1xf32>
    %620 = tpu.reciprocal %619 {approx = true} : vector<8x1xf32> -> vector<8x1xf32>
    %621 = vector.broadcast %620 : vector<8x1xf32> to vector<8x16xf32>
    %622 = arith.mulf %617, %621 : vector<8x16xf32>
    %623 = arith.truncf %622 : vector<8x16xf32> to vector<8x16xbf16>
    %cst_238 = arith.constant dense<0.000000e+00> : vector<8x32xf32>
    %624 = tpu.matmul %623, %608, %cst_238 {dimension_numbers = #tpu.dot_dimension_numbers<[1], [0], [0], [1], [0, 0, 1, 1], [], []>} : vector<8x16xbf16>, vector<16x32xbf16>, vector<8x32xf32> -> vector<8x32xf32>
    %625 = arith.addf %604, %624 : vector<8x32xf32>
    %626 = vector.broadcast %32 : vector<1x32xbf16> to vector<16x32xbf16>
    %627 = arith.mulf %581, %626 : vector<16x32xbf16>
    %628 = vector.broadcast %32 : vector<1x32xbf16> to vector<16x32xbf16>
    %629 = arith.mulf %582, %628 : vector<16x32xbf16>
    %cst_239 = arith.constant dense<0.000000e+00> : vector<8x16xf32>
    %630 = tpu.matmul %580, %627, %cst_239 {dimension_numbers = #tpu.dot_dimension_numbers<[1], [1], [0], [0], [0, 0, 1, 0], [], []>} : vector<8x32xbf16>, vector<16x32xbf16>, vector<8x16xf32> -> vector<8x16xf32>
    %cst_240 = arith.constant 0.353553385 : f32
    %631 = vector.broadcast %cst_240 : f32 to vector<8x16xf32>
    %632 = arith.mulf %630, %631 : vector<8x16xf32>
    %633 = arith.addf %632, %584 : vector<8x16xf32>
    %cst_241 = arith.constant dense<0xFF800000> : vector<8xf32>
    %634 = vector.multi_reduction <maximumf>, %633, %cst_241 [1] : vector<8x16xf32> to vector<8xf32>
    %635 = vector.shape_cast %634 : vector<8xf32> to vector<8x1xf32>
    %636 = vector.broadcast %635 : vector<8x1xf32> to vector<8x16xf32>
    %637 = arith.subf %633, %636 : vector<8x16xf32>
    %638 = math.exp %637 : vector<8x16xf32>
    %cst_242 = arith.constant dense<0.000000e+00> : vector<8xf32>
    %639 = vector.multi_reduction <add>, %638, %cst_242 [1] : vector<8x16xf32> to vector<8xf32>
    %640 = vector.shape_cast %639 : vector<8xf32> to vector<8x1xf32>
    %641 = tpu.reciprocal %640 {approx = true} : vector<8x1xf32> -> vector<8x1xf32>
    %642 = vector.broadcast %641 : vector<8x1xf32> to vector<8x16xf32>
    %643 = arith.mulf %638, %642 : vector<8x16xf32>
    %644 = arith.truncf %643 : vector<8x16xf32> to vector<8x16xbf16>
    %cst_243 = arith.constant dense<0.000000e+00> : vector<8x32xf32>
    %645 = tpu.matmul %644, %629, %cst_243 {dimension_numbers = #tpu.dot_dimension_numbers<[1], [0], [0], [1], [0, 0, 1, 1], [], []>} : vector<8x16xbf16>, vector<16x32xbf16>, vector<8x32xf32> -> vector<8x32xf32>
    %646 = arith.addf %625, %645 : vector<8x32xf32>
    %647 = vector.broadcast %40 : vector<1x32xbf16> to vector<16x32xbf16>
    %648 = arith.mulf %581, %647 : vector<16x32xbf16>
    %649 = vector.broadcast %40 : vector<1x32xbf16> to vector<16x32xbf16>
    %650 = arith.mulf %582, %649 : vector<16x32xbf16>
    %cst_244 = arith.constant dense<0.000000e+00> : vector<8x16xf32>
    %651 = tpu.matmul %580, %648, %cst_244 {dimension_numbers = #tpu.dot_dimension_numbers<[1], [1], [0], [0], [0, 0, 1, 0], [], []>} : vector<8x32xbf16>, vector<16x32xbf16>, vector<8x16xf32> -> vector<8x16xf32>
    %cst_245 = arith.constant 0.353553385 : f32
    %652 = vector.broadcast %cst_245 : f32 to vector<8x16xf32>
    %653 = arith.mulf %651, %652 : vector<8x16xf32>
    %654 = arith.addf %653, %584 : vector<8x16xf32>
    %cst_246 = arith.constant dense<0xFF800000> : vector<8xf32>
    %655 = vector.multi_reduction <maximumf>, %654, %cst_246 [1] : vector<8x16xf32> to vector<8xf32>
    %656 = vector.shape_cast %655 : vector<8xf32> to vector<8x1xf32>
    %657 = vector.broadcast %656 : vector<8x1xf32> to vector<8x16xf32>
    %658 = arith.subf %654, %657 : vector<8x16xf32>
    %659 = math.exp %658 : vector<8x16xf32>
    %cst_247 = arith.constant dense<0.000000e+00> : vector<8xf32>
    %660 = vector.multi_reduction <add>, %659, %cst_247 [1] : vector<8x16xf32> to vector<8xf32>
    %661 = vector.shape_cast %660 : vector<8xf32> to vector<8x1xf32>
    %662 = tpu.reciprocal %661 {approx = true} : vector<8x1xf32> -> vector<8x1xf32>
    %663 = vector.broadcast %662 : vector<8x1xf32> to vector<8x16xf32>
    %664 = arith.mulf %659, %663 : vector<8x16xf32>
    %665 = arith.truncf %664 : vector<8x16xf32> to vector<8x16xbf16>
    %cst_248 = arith.constant dense<0.000000e+00> : vector<8x32xf32>
    %666 = tpu.matmul %665, %650, %cst_248 {dimension_numbers = #tpu.dot_dimension_numbers<[1], [0], [0], [1], [0, 0, 1, 1], [], []>} : vector<8x16xbf16>, vector<16x32xbf16>, vector<8x32xf32> -> vector<8x32xf32>
    %667 = arith.addf %646, %666 : vector<8x32xf32>
    %c15 = arith.constant 15 : index
    %c0_249 = arith.constant 0 : index
    %c0_250 = arith.constant 0 : index
    %668 = vector.load %arg5[%c15, %c0_249, %c0_250] : memref<24x32x32xbf16, #tpu.memory_space<vmem>>, vector<1x32x32xbf16>
    %669 = vector.shape_cast %668 : vector<1x32x32xbf16> to vector<32x32xbf16>
    %c15_251 = arith.constant 15 : index
    %c0_252 = arith.constant 0 : index
    %670 = vector.load %arg6[%c15_251, %c0_252] : memref<24x32xf32, #tpu.memory_space<vmem>>, vector<1x32xf32>
    %671 = arith.truncf %667 : vector<8x32xf32> to vector<8x32xbf16>
    %cst_253 = arith.constant dense<0.000000e+00> : vector<8x32xf32>
    %672 = tpu.matmul %671, %669, %cst_253 {dimension_numbers = #tpu.dot_dimension_numbers<[1], [0], [0], [1], [0, 0, 1, 1], [], []>} : vector<8x32xbf16>, vector<32x32xbf16>, vector<8x32xf32> -> vector<8x32xf32>
    %673 = vector.broadcast %670 : vector<1x32xf32> to vector<8x32xf32>
    %674 = arith.addf %672, %673 : vector<8x32xf32>
    %675 = arith.addf %557, %674 : vector<8x32xf32>
    %c5_254 = arith.constant 5 : index
    %c0_255 = arith.constant 0 : index
    %676 = vector.load %arg11[%c5_254, %c0_255] : memref<11x32xf32, #tpu.memory_space<vmem>>, vector<1x32xf32>
    %c5_256 = arith.constant 5 : index
    %c0_257 = arith.constant 0 : index
    %677 = vector.load %arg12[%c5_256, %c0_257] : memref<11x32xf32, #tpu.memory_space<vmem>>, vector<1x32xf32>
    %cst_258 = arith.constant dense<0.000000e+00> : vector<8xf32>
    %678 = vector.multi_reduction <add>, %675, %cst_258 [1] : vector<8x32xf32> to vector<8xf32>
    %679 = vector.shape_cast %678 : vector<8xf32> to vector<8x1xf32>
    %cst_259 = arith.constant 3.200000e+01 : f32
    %680 = vector.broadcast %cst_259 : f32 to vector<8x1xf32>
    %681 = arith.divf %679, %680 : vector<8x1xf32>
    %682 = arith.mulf %675, %675 : vector<8x32xf32>
    %cst_260 = arith.constant dense<0.000000e+00> : vector<8xf32>
    %683 = vector.multi_reduction <add>, %682, %cst_260 [1] : vector<8x32xf32> to vector<8xf32>
    %684 = vector.shape_cast %683 : vector<8xf32> to vector<8x1xf32>
    %cst_261 = arith.constant 3.200000e+01 : f32
    %685 = vector.broadcast %cst_261 : f32 to vector<8x1xf32>
    %686 = arith.divf %684, %685 : vector<8x1xf32>
    %687 = arith.mulf %681, %681 : vector<8x1xf32>
    %688 = arith.subf %686, %687 : vector<8x1xf32>
    %cst_262 = arith.constant 0.000000e+00 : f32
    %689 = vector.broadcast %cst_262 : f32 to vector<8x1xf32>
    %690 = arith.maximumf %688, %689 : vector<8x1xf32>
    %691 = vector.broadcast %681 : vector<8x1xf32> to vector<8x32xf32>
    %692 = arith.subf %675, %691 : vector<8x32xf32>
    %cst_263 = arith.constant 9.99999974E-6 : f32
    %693 = vector.broadcast %cst_263 : f32 to vector<8x1xf32>
    %694 = arith.addf %690, %693 : vector<8x1xf32>
    %695 = math.rsqrt %694 : vector<8x1xf32>
    %696 = vector.broadcast %695 : vector<8x1xf32> to vector<8x32xf32>
    %697 = arith.mulf %692, %696 : vector<8x32xf32>
    %698 = vector.broadcast %676 : vector<1x32xf32> to vector<8x32xf32>
    %699 = arith.mulf %697, %698 : vector<8x32xf32>
    %700 = vector.broadcast %677 : vector<1x32xf32> to vector<8x32xf32>
    %701 = arith.addf %699, %700 : vector<8x32xf32>
    %c2_264 = arith.constant 2 : index
    %c0_265 = arith.constant 0 : index
    %c0_266 = arith.constant 0 : index
    %702 = vector.load %arg7[%c2_264, %c0_265, %c0_266] : memref<4x32x64xbf16, #tpu.memory_space<vmem>>, vector<1x32x64xbf16>
    %703 = vector.shape_cast %702 : vector<1x32x64xbf16> to vector<32x64xbf16>
    %c2_267 = arith.constant 2 : index
    %c0_268 = arith.constant 0 : index
    %704 = vector.load %arg8[%c2_267, %c0_268] : memref<4x64xf32, #tpu.memory_space<vmem>>, vector<1x64xf32>
    %705 = arith.truncf %701 : vector<8x32xf32> to vector<8x32xbf16>
    %cst_269 = arith.constant dense<0.000000e+00> : vector<8x64xf32>
    %706 = tpu.matmul %705, %703, %cst_269 {dimension_numbers = #tpu.dot_dimension_numbers<[1], [0], [0], [1], [0, 0, 1, 1], [], []>} : vector<8x32xbf16>, vector<32x64xbf16>, vector<8x64xf32> -> vector<8x64xf32>
    %707 = vector.broadcast %704 : vector<1x64xf32> to vector<8x64xf32>
    %708 = arith.addf %706, %707 : vector<8x64xf32>
    %cst_270 = arith.constant 0.000000e+00 : f32
    %709 = vector.broadcast %cst_270 : f32 to vector<8x64xf32>
    %710 = arith.maximumf %708, %709 : vector<8x64xf32>
    %c2_271 = arith.constant 2 : index
    %c0_272 = arith.constant 0 : index
    %c0_273 = arith.constant 0 : index
    %711 = vector.load %arg9[%c2_271, %c0_272, %c0_273] : memref<4x64x32xbf16, #tpu.memory_space<vmem>>, vector<1x64x32xbf16>
    %712 = vector.shape_cast %711 : vector<1x64x32xbf16> to vector<64x32xbf16>
    %c2_274 = arith.constant 2 : index
    %c0_275 = arith.constant 0 : index
    %713 = vector.load %arg10[%c2_274, %c0_275] : memref<4x32xf32, #tpu.memory_space<vmem>>, vector<1x32xf32>
    %714 = arith.truncf %710 : vector<8x64xf32> to vector<8x64xbf16>
    %cst_276 = arith.constant dense<0.000000e+00> : vector<8x32xf32>
    %715 = tpu.matmul %714, %712, %cst_276 {dimension_numbers = #tpu.dot_dimension_numbers<[1], [0], [0], [1], [0, 0, 1, 1], [], []>} : vector<8x64xbf16>, vector<64x32xbf16>, vector<8x32xf32> -> vector<8x32xf32>
    %716 = vector.broadcast %713 : vector<1x32xf32> to vector<8x32xf32>
    %717 = arith.addf %715, %716 : vector<8x32xf32>
    %718 = arith.addf %701, %717 : vector<8x32xf32>
    %c6_277 = arith.constant 6 : index
    %c0_278 = arith.constant 0 : index
    %719 = vector.load %arg11[%c6_277, %c0_278] : memref<11x32xf32, #tpu.memory_space<vmem>>, vector<1x32xf32>
    %c6_279 = arith.constant 6 : index
    %c0_280 = arith.constant 0 : index
    %720 = vector.load %arg12[%c6_279, %c0_280] : memref<11x32xf32, #tpu.memory_space<vmem>>, vector<1x32xf32>
    %cst_281 = arith.constant dense<0.000000e+00> : vector<8xf32>
    %721 = vector.multi_reduction <add>, %718, %cst_281 [1] : vector<8x32xf32> to vector<8xf32>
    %722 = vector.shape_cast %721 : vector<8xf32> to vector<8x1xf32>
    %cst_282 = arith.constant 3.200000e+01 : f32
    %723 = vector.broadcast %cst_282 : f32 to vector<8x1xf32>
    %724 = arith.divf %722, %723 : vector<8x1xf32>
    %725 = arith.mulf %718, %718 : vector<8x32xf32>
    %cst_283 = arith.constant dense<0.000000e+00> : vector<8xf32>
    %726 = vector.multi_reduction <add>, %725, %cst_283 [1] : vector<8x32xf32> to vector<8xf32>
    %727 = vector.shape_cast %726 : vector<8xf32> to vector<8x1xf32>
    %cst_284 = arith.constant 3.200000e+01 : f32
    %728 = vector.broadcast %cst_284 : f32 to vector<8x1xf32>
    %729 = arith.divf %727, %728 : vector<8x1xf32>
    %730 = arith.mulf %724, %724 : vector<8x1xf32>
    %731 = arith.subf %729, %730 : vector<8x1xf32>
    %cst_285 = arith.constant 0.000000e+00 : f32
    %732 = vector.broadcast %cst_285 : f32 to vector<8x1xf32>
    %733 = arith.maximumf %731, %732 : vector<8x1xf32>
    %734 = vector.broadcast %724 : vector<8x1xf32> to vector<8x32xf32>
    %735 = arith.subf %718, %734 : vector<8x32xf32>
    %cst_286 = arith.constant 9.99999974E-6 : f32
    %736 = vector.broadcast %cst_286 : f32 to vector<8x1xf32>
    %737 = arith.addf %733, %736 : vector<8x1xf32>
    %738 = math.rsqrt %737 : vector<8x1xf32>
    %739 = vector.broadcast %738 : vector<8x1xf32> to vector<8x32xf32>
    %740 = arith.mulf %735, %739 : vector<8x32xf32>
    %741 = vector.broadcast %719 : vector<1x32xf32> to vector<8x32xf32>
    %742 = arith.mulf %740, %741 : vector<8x32xf32>
    %743 = vector.broadcast %720 : vector<1x32xf32> to vector<8x32xf32>
    %744 = arith.addf %742, %743 : vector<8x32xf32>
    %745 = arith.addf %744, %5 : vector<8x32xf32>
    %c16 = arith.constant 16 : index
    %c0_287 = arith.constant 0 : index
    %c0_288 = arith.constant 0 : index
    %746 = vector.load %arg5[%c16, %c0_287, %c0_288] : memref<24x32x32xbf16, #tpu.memory_space<vmem>>, vector<1x32x32xbf16>
    %747 = vector.shape_cast %746 : vector<1x32x32xbf16> to vector<32x32xbf16>
    %c16_289 = arith.constant 16 : index
    %c0_290 = arith.constant 0 : index
    %748 = vector.load %arg6[%c16_289, %c0_290] : memref<24x32xf32, #tpu.memory_space<vmem>>, vector<1x32xf32>
    %749 = arith.truncf %745 : vector<8x32xf32> to vector<8x32xbf16>
    %cst_291 = arith.constant dense<0.000000e+00> : vector<8x32xf32>
    %750 = tpu.matmul %749, %747, %cst_291 {dimension_numbers = #tpu.dot_dimension_numbers<[1], [0], [0], [1], [0, 0, 1, 1], [], []>} : vector<8x32xbf16>, vector<32x32xbf16>, vector<8x32xf32> -> vector<8x32xf32>
    %751 = vector.broadcast %748 : vector<1x32xf32> to vector<8x32xf32>
    %752 = arith.addf %750, %751 : vector<8x32xf32>
    %c17 = arith.constant 17 : index
    %c0_292 = arith.constant 0 : index
    %c0_293 = arith.constant 0 : index
    %753 = vector.load %arg5[%c17, %c0_292, %c0_293] : memref<24x32x32xbf16, #tpu.memory_space<vmem>>, vector<1x32x32xbf16>
    %754 = vector.shape_cast %753 : vector<1x32x32xbf16> to vector<32x32xbf16>
    %c17_294 = arith.constant 17 : index
    %c0_295 = arith.constant 0 : index
    %755 = vector.load %arg6[%c17_294, %c0_295] : memref<24x32xf32, #tpu.memory_space<vmem>>, vector<1x32xf32>
    %756 = arith.truncf %745 : vector<8x32xf32> to vector<8x32xbf16>
    %cst_296 = arith.constant dense<0.000000e+00> : vector<8x32xf32>
    %757 = tpu.matmul %756, %754, %cst_296 {dimension_numbers = #tpu.dot_dimension_numbers<[1], [0], [0], [1], [0, 0, 1, 1], [], []>} : vector<8x32xbf16>, vector<32x32xbf16>, vector<8x32xf32> -> vector<8x32xf32>
    %758 = vector.broadcast %755 : vector<1x32xf32> to vector<8x32xf32>
    %759 = arith.addf %757, %758 : vector<8x32xf32>
    %c18 = arith.constant 18 : index
    %c0_297 = arith.constant 0 : index
    %c0_298 = arith.constant 0 : index
    %760 = vector.load %arg5[%c18, %c0_297, %c0_298] : memref<24x32x32xbf16, #tpu.memory_space<vmem>>, vector<1x32x32xbf16>
    %761 = vector.shape_cast %760 : vector<1x32x32xbf16> to vector<32x32xbf16>
    %c18_299 = arith.constant 18 : index
    %c0_300 = arith.constant 0 : index
    %762 = vector.load %arg6[%c18_299, %c0_300] : memref<24x32xf32, #tpu.memory_space<vmem>>, vector<1x32xf32>
    %763 = arith.truncf %744 : vector<8x32xf32> to vector<8x32xbf16>
    %cst_301 = arith.constant dense<0.000000e+00> : vector<8x32xf32>
    %764 = tpu.matmul %763, %761, %cst_301 {dimension_numbers = #tpu.dot_dimension_numbers<[1], [0], [0], [1], [0, 0, 1, 1], [], []>} : vector<8x32xbf16>, vector<32x32xbf16>, vector<8x32xf32> -> vector<8x32xf32>
    %765 = vector.broadcast %762 : vector<1x32xf32> to vector<8x32xf32>
    %766 = arith.addf %764, %765 : vector<8x32xf32>
    %767 = arith.truncf %752 : vector<8x32xf32> to vector<8x32xbf16>
    %768 = arith.truncf %759 : vector<8x32xf32> to vector<8x32xbf16>
    %769 = arith.truncf %766 : vector<8x32xf32> to vector<8x32xbf16>
    %770 = vector.broadcast %16 : vector<1x32xbf16> to vector<8x32xbf16>
    %771 = arith.mulf %768, %770 : vector<8x32xbf16>
    %772 = vector.broadcast %16 : vector<1x32xbf16> to vector<8x32xbf16>
    %773 = arith.mulf %769, %772 : vector<8x32xbf16>
    %cst_302 = arith.constant dense<0.000000e+00> : vector<8x8xf32>
    %774 = tpu.matmul %767, %771, %cst_302 {dimension_numbers = #tpu.dot_dimension_numbers<[1], [1], [0], [0], [0, 0, 1, 0], [], []>} : vector<8x32xbf16>, vector<8x32xbf16>, vector<8x8xf32> -> vector<8x8xf32>
    %cst_303 = arith.constant 0.353553385 : f32
    %775 = vector.broadcast %cst_303 : f32 to vector<8x8xf32>
    %776 = arith.mulf %774, %775 : vector<8x8xf32>
    %cst_304 = arith.constant dense<0xFF800000> : vector<8xf32>
    %777 = vector.multi_reduction <maximumf>, %776, %cst_304 [1] : vector<8x8xf32> to vector<8xf32>
    %778 = vector.shape_cast %777 : vector<8xf32> to vector<8x1xf32>
    %779 = vector.broadcast %778 : vector<8x1xf32> to vector<8x8xf32>
    %780 = arith.subf %776, %779 : vector<8x8xf32>
    %781 = math.exp %780 : vector<8x8xf32>
    %cst_305 = arith.constant dense<0.000000e+00> : vector<8xf32>
    %782 = vector.multi_reduction <add>, %781, %cst_305 [1] : vector<8x8xf32> to vector<8xf32>
    %783 = vector.shape_cast %782 : vector<8xf32> to vector<8x1xf32>
    %784 = tpu.reciprocal %783 {approx = true} : vector<8x1xf32> -> vector<8x1xf32>
    %785 = vector.broadcast %784 : vector<8x1xf32> to vector<8x8xf32>
    %786 = arith.mulf %781, %785 : vector<8x8xf32>
    %787 = arith.truncf %786 : vector<8x8xf32> to vector<8x8xbf16>
    %cst_306 = arith.constant dense<0.000000e+00> : vector<8x32xf32>
    %788 = tpu.matmul %787, %773, %cst_306 {dimension_numbers = #tpu.dot_dimension_numbers<[1], [0], [0], [1], [0, 0, 1, 1], [], []>} : vector<8x8xbf16>, vector<8x32xbf16>, vector<8x32xf32> -> vector<8x32xf32>
    %789 = vector.broadcast %24 : vector<1x32xbf16> to vector<8x32xbf16>
    %790 = arith.mulf %768, %789 : vector<8x32xbf16>
    %791 = vector.broadcast %24 : vector<1x32xbf16> to vector<8x32xbf16>
    %792 = arith.mulf %769, %791 : vector<8x32xbf16>
    %cst_307 = arith.constant dense<0.000000e+00> : vector<8x8xf32>
    %793 = tpu.matmul %767, %790, %cst_307 {dimension_numbers = #tpu.dot_dimension_numbers<[1], [1], [0], [0], [0, 0, 1, 0], [], []>} : vector<8x32xbf16>, vector<8x32xbf16>, vector<8x8xf32> -> vector<8x8xf32>
    %cst_308 = arith.constant 0.353553385 : f32
    %794 = vector.broadcast %cst_308 : f32 to vector<8x8xf32>
    %795 = arith.mulf %793, %794 : vector<8x8xf32>
    %cst_309 = arith.constant dense<0xFF800000> : vector<8xf32>
    %796 = vector.multi_reduction <maximumf>, %795, %cst_309 [1] : vector<8x8xf32> to vector<8xf32>
    %797 = vector.shape_cast %796 : vector<8xf32> to vector<8x1xf32>
    %798 = vector.broadcast %797 : vector<8x1xf32> to vector<8x8xf32>
    %799 = arith.subf %795, %798 : vector<8x8xf32>
    %800 = math.exp %799 : vector<8x8xf32>
    %cst_310 = arith.constant dense<0.000000e+00> : vector<8xf32>
    %801 = vector.multi_reduction <add>, %800, %cst_310 [1] : vector<8x8xf32> to vector<8xf32>
    %802 = vector.shape_cast %801 : vector<8xf32> to vector<8x1xf32>
    %803 = tpu.reciprocal %802 {approx = true} : vector<8x1xf32> -> vector<8x1xf32>
    %804 = vector.broadcast %803 : vector<8x1xf32> to vector<8x8xf32>
    %805 = arith.mulf %800, %804 : vector<8x8xf32>
    %806 = arith.truncf %805 : vector<8x8xf32> to vector<8x8xbf16>
    %cst_311 = arith.constant dense<0.000000e+00> : vector<8x32xf32>
    %807 = tpu.matmul %806, %792, %cst_311 {dimension_numbers = #tpu.dot_dimension_numbers<[1], [0], [0], [1], [0, 0, 1, 1], [], []>} : vector<8x8xbf16>, vector<8x32xbf16>, vector<8x32xf32> -> vector<8x32xf32>
    %808 = arith.addf %788, %807 : vector<8x32xf32>
    %809 = vector.broadcast %32 : vector<1x32xbf16> to vector<8x32xbf16>
    %810 = arith.mulf %768, %809 : vector<8x32xbf16>
    %811 = vector.broadcast %32 : vector<1x32xbf16> to vector<8x32xbf16>
    %812 = arith.mulf %769, %811 : vector<8x32xbf16>
    %cst_312 = arith.constant dense<0.000000e+00> : vector<8x8xf32>
    %813 = tpu.matmul %767, %810, %cst_312 {dimension_numbers = #tpu.dot_dimension_numbers<[1], [1], [0], [0], [0, 0, 1, 0], [], []>} : vector<8x32xbf16>, vector<8x32xbf16>, vector<8x8xf32> -> vector<8x8xf32>
    %cst_313 = arith.constant 0.353553385 : f32
    %814 = vector.broadcast %cst_313 : f32 to vector<8x8xf32>
    %815 = arith.mulf %813, %814 : vector<8x8xf32>
    %cst_314 = arith.constant dense<0xFF800000> : vector<8xf32>
    %816 = vector.multi_reduction <maximumf>, %815, %cst_314 [1] : vector<8x8xf32> to vector<8xf32>
    %817 = vector.shape_cast %816 : vector<8xf32> to vector<8x1xf32>
    %818 = vector.broadcast %817 : vector<8x1xf32> to vector<8x8xf32>
    %819 = arith.subf %815, %818 : vector<8x8xf32>
    %820 = math.exp %819 : vector<8x8xf32>
    %cst_315 = arith.constant dense<0.000000e+00> : vector<8xf32>
    %821 = vector.multi_reduction <add>, %820, %cst_315 [1] : vector<8x8xf32> to vector<8xf32>
    %822 = vector.shape_cast %821 : vector<8xf32> to vector<8x1xf32>
    %823 = tpu.reciprocal %822 {approx = true} : vector<8x1xf32> -> vector<8x1xf32>
    %824 = vector.broadcast %823 : vector<8x1xf32> to vector<8x8xf32>
    %825 = arith.mulf %820, %824 : vector<8x8xf32>
    %826 = arith.truncf %825 : vector<8x8xf32> to vector<8x8xbf16>
    %cst_316 = arith.constant dense<0.000000e+00> : vector<8x32xf32>
    %827 = tpu.matmul %826, %812, %cst_316 {dimension_numbers = #tpu.dot_dimension_numbers<[1], [0], [0], [1], [0, 0, 1, 1], [], []>} : vector<8x8xbf16>, vector<8x32xbf16>, vector<8x32xf32> -> vector<8x32xf32>
    %828 = arith.addf %808, %827 : vector<8x32xf32>
    %829 = vector.broadcast %40 : vector<1x32xbf16> to vector<8x32xbf16>
    %830 = arith.mulf %768, %829 : vector<8x32xbf16>
    %831 = vector.broadcast %40 : vector<1x32xbf16> to vector<8x32xbf16>
    %832 = arith.mulf %769, %831 : vector<8x32xbf16>
    %cst_317 = arith.constant dense<0.000000e+00> : vector<8x8xf32>
    %833 = tpu.matmul %767, %830, %cst_317 {dimension_numbers = #tpu.dot_dimension_numbers<[1], [1], [0], [0], [0, 0, 1, 0], [], []>} : vector<8x32xbf16>, vector<8x32xbf16>, vector<8x8xf32> -> vector<8x8xf32>
    %cst_318 = arith.constant 0.353553385 : f32
    %834 = vector.broadcast %cst_318 : f32 to vector<8x8xf32>
    %835 = arith.mulf %833, %834 : vector<8x8xf32>
    %cst_319 = arith.constant dense<0xFF800000> : vector<8xf32>
    %836 = vector.multi_reduction <maximumf>, %835, %cst_319 [1] : vector<8x8xf32> to vector<8xf32>
    %837 = vector.shape_cast %836 : vector<8xf32> to vector<8x1xf32>
    %838 = vector.broadcast %837 : vector<8x1xf32> to vector<8x8xf32>
    %839 = arith.subf %835, %838 : vector<8x8xf32>
    %840 = math.exp %839 : vector<8x8xf32>
    %cst_320 = arith.constant dense<0.000000e+00> : vector<8xf32>
    %841 = vector.multi_reduction <add>, %840, %cst_320 [1] : vector<8x8xf32> to vector<8xf32>
    %842 = vector.shape_cast %841 : vector<8xf32> to vector<8x1xf32>
    %843 = tpu.reciprocal %842 {approx = true} : vector<8x1xf32> -> vector<8x1xf32>
    %844 = vector.broadcast %843 : vector<8x1xf32> to vector<8x8xf32>
    %845 = arith.mulf %840, %844 : vector<8x8xf32>
    %846 = arith.truncf %845 : vector<8x8xf32> to vector<8x8xbf16>
    %cst_321 = arith.constant dense<0.000000e+00> : vector<8x32xf32>
    %847 = tpu.matmul %846, %832, %cst_321 {dimension_numbers = #tpu.dot_dimension_numbers<[1], [0], [0], [1], [0, 0, 1, 1], [], []>} : vector<8x8xbf16>, vector<8x32xbf16>, vector<8x32xf32> -> vector<8x32xf32>
    %848 = arith.addf %828, %847 : vector<8x32xf32>
    %c19 = arith.constant 19 : index
    %c0_322 = arith.constant 0 : index
    %c0_323 = arith.constant 0 : index
    %849 = vector.load %arg5[%c19, %c0_322, %c0_323] : memref<24x32x32xbf16, #tpu.memory_space<vmem>>, vector<1x32x32xbf16>
    %850 = vector.shape_cast %849 : vector<1x32x32xbf16> to vector<32x32xbf16>
    %c19_324 = arith.constant 19 : index
    %c0_325 = arith.constant 0 : index
    %851 = vector.load %arg6[%c19_324, %c0_325] : memref<24x32xf32, #tpu.memory_space<vmem>>, vector<1x32xf32>
    %852 = arith.truncf %848 : vector<8x32xf32> to vector<8x32xbf16>
    %cst_326 = arith.constant dense<0.000000e+00> : vector<8x32xf32>
    %853 = tpu.matmul %852, %850, %cst_326 {dimension_numbers = #tpu.dot_dimension_numbers<[1], [0], [0], [1], [0, 0, 1, 1], [], []>} : vector<8x32xbf16>, vector<32x32xbf16>, vector<8x32xf32> -> vector<8x32xf32>
    %854 = vector.broadcast %851 : vector<1x32xf32> to vector<8x32xf32>
    %855 = arith.addf %853, %854 : vector<8x32xf32>
    %856 = arith.addf %744, %855 : vector<8x32xf32>
    %c7_327 = arith.constant 7 : index
    %c0_328 = arith.constant 0 : index
    %857 = vector.load %arg11[%c7_327, %c0_328] : memref<11x32xf32, #tpu.memory_space<vmem>>, vector<1x32xf32>
    %c7_329 = arith.constant 7 : index
    %c0_330 = arith.constant 0 : index
    %858 = vector.load %arg12[%c7_329, %c0_330] : memref<11x32xf32, #tpu.memory_space<vmem>>, vector<1x32xf32>
    %cst_331 = arith.constant dense<0.000000e+00> : vector<8xf32>
    %859 = vector.multi_reduction <add>, %856, %cst_331 [1] : vector<8x32xf32> to vector<8xf32>
    %860 = vector.shape_cast %859 : vector<8xf32> to vector<8x1xf32>
    %cst_332 = arith.constant 3.200000e+01 : f32
    %861 = vector.broadcast %cst_332 : f32 to vector<8x1xf32>
    %862 = arith.divf %860, %861 : vector<8x1xf32>
    %863 = arith.mulf %856, %856 : vector<8x32xf32>
    %cst_333 = arith.constant dense<0.000000e+00> : vector<8xf32>
    %864 = vector.multi_reduction <add>, %863, %cst_333 [1] : vector<8x32xf32> to vector<8xf32>
    %865 = vector.shape_cast %864 : vector<8xf32> to vector<8x1xf32>
    %cst_334 = arith.constant 3.200000e+01 : f32
    %866 = vector.broadcast %cst_334 : f32 to vector<8x1xf32>
    %867 = arith.divf %865, %866 : vector<8x1xf32>
    %868 = arith.mulf %862, %862 : vector<8x1xf32>
    %869 = arith.subf %867, %868 : vector<8x1xf32>
    %cst_335 = arith.constant 0.000000e+00 : f32
    %870 = vector.broadcast %cst_335 : f32 to vector<8x1xf32>
    %871 = arith.maximumf %869, %870 : vector<8x1xf32>
    %872 = vector.broadcast %862 : vector<8x1xf32> to vector<8x32xf32>
    %873 = arith.subf %856, %872 : vector<8x32xf32>
    %cst_336 = arith.constant 9.99999974E-6 : f32
    %874 = vector.broadcast %cst_336 : f32 to vector<8x1xf32>
    %875 = arith.addf %871, %874 : vector<8x1xf32>
    %876 = math.rsqrt %875 : vector<8x1xf32>
    %877 = vector.broadcast %876 : vector<8x1xf32> to vector<8x32xf32>
    %878 = arith.mulf %873, %877 : vector<8x32xf32>
    %879 = vector.broadcast %857 : vector<1x32xf32> to vector<8x32xf32>
    %880 = arith.mulf %878, %879 : vector<8x32xf32>
    %881 = vector.broadcast %858 : vector<1x32xf32> to vector<8x32xf32>
    %882 = arith.addf %880, %881 : vector<8x32xf32>
    %883 = arith.addf %882, %5 : vector<8x32xf32>
    %c20 = arith.constant 20 : index
    %c0_337 = arith.constant 0 : index
    %c0_338 = arith.constant 0 : index
    %884 = vector.load %arg5[%c20, %c0_337, %c0_338] : memref<24x32x32xbf16, #tpu.memory_space<vmem>>, vector<1x32x32xbf16>
    %885 = vector.shape_cast %884 : vector<1x32x32xbf16> to vector<32x32xbf16>
    %c20_339 = arith.constant 20 : index
    %c0_340 = arith.constant 0 : index
    %886 = vector.load %arg6[%c20_339, %c0_340] : memref<24x32xf32, #tpu.memory_space<vmem>>, vector<1x32xf32>
    %887 = arith.truncf %883 : vector<8x32xf32> to vector<8x32xbf16>
    %cst_341 = arith.constant dense<0.000000e+00> : vector<8x32xf32>
    %888 = tpu.matmul %887, %885, %cst_341 {dimension_numbers = #tpu.dot_dimension_numbers<[1], [0], [0], [1], [0, 0, 1, 1], [], []>} : vector<8x32xbf16>, vector<32x32xbf16>, vector<8x32xf32> -> vector<8x32xf32>
    %889 = vector.broadcast %886 : vector<1x32xf32> to vector<8x32xf32>
    %890 = arith.addf %888, %889 : vector<8x32xf32>
    %c21 = arith.constant 21 : index
    %c0_342 = arith.constant 0 : index
    %c0_343 = arith.constant 0 : index
    %891 = vector.load %arg5[%c21, %c0_342, %c0_343] : memref<24x32x32xbf16, #tpu.memory_space<vmem>>, vector<1x32x32xbf16>
    %892 = vector.shape_cast %891 : vector<1x32x32xbf16> to vector<32x32xbf16>
    %c21_344 = arith.constant 21 : index
    %c0_345 = arith.constant 0 : index
    %893 = vector.load %arg6[%c21_344, %c0_345] : memref<24x32xf32, #tpu.memory_space<vmem>>, vector<1x32xf32>
    %894 = arith.truncf %418 : vector<16x32xf32> to vector<16x32xbf16>
    %cst_346 = arith.constant dense<0.000000e+00> : vector<16x32xf32>
    %895 = tpu.matmul %894, %892, %cst_346 {dimension_numbers = #tpu.dot_dimension_numbers<[1], [0], [0], [1], [0, 0, 1, 1], [], []>} : vector<16x32xbf16>, vector<32x32xbf16>, vector<16x32xf32> -> vector<16x32xf32>
    %896 = vector.broadcast %893 : vector<1x32xf32> to vector<16x32xf32>
    %897 = arith.addf %895, %896 : vector<16x32xf32>
    %c22 = arith.constant 22 : index
    %c0_347 = arith.constant 0 : index
    %c0_348 = arith.constant 0 : index
    %898 = vector.load %arg5[%c22, %c0_347, %c0_348] : memref<24x32x32xbf16, #tpu.memory_space<vmem>>, vector<1x32x32xbf16>
    %899 = vector.shape_cast %898 : vector<1x32x32xbf16> to vector<32x32xbf16>
    %c22_349 = arith.constant 22 : index
    %c0_350 = arith.constant 0 : index
    %900 = vector.load %arg6[%c22_349, %c0_350] : memref<24x32xf32, #tpu.memory_space<vmem>>, vector<1x32xf32>
    %901 = arith.truncf %414 : vector<16x32xf32> to vector<16x32xbf16>
    %cst_351 = arith.constant dense<0.000000e+00> : vector<16x32xf32>
    %902 = tpu.matmul %901, %899, %cst_351 {dimension_numbers = #tpu.dot_dimension_numbers<[1], [0], [0], [1], [0, 0, 1, 1], [], []>} : vector<16x32xbf16>, vector<32x32xbf16>, vector<16x32xf32> -> vector<16x32xf32>
    %903 = vector.broadcast %900 : vector<1x32xf32> to vector<16x32xf32>
    %904 = arith.addf %902, %903 : vector<16x32xf32>
    %905 = arith.truncf %890 : vector<8x32xf32> to vector<8x32xbf16>
    %906 = arith.truncf %897 : vector<16x32xf32> to vector<16x32xbf16>
    %907 = arith.truncf %904 : vector<16x32xf32> to vector<16x32xbf16>
    %908 = vector.shape_cast %7 : vector<1x16xf32> to vector<1x16xf32>
    %909 = vector.broadcast %908 : vector<1x16xf32> to vector<8x16xf32>
    %910 = vector.broadcast %16 : vector<1x32xbf16> to vector<16x32xbf16>
    %911 = arith.mulf %906, %910 : vector<16x32xbf16>
    %912 = vector.broadcast %16 : vector<1x32xbf16> to vector<16x32xbf16>
    %913 = arith.mulf %907, %912 : vector<16x32xbf16>
    %cst_352 = arith.constant dense<0.000000e+00> : vector<8x16xf32>
    %914 = tpu.matmul %905, %911, %cst_352 {dimension_numbers = #tpu.dot_dimension_numbers<[1], [1], [0], [0], [0, 0, 1, 0], [], []>} : vector<8x32xbf16>, vector<16x32xbf16>, vector<8x16xf32> -> vector<8x16xf32>
    %cst_353 = arith.constant 0.353553385 : f32
    %915 = vector.broadcast %cst_353 : f32 to vector<8x16xf32>
    %916 = arith.mulf %914, %915 : vector<8x16xf32>
    %917 = arith.addf %916, %909 : vector<8x16xf32>
    %cst_354 = arith.constant dense<0xFF800000> : vector<8xf32>
    %918 = vector.multi_reduction <maximumf>, %917, %cst_354 [1] : vector<8x16xf32> to vector<8xf32>
    %919 = vector.shape_cast %918 : vector<8xf32> to vector<8x1xf32>
    %920 = vector.broadcast %919 : vector<8x1xf32> to vector<8x16xf32>
    %921 = arith.subf %917, %920 : vector<8x16xf32>
    %922 = math.exp %921 : vector<8x16xf32>
    %cst_355 = arith.constant dense<0.000000e+00> : vector<8xf32>
    %923 = vector.multi_reduction <add>, %922, %cst_355 [1] : vector<8x16xf32> to vector<8xf32>
    %924 = vector.shape_cast %923 : vector<8xf32> to vector<8x1xf32>
    %925 = tpu.reciprocal %924 {approx = true} : vector<8x1xf32> -> vector<8x1xf32>
    %926 = vector.broadcast %925 : vector<8x1xf32> to vector<8x16xf32>
    %927 = arith.mulf %922, %926 : vector<8x16xf32>
    %928 = arith.truncf %927 : vector<8x16xf32> to vector<8x16xbf16>
    %cst_356 = arith.constant dense<0.000000e+00> : vector<8x32xf32>
    %929 = tpu.matmul %928, %913, %cst_356 {dimension_numbers = #tpu.dot_dimension_numbers<[1], [0], [0], [1], [0, 0, 1, 1], [], []>} : vector<8x16xbf16>, vector<16x32xbf16>, vector<8x32xf32> -> vector<8x32xf32>
    %930 = vector.broadcast %24 : vector<1x32xbf16> to vector<16x32xbf16>
    %931 = arith.mulf %906, %930 : vector<16x32xbf16>
    %932 = vector.broadcast %24 : vector<1x32xbf16> to vector<16x32xbf16>
    %933 = arith.mulf %907, %932 : vector<16x32xbf16>
    %cst_357 = arith.constant dense<0.000000e+00> : vector<8x16xf32>
    %934 = tpu.matmul %905, %931, %cst_357 {dimension_numbers = #tpu.dot_dimension_numbers<[1], [1], [0], [0], [0, 0, 1, 0], [], []>} : vector<8x32xbf16>, vector<16x32xbf16>, vector<8x16xf32> -> vector<8x16xf32>
    %cst_358 = arith.constant 0.353553385 : f32
    %935 = vector.broadcast %cst_358 : f32 to vector<8x16xf32>
    %936 = arith.mulf %934, %935 : vector<8x16xf32>
    %937 = arith.addf %936, %909 : vector<8x16xf32>
    %cst_359 = arith.constant dense<0xFF800000> : vector<8xf32>
    %938 = vector.multi_reduction <maximumf>, %937, %cst_359 [1] : vector<8x16xf32> to vector<8xf32>
    %939 = vector.shape_cast %938 : vector<8xf32> to vector<8x1xf32>
    %940 = vector.broadcast %939 : vector<8x1xf32> to vector<8x16xf32>
    %941 = arith.subf %937, %940 : vector<8x16xf32>
    %942 = math.exp %941 : vector<8x16xf32>
    %cst_360 = arith.constant dense<0.000000e+00> : vector<8xf32>
    %943 = vector.multi_reduction <add>, %942, %cst_360 [1] : vector<8x16xf32> to vector<8xf32>
    %944 = vector.shape_cast %943 : vector<8xf32> to vector<8x1xf32>
    %945 = tpu.reciprocal %944 {approx = true} : vector<8x1xf32> -> vector<8x1xf32>
    %946 = vector.broadcast %945 : vector<8x1xf32> to vector<8x16xf32>
    %947 = arith.mulf %942, %946 : vector<8x16xf32>
    %948 = arith.truncf %947 : vector<8x16xf32> to vector<8x16xbf16>
    %cst_361 = arith.constant dense<0.000000e+00> : vector<8x32xf32>
    %949 = tpu.matmul %948, %933, %cst_361 {dimension_numbers = #tpu.dot_dimension_numbers<[1], [0], [0], [1], [0, 0, 1, 1], [], []>} : vector<8x16xbf16>, vector<16x32xbf16>, vector<8x32xf32> -> vector<8x32xf32>
    %950 = arith.addf %929, %949 : vector<8x32xf32>
    %951 = vector.broadcast %32 : vector<1x32xbf16> to vector<16x32xbf16>
    %952 = arith.mulf %906, %951 : vector<16x32xbf16>
    %953 = vector.broadcast %32 : vector<1x32xbf16> to vector<16x32xbf16>
    %954 = arith.mulf %907, %953 : vector<16x32xbf16>
    %cst_362 = arith.constant dense<0.000000e+00> : vector<8x16xf32>
    %955 = tpu.matmul %905, %952, %cst_362 {dimension_numbers = #tpu.dot_dimension_numbers<[1], [1], [0], [0], [0, 0, 1, 0], [], []>} : vector<8x32xbf16>, vector<16x32xbf16>, vector<8x16xf32> -> vector<8x16xf32>
    %cst_363 = arith.constant 0.353553385 : f32
    %956 = vector.broadcast %cst_363 : f32 to vector<8x16xf32>
    %957 = arith.mulf %955, %956 : vector<8x16xf32>
    %958 = arith.addf %957, %909 : vector<8x16xf32>
    %cst_364 = arith.constant dense<0xFF800000> : vector<8xf32>
    %959 = vector.multi_reduction <maximumf>, %958, %cst_364 [1] : vector<8x16xf32> to vector<8xf32>
    %960 = vector.shape_cast %959 : vector<8xf32> to vector<8x1xf32>
    %961 = vector.broadcast %960 : vector<8x1xf32> to vector<8x16xf32>
    %962 = arith.subf %958, %961 : vector<8x16xf32>
    %963 = math.exp %962 : vector<8x16xf32>
    %cst_365 = arith.constant dense<0.000000e+00> : vector<8xf32>
    %964 = vector.multi_reduction <add>, %963, %cst_365 [1] : vector<8x16xf32> to vector<8xf32>
    %965 = vector.shape_cast %964 : vector<8xf32> to vector<8x1xf32>
    %966 = tpu.reciprocal %965 {approx = true} : vector<8x1xf32> -> vector<8x1xf32>
    %967 = vector.broadcast %966 : vector<8x1xf32> to vector<8x16xf32>
    %968 = arith.mulf %963, %967 : vector<8x16xf32>
    %969 = arith.truncf %968 : vector<8x16xf32> to vector<8x16xbf16>
    %cst_366 = arith.constant dense<0.000000e+00> : vector<8x32xf32>
    %970 = tpu.matmul %969, %954, %cst_366 {dimension_numbers = #tpu.dot_dimension_numbers<[1], [0], [0], [1], [0, 0, 1, 1], [], []>} : vector<8x16xbf16>, vector<16x32xbf16>, vector<8x32xf32> -> vector<8x32xf32>
    %971 = arith.addf %950, %970 : vector<8x32xf32>
    %972 = vector.broadcast %40 : vector<1x32xbf16> to vector<16x32xbf16>
    %973 = arith.mulf %906, %972 : vector<16x32xbf16>
    %974 = vector.broadcast %40 : vector<1x32xbf16> to vector<16x32xbf16>
    %975 = arith.mulf %907, %974 : vector<16x32xbf16>
    %cst_367 = arith.constant dense<0.000000e+00> : vector<8x16xf32>
    %976 = tpu.matmul %905, %973, %cst_367 {dimension_numbers = #tpu.dot_dimension_numbers<[1], [1], [0], [0], [0, 0, 1, 0], [], []>} : vector<8x32xbf16>, vector<16x32xbf16>, vector<8x16xf32> -> vector<8x16xf32>
    %cst_368 = arith.constant 0.353553385 : f32
    %977 = vector.broadcast %cst_368 : f32 to vector<8x16xf32>
    %978 = arith.mulf %976, %977 : vector<8x16xf32>
    %979 = arith.addf %978, %909 : vector<8x16xf32>
    %cst_369 = arith.constant dense<0xFF800000> : vector<8xf32>
    %980 = vector.multi_reduction <maximumf>, %979, %cst_369 [1] : vector<8x16xf32> to vector<8xf32>
    %981 = vector.shape_cast %980 : vector<8xf32> to vector<8x1xf32>
    %982 = vector.broadcast %981 : vector<8x1xf32> to vector<8x16xf32>
    %983 = arith.subf %979, %982 : vector<8x16xf32>
    %984 = math.exp %983 : vector<8x16xf32>
    %cst_370 = arith.constant dense<0.000000e+00> : vector<8xf32>
    %985 = vector.multi_reduction <add>, %984, %cst_370 [1] : vector<8x16xf32> to vector<8xf32>
    %986 = vector.shape_cast %985 : vector<8xf32> to vector<8x1xf32>
    %987 = tpu.reciprocal %986 {approx = true} : vector<8x1xf32> -> vector<8x1xf32>
    %988 = vector.broadcast %987 : vector<8x1xf32> to vector<8x16xf32>
    %989 = arith.mulf %984, %988 : vector<8x16xf32>
    %990 = arith.truncf %989 : vector<8x16xf32> to vector<8x16xbf16>
    %cst_371 = arith.constant dense<0.000000e+00> : vector<8x32xf32>
    %991 = tpu.matmul %990, %975, %cst_371 {dimension_numbers = #tpu.dot_dimension_numbers<[1], [0], [0], [1], [0, 0, 1, 1], [], []>} : vector<8x16xbf16>, vector<16x32xbf16>, vector<8x32xf32> -> vector<8x32xf32>
    %992 = arith.addf %971, %991 : vector<8x32xf32>
    %c23 = arith.constant 23 : index
    %c0_372 = arith.constant 0 : index
    %c0_373 = arith.constant 0 : index
    %993 = vector.load %arg5[%c23, %c0_372, %c0_373] : memref<24x32x32xbf16, #tpu.memory_space<vmem>>, vector<1x32x32xbf16>
    %994 = vector.shape_cast %993 : vector<1x32x32xbf16> to vector<32x32xbf16>
    %c23_374 = arith.constant 23 : index
    %c0_375 = arith.constant 0 : index
    %995 = vector.load %arg6[%c23_374, %c0_375] : memref<24x32xf32, #tpu.memory_space<vmem>>, vector<1x32xf32>
    %996 = arith.truncf %992 : vector<8x32xf32> to vector<8x32xbf16>
    %cst_376 = arith.constant dense<0.000000e+00> : vector<8x32xf32>
    %997 = tpu.matmul %996, %994, %cst_376 {dimension_numbers = #tpu.dot_dimension_numbers<[1], [0], [0], [1], [0, 0, 1, 1], [], []>} : vector<8x32xbf16>, vector<32x32xbf16>, vector<8x32xf32> -> vector<8x32xf32>
    %998 = vector.broadcast %995 : vector<1x32xf32> to vector<8x32xf32>
    %999 = arith.addf %997, %998 : vector<8x32xf32>
    %1000 = arith.addf %882, %999 : vector<8x32xf32>
    %c8_377 = arith.constant 8 : index
    %c0_378 = arith.constant 0 : index
    %1001 = vector.load %arg11[%c8_377, %c0_378] : memref<11x32xf32, #tpu.memory_space<vmem>>, vector<1x32xf32>
    %c8_379 = arith.constant 8 : index
    %c0_380 = arith.constant 0 : index
    %1002 = vector.load %arg12[%c8_379, %c0_380] : memref<11x32xf32, #tpu.memory_space<vmem>>, vector<1x32xf32>
    %cst_381 = arith.constant dense<0.000000e+00> : vector<8xf32>
    %1003 = vector.multi_reduction <add>, %1000, %cst_381 [1] : vector<8x32xf32> to vector<8xf32>
    %1004 = vector.shape_cast %1003 : vector<8xf32> to vector<8x1xf32>
    %cst_382 = arith.constant 3.200000e+01 : f32
    %1005 = vector.broadcast %cst_382 : f32 to vector<8x1xf32>
    %1006 = arith.divf %1004, %1005 : vector<8x1xf32>
    %1007 = arith.mulf %1000, %1000 : vector<8x32xf32>
    %cst_383 = arith.constant dense<0.000000e+00> : vector<8xf32>
    %1008 = vector.multi_reduction <add>, %1007, %cst_383 [1] : vector<8x32xf32> to vector<8xf32>
    %1009 = vector.shape_cast %1008 : vector<8xf32> to vector<8x1xf32>
    %cst_384 = arith.constant 3.200000e+01 : f32
    %1010 = vector.broadcast %cst_384 : f32 to vector<8x1xf32>
    %1011 = arith.divf %1009, %1010 : vector<8x1xf32>
    %1012 = arith.mulf %1006, %1006 : vector<8x1xf32>
    %1013 = arith.subf %1011, %1012 : vector<8x1xf32>
    %cst_385 = arith.constant 0.000000e+00 : f32
    %1014 = vector.broadcast %cst_385 : f32 to vector<8x1xf32>
    %1015 = arith.maximumf %1013, %1014 : vector<8x1xf32>
    %1016 = vector.broadcast %1006 : vector<8x1xf32> to vector<8x32xf32>
    %1017 = arith.subf %1000, %1016 : vector<8x32xf32>
    %cst_386 = arith.constant 9.99999974E-6 : f32
    %1018 = vector.broadcast %cst_386 : f32 to vector<8x1xf32>
    %1019 = arith.addf %1015, %1018 : vector<8x1xf32>
    %1020 = math.rsqrt %1019 : vector<8x1xf32>
    %1021 = vector.broadcast %1020 : vector<8x1xf32> to vector<8x32xf32>
    %1022 = arith.mulf %1017, %1021 : vector<8x32xf32>
    %1023 = vector.broadcast %1001 : vector<1x32xf32> to vector<8x32xf32>
    %1024 = arith.mulf %1022, %1023 : vector<8x32xf32>
    %1025 = vector.broadcast %1002 : vector<1x32xf32> to vector<8x32xf32>
    %1026 = arith.addf %1024, %1025 : vector<8x32xf32>
    %c3_387 = arith.constant 3 : index
    %c0_388 = arith.constant 0 : index
    %c0_389 = arith.constant 0 : index
    %1027 = vector.load %arg7[%c3_387, %c0_388, %c0_389] : memref<4x32x64xbf16, #tpu.memory_space<vmem>>, vector<1x32x64xbf16>
    %1028 = vector.shape_cast %1027 : vector<1x32x64xbf16> to vector<32x64xbf16>
    %c3_390 = arith.constant 3 : index
    %c0_391 = arith.constant 0 : index
    %1029 = vector.load %arg8[%c3_390, %c0_391] : memref<4x64xf32, #tpu.memory_space<vmem>>, vector<1x64xf32>
    %1030 = arith.truncf %1026 : vector<8x32xf32> to vector<8x32xbf16>
    %cst_392 = arith.constant dense<0.000000e+00> : vector<8x64xf32>
    %1031 = tpu.matmul %1030, %1028, %cst_392 {dimension_numbers = #tpu.dot_dimension_numbers<[1], [0], [0], [1], [0, 0, 1, 1], [], []>} : vector<8x32xbf16>, vector<32x64xbf16>, vector<8x64xf32> -> vector<8x64xf32>
    %1032 = vector.broadcast %1029 : vector<1x64xf32> to vector<8x64xf32>
    %1033 = arith.addf %1031, %1032 : vector<8x64xf32>
    %cst_393 = arith.constant 0.000000e+00 : f32
    %1034 = vector.broadcast %cst_393 : f32 to vector<8x64xf32>
    %1035 = arith.maximumf %1033, %1034 : vector<8x64xf32>
    %c3_394 = arith.constant 3 : index
    %c0_395 = arith.constant 0 : index
    %c0_396 = arith.constant 0 : index
    %1036 = vector.load %arg9[%c3_394, %c0_395, %c0_396] : memref<4x64x32xbf16, #tpu.memory_space<vmem>>, vector<1x64x32xbf16>
    %1037 = vector.shape_cast %1036 : vector<1x64x32xbf16> to vector<64x32xbf16>
    %c3_397 = arith.constant 3 : index
    %c0_398 = arith.constant 0 : index
    %1038 = vector.load %arg10[%c3_397, %c0_398] : memref<4x32xf32, #tpu.memory_space<vmem>>, vector<1x32xf32>
    %1039 = arith.truncf %1035 : vector<8x64xf32> to vector<8x64xbf16>
    %cst_399 = arith.constant dense<0.000000e+00> : vector<8x32xf32>
    %1040 = tpu.matmul %1039, %1037, %cst_399 {dimension_numbers = #tpu.dot_dimension_numbers<[1], [0], [0], [1], [0, 0, 1, 1], [], []>} : vector<8x64xbf16>, vector<64x32xbf16>, vector<8x32xf32> -> vector<8x32xf32>
    %1041 = vector.broadcast %1038 : vector<1x32xf32> to vector<8x32xf32>
    %1042 = arith.addf %1040, %1041 : vector<8x32xf32>
    %1043 = arith.addf %1026, %1042 : vector<8x32xf32>
    %c9_400 = arith.constant 9 : index
    %c0_401 = arith.constant 0 : index
    %1044 = vector.load %arg11[%c9_400, %c0_401] : memref<11x32xf32, #tpu.memory_space<vmem>>, vector<1x32xf32>
    %c9_402 = arith.constant 9 : index
    %c0_403 = arith.constant 0 : index
    %1045 = vector.load %arg12[%c9_402, %c0_403] : memref<11x32xf32, #tpu.memory_space<vmem>>, vector<1x32xf32>
    %cst_404 = arith.constant dense<0.000000e+00> : vector<8xf32>
    %1046 = vector.multi_reduction <add>, %1043, %cst_404 [1] : vector<8x32xf32> to vector<8xf32>
    %1047 = vector.shape_cast %1046 : vector<8xf32> to vector<8x1xf32>
    %cst_405 = arith.constant 3.200000e+01 : f32
    %1048 = vector.broadcast %cst_405 : f32 to vector<8x1xf32>
    %1049 = arith.divf %1047, %1048 : vector<8x1xf32>
    %1050 = arith.mulf %1043, %1043 : vector<8x32xf32>
    %cst_406 = arith.constant dense<0.000000e+00> : vector<8xf32>
    %1051 = vector.multi_reduction <add>, %1050, %cst_406 [1] : vector<8x32xf32> to vector<8xf32>
    %1052 = vector.shape_cast %1051 : vector<8xf32> to vector<8x1xf32>
    %cst_407 = arith.constant 3.200000e+01 : f32
    %1053 = vector.broadcast %cst_407 : f32 to vector<8x1xf32>
    %1054 = arith.divf %1052, %1053 : vector<8x1xf32>
    %1055 = arith.mulf %1049, %1049 : vector<8x1xf32>
    %1056 = arith.subf %1054, %1055 : vector<8x1xf32>
    %cst_408 = arith.constant 0.000000e+00 : f32
    %1057 = vector.broadcast %cst_408 : f32 to vector<8x1xf32>
    %1058 = arith.maximumf %1056, %1057 : vector<8x1xf32>
    %1059 = vector.broadcast %1049 : vector<8x1xf32> to vector<8x32xf32>
    %1060 = arith.subf %1043, %1059 : vector<8x32xf32>
    %cst_409 = arith.constant 9.99999974E-6 : f32
    %1061 = vector.broadcast %cst_409 : f32 to vector<8x1xf32>
    %1062 = arith.addf %1058, %1061 : vector<8x1xf32>
    %1063 = math.rsqrt %1062 : vector<8x1xf32>
    %1064 = vector.broadcast %1063 : vector<8x1xf32> to vector<8x32xf32>
    %1065 = arith.mulf %1060, %1064 : vector<8x32xf32>
    %1066 = vector.broadcast %1044 : vector<1x32xf32> to vector<8x32xf32>
    %1067 = arith.mulf %1065, %1066 : vector<8x32xf32>
    %1068 = vector.broadcast %1045 : vector<1x32xf32> to vector<8x32xf32>
    %1069 = arith.addf %1067, %1068 : vector<8x32xf32>
    %c10_410 = arith.constant 10 : index
    %c0_411 = arith.constant 0 : index
    %1070 = vector.load %arg11[%c10_410, %c0_411] : memref<11x32xf32, #tpu.memory_space<vmem>>, vector<1x32xf32>
    %c10_412 = arith.constant 10 : index
    %c0_413 = arith.constant 0 : index
    %1071 = vector.load %arg12[%c10_412, %c0_413] : memref<11x32xf32, #tpu.memory_space<vmem>>, vector<1x32xf32>
    %cst_414 = arith.constant dense<0.000000e+00> : vector<8xf32>
    %1072 = vector.multi_reduction <add>, %1069, %cst_414 [1] : vector<8x32xf32> to vector<8xf32>
    %1073 = vector.shape_cast %1072 : vector<8xf32> to vector<8x1xf32>
    %cst_415 = arith.constant 3.200000e+01 : f32
    %1074 = vector.broadcast %cst_415 : f32 to vector<8x1xf32>
    %1075 = arith.divf %1073, %1074 : vector<8x1xf32>
    %1076 = arith.mulf %1069, %1069 : vector<8x32xf32>
    %cst_416 = arith.constant dense<0.000000e+00> : vector<8xf32>
    %1077 = vector.multi_reduction <add>, %1076, %cst_416 [1] : vector<8x32xf32> to vector<8xf32>
    %1078 = vector.shape_cast %1077 : vector<8xf32> to vector<8x1xf32>
    %cst_417 = arith.constant 3.200000e+01 : f32
    %1079 = vector.broadcast %cst_417 : f32 to vector<8x1xf32>
    %1080 = arith.divf %1078, %1079 : vector<8x1xf32>
    %1081 = arith.mulf %1075, %1075 : vector<8x1xf32>
    %1082 = arith.subf %1080, %1081 : vector<8x1xf32>
    %cst_418 = arith.constant 0.000000e+00 : f32
    %1083 = vector.broadcast %cst_418 : f32 to vector<8x1xf32>
    %1084 = arith.maximumf %1082, %1083 : vector<8x1xf32>
    %1085 = vector.broadcast %1075 : vector<8x1xf32> to vector<8x32xf32>
    %1086 = arith.subf %1069, %1085 : vector<8x32xf32>
    %cst_419 = arith.constant 9.99999974E-6 : f32
    %1087 = vector.broadcast %cst_419 : f32 to vector<8x1xf32>
    %1088 = arith.addf %1084, %1087 : vector<8x1xf32>
    %1089 = math.rsqrt %1088 : vector<8x1xf32>
    %1090 = vector.broadcast %1089 : vector<8x1xf32> to vector<8x32xf32>
    %1091 = arith.mulf %1086, %1090 : vector<8x32xf32>
    %1092 = vector.broadcast %1070 : vector<1x32xf32> to vector<8x32xf32>
    %1093 = arith.mulf %1091, %1092 : vector<8x32xf32>
    %1094 = vector.broadcast %1071 : vector<1x32xf32> to vector<8x32xf32>
    %1095 = arith.addf %1093, %1094 : vector<8x32xf32>
    %c0_420 = arith.constant 0 : index
    %c0_421 = arith.constant 0 : index
    %c0_422 = arith.constant 0 : index
    %1096 = vector.load %arg14[%c0_420, %c0_421, %c0_422] : memref<1x8x32xf32, #tpu.memory_space<vmem>>, vector<1x8x32xf32>
    %1097 = vector.shape_cast %1096 : vector<1x8x32xf32> to vector<8x32xf32>
    %1098 = vector.shape_cast %1095 : vector<8x32xf32> to vector<1x8x32xf32>
    tpu.vector_store %arg14[%c0_420, %c0_421, %c0_422], %1098 {strides = array<i32>} : memref<1x8x32xf32, #tpu.memory_space<vmem>>, vector<1x8x32xf32>,
    return
  }
  func.func @transform_0(%arg0: i32) -> (i32, i32, i32) {
    %c0_i32 = arith.constant 0 : i32
    %c0_i32_0 = arith.constant 0 : i32
    %c0_i32_1 = arith.constant 0 : i32
    return %arg0, %c0_i32, %c0_i32_0 : i32, i32, i32
  }
  func.func @transform_1(%arg0: i32) -> (i32, i32, i32) {
    %c0_i32 = arith.constant 0 : i32
    %c0_i32_0 = arith.constant 0 : i32
    %c0_i32_1 = arith.constant 0 : i32
    return %arg0, %c0_i32, %c0_i32_0 : i32, i32, i32
  }
  func.func @transform_2(%arg0: i32) -> (i32, i32, i32) {
    %c0_i32 = arith.constant 0 : i32
    %c0_i32_0 = arith.constant 0 : i32
    %c0_i32_1 = arith.constant 0 : i32
    return %arg0, %c0_i32, %c0_i32_0 : i32, i32, i32
  }
  func.func @transform_3(%arg0: i32) -> (i32, i32, i32) {
    %c0_i32 = arith.constant 0 : i32
    %c0_i32_0 = arith.constant 0 : i32
    %c0_i32_1 = arith.constant 0 : i32
    return %arg0, %c0_i32, %c0_i32_0 : i32, i32, i32
  }
  func.func @transform_4(%arg0: i32) -> (i32, i32, i32) {
    %c0_i32 = arith.constant 0 : i32
    %c0_i32_0 = arith.constant 0 : i32
    %c0_i32_1 = arith.constant 0 : i32
    %c0_i32_2 = arith.constant 0 : i32
    return %c0_i32, %c0_i32_0, %c0_i32_1 : i32, i32, i32
  }
  func.func @transform_5(%arg0: i32) -> (i32, i32) {
    %c0_i32 = arith.constant 0 : i32
    %c0_i32_0 = arith.constant 0 : i32
    %c0_i32_1 = arith.constant 0 : i32
    return %c0_i32, %c0_i32_0 : i32, i32
  }
  func.func @transform_6(%arg0: i32) -> (i32, i32, i32) {
    %c0_i32 = arith.constant 0 : i32
    %c0_i32_0 = arith.constant 0 : i32
    %c0_i32_1 = arith.constant 0 : i32
    %c0_i32_2 = arith.constant 0 : i32
    return %c0_i32, %c0_i32_0, %c0_i32_1 : i32, i32, i32
  }
  func.func @transform_7(%arg0: i32) -> (i32, i32) {
    %c0_i32 = arith.constant 0 : i32
    %c0_i32_0 = arith.constant 0 : i32
    %c0_i32_1 = arith.constant 0 : i32
    return %c0_i32, %c0_i32_0 : i32, i32
  }
  func.func @transform_8(%arg0: i32) -> (i32, i32, i32) {
    %c0_i32 = arith.constant 0 : i32
    %c0_i32_0 = arith.constant 0 : i32
    %c0_i32_1 = arith.constant 0 : i32
    %c0_i32_2 = arith.constant 0 : i32
    return %c0_i32, %c0_i32_0, %c0_i32_1 : i32, i32, i32
  }
  func.func @transform_9(%arg0: i32) -> (i32, i32) {
    %c0_i32 = arith.constant 0 : i32
    %c0_i32_0 = arith.constant 0 : i32
    %c0_i32_1 = arith.constant 0 : i32
    return %c0_i32, %c0_i32_0 : i32, i32
  }
  func.func @transform_10(%arg0: i32) -> (i32, i32) {
    %c0_i32 = arith.constant 0 : i32
    %c0_i32_0 = arith.constant 0 : i32
    %c0_i32_1 = arith.constant 0 : i32
    return %c0_i32, %c0_i32_0 : i32, i32
  }
  func.func @transform_11(%arg0: i32) -> (i32, i32) {
    %c0_i32 = arith.constant 0 : i32
    %c0_i32_0 = arith.constant 0 : i32
    %c0_i32_1 = arith.constant 0 : i32
    return %c0_i32, %c0_i32_0 : i32, i32
  }
  func.func @transform_12(%arg0: i32) -> (i32, i32, i32) {
    %c0_i32 = arith.constant 0 : i32
    %c0_i32_0 = arith.constant 0 : i32
    %c0_i32_1 = arith.constant 0 : i32
    return %arg0, %c0_i32, %c0_i32_0 : i32, i32, i32
  }
  func.func @transform_13(%arg0: i32) -> (i32, i32, i32) {
    %c0_i32 = arith.constant 0 : i32
    %c0_i32_0 = arith.constant 0 : i32
    %c0_i32_1 = arith.constant 0 : i32
    return %arg0, %c0_i32, %c0_i32_0 : i32, i32, i32
  }
}

</mosaic_0001>

<llo_original>
// kernel: transformer_forward.1
$region0: #{transformer_forward.1}
  #allocation0 [shape = 'u32[]', space=smem, size = 0x4, offset = 0x4, fixed_abs, tag = 'smem constant byte address 0x4 - core index']
  #allocation1 [shape = 'u32[144,128]{1,0:T(1,128)}', space=vmem, size = 0x12000, scoped, tag = 'internal scratch']
  %s0 = inlined_call_operand.vmem [shape: f32[2,16,32], index: 0, kind: input, shape index: {}]
  %s1 = inlined_call_operand.vmem [shape: f32[2,16,32], index: 1, kind: input, shape index: {}]
  %s2 = inlined_call_operand.vmem [shape: f32[2,8,32], index: 2, kind: input, shape index: {}]
  %s3 = inlined_call_operand.vmem [shape: f32[2,1,16], index: 3, kind: input, shape index: {}]
  %s4 = inlined_call_operand.vmem [shape: bf16[24,32,32], index: 4, kind: input, shape index: {}]
  %s5 = inlined_call_operand.vmem [shape: f32[24,32], index: 5, kind: input, shape index: {}]
  %s6 = inlined_call_operand.vmem [shape: bf16[4,32,64], index: 6, kind: input, shape index: {}]
  %s7 = inlined_call_operand.vmem [shape: f32[4,64], index: 7, kind: input, shape index: {}]
  %s8 = inlined_call_operand.vmem [shape: bf16[4,64,32], index: 8, kind: input, shape index: {}]
  %s9 = inlined_call_operand.vmem [shape: f32[4,32], index: 9, kind: input, shape index: {}]
  %s10 = inlined_call_operand.vmem [shape: f32[11,32], index: 10, kind: input, shape index: {}]
  %s11 = inlined_call_operand.vmem [shape: f32[11,32], index: 11, kind: input, shape index: {}]
  %s12 = inlined_call_operand.hbm [shape: f32[2,16,32], index: 12, kind: output, shape index: {0}]
  %s13 = inlined_call_operand.hbm [shape: f32[2,8,32], index: 13, kind: output, shape index: {1}]
  %14 = xla_tuple %s12, %s13
  %s15 = sld [smem:[#allocation0]]
  $region89: #{transformer_forward.1} parent=0
    _
  %s17 = ssub.s32 1, %s15
  %s18 = scalar_select 0, %s17, %s15
  $region1: #{transformer_forward.1} parent=0
    #allocation2 [shape = 'u8[16384]{0}', space=vmem, size = 0x4000, scoped, tag = 'output window, operand 0']
    #allocation3 [shape = 's32[2]{0}', space=sflag, size = 0x8, scoped, tag = 'scoped memory for transformer_forward.1']
    #allocation4 [shape = 'u8[8192]{0}', space=vmem, size = 0x2000, scoped, tag = 'output window, operand 1']
    #allocation5 [shape = 's32[2]{0}', space=sflag, size = 0x8, scoped, tag = 'scoped memory for transformer_forward.1']
    %19 = vsyncpa [#allocation3], 0
    %s20 = scalar_lea.sflag [#allocation3], 1
    %21 = vsyncpa %s20, 0
    %22 = vsyncpa [#allocation5], 0
    %s23 = scalar_lea.sflag [#allocation5], 1
    %24 = vsyncpa %s23, 0
    loop: start=0, step=1, limit=4
    $region2: #{transformer_forward.1} parent=1 // loop_pre_header
      _
    $region3: #{transformer_forward.1} parent=1 // loop_header
      %s26 = sphi 0, %s30
      %p27 = scmp.ge.s32.totalorder %s26, 4
      %s36 = sphi 0, %s38
      %s39 = sphi 0, %s36
      %s40 = sphi 0, %s39
      %s56 = sphi 0, %s40
      %s62 = sphi 0, %s64
      %s65 = sphi 0, %s62
      %s66 = sphi 0, %s65
      %s82 = sphi 0, %s66
      %s88 = sphi 0, %s90
      %s91 = sphi 0, %s88
      %s92 = sphi 0, %s91
      %s108 = sphi 0, %s92
      %s114 = sphi 0, %s116
      %s117 = sphi 0, %s114
      %s118 = sphi 0, %s117
      %s134 = sphi 0, %s118
      %s138 = sphi 0, %s138
      %s140 = sphi 0, %s138
      %s141 = sphi 0, %s140
      %s155 = sphi 0, %s141
      %s159 = sphi 0, %s159
      %s161 = sphi 0, %s159
      %s162 = sphi 0, %s161
      %s176 = sphi 0, %s162
      %s180 = sphi 0, %s180
      %s182 = sphi 0, %s180
      %s183 = sphi 0, %s182
      %s197 = sphi 0, %s183
      %s201 = sphi 0, %s201
      %s203 = sphi 0, %s201
      %s204 = sphi 0, %s203
      %s218 = sphi 0, %s204
      %s222 = sphi 0, %s222
      %s224 = sphi 0, %s222
      %s225 = sphi 0, %s224
      %s239 = sphi 0, %s225
      %s243 = sphi 0, %s243
      %s245 = sphi 0, %s243
      %s246 = sphi 0, %s245
      %s260 = sphi 0, %s246
      %s264 = sphi 0, %s264
      %s266 = sphi 0, %s264
      %s267 = sphi 0, %s266
      %s281 = sphi 0, %s267
      %s285 = sphi 0, %s285
      %s287 = sphi 0, %s285
      %s288 = sphi 0, %s287
      %s302 = sphi 0, %s288
      %s308 = sphi 0, %s310
      %s311 = sphi 0, %s308
      %s312 = sphi 0, %s311
      %s328 = sphi 0, %s312
      %s334 = sphi 0, %s336
      %s337 = sphi 0, %s334
      %s338 = sphi 0, %s337
      %s354 = sphi 0, %s338
    $region4: #{transformer_forward.1} parent=1 // loop_header_branch
      %29 = sbr.rel (%p27) target = $region8
    $region5: #{transformer_forward.1} parent=1 // loop_body
      %s31 = ssub.s32 %s26, 1
      %s32 = ssub.s32 %s26, 2
      %s33 = sadd.s32 %s26, 1
      %s34 = ssub.s32 %s26, %s33
      %p35 = scmp.eq.s32.totalorder %s34, 0
      %s37 = sadd.s32 %s36, 1
      %s38 = scalar_select %p35, %s36, %s37
      %p41 = pneg %p35
      %p42 = scmp.eq.s32.totalorder %s26, 1
      %p43 = por %p41, %p42
      %p44 = scmp.ne.s32.totalorder %s36, %s39
      %p45 = scmp.eq.s32.totalorder %s26, 0
      %p46 = por %p44, %p45
      %p47 = scmp.ne.s32.totalorder %s36, %s39
      %p48 = scmp.eq.s32.totalorder %s31, 1
      %p49 = por %p47, %p48
      %p50 = scmp.ne.s32.totalorder %s39, %s40
      %p51 = scmp.eq.s32.totalorder %s31, 0
      %p52 = por %p50, %p51
      %p53 = scmp.ne.s32.totalorder %s39, %s40
      %p54 = scmp.eq.s32.totalorder %s32, 1
      %p55 = por %p53, %p54
      %p57 = scmp.ne.s32.totalorder %s40, %s56
      %p58 = scmp.eq.s32.totalorder %s32, 0
      %p59 = por %p57, %p58
      %s60 = ssub.s32 %s26, %s33
      %p61 = scmp.eq.s32.totalorder %s60, 0
      %s63 = sadd.s32 %s62, 1
      %s64 = scalar_select %p61, %s62, %s63
      %p67 = pneg %p61
      %p68 = scmp.eq.s32.totalorder %s26, 1
      %p69 = por %p67, %p68
      %p70 = scmp.ne.s32.totalorder %s62, %s65
      %p71 = scmp.eq.s32.totalorder %s26, 0
      %p72 = por %p70, %p71
      %p73 = scmp.ne.s32.totalorder %s62, %s65
      %p74 = scmp.eq.s32.totalorder %s31, 1
      %p75 = por %p73, %p74
      %p76 = scmp.ne.s32.totalorder %s65, %s66
      %p77 = scmp.eq.s32.totalorder %s31, 0
      %p78 = por %p76, %p77
      %p79 = scmp.ne.s32.totalorder %s65, %s66
      %p80 = scmp.eq.s32.totalorder %s32, 1
      %p81 = por %p79, %p80
      %p83 = scmp.ne.s32.totalorder %s66, %s82
      %p84 = scmp.eq.s32.totalorder %s32, 0
      %p85 = por %p83, %p84
      %s86 = ssub.s32 %s26, %s33
      %p87 = scmp.eq.s32.totalorder %s86, 0
      %s89 = sadd.s32 %s88, 1
      %s90 = scalar_select %p87, %s88, %s89
      %p93 = pneg %p87
      %p94 = scmp.eq.s32.totalorder %s26, 1
      %p95 = por %p93, %p94
      %p96 = scmp.ne.s32.totalorder %s88, %s91
      %p97 = scmp.eq.s32.totalorder %s26, 0
      %p98 = por %p96, %p97
      %p99 = scmp.ne.s32.totalorder %s88, %s91
      %p100 = scmp.eq.s32.totalorder %s31, 1
      %p101 = por %p99, %p100
      %p102 = scmp.ne.s32.totalorder %s91, %s92
      %p103 = scmp.eq.s32.totalorder %s31, 0
      %p104 = por %p102, %p103
      %p105 = scmp.ne.s32.totalorder %s91, %s92
      %p106 = scmp.eq.s32.totalorder %s32, 1
      %p107 = por %p105, %p106
      %p109 = scmp.ne.s32.totalorder %s92, %s108
      %p110 = scmp.eq.s32.totalorder %s32, 0
      %p111 = por %p109, %p110
      %s112 = ssub.s32 %s26, %s33
      %p113 = scmp.eq.s32.totalorder %s112, 0
      %s115 = sadd.s32 %s114, 1
      %s116 = scalar_select %p113, %s114, %s115
      %p119 = pneg %p113
      %p120 = scmp.eq.s32.totalorder %s26, 1
      %p121 = por %p119, %p120
      %p122 = scmp.ne.s32.totalorder %s114, %s117
      %p123 = scmp.eq.s32.totalorder %s26, 0
      %p124 = por %p122, %p123
      %p125 = scmp.ne.s32.totalorder %s114, %s117
      %p126 = scmp.eq.s32.totalorder %s31, 1
      %p127 = por %p125, %p126
      %p128 = scmp.ne.s32.totalorder %s117, %s118
      %p129 = scmp.eq.s32.totalorder %s31, 0
      %p130 = por %p128, %p129
      %p131 = scmp.ne.s32.totalorder %s117, %s118
      %p132 = scmp.eq.s32.totalorder %s32, 1
      %p133 = por %p131, %p132
      %p135 = scmp.ne.s32.totalorder %s118, %s134
      %p136 = scmp.eq.s32.totalorder %s32, 0
      %p137 = por %p135, %p136
      %s139 = sadd.s32 %s138, 1
      %p142 = scmp.eq.s32.totalorder %s26, 1
      %p143 = scmp.ne.s32.totalorder %s138, %s140
      %p144 = scmp.eq.s32.totalorder %s26, 0
      %p145 = por %p143, %p144
      %p146 = scmp.ne.s32.totalorder %s138, %s140
      %p147 = scmp.eq.s32.totalorder %s31, 1
      %p148 = por %p146, %p147
      %p149 = scmp.ne.s32.totalorder %s140, %s141
      %p150 = scmp.eq.s32.totalorder %s31, 0
      %p151 = por %p149, %p150
      %p152 = scmp.ne.s32.totalorder %s140, %s141
      %p153 = scmp.eq.s32.totalorder %s32, 1
      %p154 = por %p152, %p153
      %p156 = scmp.ne.s32.totalorder %s141, %s155
      %p157 = scmp.eq.s32.totalorder %s32, 0
      %p158 = por %p156, %p157
      %s160 = sadd.s32 %s159, 1
      %p163 = scmp.eq.s32.totalorder %s26, 1
      %p164 = scmp.ne.s32.totalorder %s159, %s161
      %p165 = scmp.eq.s32.totalorder %s26, 0
      %p166 = por %p164, %p165
      %p167 = scmp.ne.s32.totalorder %s159, %s161
      %p168 = scmp.eq.s32.totalorder %s31, 1
      %p169 = por %p167, %p168
      %p170 = scmp.ne.s32.totalorder %s161, %s162
      %p171 = scmp.eq.s32.totalorder %s31, 0
      %p172 = por %p170, %p171
      %p173 = scmp.ne.s32.totalorder %s161, %s162
      %p174 = scmp.eq.s32.totalorder %s32, 1
      %p175 = por %p173, %p174
      %p177 = scmp.ne.s32.totalorder %s162, %s176
      %p178 = scmp.eq.s32.totalorder %s32, 0
      %p179 = por %p177, %p178
      %s181 = sadd.s32 %s180, 1
      %p184 = scmp.eq.s32.totalorder %s26, 1
      %p185 = scmp.ne.s32.totalorder %s180, %s182
      %p186 = scmp.eq.s32.totalorder %s26, 0
      %p187 = por %p185, %p186
      %p188 = scmp.ne.s32.totalorder %s180, %s182
      %p189 = scmp.eq.s32.totalorder %s31, 1
      %p190 = por %p188, %p189
      %p191 = scmp.ne.s32.totalorder %s182, %s183
      %p192 = scmp.eq.s32.totalorder %s31, 0
      %p193 = por %p191, %p192
      %p194 = scmp.ne.s32.totalorder %s182, %s183
      %p195 = scmp.eq.s32.totalorder %s32, 1
      %p196 = por %p194, %p195
      %p198 = scmp.ne.s32.totalorder %s183, %s197
      %p199 = scmp.eq.s32.totalorder %s32, 0
      %p200 = por %p198, %p199
      %s202 = sadd.s32 %s201, 1
      %p205 = scmp.eq.s32.totalorder %s26, 1
      %p206 = scmp.ne.s32.totalorder %s201, %s203
      %p207 = scmp.eq.s32.totalorder %s26, 0
      %p208 = por %p206, %p207
      %p209 = scmp.ne.s32.totalorder %s201, %s203
      %p210 = scmp.eq.s32.totalorder %s31, 1
      %p211 = por %p209, %p210
      %p212 = scmp.ne.s32.totalorder %s203, %s204
      %p213 = scmp.eq.s32.totalorder %s31, 0
      %p214 = por %p212, %p213
      %p215 = scmp.ne.s32.totalorder %s203, %s204
      %p216 = scmp.eq.s32.totalorder %s32, 1
      %p217 = por %p215, %p216
      %p219 = scmp.ne.s32.totalorder %s204, %s218
      %p220 = scmp.eq.s32.totalorder %s32, 0
      %p221 = por %p219, %p220
      %s223 = sadd.s32 %s222, 1
      %p226 = scmp.eq.s32.totalorder %s26, 1
      %p227 = scmp.ne.s32.totalorder %s222, %s224
      %p228 = scmp.eq.s32.totalorder %s26, 0
      %p229 = por %p227, %p228
      %p230 = scmp.ne.s32.totalorder %s222, %s224
      %p231 = scmp.eq.s32.totalorder %s31, 1
      %p232 = por %p230, %p231
      %p233 = scmp.ne.s32.totalorder %s224, %s225
      %p234 = scmp.eq.s32.totalorder %s31, 0
      %p235 = por %p233, %p234
      %p236 = scmp.ne.s32.totalorder %s224, %s225
      %p237 = scmp.eq.s32.totalorder %s32, 1
      %p238 = por %p236, %p237
      %p240 = scmp.ne.s32.totalorder %s225, %s239
      %p241 = scmp.eq.s32.totalorder %s32, 0
      %p242 = por %p240, %p241
      %s244 = sadd.s32 %s243, 1
      %p247 = scmp.eq.s32.totalorder %s26, 1
      %p248 = scmp.ne.s32.totalorder %s243, %s245
      %p249 = scmp.eq.s32.totalorder %s26, 0
      %p250 = por %p248, %p249
      %p251 = scmp.ne.s32.totalorder %s243, %s245
      %p252 = scmp.eq.s32.totalorder %s31, 1
      %p253 = por %p251, %p252
      %p254 = scmp.ne.s32.totalorder %s245, %s246
      %p255 = scmp.eq.s32.totalorder %s31, 0
      %p256 = por %p254, %p255
      %p257 = scmp.ne.s32.totalorder %s245, %s246
      %p258 = scmp.eq.s32.totalorder %s32, 1
      %p259 = por %p257, %p258
      %p261 = scmp.ne.s32.totalorder %s246, %s260
      %p262 = scmp.eq.s32.totalorder %s32, 0
      %p263 = por %p261, %p262
      %s265 = sadd.s32 %s264, 1
      %p268 = scmp.eq.s32.totalorder %s26, 1
      %p269 = scmp.ne.s32.totalorder %s264, %s266
      %p270 = scmp.eq.s32.totalorder %s26, 0
      %p271 = por %p269, %p270
      %p272 = scmp.ne.s32.totalorder %s264, %s266
      %p273 = scmp.eq.s32.totalorder %s31, 1
      %p274 = por %p272, %p273
      %p275 = scmp.ne.s32.totalorder %s266, %s267
      %p276 = scmp.eq.s32.totalorder %s31, 0
      %p277 = por %p275, %p276
      %p278 = scmp.ne.s32.totalorder %s266, %s267
      %p279 = scmp.eq.s32.totalorder %s32, 1
      %p280 = por %p278, %p279
      %p282 = scmp.ne.s32.totalorder %s267, %s281
      %p283 = scmp.eq.s32.totalorder %s32, 0
      %p284 = por %p282, %p283
      %s286 = sadd.s32 %s285, 1
      %p289 = scmp.eq.s32.totalorder %s26, 1
      %p290 = scmp.ne.s32.totalorder %s285, %s287
      %p291 = scmp.eq.s32.totalorder %s26, 0
      %p292 = por %p290, %p291
      %p293 = scmp.ne.s32.totalorder %s285, %s287
      %p294 = scmp.eq.s32.totalorder %s31, 1
      %p295 = por %p293, %p294
      %p296 = scmp.ne.s32.totalorder %s287, %s288
      %p297 = scmp.eq.s32.totalorder %s31, 0
      %p298 = por %p296, %p297
      %p299 = scmp.ne.s32.totalorder %s287, %s288
      %p300 = scmp.eq.s32.totalorder %s32, 1
      %p301 = por %p299, %p300
      %p303 = scmp.ne.s32.totalorder %s288, %s302
      %p304 = scmp.eq.s32.totalorder %s32, 0
      %p305 = por %p303, %p304
      %s306 = ssub.s32 %s26, %s33
      %p307 = scmp.eq.s32.totalorder %s306, 0
      %s309 = sadd.s32 %s308, 1
      %s310 = scalar_select %p307, %s308, %s309
      %p313 = pneg %p307
      %p314 = scmp.eq.s32.totalorder %s26, 1
      %p315 = por %p313, %p314
      %p316 = scmp.ne.s32.totalorder %s308, %s311
      %p317 = scmp.eq.s32.totalorder %s26, 0
      %p318 = por %p316, %p317
      %p319 = scmp.ne.s32.totalorder %s308, %s311
      %p320 = scmp.eq.s32.totalorder %s31, 1
      %p321 = por %p319, %p320
      %p322 = scmp.ne.s32.totalorder %s311, %s312
      %p323 = scmp.eq.s32.totalorder %s31, 0
      %p324 = por %p322, %p323
      %p325 = scmp.ne.s32.totalorder %s311, %s312
      %p326 = scmp.eq.s32.totalorder %s32, 1
      %p327 = por %p325, %p326
      %p329 = scmp.ne.s32.totalorder %s312, %s328
      %p330 = scmp.eq.s32.totalorder %s32, 0
      %p331 = por %p329, %p330
      %s332 = ssub.s32 %s26, %s33
      %p333 = scmp.eq.s32.totalorder %s332, 0
      %s335 = sadd.s32 %s334, 1
      %s336 = scalar_select %p333, %s334, %s335
      %p339 = pneg %p333
      %p340 = scmp.eq.s32.totalorder %s26, 1
      %p341 = por %p339, %p340
      %p342 = scmp.ne.s32.totalorder %s334, %s337
      %p343 = scmp.eq.s32.totalorder %s26, 0
      %p344 = por %p342, %p343
      %p345 = scmp.ne.s32.totalorder %s334, %s337
      %p346 = scmp.eq.s32.totalorder %s31, 1
      %p347 = por %p345, %p346
      %p348 = scmp.ne.s32.totalorder %s337, %s338
      %p349 = scmp.eq.s32.totalorder %s31, 0
      %p350 = por %p348, %p349
      %p351 = scmp.ne.s32.totalorder %s337, %s338
      %p352 = scmp.eq.s32.totalorder %s32, 1
      %p353 = por %p351, %p352
      %p355 = scmp.ne.s32.totalorder %s338, %s354
      %p356 = scmp.eq.s32.totalorder %s32, 0
      %p357 = por %p355, %p356
      %p358 = scmp.le.s32.totalorder 1, %s26
      %p359 = scmp.lt.s32.totalorder %s26, 3
      %p360 = pnand %p358, %p359
      %p361 = pneg %p360
      // Predicated region
      $region9: #{transformer_forward.1} parent=5 // pred_check
        _
      $region10: #{transformer_forward.1} parent=5 // pred_check_branch
        %363 = sbr.rel (%p360) target = $region12
      $region11: #{transformer_forward.1} parent=5 // pred_region
        %s364 = ssub.s32 %s26, 1
        // Predicated region
        $region13: #{transformer_forward.1} parent=11 // pred_check
          %p365 = pneg %p151
        $region14: #{transformer_forward.1} parent=11 // pred_check_branch
          %367 = sbr.rel (%p365) target = $region16
        $region15: #{transformer_forward.1} parent=11 // pred_region
          _
        $region16: #{transformer_forward.1} parent=11 // pred_fallthru
          _
        // Predicated region
        $region17: #{transformer_forward.1} parent=11 // pred_check
          %p368 = pneg %p172
        $region18: #{transformer_forward.1} parent=11 // pred_check_branch
          %370 = sbr.rel (%p368) target = $region20
        $region19: #{transformer_forward.1} parent=11 // pred_region
          _
        $region20: #{transformer_forward.1} parent=11 // pred_fallthru
          _
        // Predicated region
        $region21: #{transformer_forward.1} parent=11 // pred_check
          %p371 = pneg %p193
        $region22: #{transformer_forward.1} parent=11 // pred_check_branch
          %373 = sbr.rel (%p371) target = $region24
        $region23: #{transformer_forward.1} parent=11 // pred_region
          _
        $region24: #{transformer_forward.1} parent=11 // pred_fallthru
          _
        // Predicated region
        $region25: #{transformer_forward.1} parent=11 // pred_check
          %p374 = pneg %p214
        $region26: #{transformer_forward.1} parent=11 // pred_check_branch
          %376 = sbr.rel (%p374) target = $region28
        $region27: #{transformer_forward.1} parent=11 // pred_region
          _
        $region28: #{transformer_forward.1} parent=11 // pred_fallthru
          _
        // Predicated region
        $region29: #{transformer_forward.1} parent=11 // pred_check
          %p377 = pneg %p235
        $region30: #{transformer_forward.1} parent=11 // pred_check_branch
          %379 = sbr.rel (%p377) target = $region32
        $region31: #{transformer_forward.1} parent=11 // pred_region
          _
        $region32: #{transformer_forward.1} parent=11 // pred_fallthru
          _
        // Predicated region
        $region33: #{transformer_forward.1} parent=11 // pred_check
          %p380 = pneg %p256
        $region34: #{transformer_forward.1} parent=11 // pred_check_branch
          %382 = sbr.rel (%p380) target = $region36
        $region35: #{transformer_forward.1} parent=11 // pred_region
          _
        $region36: #{transformer_forward.1} parent=11 // pred_fallthru
          _
        // Predicated region
        $region37: #{transformer_forward.1} parent=11 // pred_check
          %p383 = pneg %p277
        $region38: #{transformer_forward.1} parent=11 // pred_check_branch
          %385 = sbr.rel (%p383) target = $region40
        $region39: #{transformer_forward.1} parent=11 // pred_region
          _
        $region40: #{transformer_forward.1} parent=11 // pred_fallthru
          _
        // Predicated region
        $region41: #{transformer_forward.1} parent=11 // pred_check
          %p386 = pneg %p298
        $region42: #{transformer_forward.1} parent=11 // pred_check_branch
          %388 = sbr.rel (%p386) target = $region44
        $region43: #{transformer_forward.1} parent=11 // pred_region
          _
        $region44: #{transformer_forward.1} parent=11 // pred_fallthru
          _
      $region12: #{transformer_forward.1} parent=5 // pred_fallthru
        _
      %p389 = scmp.lt.s32.totalorder %s26, 2
      // Predicated region
      $region45: #{transformer_forward.1} parent=5 // pred_check
        %p390 = pneg %p389
      $region46: #{transformer_forward.1} parent=5 // pred_check_branch
        %392 = sbr.rel (%p390) target = $region48
      $region47: #{transformer_forward.1} parent=5 // pred_region
        // Predicated region
        $region49: #{transformer_forward.1} parent=47 // pred_check
          %p393 = pneg %p46
        $region50: #{transformer_forward.1} parent=47 // pred_check_branch
          %395 = sbr.rel (%p393) target = $region52
        $region51: #{transformer_forward.1} parent=47 // pred_region
          %p396 = scmp.lt.s32.totalorder %s26, 1
          %s397 = scalar_select %p396, %s26, 1
          %s398 = smul.addr %s397, 2
          %s399 = smul.addr %s398, 8
          %s400 = scalar_lea.vmem %s0, %s399
        $region52: #{transformer_forward.1} parent=47 // pred_fallthru
          _
        // Predicated region
        $region53: #{transformer_forward.1} parent=47 // pred_check
          %p401 = pneg %p72
        $region54: #{transformer_forward.1} parent=47 // pred_check_branch
          %403 = sbr.rel (%p401) target = $region56
        $region55: #{transformer_forward.1} parent=47 // pred_region
          %p404 = scmp.lt.s32.totalorder %s26, 1
          %s405 = scalar_select %p404, %s26, 1
          %s406 = smul.addr %s405, 2
          %s407 = smul.addr %s406, 8
          %s408 = scalar_lea.vmem %s1, %s407
        $region56: #{transformer_forward.1} parent=47 // pred_fallthru
          _
        // Predicated region
        $region57: #{transformer_forward.1} parent=47 // pred_check
          %p409 = pneg %p98
        $region58: #{transformer_forward.1} parent=47 // pred_check_branch
          %411 = sbr.rel (%p409) target = $region60
        $region59: #{transformer_forward.1} parent=47 // pred_region
          %p412 = scmp.lt.s32.totalorder %s26, 1
          %s413 = scalar_select %p412, %s26, 1
          %s414 = smul.addr %s413, 8
          %s415 = scalar_lea.vmem %s2, %s414
        $region60: #{transformer_forward.1} parent=47 // pred_fallthru
          _
        // Predicated region
        $region61: #{transformer_forward.1} parent=47 // pred_check
          %p416 = pneg %p124
        $region62: #{transformer_forward.1} parent=47 // pred_check_branch
          %418 = sbr.rel (%p416) target = $region64
        $region63: #{transformer_forward.1} parent=47 // pred_region
          %p419 = scmp.lt.s32.totalorder %s26, 1
          %s420 = scalar_select %p419, %s26, 1
          %s421 = scalar_lea.vmem %s3, %s420
        $region64: #{transformer_forward.1} parent=47 // pred_fallthru
          _
      $region48: #{transformer_forward.1} parent=5 // pred_fallthru
        _
      %p422 = scmp.le.s32.totalorder 1, %s26
      %p423 = scmp.lt.s32.totalorder %s26, 3
      %p424 = pnand %p422, %p423
      %p425 = pneg %p424
      // Predicated region
      $region65: #{transformer_forward.1} parent=5 // pred_check
        _
      $region66: #{transformer_forward.1} parent=5 // pred_check_branch
        %427 = sbr.rel (%p424) target = $region68
      $region67: #{transformer_forward.1} parent=5 // pred_region
        %s428 = ssub.s32 %s26, 1
        %p429 = scmp.lt.s32.totalorder %s31, 1
        %s430 = scalar_select %p429, %s31, 1
        %s431 = smul.addr %s430, 2
        %s432 = smul.addr %s431, 8
        %s433 = scalar_lea.vmem %s0, %s432
        %p434 = pneg %p52
        %p435 = pneg %p49
        %p436 = scmp.lt.s32.totalorder %s31, 1
        %s437 = scalar_select %p436, %s31, 1
        %s438 = smul.addr %s437, 2
        %s439 = smul.addr %s438, 8
        %s440 = scalar_lea.vmem %s1, %s439
        %p441 = pneg %p78
        %p442 = pneg %p75
        %p443 = scmp.lt.s32.totalorder %s31, 1
        %s444 = scalar_select %p443, %s31, 1
        %s445 = smul.addr %s444, 8
        %s446 = scalar_lea.vmem %s2, %s445
        %p447 = pneg %p104
        %p448 = pneg %p101
        %p449 = scmp.lt.s32.totalorder %s31, 1
        %s450 = scalar_select %p449, %s31, 1
        %s451 = scalar_lea.vmem %s3, %s450
        %p452 = pneg %p130
        %p453 = pneg %p127
        %p454 = pneg %p151
        %p455 = pneg %p148
        %p456 = pneg %p172
        %p457 = pneg %p169
        %p458 = pneg %p193
        %p459 = pneg %p190
        %p460 = pneg %p214
        %p461 = pneg %p211
        %p462 = pneg %p235
        %p463 = pneg %p232
        %p464 = pneg %p256
        %p465 = pneg %p253
        %p466 = pneg %p277
        %p467 = pneg %p274
        %p468 = pneg %p298
        %p469 = pneg %p295
        %p470 = pneg %p324
        %p471 = pneg %p321
        %s472 = sand.u32 %s311, 1
        %s473 = scalar_lea.sflag [#allocation3], %s472
        %s474 = sand.u32 %s311, 1
        %s475 = smul.addr %s474, 16
        %s476 = scalar_lea.vmem [#allocation2], %s475
        %p477 = pneg %p350
        %p478 = pneg %p347
        %s479 = sand.u32 %s337, 1
        %s480 = scalar_lea.sflag [#allocation5], %s479
        %s481 = sand.u32 %s337, 1
        %s482 = smul.addr %s481, 8
        %s483 = scalar_lea.vmem [#allocation4], %s482
        %p484 = scmp.lt.s32.totalorder %s31, 1
        %s485 = scalar_select %p484, %s31, 1
        %s486 = smul.addr %s485, 2
        %s487 = smul.addr %s486, 8
        %s488 = scalar_lea.vmem %s0, %s487
        %p489 = scmp.lt.s32.totalorder %s31, 1
        %s490 = scalar_select %p489, %s31, 1
        %s491 = smul.addr %s490, 2
        %s492 = smul.addr %s491, 8
        %s493 = scalar_lea.vmem %s1, %s492
        %p494 = scmp.lt.s32.totalorder %s31, 1
        %s495 = scalar_select %p494, %s31, 1
        %s496 = smul.addr %s495, 8
        %s497 = scalar_lea.vmem %s2, %s496
        %p498 = scmp.lt.s32.totalorder %s31, 1
        %s499 = scalar_select %p498, %s31, 1
        %s500 = scalar_lea.vmem %s3, %s499
        %v502 = vld [vmem:[%s488] sm:$0xff]
        %v503 = vld [vmem:[%s488 + $0x8] sm:$0xff]
        %v504 = vld [vmem:[%s493] sm:$0xff]
        %v505 = vld [vmem:[%s493 + $0x8] sm:$0xff]
        %v506 = vld [vmem:[%s497] sm:$0xff]
        %v507 = vld [vmem:[%s500] sm:$0x1]
        %v508 = vlaneseq
        %v509 = vand.u32 %v508, 127
        %vm510 = vcmp.ge.s32.totalorder %v509, 0
        %vm511 = vcmp.lt.s32.totalorder %v509, 8
        %vm512 = vmand %vm510, %vm511
        %v513 = vsel %vm512, 1, 0
        %v514 = vcvt.s32.f32 %v513
        %v515 = vpack.c.bf16 %v514, %v514
        %vm516 = vcmp.ge.s32.totalorder %v509, 8
        %vm517 = vcmp.lt.s32.totalorder %v509, 16
        %vm518 = vmand %vm516, %vm517
        %v519 = vsel %vm518, 1, 0
        %v520 = vcvt.s32.f32 %v519
        %v521 = vpack.c.bf16 %v520, %v520
        %vm522 = vcmp.ge.s32.totalorder %v509, 16
        %vm523 = vcmp.lt.s32.totalorder %v509, 24
        %vm524 = vmand %vm522, %vm523
        %v525 = vsel %vm524, 1, 0
        %v526 = vcvt.s32.f32 %v525
        %v527 = vpack.c.bf16 %v526, %v526
        %vm528 = vcmp.ge.s32.totalorder %v509, 24
        %vm529 = vcmp.lt.s32.totalorder %v509, 32
        %vm530 = vmand %vm528, %vm529
        %v531 = vsel %vm530, 1, 0
        %v532 = vcvt.s32.f32 %v531
        %v533 = vpack.c.bf16 %v532, %v532
        %v534 = vadd.f32 %v502, %v504
        %v535 = vadd.f32 %v503, %v505
        %v536 = vld [vmem:[%s4] sm:$0xf]
        %v537 = vld [vmem:[%s4 + $0x4] sm:$0xf]
        %v538 = vld [vmem:[%s4 + $0x8] sm:$0xf]
        %v539 = vld [vmem:[%s4 + $0xc] sm:$0xf]
        %v540 = vld [vmem:[%s5] sm:$0x1]
        %v541 = vpack.c.bf16 %v535, %v534
        %v542 = vlaneseq
        %v543 = vshrl.u32 %v542, 7
        %v544 = vsub.s32 0, %v543
        %v545 = vrot.slane %v540, %v544
        %v550 = vunpack.c.l.b16 %v536
        %v551 = vunpack.c.l.b16 %v537
        %v552 = vunpack.c.l.b16 %v538
        %v553 = vunpack.c.l.b16 %v539
        %v554 = vpack.c.b16 %v551, %v550
        %v555 = vpack.c.b16 %v553, %v552
        %vm558 = vcmask 261120
        %v560 = vsel %vm558, %v541, 0
        %562 = vmatprep.subr.bf16.mxu0 0
        %563 = vmatpush1.bf16.msra.mxu0 0
        %564 = vmatprep.subr.bf16.mxu0 0
        %565 = vmatpush1.bf16.msra.mxu0 0
        %566 = vmatprep.subr.bf16.mxu0 0
        %567 = vmatpush1.bf16.msra.mxu0 0
        %568 = vmatprep.subr.bf16.mxu0 0
        %569 = vmatpush1.bf16.msra.mxu0 0
        %570 = vmatprep.subr.bf16.mxu0 0
        %571 = vmatpush1.bf16.msra.mxu0 0
        %572 = vmatprep.subr.bf16.mxu0 0
        %573 = vmatpush1.bf16.msra.mxu0 0
        %574 = vmatprep.subr.bf16.mxu0 0
        %575 = vmatpush1.bf16.msra.mxu0 %v555
        %576 = vmatprep.subr.bf16.mxu0 0
        %577 = vmatpush1.bf16.msra.mxu0 %v554
        %578 = vmatprep.subr.bf16.mxu0 0
        %579 = vmatpush2.bf16.msra.mxu0 0
        %580 = vmatprep.subr.bf16.mxu0 0
        %581 = vmatpush2.bf16.msra.mxu0 0
        %582 = vmatprep.subr.bf16.mxu0 0
        %583 = vmatpush2.bf16.msra.mxu0 0
        %584 = vmatprep.subr.bf16.mxu0 0
        %585 = vmatpush2.bf16.msra.mxu0 0
        %586 = vmatprep.subr.bf16.mxu0 0
        %587 = vmatpush2.bf16.msra.mxu0 0
        %588 = vmatprep.subr.bf16.mxu0 0
        %589 = vmatpush2.bf16.msra.mxu0 0
        %590 = vmatprep.subr.bf16.mxu0 0
        %591 = vmatpush2.bf16.msra.mxu0 0
        %592 = vmatprep.subr.bf16.mxu0 0
        %593 = vmatpush2.bf16.msra.mxu0 0
        %594 = vmatprep.mubr.bf16.mxu0 0
        %595 = vmatmul.mubr.bf16.gmra.mxu0 %v560
        %v596 = vpop.f32.mrf.mxu0
        %v597 = vadd.f32 %v545, %v596
        %v598 = vpop.f32.mrf.mxu0
        %v599 = vpop.f32.mrf.mxu0
        %v600 = vadd.f32 %v545, %v599
        %v601 = vpop.f32.mrf.mxu0
        %602 = vdwg.mxu0
        %s603 = scalar_lea.vmem %s4, 16
        %v604 = vld [vmem:[%s603] sm:$0xf]
        %v605 = vld [vmem:[%s603 + $0x4] sm:$0xf]
        %v606 = vld [vmem:[%s603 + $0x8] sm:$0xf]
        %v607 = vld [vmem:[%s603 + $0xc] sm:$0xf]
        %v608 = vld [vmem:[%s5 + $0x1] sm:$0x1]
        %v609 = vlaneseq
        %v610 = vshrl.u32 %v609, 7
        %v611 = vsub.s32 0, %v610
        %v612 = vrot.slane %v608, %v611
        %v617 = vunpack.c.l.b16 %v604
        %v618 = vunpack.c.l.b16 %v605
        %v619 = vunpack.c.l.b16 %v606
        %v620 = vunpack.c.l.b16 %v607
        %v621 = vpack.c.b16 %v618, %v617
        %v622 = vpack.c.b16 %v620, %v619
        %625 = vmatprep.subr.bf16.mxu0 0
        %626 = vmatpush1.bf16.msra.mxu0 0
        %627 = vmatprep.subr.bf16.mxu0 0
        %628 = vmatpush1.bf16.msra.mxu0 0
        %629 = vmatprep.subr.bf16.mxu0 0
        %630 = vmatpush1.bf16.msra.mxu0 0
        %631 = vmatprep.subr.bf16.mxu0 0
        %632 = vmatpush1.bf16.msra.mxu0 0
        %633 = vmatprep.subr.bf16.mxu0 0
        %634 = vmatpush1.bf16.msra.mxu0 0
        %635 = vmatprep.subr.bf16.mxu0 0
        %636 = vmatpush1.bf16.msra.mxu0 0
        %637 = vmatprep.subr.bf16.mxu0 0
        %638 = vmatpush1.bf16.msra.mxu0 %v622
        %639 = vmatprep.subr.bf16.mxu0 0
        %640 = vmatpush1.bf16.msra.mxu0 %v621
        %641 = vmatprep.subr.bf16.mxu0 0
        %642 = vmatpush2.bf16.msra.mxu0 0
        %643 = vmatprep.subr.bf16.mxu0 0
        %644 = vmatpush2.bf16.msra.mxu0 0
        %645 = vmatprep.subr.bf16.mxu0 0
        %646 = vmatpush2.bf16.msra.mxu0 0
        %647 = vmatprep.subr.bf16.mxu0 0
        %648 = vmatpush2.bf16.msra.mxu0 0
        %649 = vmatprep.subr.bf16.mxu0 0
        %650 = vmatpush2.bf16.msra.mxu0 0
        %651 = vmatprep.subr.bf16.mxu0 0
        %652 = vmatpush2.bf16.msra.mxu0 0
        %653 = vmatprep.subr.bf16.mxu0 0
        %654 = vmatpush2.bf16.msra.mxu0 0
        %655 = vmatprep.subr.bf16.mxu0 0
        %656 = vmatpush2.bf16.msra.mxu0 0
        %657 = vmatprep.mubr.bf16.mxu0 0
        %658 = vmatmul.mubr.bf16.gmra.mxu0 %v560
        %v659 = vpop.f32.mrf.mxu0
        %v660 = vadd.f32 %v612, %v659
        %v661 = vpop.f32.mrf.mxu0
        %v662 = vpop.f32.mrf.mxu0
        %v663 = vadd.f32 %v612, %v662
        %v664 = vpop.f32.mrf.mxu0
        %665 = vdwg.mxu0
        %s666 = scalar_lea.vmem %s4, 32
        %v667 = vld [vmem:[%s666] sm:$0xf]
        %v668 = vld [vmem:[%s666 + $0x4] sm:$0xf]
        %v669 = vld [vmem:[%s666 + $0x8] sm:$0xf]
        %v670 = vld [vmem:[%s666 + $0xc] sm:$0xf]
        %v671 = vld [vmem:[%s5 + $0x2] sm:$0x1]
        %v672 = vpack.c.bf16 %v503, %v502
        %v673 = vlaneseq
        %v674 = vshrl.u32 %v673, 7
        %v675 = vsub.s32 0, %v674
        %v676 = vrot.slane %v671, %v675
        %v681 = vunpack.c.l.b16 %v667
        %v682 = vunpack.c.l.b16 %v668
        %v683 = vunpack.c.l.b16 %v669
        %v684 = vunpack.c.l.b16 %v670
        %v685 = vpack.c.b16 %v682, %v681
        %v686 = vpack.c.b16 %v684, %v683
        %v690 = vsel %vm558, %v672, 0
        %692 = vmatprep.subr.bf16.mxu0 0
        %693 = vmatpush1.bf16.msra.mxu0 0
        %694 = vmatprep.subr.bf16.mxu0 0
        %695 = vmatpush1.bf16.msra.mxu0 0
        %696 = vmatprep.subr.bf16.mxu0 0
        %697 = vmatpush1.bf16.msra.mxu0 0
        %698 = vmatprep.subr.bf16.mxu0 0
        %699 = vmatpush1.bf16.msra.mxu0 0
        %700 = vmatprep.subr.bf16.mxu0 0
        %701 = vmatpush1.bf16.msra.mxu0 0
        %702 = vmatprep.subr.bf16.mxu0 0
        %703 = vmatpush1.bf16.msra.mxu0 0
        %704 = vmatprep.subr.bf16.mxu0 0
        %705 = vmatpush1.bf16.msra.mxu0 %v686
        %706 = vmatprep.subr.bf16.mxu0 0
        %707 = vmatpush1.bf16.msra.mxu0 %v685
        %708 = vmatprep.subr.bf16.mxu0 0
        %709 = vmatpush2.bf16.msra.mxu0 0
        %710 = vmatprep.subr.bf16.mxu0 0
        %711 = vmatpush2.bf16.msra.mxu0 0
        %712 = vmatprep.subr.bf16.mxu0 0
        %713 = vmatpush2.bf16.msra.mxu0 0
        %714 = vmatprep.subr.bf16.mxu0 0
        %715 = vmatpush2.bf16.msra.mxu0 0
        %716 = vmatprep.subr.bf16.mxu0 0
        %717 = vmatpush2.bf16.msra.mxu0 0
        %718 = vmatprep.subr.bf16.mxu0 0
        %719 = vmatpush2.bf16.msra.mxu0 0
        %720 = vmatprep.subr.bf16.mxu0 0
        %721 = vmatpush2.bf16.msra.mxu0 0
        %722 = vmatprep.subr.bf16.mxu0 0
        %723 = vmatpush2.bf16.msra.mxu0 0
        %724 = vmatprep.mubr.bf16.mxu0 0
        %725 = vmatmul.mubr.bf16.gmra.mxu0 %v690
        %v726 = vpop.f32.mrf.mxu0
        %v727 = vadd.f32 %v676, %v726
        %v728 = vpop.f32.mrf.mxu0
        %v729 = vpop.f32.mrf.mxu0
        %v730 = vadd.f32 %v676, %v729
        %v731 = vpop.f32.mrf.mxu0
        %732 = vdwg.mxu0
        %v733 = vpack.c.bf16 %v600, %v597
        %v734 = vpack.c.bf16 %v663, %v660
        %v735 = vpack.c.bf16 %v730, %v727
        %v737 = vlaneseq
        %v738 = vshrl.u32 %v737, 7
        %v739 = vsub.s32 0, %v738
        %v740 = vrot.slane %v507, %v739
        %v742 = vmul.bf16 %v734, %v515
        %v743 = vmul.bf16 %v735, %v515
        %v745 = vsel %vm558, %v733, 0
        %v748 = vsel %vm558, %v742, 0
        %750 = vmatprep.subr.bf16.mxu0 0
        %751 = vmatpush1.bf16.xpose.msra.mxu0 0
        %752 = vmatprep.subr.bf16.mxu0 0
        %753 = vmatpush1.bf16.xpose.msra.mxu0 0
        %754 = vmatprep.subr.bf16.mxu0 0
        %755 = vmatpush1.bf16.xpose.msra.mxu0 0
        %756 = vmatprep.subr.bf16.mxu0 0
        %757 = vmatpush1.bf16.xpose.msra.mxu0 0
        %758 = vmatprep.subr.bf16.mxu0 0
        %759 = vmatpush1.bf16.xpose.msra.mxu0 0
        %760 = vmatprep.subr.bf16.mxu0 0
        %761 = vmatpush1.bf16.xpose.msra.mxu0 0
        %762 = vmatprep.subr.bf16.mxu0 0
        %763 = vmatpush1.bf16.xpose.msra.mxu0 0
        %764 = vmatprep.subr.bf16.mxu0 0
        %765 = vmatpush1.bf16.xpose.msra.mxu0 %v748
        %766 = vmatprep.subr.bf16.mxu0 0
        %767 = vmatpush2.bf16.xpose.msra.mxu0 0
        %768 = vmatprep.subr.bf16.mxu0 0
        %769 = vmatpush2.bf16.xpose.msra.mxu0 0
        %770 = vmatprep.subr.bf16.mxu0 0
        %771 = vmatpush2.bf16.xpose.msra.mxu0 0
        %772 = vmatprep.subr.bf16.mxu0 0
        %773 = vmatpush2.bf16.xpose.msra.mxu0 0
        %774 = vmatprep.subr.bf16.mxu0 0
        %775 = vmatpush2.bf16.xpose.msra.mxu0 0
        %776 = vmatprep.subr.bf16.mxu0 0
        %777 = vmatpush2.bf16.xpose.msra.mxu0 0
        %778 = vmatprep.subr.bf16.mxu0 0
        %779 = vmatpush2.bf16.xpose.msra.mxu0 0
        %780 = vmatprep.subr.bf16.mxu0 0
        %781 = vmatpush2.bf16.xpose.msra.mxu0 0
        %782 = vmatprep.mubr.bf16.mxu0 0
        %783 = vmatmul.mubr.bf16.gmra.mxu0 %v745
        %v784 = vpop.f32.mrf.mxu0
        %v785 = vadd.f32 0.0, %v784
        %v786 = vpop.f32.mrf.mxu0
        %v787 = vpop.f32.mrf.mxu0
        %v788 = vadd.f32 0.0, %v787
        %v789 = vpop.f32.mrf.mxu0
        %790 = vdwg.mxu0
        %v791 = vmul.f32 %v785, 0.35355338
        %v792 = vmul.f32 %v788, 0.35355338
        %v793 = vadd.f32 %v791, %v740
        %v794 = vadd.f32 %v792, %v740
        %vm795 = vcmask 130048
        %v796 = vsel %vm795, %v793, -inf
        %797 = vmax.xlane.f32.xlu0 %v796
        %v798 = vpop.xlane.xlu0 %797
        %v799 = vsel %vm795, %v794, -inf
        %800 = vmax.xlane.f32.xlu0 %v799
        %v801 = vpop.xlane.xlu0 %800
        %v802 = vsub.f32 %v793, %v798
        %v803 = vsub.f32 %v794, %v801
        %v804 = vmul.f32 %v802, 1.442695
        %v805 = vpow.pop %v804
        %v806 = vmul.f32 %v803, 1.442695
        %v807 = vpow.pop %v806
        %v808 = vsel %vm795, %v805, 0.0
        %809 = vadd.xlane.f32.xlu0 %v808
        %v810 = vpop.xlane.xlu0 %809
        %v811 = vsel %vm795, %v807, 0.0
        %812 = vadd.xlane.f32.xlu0 %v811
        %v813 = vpop.xlane.xlu0 %812
        %v814 = vrcp.pop %v810
        %v815 = vrcp.pop %v813
        %v816 = vmul.f32 %v805, %v814
        %v817 = vmul.f32 %v807, %v815
        %v818 = vpack.c.bf16 %v817, %v816
        %v819 = vmul.bf16 %v734, %v521
        %v820 = vmul.bf16 %v735, %v521
        %v822 = vsel %vm558, %v819, 0
        %824 = vmatprep.subr.bf16.mxu0 0
        %825 = vmatpush1.bf16.xpose.msra.mxu0 0
        %826 = vmatprep.subr.bf16.mxu0 0
        %827 = vmatpush1.bf16.xpose.msra.mxu0 0
        %828 = vmatprep.subr.bf16.mxu0 0
        %829 = vmatpush1.bf16.xpose.msra.mxu0 0
        %830 = vmatprep.subr.bf16.mxu0 0
        %831 = vmatpush1.bf16.xpose.msra.mxu0 0
        %832 = vmatprep.subr.bf16.mxu0 0
        %833 = vmatpush1.bf16.xpose.msra.mxu0 0
        %834 = vmatprep.subr.bf16.mxu0 0
        %835 = vmatpush1.bf16.xpose.msra.mxu0 0
        %836 = vmatprep.subr.bf16.mxu0 0
        %837 = vmatpush1.bf16.xpose.msra.mxu0 0
        %838 = vmatprep.subr.bf16.mxu0 0
        %839 = vmatpush1.bf16.xpose.msra.mxu0 %v822
        %840 = vmatprep.subr.bf16.mxu0 0
        %841 = vmatpush2.bf16.xpose.msra.mxu0 0
        %842 = vmatprep.subr.bf16.mxu0 0
        %843 = vmatpush2.bf16.xpose.msra.mxu0 0
        %844 = vmatprep.subr.bf16.mxu0 0
        %845 = vmatpush2.bf16.xpose.msra.mxu0 0
        %846 = vmatprep.subr.bf16.mxu0 0
        %847 = vmatpush2.bf16.xpose.msra.mxu0 0
        %848 = vmatprep.subr.bf16.mxu0 0
        %849 = vmatpush2.bf16.xpose.msra.mxu0 0
        %850 = vmatprep.subr.bf16.mxu0 0
        %851 = vmatpush2.bf16.xpose.msra.mxu0 0
        %852 = vmatprep.subr.bf16.mxu0 0
        %853 = vmatpush2.bf16.xpose.msra.mxu0 0
        %854 = vmatprep.subr.bf16.mxu0 0
        %855 = vmatpush2.bf16.xpose.msra.mxu0 0
        %856 = vmatprep.mubr.bf16.mxu0 0
        %857 = vmatmul.mubr.bf16.gmra.mxu0 %v745
        %v858 = vpop.f32.mrf.mxu0
        %v859 = vadd.f32 0.0, %v858
        %v860 = vpop.f32.mrf.mxu0
        %v861 = vpop.f32.mrf.mxu0
        %v862 = vadd.f32 0.0, %v861
        %v863 = vpop.f32.mrf.mxu0
        %864 = vdwg.mxu0
        %v865 = vmul.f32 %v859, 0.35355338
        %v866 = vmul.f32 %v862, 0.35355338
        %v867 = vadd.f32 %v865, %v740
        %v868 = vadd.f32 %v866, %v740
        %v869 = vsel %vm795, %v867, -inf
        %870 = vmax.xlane.f32.xlu0 %v869
        %v871 = vpop.xlane.xlu0 %870
        %v872 = vsel %vm795, %v868, -inf
        %873 = vmax.xlane.f32.xlu0 %v872
        %v874 = vpop.xlane.xlu0 %873
        %v875 = vsub.f32 %v867, %v871
        %v876 = vsub.f32 %v868, %v874
        %v877 = vmul.f32 %v875, 1.442695
        %v878 = vpow.pop %v877
        %v879 = vmul.f32 %v876, 1.442695
        %v880 = vpow.pop %v879
        %v881 = vsel %vm795, %v878, 0.0
        %882 = vadd.xlane.f32.xlu0 %v881
        %v883 = vpop.xlane.xlu0 %882
        %v884 = vsel %vm795, %v880, 0.0
        %885 = vadd.xlane.f32.xlu0 %v884
        %v886 = vpop.xlane.xlu0 %885
        %v887 = vrcp.pop %v883
        %v888 = vrcp.pop %v886
        %v889 = vmul.f32 %v878, %v887
        %v890 = vmul.f32 %v880, %v888
        %v891 = vpack.c.bf16 %v890, %v889
        %v893 = vsel %vm795, %v891, 0
        %895 = vmatprep.subr.bf16.mxu0 0
        %896 = vmatpush1.bf16.msra.mxu0 0
        %897 = vmatprep.subr.bf16.mxu0 0
        %898 = vmatpush1.bf16.msra.mxu0 0
        %899 = vmatprep.subr.bf16.mxu0 0
        %900 = vmatpush1.bf16.msra.mxu0 0
        %901 = vmatprep.subr.bf16.mxu0 0
        %902 = vmatpush1.bf16.msra.mxu0 0
        %903 = vmatprep.subr.bf16.mxu0 0
        %904 = vmatpush1.bf16.msra.mxu0 0
        %905 = vmatprep.subr.bf16.mxu0 0
        %906 = vmatpush1.bf16.msra.mxu0 0
        %907 = vmatprep.subr.bf16.mxu0 0
        %908 = vmatpush1.bf16.msra.mxu0 0
        %909 = vmatprep.subr.bf16.mxu0 0
        %910 = vmatpush1.bf16.msra.mxu0 %v820
        %911 = vmatprep.subr.bf16.mxu0 0
        %912 = vmatpush2.bf16.msra.mxu0 0
        %913 = vmatprep.subr.bf16.mxu0 0
        %914 = vmatpush2.bf16.msra.mxu0 0
        %915 = vmatprep.subr.bf16.mxu0 0
        %916 = vmatpush2.bf16.msra.mxu0 0
        %917 = vmatprep.subr.bf16.mxu0 0
        %918 = vmatpush2.bf16.msra.mxu0 0
        %919 = vmatprep.subr.bf16.mxu0 0
        %920 = vmatpush2.bf16.msra.mxu0 0
        %921 = vmatprep.subr.bf16.mxu0 0
        %922 = vmatpush2.bf16.msra.mxu0 0
        %923 = vmatprep.subr.bf16.mxu0 0
        %924 = vmatpush2.bf16.msra.mxu0 0
        %925 = vmatprep.subr.bf16.mxu0 0
        %926 = vmatpush2.bf16.msra.mxu0 0
        %927 = vmatprep.mubr.bf16.mxu0 0
        %928 = vmatmul.mubr.bf16.gmra.mxu0 %v893
        %v929 = vpop.f32.mrf.mxu0
        %v930 = vadd.f32 0.0, %v929
        %v931 = vpop.f32.mrf.mxu0
        %v932 = vpop.f32.mrf.mxu0
        %v933 = vadd.f32 0.0, %v932
        %v934 = vpop.f32.mrf.mxu0
        %935 = vdwg.mxu0
        %v937 = vsel %vm795, %v818, 0
        %939 = vmatprep.subr.bf16.mxu0 0
        %940 = vmatpush1.bf16.msra.mxu0 0
        %941 = vmatprep.subr.bf16.mxu0 0
        %942 = vmatpush1.bf16.msra.mxu0 0
        %943 = vmatprep.subr.bf16.mxu0 0
        %944 = vmatpush1.bf16.msra.mxu0 0
        %945 = vmatprep.subr.bf16.mxu0 0
        %946 = vmatpush1.bf16.msra.mxu0 0
        %947 = vmatprep.subr.bf16.mxu0 0
        %948 = vmatpush1.bf16.msra.mxu0 0
        %949 = vmatprep.subr.bf16.mxu0 0
        %950 = vmatpush1.bf16.msra.mxu0 0
        %951 = vmatprep.subr.bf16.mxu0 0
        %952 = vmatpush1.bf16.msra.mxu0 0
        %953 = vmatprep.subr.bf16.mxu0 0
        %954 = vmatpush1.bf16.msra.mxu0 %v743
        %955 = vmatprep.subr.bf16.mxu0 0
        %956 = vmatpush2.bf16.msra.mxu0 0
        %957 = vmatprep.subr.bf16.mxu0 0
        %958 = vmatpush2.bf16.msra.mxu0 0
        %959 = vmatprep.subr.bf16.mxu0 0
        %960 = vmatpush2.bf16.msra.mxu0 0
        %961 = vmatprep.subr.bf16.mxu0 0
        %962 = vmatpush2.bf16.msra.mxu0 0
        %963 = vmatprep.subr.bf16.mxu0 0
        %964 = vmatpush2.bf16.msra.mxu0 0
        %965 = vmatprep.subr.bf16.mxu0 0
        %966 = vmatpush2.bf16.msra.mxu0 0
        %967 = vmatprep.subr.bf16.mxu0 0
        %968 = vmatpush2.bf16.msra.mxu0 0
        %969 = vmatprep.subr.bf16.mxu0 0
        %970 = vmatpush2.bf16.msra.mxu0 0
        %971 = vmatprep.mubr.bf16.mxu0 0
        %972 = vmatmul.mubr.bf16.gmra.mxu0 %v937
        %v973 = vpop.f32.mrf.mxu0
        %v974 = vadd.f32 %v930, %v973
        %v975 = vpop.f32.mrf.mxu0
        %v976 = vpop.f32.mrf.mxu0
        %v977 = vadd.f32 %v933, %v976
        %v978 = vpop.f32.mrf.mxu0
        %979 = vdwg.mxu0
        %v980 = vmul.bf16 %v734, %v527
        %v981 = vmul.bf16 %v735, %v527
        %v983 = vsel %vm558, %v980, 0
        %985 = vmatprep.subr.bf16.mxu0 0
        %986 = vmatpush1.bf16.xpose.msra.mxu0 0
        %987 = vmatprep.subr.bf16.mxu0 0
        %988 = vmatpush1.bf16.xpose.msra.mxu0 0
        %989 = vmatprep.subr.bf16.mxu0 0
        %990 = vmatpush1.bf16.xpose.msra.mxu0 0
        %991 = vmatprep.subr.bf16.mxu0 0
        %992 = vmatpush1.bf16.xpose.msra.mxu0 0
        %993 = vmatprep.subr.bf16.mxu0 0
        %994 = vmatpush1.bf16.xpose.msra.mxu0 0
        %995 = vmatprep.subr.bf16.mxu0 0
        %996 = vmatpush1.bf16.xpose.msra.mxu0 0
        %997 = vmatprep.subr.bf16.mxu0 0
        %998 = vmatpush1.bf16.xpose.msra.mxu0 0
        %999 = vmatprep.subr.bf16.mxu0 0
        %1000 = vmatpush1.bf16.xpose.msra.mxu0 %v983
        %1001 = vmatprep.subr.bf16.mxu0 0
        %1002 = vmatpush2.bf16.xpose.msra.mxu0 0
        %1003 = vmatprep.subr.bf16.mxu0 0
        %1004 = vmatpush2.bf16.xpose.msra.mxu0 0
        %1005 = vmatprep.subr.bf16.mxu0 0
        %1006 = vmatpush2.bf16.xpose.msra.mxu0 0
        %1007 = vmatprep.subr.bf16.mxu0 0
        %1008 = vmatpush2.bf16.xpose.msra.mxu0 0
        %1009 = vmatprep.subr.bf16.mxu0 0
        %1010 = vmatpush2.bf16.xpose.msra.mxu0 0
        %1011 = vmatprep.subr.bf16.mxu0 0
        %1012 = vmatpush2.bf16.xpose.msra.mxu0 0
        %1013 = vmatprep.subr.bf16.mxu0 0
        %1014 = vmatpush2.bf16.xpose.msra.mxu0 0
        %1015 = vmatprep.subr.bf16.mxu0 0
        %1016 = vmatpush2.bf16.xpose.msra.mxu0 0
        %1017 = vmatprep.mubr.bf16.mxu0 0
        %1018 = vmatmul.mubr.bf16.gmra.mxu0 %v745
        %v1019 = vpop.f32.mrf.mxu0
        %v1020 = vadd.f32 0.0, %v1019
        %v1021 = vpop.f32.mrf.mxu0
        %v1022 = vpop.f32.mrf.mxu0
        %v1023 = vadd.f32 0.0, %v1022
        %v1024 = vpop.f32.mrf.mxu0
        %1025 = vdwg.mxu0
        %v1026 = vmul.f32 %v1020, 0.35355338
        %v1027 = vmul.f32 %v1023, 0.35355338
        %v1028 = vadd.f32 %v1026, %v740
        %v1029 = vadd.f32 %v1027, %v740
        %v1030 = vsel %vm795, %v1028, -inf
        %1031 = vmax.xlane.f32.xlu0 %v1030
        %v1032 = vpop.xlane.xlu0 %1031
        %v1033 = vsel %vm795, %v1029, -inf
        %1034 = vmax.xlane.f32.xlu0 %v1033
        %v1035 = vpop.xlane.xlu0 %1034
        %v1036 = vsub.f32 %v1028, %v1032
        %v1037 = vsub.f32 %v1029, %v1035
        %v1038 = vmul.f32 %v1036, 1.442695
        %v1039 = vpow.pop %v1038
        %v1040 = vmul.f32 %v1037, 1.442695
        %v1041 = vpow.pop %v1040
        %v1042 = vsel %vm795, %v1039, 0.0
        %1043 = vadd.xlane.f32.xlu0 %v1042
        %v1044 = vpop.xlane.xlu0 %1043
        %v1045 = vsel %vm795, %v1041, 0.0
        %1046 = vadd.xlane.f32.xlu0 %v1045
        %v1047 = vpop.xlane.xlu0 %1046
        %v1048 = vrcp.pop %v1044
        %v1049 = vrcp.pop %v1047
        %v1050 = vmul.f32 %v1039, %v1048
        %v1051 = vmul.f32 %v1041, %v1049
        %v1052 = vpack.c.bf16 %v1051, %v1050
        %v1054 = vsel %vm795, %v1052, 0
        %1056 = vmatprep.subr.bf16.mxu0 0
        %1057 = vmatpush1.bf16.msra.mxu0 0
        %1058 = vmatprep.subr.bf16.mxu0 0
        %1059 = vmatpush1.bf16.msra.mxu0 0
        %1060 = vmatprep.subr.bf16.mxu0 0
        %1061 = vmatpush1.bf16.msra.mxu0 0
        %1062 = vmatprep.subr.bf16.mxu0 0
        %1063 = vmatpush1.bf16.msra.mxu0 0
        %1064 = vmatprep.subr.bf16.mxu0 0
        %1065 = vmatpush1.bf16.msra.mxu0 0
        %1066 = vmatprep.subr.bf16.mxu0 0
        %1067 = vmatpush1.bf16.msra.mxu0 0
        %1068 = vmatprep.subr.bf16.mxu0 0
        %1069 = vmatpush1.bf16.msra.mxu0 0
        %1070 = vmatprep.subr.bf16.mxu0 0
        %1071 = vmatpush1.bf16.msra.mxu0 %v981
        %1072 = vmatprep.subr.bf16.mxu0 0
        %1073 = vmatpush2.bf16.msra.mxu0 0
        %1074 = vmatprep.subr.bf16.mxu0 0
        %1075 = vmatpush2.bf16.msra.mxu0 0
        %1076 = vmatprep.subr.bf16.mxu0 0
        %1077 = vmatpush2.bf16.msra.mxu0 0
        %1078 = vmatprep.subr.bf16.mxu0 0
        %1079 = vmatpush2.bf16.msra.mxu0 0
        %1080 = vmatprep.subr.bf16.mxu0 0
        %1081 = vmatpush2.bf16.msra.mxu0 0
        %1082 = vmatprep.subr.bf16.mxu0 0
        %1083 = vmatpush2.bf16.msra.mxu0 0
        %1084 = vmatprep.subr.bf16.mxu0 0
        %1085 = vmatpush2.bf16.msra.mxu0 0
        %1086 = vmatprep.subr.bf16.mxu0 0
        %1087 = vmatpush2.bf16.msra.mxu0 0
        %1088 = vmatprep.mubr.bf16.mxu0 0
        %1089 = vmatmul.mubr.bf16.gmra.mxu0 %v1054
        %v1090 = vpop.f32.mrf.mxu0
        %v1091 = vadd.f32 0.0, %v1090
        %v1092 = vpop.f32.mrf.mxu0
        %v1093 = vpop.f32.mrf.mxu0
        %v1094 = vadd.f32 0.0, %v1093
        %v1095 = vpop.f32.mrf.mxu0
        %1096 = vdwg.mxu0
        %v1097 = vadd.f32 %v974, %v1091
        %v1098 = vadd.f32 %v977, %v1094
        %v1099 = vmul.bf16 %v734, %v533
        %v1100 = vmul.bf16 %v735, %v533
        %v1102 = vsel %vm558, %v1099, 0
        %1104 = vmatprep.subr.bf16.mxu0 0
        %1105 = vmatpush1.bf16.xpose.msra.mxu0 0
        %1106 = vmatprep.subr.bf16.mxu0 0
        %1107 = vmatpush1.bf16.xpose.msra.mxu0 0
        %1108 = vmatprep.subr.bf16.mxu0 0
        %1109 = vmatpush1.bf16.xpose.msra.mxu0 0
        %1110 = vmatprep.subr.bf16.mxu0 0
        %1111 = vmatpush1.bf16.xpose.msra.mxu0 0
        %1112 = vmatprep.subr.bf16.mxu0 0
        %1113 = vmatpush1.bf16.xpose.msra.mxu0 0
        %1114 = vmatprep.subr.bf16.mxu0 0
        %1115 = vmatpush1.bf16.xpose.msra.mxu0 0
        %1116 = vmatprep.subr.bf16.mxu0 0
        %1117 = vmatpush1.bf16.xpose.msra.mxu0 0
        %1118 = vmatprep.subr.bf16.mxu0 0
        %1119 = vmatpush1.bf16.xpose.msra.mxu0 %v1102
        %1120 = vmatprep.subr.bf16.mxu0 0
        %1121 = vmatpush2.bf16.xpose.msra.mxu0 0
        %1122 = vmatprep.subr.bf16.mxu0 0
        %1123 = vmatpush2.bf16.xpose.msra.mxu0 0
        %1124 = vmatprep.subr.bf16.mxu0 0
        %1125 = vmatpush2.bf16.xpose.msra.mxu0 0
        %1126 = vmatprep.subr.bf16.mxu0 0
        %1127 = vmatpush2.bf16.xpose.msra.mxu0 0
        %1128 = vmatprep.subr.bf16.mxu0 0
        %1129 = vmatpush2.bf16.xpose.msra.mxu0 0
        %1130 = vmatprep.subr.bf16.mxu0 0
        %1131 = vmatpush2.bf16.xpose.msra.mxu0 0
        %1132 = vmatprep.subr.bf16.mxu0 0
        %1133 = vmatpush2.bf16.xpose.msra.mxu0 0
        %1134 = vmatprep.subr.bf16.mxu0 0
        %1135 = vmatpush2.bf16.xpose.msra.mxu0 0
        %1136 = vmatprep.mubr.bf16.mxu0 0
        %1137 = vmatmul.mubr.bf16.gmra.mxu0 %v745
        %v1138 = vpop.f32.mrf.mxu0
        %v1139 = vadd.f32 0.0, %v1138
        %v1140 = vpop.f32.mrf.mxu0
        %v1141 = vpop.f32.mrf.mxu0
        %v1142 = vadd.f32 0.0, %v1141
        %v1143 = vpop.f32.mrf.mxu0
        %1144 = vdwg.mxu0
        %v1145 = vmul.f32 %v1139, 0.35355338
        %v1146 = vmul.f32 %v1142, 0.35355338
        %v1147 = vadd.f32 %v1145, %v740
        %v1148 = vadd.f32 %v1146, %v740
        %v1149 = vsel %vm795, %v1147, -inf
        %1150 = vmax.xlane.f32.xlu0 %v1149
        %v1151 = vpop.xlane.xlu0 %1150
        %v1152 = vsel %vm795, %v1148, -inf
        %1153 = vmax.xlane.f32.xlu0 %v1152
        %v1154 = vpop.xlane.xlu0 %1153
        %v1155 = vsub.f32 %v1147, %v1151
        %v1156 = vsub.f32 %v1148, %v1154
        %v1157 = vmul.f32 %v1155, 1.442695
        %v1158 = vpow.pop %v1157
        %v1159 = vmul.f32 %v1156, 1.442695
        %v1160 = vpow.pop %v1159
        %v1161 = vsel %vm795, %v1158, 0.0
        %1162 = vadd.xlane.f32.xlu0 %v1161
        %v1163 = vpop.xlane.xlu0 %1162
        %v1164 = vsel %vm795, %v1160, 0.0
        %1165 = vadd.xlane.f32.xlu0 %v1164
        %v1166 = vpop.xlane.xlu0 %1165
        %v1167 = vrcp.pop %v1163
        %v1168 = vrcp.pop %v1166
        %v1169 = vmul.f32 %v1158, %v1167
        %v1170 = vmul.f32 %v1160, %v1168
        %v1171 = vpack.c.bf16 %v1170, %v1169
        %v1173 = vsel %vm795, %v1171, 0
        %1175 = vmatprep.subr.bf16.mxu0 0
        %1176 = vmatpush1.bf16.msra.mxu0 0
        %1177 = vmatprep.subr.bf16.mxu0 0
        %1178 = vmatpush1.bf16.msra.mxu0 0
        %1179 = vmatprep.subr.bf16.mxu0 0
        %1180 = vmatpush1.bf16.msra.mxu0 0
        %1181 = vmatprep.subr.bf16.mxu0 0
        %1182 = vmatpush1.bf16.msra.mxu0 0
        %1183 = vmatprep.subr.bf16.mxu0 0
        %1184 = vmatpush1.bf16.msra.mxu0 0
        %1185 = vmatprep.subr.bf16.mxu0 0
        %1186 = vmatpush1.bf16.msra.mxu0 0
        %1187 = vmatprep.subr.bf16.mxu0 0
        %1188 = vmatpush1.bf16.msra.mxu0 0
        %1189 = vmatprep.subr.bf16.mxu0 0
        %1190 = vmatpush1.bf16.msra.mxu0 %v1100
        %1191 = vmatprep.subr.bf16.mxu0 0
        %1192 = vmatpush2.bf16.msra.mxu0 0
        %1193 = vmatprep.subr.bf16.mxu0 0
        %1194 = vmatpush2.bf16.msra.mxu0 0
        %1195 = vmatprep.subr.bf16.mxu0 0
        %1196 = vmatpush2.bf16.msra.mxu0 0
        %1197 = vmatprep.subr.bf16.mxu0 0
        %1198 = vmatpush2.bf16.msra.mxu0 0
        %1199 = vmatprep.subr.bf16.mxu0 0
        %1200 = vmatpush2.bf16.msra.mxu0 0
        %1201 = vmatprep.subr.bf16.mxu0 0
        %1202 = vmatpush2.bf16.msra.mxu0 0
        %1203 = vmatprep.subr.bf16.mxu0 0
        %1204 = vmatpush2.bf16.msra.mxu0 0
        %1205 = vmatprep.subr.bf16.mxu0 0
        %1206 = vmatpush2.bf16.msra.mxu0 0
        %1207 = vmatprep.mubr.bf16.mxu0 0
        %1208 = vmatmul.mubr.bf16.gmra.mxu0 %v1173
        %v1209 = vpop.f32.mrf.mxu0
        %v1210 = vadd.f32 0.0, %v1209
        %v1211 = vpop.f32.mrf.mxu0
        %v1212 = vpop.f32.mrf.mxu0
        %v1213 = vadd.f32 0.0, %v1212
        %v1214 = vpop.f32.mrf.mxu0
        %1215 = vdwg.mxu0
        %v1216 = vadd.f32 %v1097, %v1210
        %v1217 = vadd.f32 %v1098, %v1213
        %s1218 = scalar_lea.vmem %s4, 48
        %v1219 = vld [vmem:[%s1218] sm:$0xf]
        %v1220 = vld [vmem:[%s1218 + $0x4] sm:$0xf]
        %v1221 = vld [vmem:[%s1218 + $0x8] sm:$0xf]
        %v1222 = vld [vmem:[%s1218 + $0xc] sm:$0xf]
        %v1223 = vld [vmem:[%s5 + $0x3] sm:$0x1]
        %v1224 = vpack.c.bf16 %v1217, %v1216
        %v1225 = vlaneseq
        %v1226 = vshrl.u32 %v1225, 7
        %v1227 = vsub.s32 0, %v1226
        %v1228 = vrot.slane %v1223, %v1227
        %v1233 = vunpack.c.l.b16 %v1219
        %v1234 = vunpack.c.l.b16 %v1220
        %v1235 = vunpack.c.l.b16 %v1221
        %v1236 = vunpack.c.l.b16 %v1222
        %v1237 = vpack.c.b16 %v1234, %v1233
        %v1238 = vpack.c.b16 %v1236, %v1235
        %v1242 = vsel %vm558, %v1224, 0
        %1244 = vmatprep.subr.bf16.mxu0 0
        %1245 = vmatpush1.bf16.msra.mxu0 0
        %1246 = vmatprep.subr.bf16.mxu0 0
        %1247 = vmatpush1.bf16.msra.mxu0 0
        %1248 = vmatprep.subr.bf16.mxu0 0
        %1249 = vmatpush1.bf16.msra.mxu0 0
        %1250 = vmatprep.subr.bf16.mxu0 0
        %1251 = vmatpush1.bf16.msra.mxu0 0
        %1252 = vmatprep.subr.bf16.mxu0 0
        %1253 = vmatpush1.bf16.msra.mxu0 0
        %1254 = vmatprep.subr.bf16.mxu0 0
        %1255 = vmatpush1.bf16.msra.mxu0 0
        %1256 = vmatprep.subr.bf16.mxu0 0
        %1257 = vmatpush1.bf16.msra.mxu0 %v1238
        %1258 = vmatprep.subr.bf16.mxu0 0
        %1259 = vmatpush1.bf16.msra.mxu0 %v1237
        %1260 = vmatprep.subr.bf16.mxu0 0
        %1261 = vmatpush2.bf16.msra.mxu0 0
        %1262 = vmatprep.subr.bf16.mxu0 0
        %1263 = vmatpush2.bf16.msra.mxu0 0
        %1264 = vmatprep.subr.bf16.mxu0 0
        %1265 = vmatpush2.bf16.msra.mxu0 0
        %1266 = vmatprep.subr.bf16.mxu0 0
        %1267 = vmatpush2.bf16.msra.mxu0 0
        %1268 = vmatprep.subr.bf16.mxu0 0
        %1269 = vmatpush2.bf16.msra.mxu0 0
        %1270 = vmatprep.subr.bf16.mxu0 0
        %1271 = vmatpush2.bf16.msra.mxu0 0
        %1272 = vmatprep.subr.bf16.mxu0 0
        %1273 = vmatpush2.bf16.msra.mxu0 0
        %1274 = vmatprep.subr.bf16.mxu0 0
        %1275 = vmatpush2.bf16.msra.mxu0 0
        %1276 = vmatprep.mubr.bf16.mxu0 0
        %1277 = vmatmul.mubr.bf16.gmra.mxu0 %v1242
        %v1278 = vpop.f32.mrf.mxu0
        %v1279 = vadd.f32 %v1228, %v1278
        %v1280 = vpop.f32.mrf.mxu0
        %v1281 = vpop.f32.mrf.mxu0
        %v1282 = vadd.f32 %v1228, %v1281
        %v1283 = vpop.f32.mrf.mxu0
        %1284 = vdwg.mxu0
        %v1285 = vadd.f32 %v502, %v1279
        %v1286 = vadd.f32 %v503, %v1282
        %v1287 = vld [vmem:[%s10] sm:$0x1]
        %v1288 = vld [vmem:[%s11] sm:$0x1]
        %v1289 = vsel %vm558, %v1285, 0.0
        %1290 = vadd.xlane.f32.xlu0 %v1289
        %v1291 = vpop.xlane.xlu0 %1290
        %v1292 = vsel %vm558, %v1286, 0.0
        %1293 = vadd.xlane.f32.xlu0 %v1292
        %v1294 = vpop.xlane.xlu0 %1293
        %v1295 = vrcp.pop 32.0
        %v1296 = vmul.f32 %v1291, %v1295
        %v1297 = vmul.f32 %v1294, %v1295
        %v1298 = vmul.f32 %v1285, %v1285
        %v1299 = vmul.f32 %v1286, %v1286
        %v1300 = vsel %vm558, %v1298, 0.0
        %1301 = vadd.xlane.f32.xlu0 %v1300
        %v1302 = vpop.xlane.xlu0 %1301
        %v1303 = vsel %vm558, %v1299, 0.0
        %1304 = vadd.xlane.f32.xlu0 %v1303
        %v1305 = vpop.xlane.xlu0 %1304
        %v1306 = vmul.f32 %v1302, %v1295
        %v1307 = vmul.f32 %v1305, %v1295
        %v1308 = vmul.f32 %v1296, %v1296
        %v1309 = vmul.f32 %v1297, %v1297
        %v1310 = vsub.f32 %v1306, %v1308
        %v1311 = vsub.f32 %v1307, %v1309
        %v1312 = vmax.f32 %v1310, 0.0
        %v1313 = vmax.f32 %v1311, 0.0
        %v1314 = vsub.f32 %v1285, %v1296
        %v1315 = vsub.f32 %v1286, %v1297
        %v1316 = vadd.f32 %v1312, 1e-05
        %v1317 = vadd.f32 %v1313, 1e-05
        %v1318 = vrsqrt.pop %v1316
        %v1319 = vrsqrt.pop %v1317
        %v1320 = vmul.f32 %v1314, %v1318
        %v1321 = vmul.f32 %v1315, %v1319
        %v1322 = vlaneseq
        %v1323 = vshrl.u32 %v1322, 7
        %v1324 = vsub.s32 0, %v1323
        %v1325 = vrot.slane %v1287, %v1324
        %v1326 = vmul.f32 %v1320, %v1325
        %v1327 = vmul.f32 %v1321, %v1325
        %v1328 = vlaneseq
        %v1329 = vshrl.u32 %v1328, 7
        %v1330 = vsub.s32 0, %v1329
        %v1331 = vrot.slane %v1288, %v1330
        %v1332 = vadd.f32 %v1326, %v1331
        %v1333 = vadd.f32 %v1327, %v1331
        %v1334 = vld [vmem:[%s6] sm:$0xf]
        %v1335 = vld [vmem:[%s6 + $0x4] sm:$0xf]
        %v1336 = vld [vmem:[%s6 + $0x8] sm:$0xf]
        %v1337 = vld [vmem:[%s6 + $0xc] sm:$0xf]
        %v1338 = vld [vmem:[%s7] sm:$0x1]
        %v1339 = vpack.c.bf16 %v1333, %v1332
        %v1340 = vlaneseq
        %v1341 = vshrl.u32 %v1340, 7
        %v1342 = vsub.s32 0, %v1341
        %v1343 = vrot.slane %v1338, %v1342
        %v1348 = vunpack.c.l.b16 %v1334
        %v1349 = vunpack.c.l.b16 %v1335
        %v1350 = vunpack.c.l.b16 %v1336
        %v1351 = vunpack.c.l.b16 %v1337
        %v1352 = vpack.c.b16 %v1349, %v1348
        %v1353 = vpack.c.b16 %v1351, %v1350
        %v1357 = vsel %vm558, %v1339, 0
        %1359 = vmatprep.subr.bf16.mxu0 0
        %1360 = vmatpush1.bf16.msra.mxu0 0
        %1361 = vmatprep.subr.bf16.mxu0 0
        %1362 = vmatpush1.bf16.msra.mxu0 0
        %1363 = vmatprep.subr.bf16.mxu0 0
        %1364 = vmatpush1.bf16.msra.mxu0 0
        %1365 = vmatprep.subr.bf16.mxu0 0
        %1366 = vmatpush1.bf16.msra.mxu0 0
        %1367 = vmatprep.subr.bf16.mxu0 0
        %1368 = vmatpush1.bf16.msra.mxu0 0
        %1369 = vmatprep.subr.bf16.mxu0 0
        %1370 = vmatpush1.bf16.msra.mxu0 0
        %1371 = vmatprep.subr.bf16.mxu0 0
        %1372 = vmatpush1.bf16.msra.mxu0 %v1353
        %1373 = vmatprep.subr.bf16.mxu0 0
        %1374 = vmatpush1.bf16.msra.mxu0 %v1352
        %1375 = vmatprep.subr.bf16.mxu0 0
        %1376 = vmatpush2.bf16.msra.mxu0 0
        %1377 = vmatprep.subr.bf16.mxu0 0
        %1378 = vmatpush2.bf16.msra.mxu0 0
        %1379 = vmatprep.subr.bf16.mxu0 0
        %1380 = vmatpush2.bf16.msra.mxu0 0
        %1381 = vmatprep.subr.bf16.mxu0 0
        %1382 = vmatpush2.bf16.msra.mxu0 0
        %1383 = vmatprep.subr.bf16.mxu0 0
        %1384 = vmatpush2.bf16.msra.mxu0 0
        %1385 = vmatprep.subr.bf16.mxu0 0
        %1386 = vmatpush2.bf16.msra.mxu0 0
        %1387 = vmatprep.subr.bf16.mxu0 0
        %1388 = vmatpush2.bf16.msra.mxu0 0
        %1389 = vmatprep.subr.bf16.mxu0 0
        %1390 = vmatpush2.bf16.msra.mxu0 0
        %1391 = vmatprep.mubr.bf16.mxu0 0
        %1392 = vmatmul.mubr.bf16.gmra.mxu0 %v1357
        %v1393 = vpop.f32.mrf.mxu0
        %v1394 = vadd.f32 %v1343, %v1393
        %v1395 = vpop.f32.mrf.mxu0
        %v1396 = vpop.f32.mrf.mxu0
        %v1397 = vadd.f32 %v1343, %v1396
        %v1398 = vpop.f32.mrf.mxu0
        %1399 = vdwg.mxu0
        %v1400 = vmax.f32 %v1394, 0.0
        %v1401 = vmax.f32 %v1397, 0.0
        %v1402 = vld [vmem:[%s8] sm:$0xf]
        %v1403 = vld [vmem:[%s8 + $0x4] sm:$0xf]
        %v1404 = vld [vmem:[%s8 + $0x8] sm:$0xf]
        %v1405 = vld [vmem:[%s8 + $0xc] sm:$0xf]
        %v1406 = vld [vmem:[%s8 + $0x10] sm:$0xf]
        %v1407 = vld [vmem:[%s8 + $0x14] sm:$0xf]
        %v1408 = vld [vmem:[%s8 + $0x18] sm:$0xf]
        %v1409 = vld [vmem:[%s8 + $0x1c] sm:$0xf]
        %v1410 = vld [vmem:[%s9] sm:$0x1]
        %v1411 = vpack.c.bf16 %v1401, %v1400
        %v1412 = vlaneseq
        %v1413 = vshrl.u32 %v1412, 7
        %v1414 = vsub.s32 0, %v1413
        %v1415 = vrot.slane %v1410, %v1414
        %v1424 = vunpack.c.l.b16 %v1402
        %v1425 = vunpack.c.l.b16 %v1403
        %v1426 = vunpack.c.l.b16 %v1404
        %v1427 = vunpack.c.l.b16 %v1405
        %v1428 = vunpack.c.l.b16 %v1406
        %v1429 = vunpack.c.l.b16 %v1407
        %v1430 = vunpack.c.l.b16 %v1408
        %v1431 = vunpack.c.l.b16 %v1409
        %v1432 = vpack.c.b16 %v1425, %v1424
        %v1433 = vpack.c.b16 %v1427, %v1426
        %v1434 = vpack.c.b16 %v1429, %v1428
        %v1435 = vpack.c.b16 %v1431, %v1430
        %vm1440 = vcmask 523264
        %v1442 = vsel %vm1440, %v1411, 0
        %1444 = vmatprep.subr.bf16.mxu0 0
        %1445 = vmatpush1.bf16.msra.mxu0 0
        %1446 = vmatprep.subr.bf16.mxu0 0
        %1447 = vmatpush1.bf16.msra.mxu0 0
        %1448 = vmatprep.subr.bf16.mxu0 0
        %1449 = vmatpush1.bf16.msra.mxu0 0
        %1450 = vmatprep.subr.bf16.mxu0 0
        %1451 = vmatpush1.bf16.msra.mxu0 0
        %1452 = vmatprep.subr.bf16.mxu0 0
        %1453 = vmatpush1.bf16.msra.mxu0 %v1435
        %1454 = vmatprep.subr.bf16.mxu0 0
        %1455 = vmatpush1.bf16.msra.mxu0 %v1434
        %1456 = vmatprep.subr.bf16.mxu0 0
        %1457 = vmatpush1.bf16.msra.mxu0 %v1433
        %1458 = vmatprep.subr.bf16.mxu0 0
        %1459 = vmatpush1.bf16.msra.mxu0 %v1432
        %1460 = vmatprep.subr.bf16.mxu0 0
        %1461 = vmatpush2.bf16.msra.mxu0 0
        %1462 = vmatprep.subr.bf16.mxu0 0
        %1463 = vmatpush2.bf16.msra.mxu0 0
        %1464 = vmatprep.subr.bf16.mxu0 0
        %1465 = vmatpush2.bf16.msra.mxu0 0
        %1466 = vmatprep.subr.bf16.mxu0 0
        %1467 = vmatpush2.bf16.msra.mxu0 0
        %1468 = vmatprep.subr.bf16.mxu0 0
        %1469 = vmatpush2.bf16.msra.mxu0 0
        %1470 = vmatprep.subr.bf16.mxu0 0
        %1471 = vmatpush2.bf16.msra.mxu0 0
        %1472 = vmatprep.subr.bf16.mxu0 0
        %1473 = vmatpush2.bf16.msra.mxu0 0
        %1474 = vmatprep.subr.bf16.mxu0 0
        %1475 = vmatpush2.bf16.msra.mxu0 0
        %1476 = vmatprep.mubr.bf16.mxu0 0
        %1477 = vmatmul.mubr.bf16.gmra.mxu0 %v1442
        %v1478 = vpop.f32.mrf.mxu0
        %v1479 = vadd.f32 %v1415, %v1478
        %v1480 = vpop.f32.mrf.mxu0
        %v1481 = vpop.f32.mrf.mxu0
        %v1482 = vadd.f32 %v1415, %v1481
        %v1483 = vpop.f32.mrf.mxu0
        %1484 = vdwg.mxu0
        %v1485 = vadd.f32 %v1332, %v1479
        %v1486 = vadd.f32 %v1333, %v1482
        %v1487 = vld [vmem:[%s10 + $0x1] sm:$0x1]
        %v1488 = vld [vmem:[%s11 + $0x1] sm:$0x1]
        %v1489 = vsel %vm558, %v1485, 0.0
        %1490 = vadd.xlane.f32.xlu0 %v1489
        %v1491 = vpop.xlane.xlu0 %1490
        %v1492 = vsel %vm558, %v1486, 0.0
        %1493 = vadd.xlane.f32.xlu0 %v1492
        %v1494 = vpop.xlane.xlu0 %1493
        %v1495 = vmul.f32 %v1491, %v1295
        %v1496 = vmul.f32 %v1494, %v1295
        %v1497 = vmul.f32 %v1485, %v1485
        %v1498 = vmul.f32 %v1486, %v1486
        %v1499 = vsel %vm558, %v1497, 0.0
        %1500 = vadd.xlane.f32.xlu0 %v1499
        %v1501 = vpop.xlane.xlu0 %1500
        %v1502 = vsel %vm558, %v1498, 0.0
        %1503 = vadd.xlane.f32.xlu0 %v1502
        %v1504 = vpop.xlane.xlu0 %1503
        %v1505 = vmul.f32 %v1501, %v1295
        %v1506 = vmul.f32 %v1504, %v1295
        %v1507 = vmul.f32 %v1495, %v1495
        %v1508 = vmul.f32 %v1496, %v1496
        %v1509 = vsub.f32 %v1505, %v1507
        %v1510 = vsub.f32 %v1506, %v1508
        %v1511 = vmax.f32 %v1509, 0.0
        %v1512 = vmax.f32 %v1510, 0.0
        %v1513 = vsub.f32 %v1485, %v1495
        %v1514 = vsub.f32 %v1486, %v1496
        %v1515 = vadd.f32 %v1511, 1e-05
        %v1516 = vadd.f32 %v1512, 1e-05
        %v1517 = vrsqrt.pop %v1515
        %v1518 = vrsqrt.pop %v1516
        %v1519 = vmul.f32 %v1513, %v1517
        %v1520 = vmul.f32 %v1514, %v1518
        %v1521 = vlaneseq
        %v1522 = vshrl.u32 %v1521, 7
        %v1523 = vsub.s32 0, %v1522
        %v1524 = vrot.slane %v1487, %v1523
        %v1525 = vmul.f32 %v1519, %v1524
        %v1526 = vmul.f32 %v1520, %v1524
        %v1527 = vlaneseq
        %v1528 = vshrl.u32 %v1527, 7
        %v1529 = vsub.s32 0, %v1528
        %v1530 = vrot.slane %v1488, %v1529
        %v1531 = vadd.f32 %v1525, %v1530
        %v1532 = vadd.f32 %v1526, %v1530
        %v1533 = vadd.f32 %v1531, %v504
        %v1534 = vadd.f32 %v1532, %v505
        %s1535 = scalar_lea.vmem %s4, 64
        %v1536 = vld [vmem:[%s1535] sm:$0xf]
        %v1537 = vld [vmem:[%s1535 + $0x4] sm:$0xf]
        %v1538 = vld [vmem:[%s1535 + $0x8] sm:$0xf]
        %v1539 = vld [vmem:[%s1535 + $0xc] sm:$0xf]
        %v1540 = vld [vmem:[%s5 + $0x4] sm:$0x1]
        %v1541 = vpack.c.bf16 %v1534, %v1533
        %v1542 = vlaneseq
        %v1543 = vshrl.u32 %v1542, 7
        %v1544 = vsub.s32 0, %v1543
        %v1545 = vrot.slane %v1540, %v1544
        %v1550 = vunpack.c.l.b16 %v1536
        %v1551 = vunpack.c.l.b16 %v1537
        %v1552 = vunpack.c.l.b16 %v1538
        %v1553 = vunpack.c.l.b16 %v1539
        %v1554 = vpack.c.b16 %v1551, %v1550
        %v1555 = vpack.c.b16 %v1553, %v1552
        %v1559 = vsel %vm558, %v1541, 0
        %1561 = vmatprep.subr.bf16.mxu0 0
        %1562 = vmatpush1.bf16.msra.mxu0 0
        %1563 = vmatprep.subr.bf16.mxu0 0
        %1564 = vmatpush1.bf16.msra.mxu0 0
        %1565 = vmatprep.subr.bf16.mxu0 0
        %1566 = vmatpush1.bf16.msra.mxu0 0
        %1567 = vmatprep.subr.bf16.mxu0 0
        %1568 = vmatpush1.bf16.msra.mxu0 0
        %1569 = vmatprep.subr.bf16.mxu0 0
        %1570 = vmatpush1.bf16.msra.mxu0 0
        %1571 = vmatprep.subr.bf16.mxu0 0
        %1572 = vmatpush1.bf16.msra.mxu0 0
        %1573 = vmatprep.subr.bf16.mxu0 0
        %1574 = vmatpush1.bf16.msra.mxu0 %v1555
        %1575 = vmatprep.subr.bf16.mxu0 0
        %1576 = vmatpush1.bf16.msra.mxu0 %v1554
        %1577 = vmatprep.subr.bf16.mxu0 0
        %1578 = vmatpush2.bf16.msra.mxu0 0
        %1579 = vmatprep.subr.bf16.mxu0 0
        %1580 = vmatpush2.bf16.msra.mxu0 0
        %1581 = vmatprep.subr.bf16.mxu0 0
        %1582 = vmatpush2.bf16.msra.mxu0 0
        %1583 = vmatprep.subr.bf16.mxu0 0
        %1584 = vmatpush2.bf16.msra.mxu0 0
        %1585 = vmatprep.subr.bf16.mxu0 0
        %1586 = vmatpush2.bf16.msra.mxu0 0
        %1587 = vmatprep.subr.bf16.mxu0 0
        %1588 = vmatpush2.bf16.msra.mxu0 0
        %1589 = vmatprep.subr.bf16.mxu0 0
        %1590 = vmatpush2.bf16.msra.mxu0 0
        %1591 = vmatprep.subr.bf16.mxu0 0
        %1592 = vmatpush2.bf16.msra.mxu0 0
        %1593 = vmatprep.mubr.bf16.mxu0 0
        %1594 = vmatmul.mubr.bf16.gmra.mxu0 %v1559
        %v1595 = vpop.f32.mrf.mxu0
        %v1596 = vadd.f32 %v1545, %v1595
        %v1597 = vpop.f32.mrf.mxu0
        %v1598 = vpop.f32.mrf.mxu0
        %v1599 = vadd.f32 %v1545, %v1598
        %v1600 = vpop.f32.mrf.mxu0
        %1601 = vdwg.mxu0
        %s1602 = scalar_lea.vmem %s4, 80
        %v1603 = vld [vmem:[%s1602] sm:$0xf]
        %v1604 = vld [vmem:[%s1602 + $0x4] sm:$0xf]
        %v1605 = vld [vmem:[%s1602 + $0x8] sm:$0xf]
        %v1606 = vld [vmem:[%s1602 + $0xc] sm:$0xf]
        %v1607 = vld [vmem:[%s5 + $0x5] sm:$0x1]
        %v1608 = vlaneseq
        %v1609 = vshrl.u32 %v1608, 7
        %v1610 = vsub.s32 0, %v1609
        %v1611 = vrot.slane %v1607, %v1610
        %v1616 = vunpack.c.l.b16 %v1603
        %v1617 = vunpack.c.l.b16 %v1604
        %v1618 = vunpack.c.l.b16 %v1605
        %v1619 = vunpack.c.l.b16 %v1606
        %v1620 = vpack.c.b16 %v1617, %v1616
        %v1621 = vpack.c.b16 %v1619, %v1618
        %1624 = vmatprep.subr.bf16.mxu0 0
        %1625 = vmatpush1.bf16.msra.mxu0 0
        %1626 = vmatprep.subr.bf16.mxu0 0
        %1627 = vmatpush1.bf16.msra.mxu0 0
        %1628 = vmatprep.subr.bf16.mxu0 0
        %1629 = vmatpush1.bf16.msra.mxu0 0
        %1630 = vmatprep.subr.bf16.mxu0 0
        %1631 = vmatpush1.bf16.msra.mxu0 0
        %1632 = vmatprep.subr.bf16.mxu0 0
        %1633 = vmatpush1.bf16.msra.mxu0 0
        %1634 = vmatprep.subr.bf16.mxu0 0
        %1635 = vmatpush1.bf16.msra.mxu0 0
        %1636 = vmatprep.subr.bf16.mxu0 0
        %1637 = vmatpush1.bf16.msra.mxu0 %v1621
        %1638 = vmatprep.subr.bf16.mxu0 0
        %1639 = vmatpush1.bf16.msra.mxu0 %v1620
        %1640 = vmatprep.subr.bf16.mxu0 0
        %1641 = vmatpush2.bf16.msra.mxu0 0
        %1642 = vmatprep.subr.bf16.mxu0 0
        %1643 = vmatpush2.bf16.msra.mxu0 0
        %1644 = vmatprep.subr.bf16.mxu0 0
        %1645 = vmatpush2.bf16.msra.mxu0 0
        %1646 = vmatprep.subr.bf16.mxu0 0
        %1647 = vmatpush2.bf16.msra.mxu0 0
        %1648 = vmatprep.subr.bf16.mxu0 0
        %1649 = vmatpush2.bf16.msra.mxu0 0
        %1650 = vmatprep.subr.bf16.mxu0 0
        %1651 = vmatpush2.bf16.msra.mxu0 0
        %1652 = vmatprep.subr.bf16.mxu0 0
        %1653 = vmatpush2.bf16.msra.mxu0 0
        %1654 = vmatprep.subr.bf16.mxu0 0
        %1655 = vmatpush2.bf16.msra.mxu0 0
        %1656 = vmatprep.mubr.bf16.mxu0 0
        %1657 = vmatmul.mubr.bf16.gmra.mxu0 %v1559
        %v1658 = vpop.f32.mrf.mxu0
        %v1659 = vadd.f32 %v1611, %v1658
        %v1660 = vpop.f32.mrf.mxu0
        %v1661 = vpop.f32.mrf.mxu0
        %v1662 = vadd.f32 %v1611, %v1661
        %v1663 = vpop.f32.mrf.mxu0
        %1664 = vdwg.mxu0
        %s1665 = scalar_lea.vmem %s4, 96
        %v1666 = vld [vmem:[%s1665] sm:$0xf]
        %v1667 = vld [vmem:[%s1665 + $0x4] sm:$0xf]
        %v1668 = vld [vmem:[%s1665 + $0x8] sm:$0xf]
        %v1669 = vld [vmem:[%s1665 + $0xc] sm:$0xf]
        %v1670 = vld [vmem:[%s5 + $0x6] sm:$0x1]
        %v1671 = vpack.c.bf16 %v1532, %v1531
        %v1672 = vlaneseq
        %v1673 = vshrl.u32 %v1672, 7
        %v1674 = vsub.s32 0, %v1673
        %v1675 = vrot.slane %v1670, %v1674
        %v1680 = vunpack.c.l.b16 %v1666
        %v1681 = vunpack.c.l.b16 %v1667
        %v1682 = vunpack.c.l.b16 %v1668
        %v1683 = vunpack.c.l.b16 %v1669
        %v1684 = vpack.c.b16 %v1681, %v1680
        %v1685 = vpack.c.b16 %v1683, %v1682
        %v1689 = vsel %vm558, %v1671, 0
        %1691 = vmatprep.subr.bf16.mxu0 0
        %1692 = vmatpush1.bf16.msra.mxu0 0
        %1693 = vmatprep.subr.bf16.mxu0 0
        %1694 = vmatpush1.bf16.msra.mxu0 0
        %1695 = vmatprep.subr.bf16.mxu0 0
        %1696 = vmatpush1.bf16.msra.mxu0 0
        %1697 = vmatprep.subr.bf16.mxu0 0
        %1698 = vmatpush1.bf16.msra.mxu0 0
        %1699 = vmatprep.subr.bf16.mxu0 0
        %1700 = vmatpush1.bf16.msra.mxu0 0
        %1701 = vmatprep.subr.bf16.mxu0 0
        %1702 = vmatpush1.bf16.msra.mxu0 0
        %1703 = vmatprep.subr.bf16.mxu0 0
        %1704 = vmatpush1.bf16.msra.mxu0 %v1685
        %1705 = vmatprep.subr.bf16.mxu0 0
        %1706 = vmatpush1.bf16.msra.mxu0 %v1684
        %1707 = vmatprep.subr.bf16.mxu0 0
        %1708 = vmatpush2.bf16.msra.mxu0 0
        %1709 = vmatprep.subr.bf16.mxu0 0
        %1710 = vmatpush2.bf16.msra.mxu0 0
        %1711 = vmatprep.subr.bf16.mxu0 0
        %1712 = vmatpush2.bf16.msra.mxu0 0
        %1713 = vmatprep.subr.bf16.mxu0 0
        %1714 = vmatpush2.bf16.msra.mxu0 0
        %1715 = vmatprep.subr.bf16.mxu0 0
        %1716 = vmatpush2.bf16.msra.mxu0 0
        %1717 = vmatprep.subr.bf16.mxu0 0
        %1718 = vmatpush2.bf16.msra.mxu0 0
        %1719 = vmatprep.subr.bf16.mxu0 0
        %1720 = vmatpush2.bf16.msra.mxu0 0
        %1721 = vmatprep.subr.bf16.mxu0 0
        %1722 = vmatpush2.bf16.msra.mxu0 0
        %1723 = vmatprep.mubr.bf16.mxu0 0
        %1724 = vmatmul.mubr.bf16.gmra.mxu0 %v1689
        %v1725 = vpop.f32.mrf.mxu0
        %v1726 = vadd.f32 %v1675, %v1725
        %v1727 = vpop.f32.mrf.mxu0
        %v1728 = vpop.f32.mrf.mxu0
        %v1729 = vadd.f32 %v1675, %v1728
        %v1730 = vpop.f32.mrf.mxu0
        %1731 = vdwg.mxu0
        %v1732 = vpack.c.bf16 %v1599, %v1596
        %v1733 = vpack.c.bf16 %v1662, %v1659
        %v1734 = vpack.c.bf16 %v1729, %v1726
        %v1735 = vmul.bf16 %v1733, %v515
        %v1736 = vmul.bf16 %v1734, %v515
        %v1738 = vsel %vm558, %v1732, 0
        %v1741 = vsel %vm558, %v1735, 0
        %1743 = vmatprep.subr.bf16.mxu0 0
        %1744 = vmatpush1.bf16.xpose.msra.mxu0 0
        %1745 = vmatprep.subr.bf16.mxu0 0
        %1746 = vmatpush1.bf16.xpose.msra.mxu0 0
        %1747 = vmatprep.subr.bf16.mxu0 0
        %1748 = vmatpush1.bf16.xpose.msra.mxu0 0
        %1749 = vmatprep.subr.bf16.mxu0 0
        %1750 = vmatpush1.bf16.xpose.msra.mxu0 0
        %1751 = vmatprep.subr.bf16.mxu0 0
        %1752 = vmatpush1.bf16.xpose.msra.mxu0 0
        %1753 = vmatprep.subr.bf16.mxu0 0
        %1754 = vmatpush1.bf16.xpose.msra.mxu0 0
        %1755 = vmatprep.subr.bf16.mxu0 0
        %1756 = vmatpush1.bf16.xpose.msra.mxu0 0
        %1757 = vmatprep.subr.bf16.mxu0 0
        %1758 = vmatpush1.bf16.xpose.msra.mxu0 %v1741
        %1759 = vmatprep.subr.bf16.mxu0 0
        %1760 = vmatpush2.bf16.xpose.msra.mxu0 0
        %1761 = vmatprep.subr.bf16.mxu0 0
        %1762 = vmatpush2.bf16.xpose.msra.mxu0 0
        %1763 = vmatprep.subr.bf16.mxu0 0
        %1764 = vmatpush2.bf16.xpose.msra.mxu0 0
        %1765 = vmatprep.subr.bf16.mxu0 0
        %1766 = vmatpush2.bf16.xpose.msra.mxu0 0
        %1767 = vmatprep.subr.bf16.mxu0 0
        %1768 = vmatpush2.bf16.xpose.msra.mxu0 0
        %1769 = vmatprep.subr.bf16.mxu0 0
        %1770 = vmatpush2.bf16.xpose.msra.mxu0 0
        %1771 = vmatprep.subr.bf16.mxu0 0
        %1772 = vmatpush2.bf16.xpose.msra.mxu0 0
        %1773 = vmatprep.subr.bf16.mxu0 0
        %1774 = vmatpush2.bf16.xpose.msra.mxu0 0
        %1775 = vmatprep.mubr.bf16.mxu0 0
        %1776 = vmatmul.mubr.bf16.gmra.mxu0 %v1738
        %v1777 = vpop.f32.mrf.mxu0
        %v1778 = vadd.f32 0.0, %v1777
        %v1779 = vpop.f32.mrf.mxu0
        %v1780 = vpop.f32.mrf.mxu0
        %v1781 = vadd.f32 0.0, %v1780
        %v1782 = vpop.f32.mrf.mxu0
        %1783 = vdwg.mxu0
        %v1784 = vmul.f32 %v1778, 0.35355338
        %v1785 = vmul.f32 %v1781, 0.35355338
        %v1786 = vadd.f32 %v1784, %v740
        %v1787 = vadd.f32 %v1785, %v740
        %v1788 = vsel %vm795, %v1786, -inf
        %1789 = vmax.xlane.f32.xlu0 %v1788
        %v1790 = vpop.xlane.xlu0 %1789
        %v1791 = vsel %vm795, %v1787, -inf
        %1792 = vmax.xlane.f32.xlu0 %v1791
        %v1793 = vpop.xlane.xlu0 %1792
        %v1794 = vsub.f32 %v1786, %v1790
        %v1795 = vsub.f32 %v1787, %v1793
        %v1796 = vmul.f32 %v1794, 1.442695
        %v1797 = vpow.pop %v1796
        %v1798 = vmul.f32 %v1795, 1.442695
        %v1799 = vpow.pop %v1798
        %v1800 = vsel %vm795, %v1797, 0.0
        %1801 = vadd.xlane.f32.xlu0 %v1800
        %v1802 = vpop.xlane.xlu0 %1801
        %v1803 = vsel %vm795, %v1799, 0.0
        %1804 = vadd.xlane.f32.xlu0 %v1803
        %v1805 = vpop.xlane.xlu0 %1804
        %v1806 = vrcp.pop %v1802
        %v1807 = vrcp.pop %v1805
        %v1808 = vmul.f32 %v1797, %v1806
        %v1809 = vmul.f32 %v1799, %v1807
        %v1810 = vpack.c.bf16 %v1809, %v1808
        %v1811 = vmul.bf16 %v1733, %v521
        %v1812 = vmul.bf16 %v1734, %v521
        %v1814 = vsel %vm558, %v1811, 0
        %1816 = vmatprep.subr.bf16.mxu0 0
        %1817 = vmatpush1.bf16.xpose.msra.mxu0 0
        %1818 = vmatprep.subr.bf16.mxu0 0
        %1819 = vmatpush1.bf16.xpose.msra.mxu0 0
        %1820 = vmatprep.subr.bf16.mxu0 0
        %1821 = vmatpush1.bf16.xpose.msra.mxu0 0
        %1822 = vmatprep.subr.bf16.mxu0 0
        %1823 = vmatpush1.bf16.xpose.msra.mxu0 0
        %1824 = vmatprep.subr.bf16.mxu0 0
        %1825 = vmatpush1.bf16.xpose.msra.mxu0 0
        %1826 = vmatprep.subr.bf16.mxu0 0
        %1827 = vmatpush1.bf16.xpose.msra.mxu0 0
        %1828 = vmatprep.subr.bf16.mxu0 0
        %1829 = vmatpush1.bf16.xpose.msra.mxu0 0
        %1830 = vmatprep.subr.bf16.mxu0 0
        %1831 = vmatpush1.bf16.xpose.msra.mxu0 %v1814
        %1832 = vmatprep.subr.bf16.mxu0 0
        %1833 = vmatpush2.bf16.xpose.msra.mxu0 0
        %1834 = vmatprep.subr.bf16.mxu0 0
        %1835 = vmatpush2.bf16.xpose.msra.mxu0 0
        %1836 = vmatprep.subr.bf16.mxu0 0
        %1837 = vmatpush2.bf16.xpose.msra.mxu0 0
        %1838 = vmatprep.subr.bf16.mxu0 0
        %1839 = vmatpush2.bf16.xpose.msra.mxu0 0
        %1840 = vmatprep.subr.bf16.mxu0 0
        %1841 = vmatpush2.bf16.xpose.msra.mxu0 0
        %1842 = vmatprep.subr.bf16.mxu0 0
        %1843 = vmatpush2.bf16.xpose.msra.mxu0 0
        %1844 = vmatprep.subr.bf16.mxu0 0
        %1845 = vmatpush2.bf16.xpose.msra.mxu0 0
        %1846 = vmatprep.subr.bf16.mxu0 0
        %1847 = vmatpush2.bf16.xpose.msra.mxu0 0
        %1848 = vmatprep.mubr.bf16.mxu0 0
        %1849 = vmatmul.mubr.bf16.gmra.mxu0 %v1738
        %v1850 = vpop.f32.mrf.mxu0
        %v1851 = vadd.f32 0.0, %v1850
        %v1852 = vpop.f32.mrf.mxu0
        %v1853 = vpop.f32.mrf.mxu0
        %v1854 = vadd.f32 0.0, %v1853
        %v1855 = vpop.f32.mrf.mxu0
        %1856 = vdwg.mxu0
        %v1857 = vmul.f32 %v1851, 0.35355338
        %v1858 = vmul.f32 %v1854, 0.35355338
        %v1859 = vadd.f32 %v1857, %v740
        %v1860 = vadd.f32 %v1858, %v740
        %v1861 = vsel %vm795, %v1859, -inf
        %1862 = vmax.xlane.f32.xlu0 %v1861
        %v1863 = vpop.xlane.xlu0 %1862
        %v1864 = vsel %vm795, %v1860, -inf
        %1865 = vmax.xlane.f32.xlu0 %v1864
        %v1866 = vpop.xlane.xlu0 %1865
        %v1867 = vsub.f32 %v1859, %v1863
        %v1868 = vsub.f32 %v1860, %v1866
        %v1869 = vmul.f32 %v1867, 1.442695
        %v1870 = vpow.pop %v1869
        %v1871 = vmul.f32 %v1868, 1.442695
        %v1872 = vpow.pop %v1871
        %v1873 = vsel %vm795, %v1870, 0.0
        %1874 = vadd.xlane.f32.xlu0 %v1873
        %v1875 = vpop.xlane.xlu0 %1874
        %v1876 = vsel %vm795, %v1872, 0.0
        %1877 = vadd.xlane.f32.xlu0 %v1876
        %v1878 = vpop.xlane.xlu0 %1877
        %v1879 = vrcp.pop %v1875
        %v1880 = vrcp.pop %v1878
        %v1881 = vmul.f32 %v1870, %v1879
        %v1882 = vmul.f32 %v1872, %v1880
        %v1883 = vpack.c.bf16 %v1882, %v1881
        %v1885 = vsel %vm795, %v1883, 0
        %1887 = vmatprep.subr.bf16.mxu0 0
        %1888 = vmatpush1.bf16.msra.mxu0 0
        %1889 = vmatprep.subr.bf16.mxu0 0
        %1890 = vmatpush1.bf16.msra.mxu0 0
        %1891 = vmatprep.subr.bf16.mxu0 0
        %1892 = vmatpush1.bf16.msra.mxu0 0
        %1893 = vmatprep.subr.bf16.mxu0 0
        %1894 = vmatpush1.bf16.msra.mxu0 0
        %1895 = vmatprep.subr.bf16.mxu0 0
        %1896 = vmatpush1.bf16.msra.mxu0 0
        %1897 = vmatprep.subr.bf16.mxu0 0
        %1898 = vmatpush1.bf16.msra.mxu0 0
        %1899 = vmatprep.subr.bf16.mxu0 0
        %1900 = vmatpush1.bf16.msra.mxu0 0
        %1901 = vmatprep.subr.bf16.mxu0 0
        %1902 = vmatpush1.bf16.msra.mxu0 %v1812
        %1903 = vmatprep.subr.bf16.mxu0 0
        %1904 = vmatpush2.bf16.msra.mxu0 0
        %1905 = vmatprep.subr.bf16.mxu0 0
        %1906 = vmatpush2.bf16.msra.mxu0 0
        %1907 = vmatprep.subr.bf16.mxu0 0
        %1908 = vmatpush2.bf16.msra.mxu0 0
        %1909 = vmatprep.subr.bf16.mxu0 0
        %1910 = vmatpush2.bf16.msra.mxu0 0
        %1911 = vmatprep.subr.bf16.mxu0 0
        %1912 = vmatpush2.bf16.msra.mxu0 0
        %1913 = vmatprep.subr.bf16.mxu0 0
        %1914 = vmatpush2.bf16.msra.mxu0 0
        %1915 = vmatprep.subr.bf16.mxu0 0
        %1916 = vmatpush2.bf16.msra.mxu0 0
        %1917 = vmatprep.subr.bf16.mxu0 0
        %1918 = vmatpush2.bf16.msra.mxu0 0
        %1919 = vmatprep.mubr.bf16.mxu0 0
        %1920 = vmatmul.mubr.bf16.gmra.mxu0 %v1885
        %v1921 = vpop.f32.mrf.mxu0
        %v1922 = vadd.f32 0.0, %v1921
        %v1923 = vpop.f32.mrf.mxu0
        %v1924 = vpop.f32.mrf.mxu0
        %v1925 = vadd.f32 0.0, %v1924
        %v1926 = vpop.f32.mrf.mxu0
        %1927 = vdwg.mxu0
        %v1929 = vsel %vm795, %v1810, 0
        %1931 = vmatprep.subr.bf16.mxu0 0
        %1932 = vmatpush1.bf16.msra.mxu0 0
        %1933 = vmatprep.subr.bf16.mxu0 0
        %1934 = vmatpush1.bf16.msra.mxu0 0
        %1935 = vmatprep.subr.bf16.mxu0 0
        %1936 = vmatpush1.bf16.msra.mxu0 0
        %1937 = vmatprep.subr.bf16.mxu0 0
        %1938 = vmatpush1.bf16.msra.mxu0 0
        %1939 = vmatprep.subr.bf16.mxu0 0
        %1940 = vmatpush1.bf16.msra.mxu0 0
        %1941 = vmatprep.subr.bf16.mxu0 0
        %1942 = vmatpush1.bf16.msra.mxu0 0
        %1943 = vmatprep.subr.bf16.mxu0 0
        %1944 = vmatpush1.bf16.msra.mxu0 0
        %1945 = vmatprep.subr.bf16.mxu0 0
        %1946 = vmatpush1.bf16.msra.mxu0 %v1736
        %1947 = vmatprep.subr.bf16.mxu0 0
        %1948 = vmatpush2.bf16.msra.mxu0 0
        %1949 = vmatprep.subr.bf16.mxu0 0
        %1950 = vmatpush2.bf16.msra.mxu0 0
        %1951 = vmatprep.subr.bf16.mxu0 0
        %1952 = vmatpush2.bf16.msra.mxu0 0
        %1953 = vmatprep.subr.bf16.mxu0 0
        %1954 = vmatpush2.bf16.msra.mxu0 0
        %1955 = vmatprep.subr.bf16.mxu0 0
        %1956 = vmatpush2.bf16.msra.mxu0 0
        %1957 = vmatprep.subr.bf16.mxu0 0
        %1958 = vmatpush2.bf16.msra.mxu0 0
        %1959 = vmatprep.subr.bf16.mxu0 0
        %1960 = vmatpush2.bf16.msra.mxu0 0
        %1961 = vmatprep.subr.bf16.mxu0 0
        %1962 = vmatpush2.bf16.msra.mxu0 0
        %1963 = vmatprep.mubr.bf16.mxu0 0
        %1964 = vmatmul.mubr.bf16.gmra.mxu0 %v1929
        %v1965 = vpop.f32.mrf.mxu0
        %v1966 = vadd.f32 %v1922, %v1965
        %v1967 = vpop.f32.mrf.mxu0
        %v1968 = vpop.f32.mrf.mxu0
        %v1969 = vadd.f32 %v1925, %v1968
        %v1970 = vpop.f32.mrf.mxu0
        %1971 = vdwg.mxu0
        %v1972 = vmul.bf16 %v1733, %v527
        %v1973 = vmul.bf16 %v1734, %v527
        %v1975 = vsel %vm558, %v1972, 0
        %1977 = vmatprep.subr.bf16.mxu0 0
        %1978 = vmatpush1.bf16.xpose.msra.mxu0 0
        %1979 = vmatprep.subr.bf16.mxu0 0
        %1980 = vmatpush1.bf16.xpose.msra.mxu0 0
        %1981 = vmatprep.subr.bf16.mxu0 0
        %1982 = vmatpush1.bf16.xpose.msra.mxu0 0
        %1983 = vmatprep.subr.bf16.mxu0 0
        %1984 = vmatpush1.bf16.xpose.msra.mxu0 0
        %1985 = vmatprep.subr.bf16.mxu0 0
        %1986 = vmatpush1.bf16.xpose.msra.mxu0 0
        %1987 = vmatprep.subr.bf16.mxu0 0
        %1988 = vmatpush1.bf16.xpose.msra.mxu0 0
        %1989 = vmatprep.subr.bf16.mxu0 0
        %1990 = vmatpush1.bf16.xpose.msra.mxu0 0
        %1991 = vmatprep.subr.bf16.mxu0 0
        %1992 = vmatpush1.bf16.xpose.msra.mxu0 %v1975
        %1993 = vmatprep.subr.bf16.mxu0 0
        %1994 = vmatpush2.bf16.xpose.msra.mxu0 0
        %1995 = vmatprep.subr.bf16.mxu0 0
        %1996 = vmatpush2.bf16.xpose.msra.mxu0 0
        %1997 = vmatprep.subr.bf16.mxu0 0
        %1998 = vmatpush2.bf16.xpose.msra.mxu0 0
        %1999 = vmatprep.subr.bf16.mxu0 0
        %2000 = vmatpush2.bf16.xpose.msra.mxu0 0
        %2001 = vmatprep.subr.bf16.mxu0 0
        %2002 = vmatpush2.bf16.xpose.msra.mxu0 0
        %2003 = vmatprep.subr.bf16.mxu0 0
        %2004 = vmatpush2.bf16.xpose.msra.mxu0 0
        %2005 = vmatprep.subr.bf16.mxu0 0
        %2006 = vmatpush2.bf16.xpose.msra.mxu0 0
        %2007 = vmatprep.subr.bf16.mxu0 0
        %2008 = vmatpush2.bf16.xpose.msra.mxu0 0
        %2009 = vmatprep.mubr.bf16.mxu0 0
        %2010 = vmatmul.mubr.bf16.gmra.mxu0 %v1738
        %v2011 = vpop.f32.mrf.mxu0
        %v2012 = vadd.f32 0.0, %v2011
        %v2013 = vpop.f32.mrf.mxu0
        %v2014 = vpop.f32.mrf.mxu0
        %v2015 = vadd.f32 0.0, %v2014
        %v2016 = vpop.f32.mrf.mxu0
        %2017 = vdwg.mxu0
        %v2018 = vmul.f32 %v2012, 0.35355338
        %v2019 = vmul.f32 %v2015, 0.35355338
        %v2020 = vadd.f32 %v2018, %v740
        %v2021 = vadd.f32 %v2019, %v740
        %v2022 = vsel %vm795, %v2020, -inf
        %2023 = vmax.xlane.f32.xlu0 %v2022
        %v2024 = vpop.xlane.xlu0 %2023
        %v2025 = vsel %vm795, %v2021, -inf
        %2026 = vmax.xlane.f32.xlu0 %v2025
        %v2027 = vpop.xlane.xlu0 %2026
        %v2028 = vsub.f32 %v2020, %v2024
        %v2029 = vsub.f32 %v2021, %v2027
        %v2030 = vmul.f32 %v2028, 1.442695
        %v2031 = vpow.pop %v2030
        %v2032 = vmul.f32 %v2029, 1.442695
        %v2033 = vpow.pop %v2032
        %v2034 = vsel %vm795, %v2031, 0.0
        %2035 = vadd.xlane.f32.xlu0 %v2034
        %v2036 = vpop.xlane.xlu0 %2035
        %v2037 = vsel %vm795, %v2033, 0.0
        %2038 = vadd.xlane.f32.xlu0 %v2037
        %v2039 = vpop.xlane.xlu0 %2038
        %v2040 = vrcp.pop %v2036
        %v2041 = vrcp.pop %v2039
        %v2042 = vmul.f32 %v2031, %v2040
        %v2043 = vmul.f32 %v2033, %v2041
        %v2044 = vpack.c.bf16 %v2043, %v2042
        %v2046 = vsel %vm795, %v2044, 0
        %2048 = vmatprep.subr.bf16.mxu0 0
        %2049 = vmatpush1.bf16.msra.mxu0 0
        %2050 = vmatprep.subr.bf16.mxu0 0
        %2051 = vmatpush1.bf16.msra.mxu0 0
        %2052 = vmatprep.subr.bf16.mxu0 0
        %2053 = vmatpush1.bf16.msra.mxu0 0
        %2054 = vmatprep.subr.bf16.mxu0 0
        %2055 = vmatpush1.bf16.msra.mxu0 0
        %2056 = vmatprep.subr.bf16.mxu0 0
        %2057 = vmatpush1.bf16.msra.mxu0 0
        %2058 = vmatprep.subr.bf16.mxu0 0
        %2059 = vmatpush1.bf16.msra.mxu0 0
        %2060 = vmatprep.subr.bf16.mxu0 0
        %2061 = vmatpush1.bf16.msra.mxu0 0
        %2062 = vmatprep.subr.bf16.mxu0 0
        %2063 = vmatpush1.bf16.msra.mxu0 %v1973
        %2064 = vmatprep.subr.bf16.mxu0 0
        %2065 = vmatpush2.bf16.msra.mxu0 0
        %2066 = vmatprep.subr.bf16.mxu0 0
        %2067 = vmatpush2.bf16.msra.mxu0 0
        %2068 = vmatprep.subr.bf16.mxu0 0
        %2069 = vmatpush2.bf16.msra.mxu0 0
        %2070 = vmatprep.subr.bf16.mxu0 0
        %2071 = vmatpush2.bf16.msra.mxu0 0
        %2072 = vmatprep.subr.bf16.mxu0 0
        %2073 = vmatpush2.bf16.msra.mxu0 0
        %2074 = vmatprep.subr.bf16.mxu0 0
        %2075 = vmatpush2.bf16.msra.mxu0 0
        %2076 = vmatprep.subr.bf16.mxu0 0
        %2077 = vmatpush2.bf16.msra.mxu0 0
        %2078 = vmatprep.subr.bf16.mxu0 0
        %2079 = vmatpush2.bf16.msra.mxu0 0
        %2080 = vmatprep.mubr.bf16.mxu0 0
        %2081 = vmatmul.mubr.bf16.gmra.mxu0 %v2046
        %v2082 = vpop.f32.mrf.mxu0
        %v2083 = vadd.f32 0.0, %v2082
        %v2084 = vpop.f32.mrf.mxu0
        %v2085 = vpop.f32.mrf.mxu0
        %v2086 = vadd.f32 0.0, %v2085
        %v2087 = vpop.f32.mrf.mxu0
        %2088 = vdwg.mxu0
        %v2089 = vadd.f32 %v1966, %v2083
        %v2090 = vadd.f32 %v1969, %v2086
        %v2091 = vmul.bf16 %v1733, %v533
        %v2092 = vmul.bf16 %v1734, %v533
        %v2094 = vsel %vm558, %v2091, 0
        %2096 = vmatprep.subr.bf16.mxu0 0
        %2097 = vmatpush1.bf16.xpose.msra.mxu0 0
        %2098 = vmatprep.subr.bf16.mxu0 0
        %2099 = vmatpush1.bf16.xpose.msra.mxu0 0
        %2100 = vmatprep.subr.bf16.mxu0 0
        %2101 = vmatpush1.bf16.xpose.msra.mxu0 0
        %2102 = vmatprep.subr.bf16.mxu0 0
        %2103 = vmatpush1.bf16.xpose.msra.mxu0 0
        %2104 = vmatprep.subr.bf16.mxu0 0
        %2105 = vmatpush1.bf16.xpose.msra.mxu0 0
        %2106 = vmatprep.subr.bf16.mxu0 0
        %2107 = vmatpush1.bf16.xpose.msra.mxu0 0
        %2108 = vmatprep.subr.bf16.mxu0 0
        %2109 = vmatpush1.bf16.xpose.msra.mxu0 0
        %2110 = vmatprep.subr.bf16.mxu0 0
        %2111 = vmatpush1.bf16.xpose.msra.mxu0 %v2094
        %2112 = vmatprep.subr.bf16.mxu0 0
        %2113 = vmatpush2.bf16.xpose.msra.mxu0 0
        %2114 = vmatprep.subr.bf16.mxu0 0
        %2115 = vmatpush2.bf16.xpose.msra.mxu0 0
        %2116 = vmatprep.subr.bf16.mxu0 0
        %2117 = vmatpush2.bf16.xpose.msra.mxu0 0
        %2118 = vmatprep.subr.bf16.mxu0 0
        %2119 = vmatpush2.bf16.xpose.msra.mxu0 0
        %2120 = vmatprep.subr.bf16.mxu0 0
        %2121 = vmatpush2.bf16.xpose.msra.mxu0 0
        %2122 = vmatprep.subr.bf16.mxu0 0
        %2123 = vmatpush2.bf16.xpose.msra.mxu0 0
        %2124 = vmatprep.subr.bf16.mxu0 0
        %2125 = vmatpush2.bf16.xpose.msra.mxu0 0
        %2126 = vmatprep.subr.bf16.mxu0 0
        %2127 = vmatpush2.bf16.xpose.msra.mxu0 0
        %2128 = vmatprep.mubr.bf16.mxu0 0
        %2129 = vmatmul.mubr.bf16.gmra.mxu0 %v1738
        %v2130 = vpop.f32.mrf.mxu0
        %v2131 = vadd.f32 0.0, %v2130
        %v2132 = vpop.f32.mrf.mxu0
        %v2133 = vpop.f32.mrf.mxu0
        %v2134 = vadd.f32 0.0, %v2133
        %v2135 = vpop.f32.mrf.mxu0
        %2136 = vdwg.mxu0
        %v2137 = vmul.f32 %v2131, 0.35355338
        %v2138 = vmul.f32 %v2134, 0.35355338
        %v2139 = vadd.f32 %v2137, %v740
        %v2140 = vadd.f32 %v2138, %v740
        %v2141 = vsel %vm795, %v2139, -inf
        %2142 = vmax.xlane.f32.xlu0 %v2141
        %v2143 = vpop.xlane.xlu0 %2142
        %v2144 = vsel %vm795, %v2140, -inf
        %2145 = vmax.xlane.f32.xlu0 %v2144
        %v2146 = vpop.xlane.xlu0 %2145
        %v2147 = vsub.f32 %v2139, %v2143
        %v2148 = vsub.f32 %v2140, %v2146
        %v2149 = vmul.f32 %v2147, 1.442695
        %v2150 = vpow.pop %v2149
        %v2151 = vmul.f32 %v2148, 1.442695
        %v2152 = vpow.pop %v2151
        %v2153 = vsel %vm795, %v2150, 0.0
        %2154 = vadd.xlane.f32.xlu0 %v2153
        %v2155 = vpop.xlane.xlu0 %2154
        %v2156 = vsel %vm795, %v2152, 0.0
        %2157 = vadd.xlane.f32.xlu0 %v2156
        %v2158 = vpop.xlane.xlu0 %2157
        %v2159 = vrcp.pop %v2155
        %v2160 = vrcp.pop %v2158
        %v2161 = vmul.f32 %v2150, %v2159
        %v2162 = vmul.f32 %v2152, %v2160
        %v2163 = vpack.c.bf16 %v2162, %v2161
        %v2165 = vsel %vm795, %v2163, 0
        %2167 = vmatprep.subr.bf16.mxu0 0
        %2168 = vmatpush1.bf16.msra.mxu0 0
        %2169 = vmatprep.subr.bf16.mxu0 0
        %2170 = vmatpush1.bf16.msra.mxu0 0
        %2171 = vmatprep.subr.bf16.mxu0 0
        %2172 = vmatpush1.bf16.msra.mxu0 0
        %2173 = vmatprep.subr.bf16.mxu0 0
        %2174 = vmatpush1.bf16.msra.mxu0 0
        %2175 = vmatprep.subr.bf16.mxu0 0
        %2176 = vmatpush1.bf16.msra.mxu0 0
        %2177 = vmatprep.subr.bf16.mxu0 0
        %2178 = vmatpush1.bf16.msra.mxu0 0
        %2179 = vmatprep.subr.bf16.mxu0 0
        %2180 = vmatpush1.bf16.msra.mxu0 0
        %2181 = vmatprep.subr.bf16.mxu0 0
        %2182 = vmatpush1.bf16.msra.mxu0 %v2092
        %2183 = vmatprep.subr.bf16.mxu0 0
        %2184 = vmatpush2.bf16.msra.mxu0 0
        %2185 = vmatprep.subr.bf16.mxu0 0
        %2186 = vmatpush2.bf16.msra.mxu0 0
        %2187 = vmatprep.subr.bf16.mxu0 0
        %2188 = vmatpush2.bf16.msra.mxu0 0
        %2189 = vmatprep.subr.bf16.mxu0 0
        %2190 = vmatpush2.bf16.msra.mxu0 0
        %2191 = vmatprep.subr.bf16.mxu0 0
        %2192 = vmatpush2.bf16.msra.mxu0 0
        %2193 = vmatprep.subr.bf16.mxu0 0
        %2194 = vmatpush2.bf16.msra.mxu0 0
        %2195 = vmatprep.subr.bf16.mxu0 0
        %2196 = vmatpush2.bf16.msra.mxu0 0
        %2197 = vmatprep.subr.bf16.mxu0 0
        %2198 = vmatpush2.bf16.msra.mxu0 0
        %2199 = vmatprep.mubr.bf16.mxu0 0
        %2200 = vmatmul.mubr.bf16.gmra.mxu0 %v2165
        %v2201 = vpop.f32.mrf.mxu0
        %v2202 = vadd.f32 0.0, %v2201
        %v2203 = vpop.f32.mrf.mxu0
        %v2204 = vpop.f32.mrf.mxu0
        %v2205 = vadd.f32 0.0, %v2204
        %v2206 = vpop.f32.mrf.mxu0
        %2207 = vdwg.mxu0
        %v2208 = vadd.f32 %v2089, %v2202
        %v2209 = vadd.f32 %v2090, %v2205
        %s2210 = scalar_lea.vmem %s4, 112
        %v2211 = vld [vmem:[%s2210] sm:$0xf]
        %v2212 = vld [vmem:[%s2210 + $0x4] sm:$0xf]
        %v2213 = vld [vmem:[%s2210 + $0x8] sm:$0xf]
        %v2214 = vld [vmem:[%s2210 + $0xc] sm:$0xf]
        %v2215 = vld [vmem:[%s5 + $0x7] sm:$0x1]
        %v2216 = vpack.c.bf16 %v2209, %v2208
        %v2217 = vlaneseq
        %v2218 = vshrl.u32 %v2217, 7
        %v2219 = vsub.s32 0, %v2218
        %v2220 = vrot.slane %v2215, %v2219
        %v2225 = vunpack.c.l.b16 %v2211
        %v2226 = vunpack.c.l.b16 %v2212
        %v2227 = vunpack.c.l.b16 %v2213
        %v2228 = vunpack.c.l.b16 %v2214
        %v2229 = vpack.c.b16 %v2226, %v2225
        %v2230 = vpack.c.b16 %v2228, %v2227
        %v2234 = vsel %vm558, %v2216, 0
        %2236 = vmatprep.subr.bf16.mxu0 0
        %2237 = vmatpush1.bf16.msra.mxu0 0
        %2238 = vmatprep.subr.bf16.mxu0 0
        %2239 = vmatpush1.bf16.msra.mxu0 0
        %2240 = vmatprep.subr.bf16.mxu0 0
        %2241 = vmatpush1.bf16.msra.mxu0 0
        %2242 = vmatprep.subr.bf16.mxu0 0
        %2243 = vmatpush1.bf16.msra.mxu0 0
        %2244 = vmatprep.subr.bf16.mxu0 0
        %2245 = vmatpush1.bf16.msra.mxu0 0
        %2246 = vmatprep.subr.bf16.mxu0 0
        %2247 = vmatpush1.bf16.msra.mxu0 0
        %2248 = vmatprep.subr.bf16.mxu0 0
        %2249 = vmatpush1.bf16.msra.mxu0 %v2230
        %2250 = vmatprep.subr.bf16.mxu0 0
        %2251 = vmatpush1.bf16.msra.mxu0 %v2229
        %2252 = vmatprep.subr.bf16.mxu0 0
        %2253 = vmatpush2.bf16.msra.mxu0 0
        %2254 = vmatprep.subr.bf16.mxu0 0
        %2255 = vmatpush2.bf16.msra.mxu0 0
        %2256 = vmatprep.subr.bf16.mxu0 0
        %2257 = vmatpush2.bf16.msra.mxu0 0
        %2258 = vmatprep.subr.bf16.mxu0 0
        %2259 = vmatpush2.bf16.msra.mxu0 0
        %2260 = vmatprep.subr.bf16.mxu0 0
        %2261 = vmatpush2.bf16.msra.mxu0 0
        %2262 = vmatprep.subr.bf16.mxu0 0
        %2263 = vmatpush2.bf16.msra.mxu0 0
        %2264 = vmatprep.subr.bf16.mxu0 0
        %2265 = vmatpush2.bf16.msra.mxu0 0
        %2266 = vmatprep.subr.bf16.mxu0 0
        %2267 = vmatpush2.bf16.msra.mxu0 0
        %2268 = vmatprep.mubr.bf16.mxu0 0
        %2269 = vmatmul.mubr.bf16.gmra.mxu0 %v2234
        %v2270 = vpop.f32.mrf.mxu0
        %v2271 = vadd.f32 %v2220, %v2270
        %v2272 = vpop.f32.mrf.mxu0
        %v2273 = vpop.f32.mrf.mxu0
        %v2274 = vadd.f32 %v2220, %v2273
        %v2275 = vpop.f32.mrf.mxu0
        %2276 = vdwg.mxu0
        %v2277 = vadd.f32 %v1531, %v2271
        %v2278 = vadd.f32 %v1532, %v2274
        %v2279 = vld [vmem:[%s10 + $0x2] sm:$0x1]
        %v2280 = vld [vmem:[%s11 + $0x2] sm:$0x1]
        %v2281 = vsel %vm558, %v2277, 0.0
        %2282 = vadd.xlane.f32.xlu0 %v2281
        %v2283 = vpop.xlane.xlu0 %2282
        %v2284 = vsel %vm558, %v2278, 0.0
        %2285 = vadd.xlane.f32.xlu0 %v2284
        %v2286 = vpop.xlane.xlu0 %2285
        %v2287 = vmul.f32 %v2283, %v1295
        %v2288 = vmul.f32 %v2286, %v1295
        %v2289 = vmul.f32 %v2277, %v2277
        %v2290 = vmul.f32 %v2278, %v2278
        %v2291 = vsel %vm558, %v2289, 0.0
        %2292 = vadd.xlane.f32.xlu0 %v2291
        %v2293 = vpop.xlane.xlu0 %2292
        %v2294 = vsel %vm558, %v2290, 0.0
        %2295 = vadd.xlane.f32.xlu0 %v2294
        %v2296 = vpop.xlane.xlu0 %2295
        %v2297 = vmul.f32 %v2293, %v1295
        %v2298 = vmul.f32 %v2296, %v1295
        %v2299 = vmul.f32 %v2287, %v2287
        %v2300 = vmul.f32 %v2288, %v2288
        %v2301 = vsub.f32 %v2297, %v2299
        %v2302 = vsub.f32 %v2298, %v2300
        %v2303 = vmax.f32 %v2301, 0.0
        %v2304 = vmax.f32 %v2302, 0.0
        %v2305 = vsub.f32 %v2277, %v2287
        %v2306 = vsub.f32 %v2278, %v2288
        %v2307 = vadd.f32 %v2303, 1e-05
        %v2308 = vadd.f32 %v2304, 1e-05
        %v2309 = vrsqrt.pop %v2307
        %v2310 = vrsqrt.pop %v2308
        %v2311 = vmul.f32 %v2305, %v2309
        %v2312 = vmul.f32 %v2306, %v2310
        %v2313 = vlaneseq
        %v2314 = vshrl.u32 %v2313, 7
        %v2315 = vsub.s32 0, %v2314
        %v2316 = vrot.slane %v2279, %v2315
        %v2317 = vmul.f32 %v2311, %v2316
        %v2318 = vmul.f32 %v2312, %v2316
        %v2319 = vlaneseq
        %v2320 = vshrl.u32 %v2319, 7
        %v2321 = vsub.s32 0, %v2320
        %v2322 = vrot.slane %v2280, %v2321
        %v2323 = vadd.f32 %v2317, %v2322
        %v2324 = vadd.f32 %v2318, %v2322
        %s2325 = scalar_lea.vmem %s6, 16
        %v2326 = vld [vmem:[%s2325] sm:$0xf]
        %v2327 = vld [vmem:[%s2325 + $0x4] sm:$0xf]
        %v2328 = vld [vmem:[%s2325 + $0x8] sm:$0xf]
        %v2329 = vld [vmem:[%s2325 + $0xc] sm:$0xf]
        %v2330 = vld [vmem:[%s7 + $0x1] sm:$0x1]
        %v2331 = vpack.c.bf16 %v2324, %v2323
        %v2332 = vlaneseq
        %v2333 = vshrl.u32 %v2332, 7
        %v2334 = vsub.s32 0, %v2333
        %v2335 = vrot.slane %v2330, %v2334
        %v2340 = vunpack.c.l.b16 %v2326
        %v2341 = vunpack.c.l.b16 %v2327
        %v2342 = vunpack.c.l.b16 %v2328
        %v2343 = vunpack.c.l.b16 %v2329
        %v2344 = vpack.c.b16 %v2341, %v2340
        %v2345 = vpack.c.b16 %v2343, %v2342
        %v2349 = vsel %vm558, %v2331, 0
        %2351 = vmatprep.subr.bf16.mxu0 0
        %2352 = vmatpush1.bf16.msra.mxu0 0
        %2353 = vmatprep.subr.bf16.mxu0 0
        %2354 = vmatpush1.bf16.msra.mxu0 0
        %2355 = vmatprep.subr.bf16.mxu0 0
        %2356 = vmatpush1.bf16.msra.mxu0 0
        %2357 = vmatprep.subr.bf16.mxu0 0
        %2358 = vmatpush1.bf16.msra.mxu0 0
        %2359 = vmatprep.subr.bf16.mxu0 0
        %2360 = vmatpush1.bf16.msra.mxu0 0
        %2361 = vmatprep.subr.bf16.mxu0 0
        %2362 = vmatpush1.bf16.msra.mxu0 0
        %2363 = vmatprep.subr.bf16.mxu0 0
        %2364 = vmatpush1.bf16.msra.mxu0 %v2345
        %2365 = vmatprep.subr.bf16.mxu0 0
        %2366 = vmatpush1.bf16.msra.mxu0 %v2344
        %2367 = vmatprep.subr.bf16.mxu0 0
        %2368 = vmatpush2.bf16.msra.mxu0 0
        %2369 = vmatprep.subr.bf16.mxu0 0
        %2370 = vmatpush2.bf16.msra.mxu0 0
        %2371 = vmatprep.subr.bf16.mxu0 0
        %2372 = vmatpush2.bf16.msra.mxu0 0
        %2373 = vmatprep.subr.bf16.mxu0 0
        %2374 = vmatpush2.bf16.msra.mxu0 0
        %2375 = vmatprep.subr.bf16.mxu0 0
        %2376 = vmatpush2.bf16.msra.mxu0 0
        %2377 = vmatprep.subr.bf16.mxu0 0
        %2378 = vmatpush2.bf16.msra.mxu0 0
        %2379 = vmatprep.subr.bf16.mxu0 0
        %2380 = vmatpush2.bf16.msra.mxu0 0
        %2381 = vmatprep.subr.bf16.mxu0 0
        %2382 = vmatpush2.bf16.msra.mxu0 0
        %2383 = vmatprep.mubr.bf16.mxu0 0
        %2384 = vmatmul.mubr.bf16.gmra.mxu0 %v2349
        %v2385 = vpop.f32.mrf.mxu0
        %v2386 = vadd.f32 %v2335, %v2385
        %v2387 = vpop.f32.mrf.mxu0
        %v2388 = vpop.f32.mrf.mxu0
        %v2389 = vadd.f32 %v2335, %v2388
        %v2390 = vpop.f32.mrf.mxu0
        %2391 = vdwg.mxu0
        %v2392 = vmax.f32 %v2386, 0.0
        %v2393 = vmax.f32 %v2389, 0.0
        %s2394 = scalar_lea.vmem %s8, 32
        %v2395 = vld [vmem:[%s2394] sm:$0xf]
        %v2396 = vld [vmem:[%s2394 + $0x4] sm:$0xf]
        %v2397 = vld [vmem:[%s2394 + $0x8] sm:$0xf]
        %v2398 = vld [vmem:[%s2394 + $0xc] sm:$0xf]
        %v2399 = vld [vmem:[%s2394 + $0x10] sm:$0xf]
        %v2400 = vld [vmem:[%s2394 + $0x14] sm:$0xf]
        %v2401 = vld [vmem:[%s2394 + $0x18] sm:$0xf]
        %v2402 = vld [vmem:[%s2394 + $0x1c] sm:$0xf]
        %v2403 = vld [vmem:[%s9 + $0x1] sm:$0x1]
        %v2404 = vpack.c.bf16 %v2393, %v2392
        %v2405 = vlaneseq
        %v2406 = vshrl.u32 %v2405, 7
        %v2407 = vsub.s32 0, %v2406
        %v2408 = vrot.slane %v2403, %v2407
        %v2417 = vunpack.c.l.b16 %v2395
        %v2418 = vunpack.c.l.b16 %v2396
        %v2419 = vunpack.c.l.b16 %v2397
        %v2420 = vunpack.c.l.b16 %v2398
        %v2421 = vunpack.c.l.b16 %v2399
        %v2422 = vunpack.c.l.b16 %v2400
        %v2423 = vunpack.c.l.b16 %v2401
        %v2424 = vunpack.c.l.b16 %v2402
        %v2425 = vpack.c.b16 %v2418, %v2417
        %v2426 = vpack.c.b16 %v2420, %v2419
        %v2427 = vpack.c.b16 %v2422, %v2421
        %v2428 = vpack.c.b16 %v2424, %v2423
        %v2434 = vsel %vm1440, %v2404, 0
        %2436 = vmatprep.subr.bf16.mxu0 0
        %2437 = vmatpush1.bf16.msra.mxu0 0
        %2438 = vmatprep.subr.bf16.mxu0 0
        %2439 = vmatpush1.bf16.msra.mxu0 0
        %2440 = vmatprep.subr.bf16.mxu0 0
        %2441 = vmatpush1.bf16.msra.mxu0 0
        %2442 = vmatprep.subr.bf16.mxu0 0
        %2443 = vmatpush1.bf16.msra.mxu0 0
        %2444 = vmatprep.subr.bf16.mxu0 0
        %2445 = vmatpush1.bf16.msra.mxu0 %v2428
        %2446 = vmatprep.subr.bf16.mxu0 0
        %2447 = vmatpush1.bf16.msra.mxu0 %v2427
        %2448 = vmatprep.subr.bf16.mxu0 0
        %2449 = vmatpush1.bf16.msra.mxu0 %v2426
        %2450 = vmatprep.subr.bf16.mxu0 0
        %2451 = vmatpush1.bf16.msra.mxu0 %v2425
        %2452 = vmatprep.subr.bf16.mxu0 0
        %2453 = vmatpush2.bf16.msra.mxu0 0
        %2454 = vmatprep.subr.bf16.mxu0 0
        %2455 = vmatpush2.bf16.msra.mxu0 0
        %2456 = vmatprep.subr.bf16.mxu0 0
        %2457 = vmatpush2.bf16.msra.mxu0 0
        %2458 = vmatprep.subr.bf16.mxu0 0
        %2459 = vmatpush2.bf16.msra.mxu0 0
        %2460 = vmatprep.subr.bf16.mxu0 0
        %2461 = vmatpush2.bf16.msra.mxu0 0
        %2462 = vmatprep.subr.bf16.mxu0 0
        %2463 = vmatpush2.bf16.msra.mxu0 0
        %2464 = vmatprep.subr.bf16.mxu0 0
        %2465 = vmatpush2.bf16.msra.mxu0 0
        %2466 = vmatprep.subr.bf16.mxu0 0
        %2467 = vmatpush2.bf16.msra.mxu0 0
        %2468 = vmatprep.mubr.bf16.mxu0 0
        %2469 = vmatmul.mubr.bf16.gmra.mxu0 %v2434
        %v2470 = vpop.f32.mrf.mxu0
        %v2471 = vadd.f32 %v2408, %v2470
        %v2472 = vpop.f32.mrf.mxu0
        %v2473 = vpop.f32.mrf.mxu0
        %v2474 = vadd.f32 %v2408, %v2473
        %v2475 = vpop.f32.mrf.mxu0
        %2476 = vdwg.mxu0
        %v2477 = vadd.f32 %v2323, %v2471
        %v2478 = vadd.f32 %v2324, %v2474
        %v2479 = vld [vmem:[%s10 + $0x3] sm:$0x1]
        %v2480 = vld [vmem:[%s11 + $0x3] sm:$0x1]
        %v2481 = vsel %vm558, %v2477, 0.0
        %2482 = vadd.xlane.f32.xlu0 %v2481
        %v2483 = vpop.xlane.xlu0 %2482
        %v2484 = vsel %vm558, %v2478, 0.0
        %2485 = vadd.xlane.f32.xlu0 %v2484
        %v2486 = vpop.xlane.xlu0 %2485
        %v2487 = vmul.f32 %v2483, %v1295
        %v2488 = vmul.f32 %v2486, %v1295
        %v2489 = vmul.f32 %v2477, %v2477
        %v2490 = vmul.f32 %v2478, %v2478
        %v2491 = vsel %vm558, %v2489, 0.0
        %2492 = vadd.xlane.f32.xlu0 %v2491
        %v2493 = vpop.xlane.xlu0 %2492
        %v2494 = vsel %vm558, %v2490, 0.0
        %2495 = vadd.xlane.f32.xlu0 %v2494
        %v2496 = vpop.xlane.xlu0 %2495
        %v2497 = vmul.f32 %v2493, %v1295
        %v2498 = vmul.f32 %v2496, %v1295
        %v2499 = vmul.f32 %v2487, %v2487
        %v2500 = vmul.f32 %v2488, %v2488
        %v2501 = vsub.f32 %v2497, %v2499
        %v2502 = vsub.f32 %v2498, %v2500
        %v2503 = vmax.f32 %v2501, 0.0
        %v2504 = vmax.f32 %v2502, 0.0
        %v2505 = vsub.f32 %v2477, %v2487
        %v2506 = vsub.f32 %v2478, %v2488
        %v2507 = vadd.f32 %v2503, 1e-05
        %v2508 = vadd.f32 %v2504, 1e-05
        %v2509 = vrsqrt.pop %v2507
        %v2510 = vrsqrt.pop %v2508
        %v2511 = vmul.f32 %v2505, %v2509
        %v2512 = vmul.f32 %v2506, %v2510
        %v2513 = vlaneseq
        %v2514 = vshrl.u32 %v2513, 7
        %v2515 = vsub.s32 0, %v2514
        %v2516 = vrot.slane %v2479, %v2515
        %v2517 = vmul.f32 %v2511, %v2516
        %v2518 = vmul.f32 %v2512, %v2516
        %v2519 = vlaneseq
        %v2520 = vshrl.u32 %v2519, 7
        %v2521 = vsub.s32 0, %v2520
        %v2522 = vrot.slane %v2480, %v2521
        %v2523 = vadd.f32 %v2517, %v2522
        %v2524 = vadd.f32 %v2518, %v2522
        %2525 = vst.msk [vmem:[%s476] sm:$0xff] %vm558, %v2523
        %2526 = vst.msk [vmem:[%s476 + $0x8] sm:$0xff] %vm558, %v2524
        %v2527 = vadd.f32 %v2523, %v504
        %v2528 = vadd.f32 %v2524, %v505
        %v2529 = vadd.f32 %v506, 0.0
        %s2530 = scalar_lea.vmem %s4, 128
        %v2531 = vld [vmem:[%s2530] sm:$0xf]
        %v2532 = vld [vmem:[%s2530 + $0x4] sm:$0xf]
        %v2533 = vld [vmem:[%s2530 + $0x8] sm:$0xf]
        %v2534 = vld [vmem:[%s2530 + $0xc] sm:$0xf]
        %v2535 = vld [vmem:[%s5 + $0x8] sm:$0x1]
        %v2536 = vpack.c.bf16 %v2529, %v2529
        %v2537 = vlaneseq
        %v2538 = vshrl.u32 %v2537, 7
        %v2539 = vsub.s32 0, %v2538
        %v2540 = vrot.slane %v2535, %v2539
        %v2545 = vunpack.c.l.b16 %v2531
        %v2546 = vunpack.c.l.b16 %v2532
        %v2547 = vunpack.c.l.b16 %v2533
        %v2548 = vunpack.c.l.b16 %v2534
        %v2549 = vpack.c.b16 %v2546, %v2545
        %v2550 = vpack.c.b16 %v2548, %v2547
        %v2554 = vsel %vm558, %v2536, 0
        %2556 = vmatprep.subr.bf16.mxu0 0
        %2557 = vmatpush1.bf16.msra.mxu0 0
        %2558 = vmatprep.subr.bf16.mxu0 0
        %2559 = vmatpush1.bf16.msra.mxu0 0
        %2560 = vmatprep.subr.bf16.mxu0 0
        %2561 = vmatpush1.bf16.msra.mxu0 0
        %2562 = vmatprep.subr.bf16.mxu0 0
        %2563 = vmatpush1.bf16.msra.mxu0 0
        %2564 = vmatprep.subr.bf16.mxu0 0
        %2565 = vmatpush1.bf16.msra.mxu0 0
        %2566 = vmatprep.subr.bf16.mxu0 0
        %2567 = vmatpush1.bf16.msra.mxu0 0
        %2568 = vmatprep.subr.bf16.mxu0 0
        %2569 = vmatpush1.bf16.msra.mxu0 %v2550
        %2570 = vmatprep.subr.bf16.mxu0 0
        %2571 = vmatpush1.bf16.msra.mxu0 %v2549
        %2572 = vmatprep.subr.bf16.mxu0 0
        %2573 = vmatpush2.bf16.msra.mxu0 0
        %2574 = vmatprep.subr.bf16.mxu0 0
        %2575 = vmatpush2.bf16.msra.mxu0 0
        %2576 = vmatprep.subr.bf16.mxu0 0
        %2577 = vmatpush2.bf16.msra.mxu0 0
        %2578 = vmatprep.subr.bf16.mxu0 0
        %2579 = vmatpush2.bf16.msra.mxu0 0
        %2580 = vmatprep.subr.bf16.mxu0 0
        %2581 = vmatpush2.bf16.msra.mxu0 0
        %2582 = vmatprep.subr.bf16.mxu0 0
        %2583 = vmatpush2.bf16.msra.mxu0 0
        %2584 = vmatprep.subr.bf16.mxu0 0
        %2585 = vmatpush2.bf16.msra.mxu0 0
        %2586 = vmatprep.subr.bf16.mxu0 0
        %2587 = vmatpush2.bf16.msra.mxu0 0
        %2588 = vmatprep.mubr.bf16.mxu0 0
        %2589 = vmatmul.mubr.bf16.gmra.mxu0 %v2554
        %v2590 = vpop.f32.mrf.mxu0
        %v2591 = vadd.f32 %v2540, %v2590
        %v2592 = vpop.f32.mrf.mxu0
        %v2593 = vpop.f32.mrf.mxu0
        %v2594 = vpop.f32.mrf.mxu0
        %2595 = vdwg.mxu0
        %s2596 = scalar_lea.vmem %s4, 144
        %v2597 = vld [vmem:[%s2596] sm:$0xf]
        %v2598 = vld [vmem:[%s2596 + $0x4] sm:$0xf]
        %v2599 = vld [vmem:[%s2596 + $0x8] sm:$0xf]
        %v2600 = vld [vmem:[%s2596 + $0xc] sm:$0xf]
        %v2601 = vld [vmem:[%s5 + $0x9] sm:$0x1]
        %v2602 = vlaneseq
        %v2603 = vshrl.u32 %v2602, 7
        %v2604 = vsub.s32 0, %v2603
        %v2605 = vrot.slane %v2601, %v2604
        %v2610 = vunpack.c.l.b16 %v2597
        %v2611 = vunpack.c.l.b16 %v2598
        %v2612 = vunpack.c.l.b16 %v2599
        %v2613 = vunpack.c.l.b16 %v2600
        %v2614 = vpack.c.b16 %v2611, %v2610
        %v2615 = vpack.c.b16 %v2613, %v2612
        %2618 = vmatprep.subr.bf16.mxu0 0
        %2619 = vmatpush1.bf16.msra.mxu0 0
        %2620 = vmatprep.subr.bf16.mxu0 0
        %2621 = vmatpush1.bf16.msra.mxu0 0
        %2622 = vmatprep.subr.bf16.mxu0 0
        %2623 = vmatpush1.bf16.msra.mxu0 0
        %2624 = vmatprep.subr.bf16.mxu0 0
        %2625 = vmatpush1.bf16.msra.mxu0 0
        %2626 = vmatprep.subr.bf16.mxu0 0
        %2627 = vmatpush1.bf16.msra.mxu0 0
        %2628 = vmatprep.subr.bf16.mxu0 0
        %2629 = vmatpush1.bf16.msra.mxu0 0
        %2630 = vmatprep.subr.bf16.mxu0 0
        %2631 = vmatpush1.bf16.msra.mxu0 %v2615
        %2632 = vmatprep.subr.bf16.mxu0 0
        %2633 = vmatpush1.bf16.msra.mxu0 %v2614
        %2634 = vmatprep.subr.bf16.mxu0 0
        %2635 = vmatpush2.bf16.msra.mxu0 0
        %2636 = vmatprep.subr.bf16.mxu0 0
        %2637 = vmatpush2.bf16.msra.mxu0 0
        %2638 = vmatprep.subr.bf16.mxu0 0
        %2639 = vmatpush2.bf16.msra.mxu0 0
        %2640 = vmatprep.subr.bf16.mxu0 0
        %2641 = vmatpush2.bf16.msra.mxu0 0
        %2642 = vmatprep.subr.bf16.mxu0 0
        %2643 = vmatpush2.bf16.msra.mxu0 0
        %2644 = vmatprep.subr.bf16.mxu0 0
        %2645 = vmatpush2.bf16.msra.mxu0 0
        %2646 = vmatprep.subr.bf16.mxu0 0
        %2647 = vmatpush2.bf16.msra.mxu0 0
        %2648 = vmatprep.subr.bf16.mxu0 0
        %2649 = vmatpush2.bf16.msra.mxu0 0
        %2650 = vmatprep.mubr.bf16.mxu0 0
        %2651 = vmatmul.mubr.bf16.gmra.mxu0 %v2554
        %v2652 = vpop.f32.mrf.mxu0
        %v2653 = vadd.f32 %v2605, %v2652
        %v2654 = vpop.f32.mrf.mxu0
        %v2655 = vpop.f32.mrf.mxu0
        %v2656 = vpop.f32.mrf.mxu0
        %2657 = vdwg.mxu0
        %s2658 = scalar_lea.vmem %s4, 160
        %v2659 = vld [vmem:[%s2658] sm:$0xf]
        %v2660 = vld [vmem:[%s2658 + $0x4] sm:$0xf]
        %v2661 = vld [vmem:[%s2658 + $0x8] sm:$0xf]
        %v2662 = vld [vmem:[%s2658 + $0xc] sm:$0xf]
        %v2663 = vld [vmem:[%s5 + $0xa] sm:$0x1]
        %v2664 = vlaneseq
        %v2665 = vshrl.u32 %v2664, 7
        %v2666 = vsub.s32 0, %v2665
        %v2667 = vrot.slane %v2663, %v2666
        %v2672 = vunpack.c.l.b16 %v2659
        %v2673 = vunpack.c.l.b16 %v2660
        %v2674 = vunpack.c.l.b16 %v2661
        %v2675 = vunpack.c.l.b16 %v2662
        %v2676 = vpack.c.b16 %v2673, %v2672
        %v2677 = vpack.c.b16 %v2675, %v2674
        %v2681 = vsel %vm558, 0, 0
        %2683 = vmatprep.subr.bf16.mxu0 0
        %2684 = vmatpush1.bf16.msra.mxu0 0
        %2685 = vmatprep.subr.bf16.mxu0 0
        %2686 = vmatpush1.bf16.msra.mxu0 0
        %2687 = vmatprep.subr.bf16.mxu0 0
        %2688 = vmatpush1.bf16.msra.mxu0 0
        %2689 = vmatprep.subr.bf16.mxu0 0
        %2690 = vmatpush1.bf16.msra.mxu0 0
        %2691 = vmatprep.subr.bf16.mxu0 0
        %2692 = vmatpush1.bf16.msra.mxu0 0
        %2693 = vmatprep.subr.bf16.mxu0 0
        %2694 = vmatpush1.bf16.msra.mxu0 0
        %2695 = vmatprep.subr.bf16.mxu0 0
        %2696 = vmatpush1.bf16.msra.mxu0 %v2677
        %2697 = vmatprep.subr.bf16.mxu0 0
        %2698 = vmatpush1.bf16.msra.mxu0 %v2676
        %2699 = vmatprep.subr.bf16.mxu0 0
        %2700 = vmatpush2.bf16.msra.mxu0 0
        %2701 = vmatprep.subr.bf16.mxu0 0
        %2702 = vmatpush2.bf16.msra.mxu0 0
        %2703 = vmatprep.subr.bf16.mxu0 0
        %2704 = vmatpush2.bf16.msra.mxu0 0
        %2705 = vmatprep.subr.bf16.mxu0 0
        %2706 = vmatpush2.bf16.msra.mxu0 0
        %2707 = vmatprep.subr.bf16.mxu0 0
        %2708 = vmatpush2.bf16.msra.mxu0 0
        %2709 = vmatprep.subr.bf16.mxu0 0
        %2710 = vmatpush2.bf16.msra.mxu0 0
        %2711 = vmatprep.subr.bf16.mxu0 0
        %2712 = vmatpush2.bf16.msra.mxu0 0
        %2713 = vmatprep.subr.bf16.mxu0 0
        %2714 = vmatpush2.bf16.msra.mxu0 0
        %2715 = vmatprep.mubr.bf16.mxu0 0
        %2716 = vmatmul.mubr.bf16.gmra.mxu0 %v2681
        %v2717 = vpop.f32.mrf.mxu0
        %v2718 = vadd.f32 %v2667, %v2717
        %v2719 = vpop.f32.mrf.mxu0
        %v2720 = vpop.f32.mrf.mxu0
        %v2721 = vpop.f32.mrf.mxu0
        %2722 = vdwg.mxu0
        %v2723 = vpack.c.bf16 %v2591, %v2591
        %v2724 = vpack.c.bf16 %v2653, %v2653
        %v2725 = vpack.c.bf16 %v2718, %v2718
        %v2726 = vmul.bf16 %v2724, %v515
        %v2727 = vmul.bf16 %v2725, %v515
        %v2729 = vsel %vm558, %v2723, 0
        %v2732 = vsel %vm558, %v2726, 0
        %2734 = vmatprep.subr.bf16.mxu0 0
        %2735 = vmatpush1.bf16.xpose.msra.mxu0 0
        %2736 = vmatprep.subr.bf16.mxu0 0
        %2737 = vmatpush1.bf16.xpose.msra.mxu0 0
        %2738 = vmatprep.subr.bf16.mxu0 0
        %2739 = vmatpush1.bf16.xpose.msra.mxu0 0
        %2740 = vmatprep.subr.bf16.mxu0 0
        %2741 = vmatpush1.bf16.xpose.msra.mxu0 0
        %2742 = vmatprep.subr.bf16.mxu0 0
        %2743 = vmatpush1.bf16.xpose.msra.mxu0 0
        %2744 = vmatprep.subr.bf16.mxu0 0
        %2745 = vmatpush1.bf16.xpose.msra.mxu0 0
        %2746 = vmatprep.subr.bf16.mxu0 0
        %2747 = vmatpush1.bf16.xpose.msra.mxu0 0
        %2748 = vmatprep.subr.bf16.mxu0 0
        %2749 = vmatpush1.bf16.xpose.msra.mxu0 %v2732
        %2750 = vmatprep.subr.bf16.mxu0 0
        %2751 = vmatpush2.bf16.xpose.msra.mxu0 0
        %2752 = vmatprep.subr.bf16.mxu0 0
        %2753 = vmatpush2.bf16.xpose.msra.mxu0 0
        %2754 = vmatprep.subr.bf16.mxu0 0
        %2755 = vmatpush2.bf16.xpose.msra.mxu0 0
        %2756 = vmatprep.subr.bf16.mxu0 0
        %2757 = vmatpush2.bf16.xpose.msra.mxu0 0
        %2758 = vmatprep.subr.bf16.mxu0 0
        %2759 = vmatpush2.bf16.xpose.msra.mxu0 0
        %2760 = vmatprep.subr.bf16.mxu0 0
        %2761 = vmatpush2.bf16.xpose.msra.mxu0 0
        %2762 = vmatprep.subr.bf16.mxu0 0
        %2763 = vmatpush2.bf16.xpose.msra.mxu0 0
        %2764 = vmatprep.subr.bf16.mxu0 0
        %2765 = vmatpush2.bf16.xpose.msra.mxu0 0
        %2766 = vmatprep.mubr.bf16.mxu0 0
        %2767 = vmatmul.mubr.bf16.gmra.mxu0 %v2729
        %v2768 = vpop.f32.mrf.mxu0
        %v2769 = vadd.f32 0.0, %v2768
        %v2770 = vpop.f32.mrf.mxu0
        %v2771 = vpop.f32.mrf.mxu0
        %v2772 = vpop.f32.mrf.mxu0
        %2773 = vdwg.mxu0
        %v2774 = vmul.f32 %v2769, 0.35355338
        %vm2775 = vcmask 64512
        %v2776 = vsel %vm2775, %v2774, -inf
        %2777 = vmax.xlane.f32.xlu0 %v2776
        %v2778 = vpop.xlane.xlu0 %2777
        %v2779 = vsub.f32 %v2774, %v2778
        %v2780 = vmul.f32 %v2779, 1.442695
        %v2781 = vpow.pop %v2780
        %v2782 = vsel %vm2775, %v2781, 0.0
        %2783 = vadd.xlane.f32.xlu0 %v2782
        %v2784 = vpop.xlane.xlu0 %2783
        %v2785 = vrcp.pop %v2784
        %v2786 = vmul.f32 %v2781, %v2785
        %v2787 = vpack.c.bf16 %v2786, %v2786
        %v2788 = vmul.bf16 %v2724, %v521
        %v2789 = vmul.bf16 %v2725, %v521
        %v2791 = vsel %vm558, %v2788, 0
        %2793 = vmatprep.subr.bf16.mxu0 0
        %2794 = vmatpush1.bf16.xpose.msra.mxu0 0
        %2795 = vmatprep.subr.bf16.mxu0 0
        %2796 = vmatpush1.bf16.xpose.msra.mxu0 0
        %2797 = vmatprep.subr.bf16.mxu0 0
        %2798 = vmatpush1.bf16.xpose.msra.mxu0 0
        %2799 = vmatprep.subr.bf16.mxu0 0
        %2800 = vmatpush1.bf16.xpose.msra.mxu0 0
        %2801 = vmatprep.subr.bf16.mxu0 0
        %2802 = vmatpush1.bf16.xpose.msra.mxu0 0
        %2803 = vmatprep.subr.bf16.mxu0 0
        %2804 = vmatpush1.bf16.xpose.msra.mxu0 0
        %2805 = vmatprep.subr.bf16.mxu0 0
        %2806 = vmatpush1.bf16.xpose.msra.mxu0 0
        %2807 = vmatprep.subr.bf16.mxu0 0
        %2808 = vmatpush1.bf16.xpose.msra.mxu0 %v2791
        %2809 = vmatprep.subr.bf16.mxu0 0
        %2810 = vmatpush2.bf16.xpose.msra.mxu0 0
        %2811 = vmatprep.subr.bf16.mxu0 0
        %2812 = vmatpush2.bf16.xpose.msra.mxu0 0
        %2813 = vmatprep.subr.bf16.mxu0 0
        %2814 = vmatpush2.bf16.xpose.msra.mxu0 0
        %2815 = vmatprep.subr.bf16.mxu0 0
        %2816 = vmatpush2.bf16.xpose.msra.mxu0 0
        %2817 = vmatprep.subr.bf16.mxu0 0
        %2818 = vmatpush2.bf16.xpose.msra.mxu0 0
        %2819 = vmatprep.subr.bf16.mxu0 0
        %2820 = vmatpush2.bf16.xpose.msra.mxu0 0
        %2821 = vmatprep.subr.bf16.mxu0 0
        %2822 = vmatpush2.bf16.xpose.msra.mxu0 0
        %2823 = vmatprep.subr.bf16.mxu0 0
        %2824 = vmatpush2.bf16.xpose.msra.mxu0 0
        %2825 = vmatprep.mubr.bf16.mxu0 0
        %2826 = vmatmul.mubr.bf16.gmra.mxu0 %v2729
        %v2827 = vpop.f32.mrf.mxu0
        %v2828 = vadd.f32 0.0, %v2827
        %v2829 = vpop.f32.mrf.mxu0
        %v2830 = vpop.f32.mrf.mxu0
        %v2831 = vpop.f32.mrf.mxu0
        %2832 = vdwg.mxu0
        %v2833 = vmul.f32 %v2828, 0.35355338
        %v2834 = vsel %vm2775, %v2833, -inf
        %2835 = vmax.xlane.f32.xlu0 %v2834
        %v2836 = vpop.xlane.xlu0 %2835
        %v2837 = vsub.f32 %v2833, %v2836
        %v2838 = vmul.f32 %v2837, 1.442695
        %v2839 = vpow.pop %v2838
        %v2840 = vsel %vm2775, %v2839, 0.0
        %2841 = vadd.xlane.f32.xlu0 %v2840
        %v2842 = vpop.xlane.xlu0 %2841
        %v2843 = vrcp.pop %v2842
        %v2844 = vmul.f32 %v2839, %v2843
        %v2845 = vpack.c.bf16 %v2844, %v2844
        %v2847 = vsel %vm2775, %v2845, 0
        %vm2849 = vcmask 1043456
        %v2851 = vsel %vm2849, %v2789, 0
        %2853 = vmatprep.subr.bf16.mxu0 0
        %2854 = vmatpush1.bf16.msra.mxu0 0
        %2855 = vmatprep.subr.bf16.mxu0 0
        %2856 = vmatpush1.bf16.msra.mxu0 0
        %2857 = vmatprep.subr.bf16.mxu0 0
        %2858 = vmatpush1.bf16.msra.mxu0 0
        %2859 = vmatprep.subr.bf16.mxu0 0
        %2860 = vmatpush1.bf16.msra.mxu0 0
        %2861 = vmatprep.subr.bf16.mxu0 0
        %2862 = vmatpush1.bf16.msra.mxu0 0
        %2863 = vmatprep.subr.bf16.mxu0 0
        %2864 = vmatpush1.bf16.msra.mxu0 0
        %2865 = vmatprep.subr.bf16.mxu0 0
        %2866 = vmatpush1.bf16.msra.mxu0 0
        %2867 = vmatprep.subr.bf16.mxu0 0
        %2868 = vmatpush1.bf16.msra.mxu0 %v2851
        %2869 = vmatprep.subr.bf16.mxu0 0
        %2870 = vmatpush2.bf16.msra.mxu0 0
        %2871 = vmatprep.subr.bf16.mxu0 0
        %2872 = vmatpush2.bf16.msra.mxu0 0
        %2873 = vmatprep.subr.bf16.mxu0 0
        %2874 = vmatpush2.bf16.msra.mxu0 0
        %2875 = vmatprep.subr.bf16.mxu0 0
        %2876 = vmatpush2.bf16.msra.mxu0 0
        %2877 = vmatprep.subr.bf16.mxu0 0
        %2878 = vmatpush2.bf16.msra.mxu0 0
        %2879 = vmatprep.subr.bf16.mxu0 0
        %2880 = vmatpush2.bf16.msra.mxu0 0
        %2881 = vmatprep.subr.bf16.mxu0 0
        %2882 = vmatpush2.bf16.msra.mxu0 0
        %2883 = vmatprep.subr.bf16.mxu0 0
        %2884 = vmatpush2.bf16.msra.mxu0 0
        %2885 = vmatprep.mubr.bf16.mxu0 0
        %2886 = vmatmul.mubr.bf16.gmra.mxu0 %v2847
        %v2887 = vpop.f32.mrf.mxu0
        %v2888 = vadd.f32 0.0, %v2887
        %v2889 = vpop.f32.mrf.mxu0
        %v2890 = vpop.f32.mrf.mxu0
        %v2891 = vpop.f32.mrf.mxu0
        %2892 = vdwg.mxu0
        %v2894 = vsel %vm2775, %v2787, 0
        %v2897 = vsel %vm2849, %v2727, 0
        %2899 = vmatprep.subr.bf16.mxu0 0
        %2900 = vmatpush1.bf16.msra.mxu0 0
        %2901 = vmatprep.subr.bf16.mxu0 0
        %2902 = vmatpush1.bf16.msra.mxu0 0
        %2903 = vmatprep.subr.bf16.mxu0 0
        %2904 = vmatpush1.bf16.msra.mxu0 0
        %2905 = vmatprep.subr.bf16.mxu0 0
        %2906 = vmatpush1.bf16.msra.mxu0 0
        %2907 = vmatprep.subr.bf16.mxu0 0
        %2908 = vmatpush1.bf16.msra.mxu0 0
        %2909 = vmatprep.subr.bf16.mxu0 0
        %2910 = vmatpush1.bf16.msra.mxu0 0
        %2911 = vmatprep.subr.bf16.mxu0 0
        %2912 = vmatpush1.bf16.msra.mxu0 0
        %2913 = vmatprep.subr.bf16.mxu0 0
        %2914 = vmatpush1.bf16.msra.mxu0 %v2897
        %2915 = vmatprep.subr.bf16.mxu0 0
        %2916 = vmatpush2.bf16.msra.mxu0 0
        %2917 = vmatprep.subr.bf16.mxu0 0
        %2918 = vmatpush2.bf16.msra.mxu0 0
        %2919 = vmatprep.subr.bf16.mxu0 0
        %2920 = vmatpush2.bf16.msra.mxu0 0
        %2921 = vmatprep.subr.bf16.mxu0 0
        %2922 = vmatpush2.bf16.msra.mxu0 0
        %2923 = vmatprep.subr.bf16.mxu0 0
        %2924 = vmatpush2.bf16.msra.mxu0 0
        %2925 = vmatprep.subr.bf16.mxu0 0
        %2926 = vmatpush2.bf16.msra.mxu0 0
        %2927 = vmatprep.subr.bf16.mxu0 0
        %2928 = vmatpush2.bf16.msra.mxu0 0
        %2929 = vmatprep.subr.bf16.mxu0 0
        %2930 = vmatpush2.bf16.msra.mxu0 0
        %2931 = vmatprep.mubr.bf16.mxu0 0
        %2932 = vmatmul.mubr.bf16.gmra.mxu0 %v2894
        %v2933 = vpop.f32.mrf.mxu0
        %v2934 = vadd.f32 %v2888, %v2933
        %v2935 = vpop.f32.mrf.mxu0
        %v2936 = vpop.f32.mrf.mxu0
        %v2937 = vpop.f32.mrf.mxu0
        %2938 = vdwg.mxu0
        %v2939 = vmul.bf16 %v2724, %v527
        %v2940 = vmul.bf16 %v2725, %v527
        %v2942 = vsel %vm558, %v2939, 0
        %2944 = vmatprep.subr.bf16.mxu0 0
        %2945 = vmatpush1.bf16.xpose.msra.mxu0 0
        %2946 = vmatprep.subr.bf16.mxu0 0
        %2947 = vmatpush1.bf16.xpose.msra.mxu0 0
        %2948 = vmatprep.subr.bf16.mxu0 0
        %2949 = vmatpush1.bf16.xpose.msra.mxu0 0
        %2950 = vmatprep.subr.bf16.mxu0 0
        %2951 = vmatpush1.bf16.xpose.msra.mxu0 0
        %2952 = vmatprep.subr.bf16.mxu0 0
        %2953 = vmatpush1.bf16.xpose.msra.mxu0 0
        %2954 = vmatprep.subr.bf16.mxu0 0
        %2955 = vmatpush1.bf16.xpose.msra.mxu0 0
        %2956 = vmatprep.subr.bf16.mxu0 0
        %2957 = vmatpush1.bf16.xpose.msra.mxu0 0
        %2958 = vmatprep.subr.bf16.mxu0 0
        %2959 = vmatpush1.bf16.xpose.msra.mxu0 %v2942
        %2960 = vmatprep.subr.bf16.mxu0 0
        %2961 = vmatpush2.bf16.xpose.msra.mxu0 0
        %2962 = vmatprep.subr.bf16.mxu0 0
        %2963 = vmatpush2.bf16.xpose.msra.mxu0 0
        %2964 = vmatprep.subr.bf16.mxu0 0
        %2965 = vmatpush2.bf16.xpose.msra.mxu0 0
        %2966 = vmatprep.subr.bf16.mxu0 0
        %2967 = vmatpush2.bf16.xpose.msra.mxu0 0
        %2968 = vmatprep.subr.bf16.mxu0 0
        %2969 = vmatpush2.bf16.xpose.msra.mxu0 0
        %2970 = vmatprep.subr.bf16.mxu0 0
        %2971 = vmatpush2.bf16.xpose.msra.mxu0 0
        %2972 = vmatprep.subr.bf16.mxu0 0
        %2973 = vmatpush2.bf16.xpose.msra.mxu0 0
        %2974 = vmatprep.subr.bf16.mxu0 0
        %2975 = vmatpush2.bf16.xpose.msra.mxu0 0
        %2976 = vmatprep.mubr.bf16.mxu0 0
        %2977 = vmatmul.mubr.bf16.gmra.mxu0 %v2729
        %v2978 = vpop.f32.mrf.mxu0
        %v2979 = vadd.f32 0.0, %v2978
        %v2980 = vpop.f32.mrf.mxu0
        %v2981 = vpop.f32.mrf.mxu0
        %v2982 = vpop.f32.mrf.mxu0
        %2983 = vdwg.mxu0
        %v2984 = vmul.f32 %v2979, 0.35355338
        %v2985 = vsel %vm2775, %v2984, -inf
        %2986 = vmax.xlane.f32.xlu0 %v2985
        %v2987 = vpop.xlane.xlu0 %2986
        %v2988 = vsub.f32 %v2984, %v2987
        %v2989 = vmul.f32 %v2988, 1.442695
        %v2990 = vpow.pop %v2989
        %v2991 = vsel %vm2775, %v2990, 0.0
        %2992 = vadd.xlane.f32.xlu0 %v2991
        %v2993 = vpop.xlane.xlu0 %2992
        %v2994 = vrcp.pop %v2993
        %v2995 = vmul.f32 %v2990, %v2994
        %v2996 = vpack.c.bf16 %v2995, %v2995
        %v2998 = vsel %vm2775, %v2996, 0
        %v3001 = vsel %vm2849, %v2940, 0
        %3003 = vmatprep.subr.bf16.mxu0 0
        %3004 = vmatpush1.bf16.msra.mxu0 0
        %3005 = vmatprep.subr.bf16.mxu0 0
        %3006 = vmatpush1.bf16.msra.mxu0 0
        %3007 = vmatprep.subr.bf16.mxu0 0
        %3008 = vmatpush1.bf16.msra.mxu0 0
        %3009 = vmatprep.subr.bf16.mxu0 0
        %3010 = vmatpush1.bf16.msra.mxu0 0
        %3011 = vmatprep.subr.bf16.mxu0 0
        %3012 = vmatpush1.bf16.msra.mxu0 0
        %3013 = vmatprep.subr.bf16.mxu0 0
        %3014 = vmatpush1.bf16.msra.mxu0 0
        %3015 = vmatprep.subr.bf16.mxu0 0
        %3016 = vmatpush1.bf16.msra.mxu0 0
        %3017 = vmatprep.subr.bf16.mxu0 0
        %3018 = vmatpush1.bf16.msra.mxu0 %v3001
        %3019 = vmatprep.subr.bf16.mxu0 0
        %3020 = vmatpush2.bf16.msra.mxu0 0
        %3021 = vmatprep.subr.bf16.mxu0 0
        %3022 = vmatpush2.bf16.msra.mxu0 0
        %3023 = vmatprep.subr.bf16.mxu0 0
        %3024 = vmatpush2.bf16.msra.mxu0 0
        %3025 = vmatprep.subr.bf16.mxu0 0
        %3026 = vmatpush2.bf16.msra.mxu0 0
        %3027 = vmatprep.subr.bf16.mxu0 0
        %3028 = vmatpush2.bf16.msra.mxu0 0
        %3029 = vmatprep.subr.bf16.mxu0 0
        %3030 = vmatpush2.bf16.msra.mxu0 0
        %3031 = vmatprep.subr.bf16.mxu0 0
        %3032 = vmatpush2.bf16.msra.mxu0 0
        %3033 = vmatprep.subr.bf16.mxu0 0
        %3034 = vmatpush2.bf16.msra.mxu0 0
        %3035 = vmatprep.mubr.bf16.mxu0 0
        %3036 = vmatmul.mubr.bf16.gmra.mxu0 %v2998
        %v3037 = vpop.f32.mrf.mxu0
        %v3038 = vadd.f32 0.0, %v3037
        %v3039 = vpop.f32.mrf.mxu0
        %v3040 = vpop.f32.mrf.mxu0
        %v3041 = vpop.f32.mrf.mxu0
        %3042 = vdwg.mxu0
        %v3043 = vadd.f32 %v2934, %v3038
        %v3044 = vmul.bf16 %v2724, %v533
        %v3045 = vmul.bf16 %v2725, %v533
        %v3047 = vsel %vm558, %v3044, 0
        %3049 = vmatprep.subr.bf16.mxu0 0
        %3050 = vmatpush1.bf16.xpose.msra.mxu0 0
        %3051 = vmatprep.subr.bf16.mxu0 0
        %3052 = vmatpush1.bf16.xpose.msra.mxu0 0
        %3053 = vmatprep.subr.bf16.mxu0 0
        %3054 = vmatpush1.bf16.xpose.msra.mxu0 0
        %3055 = vmatprep.subr.bf16.mxu0 0
        %3056 = vmatpush1.bf16.xpose.msra.mxu0 0
        %3057 = vmatprep.subr.bf16.mxu0 0
        %3058 = vmatpush1.bf16.xpose.msra.mxu0 0
        %3059 = vmatprep.subr.bf16.mxu0 0
        %3060 = vmatpush1.bf16.xpose.msra.mxu0 0
        %3061 = vmatprep.subr.bf16.mxu0 0
        %3062 = vmatpush1.bf16.xpose.msra.mxu0 0
        %3063 = vmatprep.subr.bf16.mxu0 0
        %3064 = vmatpush1.bf16.xpose.msra.mxu0 %v3047
        %3065 = vmatprep.subr.bf16.mxu0 0
        %3066 = vmatpush2.bf16.xpose.msra.mxu0 0
        %3067 = vmatprep.subr.bf16.mxu0 0
        %3068 = vmatpush2.bf16.xpose.msra.mxu0 0
        %3069 = vmatprep.subr.bf16.mxu0 0
        %3070 = vmatpush2.bf16.xpose.msra.mxu0 0
        %3071 = vmatprep.subr.bf16.mxu0 0
        %3072 = vmatpush2.bf16.xpose.msra.mxu0 0
        %3073 = vmatprep.subr.bf16.mxu0 0
        %3074 = vmatpush2.bf16.xpose.msra.mxu0 0
        %3075 = vmatprep.subr.bf16.mxu0 0
        %3076 = vmatpush2.bf16.xpose.msra.mxu0 0
        %3077 = vmatprep.subr.bf16.mxu0 0
        %3078 = vmatpush2.bf16.xpose.msra.mxu0 0
        %3079 = vmatprep.subr.bf16.mxu0 0
        %3080 = vmatpush2.bf16.xpose.msra.mxu0 0
        %3081 = vmatprep.mubr.bf16.mxu0 0
        %3082 = vmatmul.mubr.bf16.gmra.mxu0 %v2729
        %v3083 = vpop.f32.mrf.mxu0
        %v3084 = vadd.f32 0.0, %v3083
        %v3085 = vpop.f32.mrf.mxu0
        %v3086 = vpop.f32.mrf.mxu0
        %v3087 = vpop.f32.mrf.mxu0
        %3088 = vdwg.mxu0
        %v3089 = vmul.f32 %v3084, 0.35355338
        %v3090 = vsel %vm2775, %v3089, -inf
        %3091 = vmax.xlane.f32.xlu0 %v3090
        %v3092 = vpop.xlane.xlu0 %3091
        %v3093 = vsub.f32 %v3089, %v3092
        %v3094 = vmul.f32 %v3093, 1.442695
        %v3095 = vpow.pop %v3094
        %v3096 = vsel %vm2775, %v3095, 0.0
        %3097 = vadd.xlane.f32.xlu0 %v3096
        %v3098 = vpop.xlane.xlu0 %3097
        %v3099 = vrcp.pop %v3098
        %v3100 = vmul.f32 %v3095, %v3099
        %v3101 = vpack.c.bf16 %v3100, %v3100
        %v3103 = vsel %vm2775, %v3101, 0
        %v3106 = vsel %vm2849, %v3045, 0
        %3108 = vmatprep.subr.bf16.mxu0 0
        %3109 = vmatpush1.bf16.msra.mxu0 0
        %3110 = vmatprep.subr.bf16.mxu0 0
        %3111 = vmatpush1.bf16.msra.mxu0 0
        %3112 = vmatprep.subr.bf16.mxu0 0
        %3113 = vmatpush1.bf16.msra.mxu0 0
        %3114 = vmatprep.subr.bf16.mxu0 0
        %3115 = vmatpush1.bf16.msra.mxu0 0
        %3116 = vmatprep.subr.bf16.mxu0 0
        %3117 = vmatpush1.bf16.msra.mxu0 0
        %3118 = vmatprep.subr.bf16.mxu0 0
        %3119 = vmatpush1.bf16.msra.mxu0 0
        %3120 = vmatprep.subr.bf16.mxu0 0
        %3121 = vmatpush1.bf16.msra.mxu0 0
        %3122 = vmatprep.subr.bf16.mxu0 0
        %3123 = vmatpush1.bf16.msra.mxu0 %v3106
        %3124 = vmatprep.subr.bf16.mxu0 0
        %3125 = vmatpush2.bf16.msra.mxu0 0
        %3126 = vmatprep.subr.bf16.mxu0 0
        %3127 = vmatpush2.bf16.msra.mxu0 0
        %3128 = vmatprep.subr.bf16.mxu0 0
        %3129 = vmatpush2.bf16.msra.mxu0 0
        %3130 = vmatprep.subr.bf16.mxu0 0
        %3131 = vmatpush2.bf16.msra.mxu0 0
        %3132 = vmatprep.subr.bf16.mxu0 0
        %3133 = vmatpush2.bf16.msra.mxu0 0
        %3134 = vmatprep.subr.bf16.mxu0 0
        %3135 = vmatpush2.bf16.msra.mxu0 0
        %3136 = vmatprep.subr.bf16.mxu0 0
        %3137 = vmatpush2.bf16.msra.mxu0 0
        %3138 = vmatprep.subr.bf16.mxu0 0
        %3139 = vmatpush2.bf16.msra.mxu0 0
        %3140 = vmatprep.mubr.bf16.mxu0 0
        %3141 = vmatmul.mubr.bf16.gmra.mxu0 %v3103
        %v3142 = vpop.f32.mrf.mxu0
        %v3143 = vadd.f32 0.0, %v3142
        %v3144 = vpop.f32.mrf.mxu0
        %v3145 = vpop.f32.mrf.mxu0
        %v3146 = vpop.f32.mrf.mxu0
        %3147 = vdwg.mxu0
        %v3148 = vadd.f32 %v3043, %v3143
        %s3149 = scalar_lea.vmem %s4, 176
        %v3150 = vld [vmem:[%s3149] sm:$0xf]
        %v3151 = vld [vmem:[%s3149 + $0x4] sm:$0xf]
        %v3152 = vld [vmem:[%s3149 + $0x8] sm:$0xf]
        %v3153 = vld [vmem:[%s3149 + $0xc] sm:$0xf]
        %v3154 = vld [vmem:[%s5 + $0xb] sm:$0x1]
        %v3155 = vpack.c.bf16 %v3148, %v3148
        %v3156 = vlaneseq
        %v3157 = vshrl.u32 %v3156, 7
        %v3158 = vsub.s32 0, %v3157
        %v3159 = vrot.slane %v3154, %v3158
        %v3164 = vunpack.c.l.b16 %v3150
        %v3165 = vunpack.c.l.b16 %v3151
        %v3166 = vunpack.c.l.b16 %v3152
        %v3167 = vunpack.c.l.b16 %v3153
        %v3168 = vpack.c.b16 %v3165, %v3164
        %v3169 = vpack.c.b16 %v3167, %v3166
        %v3173 = vsel %vm558, %v3155, 0
        %3175 = vmatprep.subr.bf16.mxu0 0
        %3176 = vmatpush1.bf16.msra.mxu0 0
        %3177 = vmatprep.subr.bf16.mxu0 0
        %3178 = vmatpush1.bf16.msra.mxu0 0
        %3179 = vmatprep.subr.bf16.mxu0 0
        %3180 = vmatpush1.bf16.msra.mxu0 0
        %3181 = vmatprep.subr.bf16.mxu0 0
        %3182 = vmatpush1.bf16.msra.mxu0 0
        %3183 = vmatprep.subr.bf16.mxu0 0
        %3184 = vmatpush1.bf16.msra.mxu0 0
        %3185 = vmatprep.subr.bf16.mxu0 0
        %3186 = vmatpush1.bf16.msra.mxu0 0
        %3187 = vmatprep.subr.bf16.mxu0 0
        %3188 = vmatpush1.bf16.msra.mxu0 %v3169
        %3189 = vmatprep.subr.bf16.mxu0 0
        %3190 = vmatpush1.bf16.msra.mxu0 %v3168
        %3191 = vmatprep.subr.bf16.mxu0 0
        %3192 = vmatpush2.bf16.msra.mxu0 0
        %3193 = vmatprep.subr.bf16.mxu0 0
        %3194 = vmatpush2.bf16.msra.mxu0 0
        %3195 = vmatprep.subr.bf16.mxu0 0
        %3196 = vmatpush2.bf16.msra.mxu0 0
        %3197 = vmatprep.subr.bf16.mxu0 0
        %3198 = vmatpush2.bf16.msra.mxu0 0
        %3199 = vmatprep.subr.bf16.mxu0 0
        %3200 = vmatpush2.bf16.msra.mxu0 0
        %3201 = vmatprep.subr.bf16.mxu0 0
        %3202 = vmatpush2.bf16.msra.mxu0 0
        %3203 = vmatprep.subr.bf16.mxu0 0
        %3204 = vmatpush2.bf16.msra.mxu0 0
        %3205 = vmatprep.subr.bf16.mxu0 0
        %3206 = vmatpush2.bf16.msra.mxu0 0
        %3207 = vmatprep.mubr.bf16.mxu0 0
        %3208 = vmatmul.mubr.bf16.gmra.mxu0 %v3173
        %v3209 = vpop.f32.mrf.mxu0
        %v3210 = vadd.f32 %v3159, %v3209
        %v3211 = vpop.f32.mrf.mxu0
        %v3212 = vpop.f32.mrf.mxu0
        %v3213 = vpop.f32.mrf.mxu0
        %3214 = vdwg.mxu0
        %v3215 = vadd.f32 %v3210, 0.0
        %v3216 = vld [vmem:[%s10 + $0x4] sm:$0x1]
        %v3217 = vld [vmem:[%s11 + $0x4] sm:$0x1]
        %v3218 = vsel %vm558, %v3215, 0.0
        %3219 = vadd.xlane.f32.xlu0 %v3218
        %v3220 = vpop.xlane.xlu0 %3219
        %v3221 = vmul.f32 %v3220, %v1295
        %v3222 = vmul.f32 %v3215, %v3215
        %v3223 = vsel %vm558, %v3222, 0.0
        %3224 = vadd.xlane.f32.xlu0 %v3223
        %v3225 = vpop.xlane.xlu0 %3224
        %v3226 = vmul.f32 %v3225, %v1295
        %v3227 = vmul.f32 %v3221, %v3221
        %v3228 = vsub.f32 %v3226, %v3227
        %v3229 = vmax.f32 %v3228, 0.0
        %v3230 = vsub.f32 %v3215, %v3221
        %v3231 = vadd.f32 %v3229, 1e-05
        %v3232 = vrsqrt.pop %v3231
        %v3233 = vmul.f32 %v3230, %v3232
        %v3234 = vlaneseq
        %v3235 = vshrl.u32 %v3234, 7
        %v3236 = vsub.s32 0, %v3235
        %v3237 = vrot.slane %v3216, %v3236
        %v3238 = vmul.f32 %v3233, %v3237
        %v3239 = vlaneseq
        %v3240 = vshrl.u32 %v3239, 7
        %v3241 = vsub.s32 0, %v3240
        %v3242 = vrot.slane %v3217, %v3241
        %v3243 = vadd.f32 %v3238, %v3242
        %v3244 = vadd.f32 %v3243, %v506
        %s3245 = scalar_lea.vmem %s4, 192
        %v3246 = vld [vmem:[%s3245] sm:$0xf]
        %v3247 = vld [vmem:[%s3245 + $0x4] sm:$0xf]
        %v3248 = vld [vmem:[%s3245 + $0x8] sm:$0xf]
        %v3249 = vld [vmem:[%s3245 + $0xc] sm:$0xf]
        %v3250 = vld [vmem:[%s5 + $0xc] sm:$0x1]
        %v3251 = vpack.c.bf16 %v3244, %v3244
        %v3252 = vlaneseq
        %v3253 = vshrl.u32 %v3252, 7
        %v3254 = vsub.s32 0, %v3253
        %v3255 = vrot.slane %v3250, %v3254
        %v3260 = vunpack.c.l.b16 %v3246
        %v3261 = vunpack.c.l.b16 %v3247
        %v3262 = vunpack.c.l.b16 %v3248
        %v3263 = vunpack.c.l.b16 %v3249
        %v3264 = vpack.c.b16 %v3261, %v3260
        %v3265 = vpack.c.b16 %v3263, %v3262
        %v3269 = vsel %vm558, %v3251, 0
        %3271 = vmatprep.subr.bf16.mxu0 0
        %3272 = vmatpush1.bf16.msra.mxu0 0
        %3273 = vmatprep.subr.bf16.mxu0 0
        %3274 = vmatpush1.bf16.msra.mxu0 0
        %3275 = vmatprep.subr.bf16.mxu0 0
        %3276 = vmatpush1.bf16.msra.mxu0 0
        %3277 = vmatprep.subr.bf16.mxu0 0
        %3278 = vmatpush1.bf16.msra.mxu0 0
        %3279 = vmatprep.subr.bf16.mxu0 0
        %3280 = vmatpush1.bf16.msra.mxu0 0
        %3281 = vmatprep.subr.bf16.mxu0 0
        %3282 = vmatpush1.bf16.msra.mxu0 0
        %3283 = vmatprep.subr.bf16.mxu0 0
        %3284 = vmatpush1.bf16.msra.mxu0 %v3265
        %3285 = vmatprep.subr.bf16.mxu0 0
        %3286 = vmatpush1.bf16.msra.mxu0 %v3264
        %3287 = vmatprep.subr.bf16.mxu0 0
        %3288 = vmatpush2.bf16.msra.mxu0 0
        %3289 = vmatprep.subr.bf16.mxu0 0
        %3290 = vmatpush2.bf16.msra.mxu0 0
        %3291 = vmatprep.subr.bf16.mxu0 0
        %3292 = vmatpush2.bf16.msra.mxu0 0
        %3293 = vmatprep.subr.bf16.mxu0 0
        %3294 = vmatpush2.bf16.msra.mxu0 0
        %3295 = vmatprep.subr.bf16.mxu0 0
        %3296 = vmatpush2.bf16.msra.mxu0 0
        %3297 = vmatprep.subr.bf16.mxu0 0
        %3298 = vmatpush2.bf16.msra.mxu0 0
        %3299 = vmatprep.subr.bf16.mxu0 0
        %3300 = vmatpush2.bf16.msra.mxu0 0
        %3301 = vmatprep.subr.bf16.mxu0 0
        %3302 = vmatpush2.bf16.msra.mxu0 0
        %3303 = vmatprep.mubr.bf16.mxu0 0
        %3304 = vmatmul.mubr.bf16.gmra.mxu0 %v3269
        %v3305 = vpop.f32.mrf.mxu0
        %v3306 = vadd.f32 %v3255, %v3305
        %v3307 = vpop.f32.mrf.mxu0
        %v3308 = vpop.f32.mrf.mxu0
        %v3309 = vpop.f32.mrf.mxu0
        %3310 = vdwg.mxu0
        %s3311 = scalar_lea.vmem %s4, 208
        %v3312 = vld [vmem:[%s3311] sm:$0xf]
        %v3313 = vld [vmem:[%s3311 + $0x4] sm:$0xf]
        %v3314 = vld [vmem:[%s3311 + $0x8] sm:$0xf]
        %v3315 = vld [vmem:[%s3311 + $0xc] sm:$0xf]
        %v3316 = vld [vmem:[%s5 + $0xd] sm:$0x1]
        %v3317 = vpack.c.bf16 %v2528, %v2527
        %v3318 = vlaneseq
        %v3319 = vshrl.u32 %v3318, 7
        %v3320 = vsub.s32 0, %v3319
        %v3321 = vrot.slane %v3316, %v3320
        %v3326 = vunpack.c.l.b16 %v3312
        %v3327 = vunpack.c.l.b16 %v3313
        %v3328 = vunpack.c.l.b16 %v3314
        %v3329 = vunpack.c.l.b16 %v3315
        %v3330 = vpack.c.b16 %v3327, %v3326
        %v3331 = vpack.c.b16 %v3329, %v3328
        %v3335 = vsel %vm558, %v3317, 0
        %3337 = vmatprep.subr.bf16.mxu0 0
        %3338 = vmatpush1.bf16.msra.mxu0 0
        %3339 = vmatprep.subr.bf16.mxu0 0
        %3340 = vmatpush1.bf16.msra.mxu0 0
        %3341 = vmatprep.subr.bf16.mxu0 0
        %3342 = vmatpush1.bf16.msra.mxu0 0
        %3343 = vmatprep.subr.bf16.mxu0 0
        %3344 = vmatpush1.bf16.msra.mxu0 0
        %3345 = vmatprep.subr.bf16.mxu0 0
        %3346 = vmatpush1.bf16.msra.mxu0 0
        %3347 = vmatprep.subr.bf16.mxu0 0
        %3348 = vmatpush1.bf16.msra.mxu0 0
        %3349 = vmatprep.subr.bf16.mxu0 0
        %3350 = vmatpush1.bf16.msra.mxu0 %v3331
        %3351 = vmatprep.subr.bf16.mxu0 0
        %3352 = vmatpush1.bf16.msra.mxu0 %v3330
        %3353 = vmatprep.subr.bf16.mxu0 0
        %3354 = vmatpush2.bf16.msra.mxu0 0
        %3355 = vmatprep.subr.bf16.mxu0 0
        %3356 = vmatpush2.bf16.msra.mxu0 0
        %3357 = vmatprep.subr.bf16.mxu0 0
        %3358 = vmatpush2.bf16.msra.mxu0 0
        %3359 = vmatprep.subr.bf16.mxu0 0
        %3360 = vmatpush2.bf16.msra.mxu0 0
        %3361 = vmatprep.subr.bf16.mxu0 0
        %3362 = vmatpush2.bf16.msra.mxu0 0
        %3363 = vmatprep.subr.bf16.mxu0 0
        %3364 = vmatpush2.bf16.msra.mxu0 0
        %3365 = vmatprep.subr.bf16.mxu0 0
        %3366 = vmatpush2.bf16.msra.mxu0 0
        %3367 = vmatprep.subr.bf16.mxu0 0
        %3368 = vmatpush2.bf16.msra.mxu0 0
        %3369 = vmatprep.mubr.bf16.mxu0 0
        %3370 = vmatmul.mubr.bf16.gmra.mxu0 %v3335
        %v3371 = vpop.f32.mrf.mxu0
        %v3372 = vadd.f32 %v3321, %v3371
        %v3373 = vpop.f32.mrf.mxu0
        %v3374 = vpop.f32.mrf.mxu0
        %v3375 = vadd.f32 %v3321, %v3374
        %v3376 = vpop.f32.mrf.mxu0
        %3377 = vdwg.mxu0
        %s3378 = scalar_lea.vmem %s4, 224
        %v3379 = vld [vmem:[%s3378] sm:$0xf]
        %v3380 = vld [vmem:[%s3378 + $0x4] sm:$0xf]
        %v3381 = vld [vmem:[%s3378 + $0x8] sm:$0xf]
        %v3382 = vld [vmem:[%s3378 + $0xc] sm:$0xf]
        %v3383 = vld [vmem:[%s5 + $0xe] sm:$0x1]
        %v3384 = vpack.c.bf16 %v2524, %v2523
        %v3385 = vlaneseq
        %v3386 = vshrl.u32 %v3385, 7
        %v3387 = vsub.s32 0, %v3386
        %v3388 = vrot.slane %v3383, %v3387
        %v3393 = vunpack.c.l.b16 %v3379
        %v3394 = vunpack.c.l.b16 %v3380
        %v3395 = vunpack.c.l.b16 %v3381
        %v3396 = vunpack.c.l.b16 %v3382
        %v3397 = vpack.c.b16 %v3394, %v3393
        %v3398 = vpack.c.b16 %v3396, %v3395
        %v3402 = vsel %vm558, %v3384, 0
        %3404 = vmatprep.subr.bf16.mxu0 0
        %3405 = vmatpush1.bf16.msra.mxu0 0
        %3406 = vmatprep.subr.bf16.mxu0 0
        %3407 = vmatpush1.bf16.msra.mxu0 0
        %3408 = vmatprep.subr.bf16.mxu0 0
        %3409 = vmatpush1.bf16.msra.mxu0 0
        %3410 = vmatprep.subr.bf16.mxu0 0
        %3411 = vmatpush1.bf16.msra.mxu0 0
        %3412 = vmatprep.subr.bf16.mxu0 0
        %3413 = vmatpush1.bf16.msra.mxu0 0
        %3414 = vmatprep.subr.bf16.mxu0 0
        %3415 = vmatpush1.bf16.msra.mxu0 0
        %3416 = vmatprep.subr.bf16.mxu0 0
        %3417 = vmatpush1.bf16.msra.mxu0 %v3398
        %3418 = vmatprep.subr.bf16.mxu0 0
        %3419 = vmatpush1.bf16.msra.mxu0 %v3397
        %3420 = vmatprep.subr.bf16.mxu0 0
        %3421 = vmatpush2.bf16.msra.mxu0 0
        %3422 = vmatprep.subr.bf16.mxu0 0
        %3423 = vmatpush2.bf16.msra.mxu0 0
        %3424 = vmatprep.subr.bf16.mxu0 0
        %3425 = vmatpush2.bf16.msra.mxu0 0
        %3426 = vmatprep.subr.bf16.mxu0 0
        %3427 = vmatpush2.bf16.msra.mxu0 0
        %3428 = vmatprep.subr.bf16.mxu0 0
        %3429 = vmatpush2.bf16.msra.mxu0 0
        %3430 = vmatprep.subr.bf16.mxu0 0
        %3431 = vmatpush2.bf16.msra.mxu0 0
        %3432 = vmatprep.subr.bf16.mxu0 0
        %3433 = vmatpush2.bf16.msra.mxu0 0
        %3434 = vmatprep.subr.bf16.mxu0 0
        %3435 = vmatpush2.bf16.msra.mxu0 0
        %3436 = vmatprep.mubr.bf16.mxu0 0
        %3437 = vmatmul.mubr.bf16.gmra.mxu0 %v3402
        %v3438 = vpop.f32.mrf.mxu0
        %v3439 = vadd.f32 %v3388, %v3438
        %v3440 = vpop.f32.mrf.mxu0
        %v3441 = vpop.f32.mrf.mxu0
        %v3442 = vadd.f32 %v3388, %v3441
        %v3443 = vpop.f32.mrf.mxu0
        %3444 = vdwg.mxu0
        %v3445 = vpack.c.bf16 %v3306, %v3306
        %v3446 = vpack.c.bf16 %v3375, %v3372
        %v3447 = vpack.c.bf16 %v3442, %v3439
        %v3448 = vmul.bf16 %v3446, %v515
        %v3449 = vmul.bf16 %v3447, %v515
        %v3451 = vsel %vm558, %v3445, 0
        %v3454 = vsel %vm558, %v3448, 0
        %3456 = vmatprep.subr.bf16.mxu0 0
        %3457 = vmatpush1.bf16.xpose.msra.mxu0 0
        %3458 = vmatprep.subr.bf16.mxu0 0
        %3459 = vmatpush1.bf16.xpose.msra.mxu0 0
        %3460 = vmatprep.subr.bf16.mxu0 0
        %3461 = vmatpush1.bf16.xpose.msra.mxu0 0
        %3462 = vmatprep.subr.bf16.mxu0 0
        %3463 = vmatpush1.bf16.xpose.msra.mxu0 0
        %3464 = vmatprep.subr.bf16.mxu0 0
        %3465 = vmatpush1.bf16.xpose.msra.mxu0 0
        %3466 = vmatprep.subr.bf16.mxu0 0
        %3467 = vmatpush1.bf16.xpose.msra.mxu0 0
        %3468 = vmatprep.subr.bf16.mxu0 0
        %3469 = vmatpush1.bf16.xpose.msra.mxu0 0
        %3470 = vmatprep.subr.bf16.mxu0 0
        %3471 = vmatpush1.bf16.xpose.msra.mxu0 %v3454
        %3472 = vmatprep.subr.bf16.mxu0 0
        %3473 = vmatpush2.bf16.xpose.msra.mxu0 0
        %3474 = vmatprep.subr.bf16.mxu0 0
        %3475 = vmatpush2.bf16.xpose.msra.mxu0 0
        %3476 = vmatprep.subr.bf16.mxu0 0
        %3477 = vmatpush2.bf16.xpose.msra.mxu0 0
        %3478 = vmatprep.subr.bf16.mxu0 0
        %3479 = vmatpush2.bf16.xpose.msra.mxu0 0
        %3480 = vmatprep.subr.bf16.mxu0 0
        %3481 = vmatpush2.bf16.xpose.msra.mxu0 0
        %3482 = vmatprep.subr.bf16.mxu0 0
        %3483 = vmatpush2.bf16.xpose.msra.mxu0 0
        %3484 = vmatprep.subr.bf16.mxu0 0
        %3485 = vmatpush2.bf16.xpose.msra.mxu0 0
        %3486 = vmatprep.subr.bf16.mxu0 0
        %3487 = vmatpush2.bf16.xpose.msra.mxu0 0
        %3488 = vmatprep.mubr.bf16.mxu0 0
        %3489 = vmatmul.mubr.bf16.gmra.mxu0 %v3451
        %v3490 = vpop.f32.mrf.mxu0
        %v3491 = vadd.f32 0.0, %v3490
        %v3492 = vpop.f32.mrf.mxu0
        %v3493 = vpop.f32.mrf.mxu0
        %v3494 = vpop.f32.mrf.mxu0
        %3495 = vdwg.mxu0
        %v3496 = vmul.f32 %v3491, 0.35355338
        %v3497 = vadd.f32 %v3496, %v740
        %v3498 = vsel %vm795, %v3497, -inf
        %3499 = vmax.xlane.f32.xlu0 %v3498
        %v3500 = vpop.xlane.xlu0 %3499
        %v3501 = vsub.f32 %v3497, %v3500
        %v3502 = vmul.f32 %v3501, 1.442695
        %v3503 = vpow.pop %v3502
        %v3504 = vsel %vm795, %v3503, 0.0
        %3505 = vadd.xlane.f32.xlu0 %v3504
        %v3506 = vpop.xlane.xlu0 %3505
        %v3507 = vrcp.pop %v3506
        %v3508 = vmul.f32 %v3503, %v3507
        %v3509 = vpack.c.bf16 %v3508, %v3508
        %v3510 = vmul.bf16 %v3446, %v521
        %v3511 = vmul.bf16 %v3447, %v521
        %v3513 = vsel %vm558, %v3510, 0
        %3515 = vmatprep.subr.bf16.mxu0 0
        %3516 = vmatpush1.bf16.xpose.msra.mxu0 0
        %3517 = vmatprep.subr.bf16.mxu0 0
        %3518 = vmatpush1.bf16.xpose.msra.mxu0 0
        %3519 = vmatprep.subr.bf16.mxu0 0
        %3520 = vmatpush1.bf16.xpose.msra.mxu0 0
        %3521 = vmatprep.subr.bf16.mxu0 0
        %3522 = vmatpush1.bf16.xpose.msra.mxu0 0
        %3523 = vmatprep.subr.bf16.mxu0 0
        %3524 = vmatpush1.bf16.xpose.msra.mxu0 0
        %3525 = vmatprep.subr.bf16.mxu0 0
        %3526 = vmatpush1.bf16.xpose.msra.mxu0 0
        %3527 = vmatprep.subr.bf16.mxu0 0
        %3528 = vmatpush1.bf16.xpose.msra.mxu0 0
        %3529 = vmatprep.subr.bf16.mxu0 0
        %3530 = vmatpush1.bf16.xpose.msra.mxu0 %v3513
        %3531 = vmatprep.subr.bf16.mxu0 0
        %3532 = vmatpush2.bf16.xpose.msra.mxu0 0
        %3533 = vmatprep.subr.bf16.mxu0 0
        %3534 = vmatpush2.bf16.xpose.msra.mxu0 0
        %3535 = vmatprep.subr.bf16.mxu0 0
        %3536 = vmatpush2.bf16.xpose.msra.mxu0 0
        %3537 = vmatprep.subr.bf16.mxu0 0
        %3538 = vmatpush2.bf16.xpose.msra.mxu0 0
        %3539 = vmatprep.subr.bf16.mxu0 0
        %3540 = vmatpush2.bf16.xpose.msra.mxu0 0
        %3541 = vmatprep.subr.bf16.mxu0 0
        %3542 = vmatpush2.bf16.xpose.msra.mxu0 0
        %3543 = vmatprep.subr.bf16.mxu0 0
        %3544 = vmatpush2.bf16.xpose.msra.mxu0 0
        %3545 = vmatprep.subr.bf16.mxu0 0
        %3546 = vmatpush2.bf16.xpose.msra.mxu0 0
        %3547 = vmatprep.mubr.bf16.mxu0 0
        %3548 = vmatmul.mubr.bf16.gmra.mxu0 %v3451
        %v3549 = vpop.f32.mrf.mxu0
        %v3550 = vadd.f32 0.0, %v3549
        %v3551 = vpop.f32.mrf.mxu0
        %v3552 = vpop.f32.mrf.mxu0
        %v3553 = vpop.f32.mrf.mxu0
        %3554 = vdwg.mxu0
        %v3555 = vmul.f32 %v3550, 0.35355338
        %v3556 = vadd.f32 %v3555, %v740
        %v3557 = vsel %vm795, %v3556, -inf
        %3558 = vmax.xlane.f32.xlu0 %v3557
        %v3559 = vpop.xlane.xlu0 %3558
        %v3560 = vsub.f32 %v3556, %v3559
        %v3561 = vmul.f32 %v3560, 1.442695
        %v3562 = vpow.pop %v3561
        %v3563 = vsel %vm795, %v3562, 0.0
        %3564 = vadd.xlane.f32.xlu0 %v3563
        %v3565 = vpop.xlane.xlu0 %3564
        %v3566 = vrcp.pop %v3565
        %v3567 = vmul.f32 %v3562, %v3566
        %v3568 = vpack.c.bf16 %v3567, %v3567
        %v3570 = vsel %vm795, %v3568, 0
        %3572 = vmatprep.subr.bf16.mxu0 0
        %3573 = vmatpush1.bf16.msra.mxu0 0
        %3574 = vmatprep.subr.bf16.mxu0 0
        %3575 = vmatpush1.bf16.msra.mxu0 0
        %3576 = vmatprep.subr.bf16.mxu0 0
        %3577 = vmatpush1.bf16.msra.mxu0 0
        %3578 = vmatprep.subr.bf16.mxu0 0
        %3579 = vmatpush1.bf16.msra.mxu0 0
        %3580 = vmatprep.subr.bf16.mxu0 0
        %3581 = vmatpush1.bf16.msra.mxu0 0
        %3582 = vmatprep.subr.bf16.mxu0 0
        %3583 = vmatpush1.bf16.msra.mxu0 0
        %3584 = vmatprep.subr.bf16.mxu0 0
        %3585 = vmatpush1.bf16.msra.mxu0 0
        %3586 = vmatprep.subr.bf16.mxu0 0
        %3587 = vmatpush1.bf16.msra.mxu0 %v3511
        %3588 = vmatprep.subr.bf16.mxu0 0
        %3589 = vmatpush2.bf16.msra.mxu0 0
        %3590 = vmatprep.subr.bf16.mxu0 0
        %3591 = vmatpush2.bf16.msra.mxu0 0
        %3592 = vmatprep.subr.bf16.mxu0 0
        %3593 = vmatpush2.bf16.msra.mxu0 0
        %3594 = vmatprep.subr.bf16.mxu0 0
        %3595 = vmatpush2.bf16.msra.mxu0 0
        %3596 = vmatprep.subr.bf16.mxu0 0
        %3597 = vmatpush2.bf16.msra.mxu0 0
        %3598 = vmatprep.subr.bf16.mxu0 0
        %3599 = vmatpush2.bf16.msra.mxu0 0
        %3600 = vmatprep.subr.bf16.mxu0 0
        %3601 = vmatpush2.bf16.msra.mxu0 0
        %3602 = vmatprep.subr.bf16.mxu0 0
        %3603 = vmatpush2.bf16.msra.mxu0 0
        %3604 = vmatprep.mubr.bf16.mxu0 0
        %3605 = vmatmul.mubr.bf16.gmra.mxu0 %v3570
        %v3606 = vpop.f32.mrf.mxu0
        %v3607 = vadd.f32 0.0, %v3606
        %v3608 = vpop.f32.mrf.mxu0
        %v3609 = vpop.f32.mrf.mxu0
        %v3610 = vpop.f32.mrf.mxu0
        %3611 = vdwg.mxu0
        %v3613 = vsel %vm795, %v3509, 0
        %3615 = vmatprep.subr.bf16.mxu0 0
        %3616 = vmatpush1.bf16.msra.mxu0 0
        %3617 = vmatprep.subr.bf16.mxu0 0
        %3618 = vmatpush1.bf16.msra.mxu0 0
        %3619 = vmatprep.subr.bf16.mxu0 0
        %3620 = vmatpush1.bf16.msra.mxu0 0
        %3621 = vmatprep.subr.bf16.mxu0 0
        %3622 = vmatpush1.bf16.msra.mxu0 0
        %3623 = vmatprep.subr.bf16.mxu0 0
        %3624 = vmatpush1.bf16.msra.mxu0 0
        %3625 = vmatprep.subr.bf16.mxu0 0
        %3626 = vmatpush1.bf16.msra.mxu0 0
        %3627 = vmatprep.subr.bf16.mxu0 0
        %3628 = vmatpush1.bf16.msra.mxu0 0
        %3629 = vmatprep.subr.bf16.mxu0 0
        %3630 = vmatpush1.bf16.msra.mxu0 %v3449
        %3631 = vmatprep.subr.bf16.mxu0 0
        %3632 = vmatpush2.bf16.msra.mxu0 0
        %3633 = vmatprep.subr.bf16.mxu0 0
        %3634 = vmatpush2.bf16.msra.mxu0 0
        %3635 = vmatprep.subr.bf16.mxu0 0
        %3636 = vmatpush2.bf16.msra.mxu0 0
        %3637 = vmatprep.subr.bf16.mxu0 0
        %3638 = vmatpush2.bf16.msra.mxu0 0
        %3639 = vmatprep.subr.bf16.mxu0 0
        %3640 = vmatpush2.bf16.msra.mxu0 0
        %3641 = vmatprep.subr.bf16.mxu0 0
        %3642 = vmatpush2.bf16.msra.mxu0 0
        %3643 = vmatprep.subr.bf16.mxu0 0
        %3644 = vmatpush2.bf16.msra.mxu0 0
        %3645 = vmatprep.subr.bf16.mxu0 0
        %3646 = vmatpush2.bf16.msra.mxu0 0
        %3647 = vmatprep.mubr.bf16.mxu0 0
        %3648 = vmatmul.mubr.bf16.gmra.mxu0 %v3613
        %v3649 = vpop.f32.mrf.mxu0
        %v3650 = vadd.f32 %v3607, %v3649
        %v3651 = vpop.f32.mrf.mxu0
        %v3652 = vpop.f32.mrf.mxu0
        %v3653 = vpop.f32.mrf.mxu0
        %3654 = vdwg.mxu0
        %v3655 = vmul.bf16 %v3446, %v527
        %v3656 = vmul.bf16 %v3447, %v527
        %v3658 = vsel %vm558, %v3655, 0
        %3660 = vmatprep.subr.bf16.mxu0 0
        %3661 = vmatpush1.bf16.xpose.msra.mxu0 0
        %3662 = vmatprep.subr.bf16.mxu0 0
        %3663 = vmatpush1.bf16.xpose.msra.mxu0 0
        %3664 = vmatprep.subr.bf16.mxu0 0
        %3665 = vmatpush1.bf16.xpose.msra.mxu0 0
        %3666 = vmatprep.subr.bf16.mxu0 0
        %3667 = vmatpush1.bf16.xpose.msra.mxu0 0
        %3668 = vmatprep.subr.bf16.mxu0 0
        %3669 = vmatpush1.bf16.xpose.msra.mxu0 0
        %3670 = vmatprep.subr.bf16.mxu0 0
        %3671 = vmatpush1.bf16.xpose.msra.mxu0 0
        %3672 = vmatprep.subr.bf16.mxu0 0
        %3673 = vmatpush1.bf16.xpose.msra.mxu0 0
        %3674 = vmatprep.subr.bf16.mxu0 0
        %3675 = vmatpush1.bf16.xpose.msra.mxu0 %v3658
        %3676 = vmatprep.subr.bf16.mxu0 0
        %3677 = vmatpush2.bf16.xpose.msra.mxu0 0
        %3678 = vmatprep.subr.bf16.mxu0 0
        %3679 = vmatpush2.bf16.xpose.msra.mxu0 0
        %3680 = vmatprep.subr.bf16.mxu0 0
        %3681 = vmatpush2.bf16.xpose.msra.mxu0 0
        %3682 = vmatprep.subr.bf16.mxu0 0
        %3683 = vmatpush2.bf16.xpose.msra.mxu0 0
        %3684 = vmatprep.subr.bf16.mxu0 0
        %3685 = vmatpush2.bf16.xpose.msra.mxu0 0
        %3686 = vmatprep.subr.bf16.mxu0 0
        %3687 = vmatpush2.bf16.xpose.msra.mxu0 0
        %3688 = vmatprep.subr.bf16.mxu0 0
        %3689 = vmatpush2.bf16.xpose.msra.mxu0 0
        %3690 = vmatprep.subr.bf16.mxu0 0
        %3691 = vmatpush2.bf16.xpose.msra.mxu0 0
        %3692 = vmatprep.mubr.bf16.mxu0 0
        %3693 = vmatmul.mubr.bf16.gmra.mxu0 %v3451
        %v3694 = vpop.f32.mrf.mxu0
        %v3695 = vadd.f32 0.0, %v3694
        %v3696 = vpop.f32.mrf.mxu0
        %v3697 = vpop.f32.mrf.mxu0
        %v3698 = vpop.f32.mrf.mxu0
        %3699 = vdwg.mxu0
        %v3700 = vmul.f32 %v3695, 0.35355338
        %v3701 = vadd.f32 %v3700, %v740
        %v3702 = vsel %vm795, %v3701, -inf
        %3703 = vmax.xlane.f32.xlu0 %v3702
        %v3704 = vpop.xlane.xlu0 %3703
        %v3705 = vsub.f32 %v3701, %v3704
        %v3706 = vmul.f32 %v3705, 1.442695
        %v3707 = vpow.pop %v3706
        %v3708 = vsel %vm795, %v3707, 0.0
        %3709 = vadd.xlane.f32.xlu0 %v3708
        %v3710 = vpop.xlane.xlu0 %3709
        %v3711 = vrcp.pop %v3710
        %v3712 = vmul.f32 %v3707, %v3711
        %v3713 = vpack.c.bf16 %v3712, %v3712
        %v3715 = vsel %vm795, %v3713, 0
        %3717 = vmatprep.subr.bf16.mxu0 0
        %3718 = vmatpush1.bf16.msra.mxu0 0
        %3719 = vmatprep.subr.bf16.mxu0 0
        %3720 = vmatpush1.bf16.msra.mxu0 0
        %3721 = vmatprep.subr.bf16.mxu0 0
        %3722 = vmatpush1.bf16.msra.mxu0 0
        %3723 = vmatprep.subr.bf16.mxu0 0
        %3724 = vmatpush1.bf16.msra.mxu0 0
        %3725 = vmatprep.subr.bf16.mxu0 0
        %3726 = vmatpush1.bf16.msra.mxu0 0
        %3727 = vmatprep.subr.bf16.mxu0 0
        %3728 = vmatpush1.bf16.msra.mxu0 0
        %3729 = vmatprep.subr.bf16.mxu0 0
        %3730 = vmatpush1.bf16.msra.mxu0 0
        %3731 = vmatprep.subr.bf16.mxu0 0
        %3732 = vmatpush1.bf16.msra.mxu0 %v3656
        %3733 = vmatprep.subr.bf16.mxu0 0
        %3734 = vmatpush2.bf16.msra.mxu0 0
        %3735 = vmatprep.subr.bf16.mxu0 0
        %3736 = vmatpush2.bf16.msra.mxu0 0
        %3737 = vmatprep.subr.bf16.mxu0 0
        %3738 = vmatpush2.bf16.msra.mxu0 0
        %3739 = vmatprep.subr.bf16.mxu0 0
        %3740 = vmatpush2.bf16.msra.mxu0 0
        %3741 = vmatprep.subr.bf16.mxu0 0
        %3742 = vmatpush2.bf16.msra.mxu0 0
        %3743 = vmatprep.subr.bf16.mxu0 0
        %3744 = vmatpush2.bf16.msra.mxu0 0
        %3745 = vmatprep.subr.bf16.mxu0 0
        %3746 = vmatpush2.bf16.msra.mxu0 0
        %3747 = vmatprep.subr.bf16.mxu0 0
        %3748 = vmatpush2.bf16.msra.mxu0 0
        %3749 = vmatprep.mubr.bf16.mxu0 0
        %3750 = vmatmul.mubr.bf16.gmra.mxu0 %v3715
        %v3751 = vpop.f32.mrf.mxu0
        %v3752 = vadd.f32 0.0, %v3751
        %v3753 = vpop.f32.mrf.mxu0
        %v3754 = vpop.f32.mrf.mxu0
        %v3755 = vpop.f32.mrf.mxu0
        %3756 = vdwg.mxu0
        %v3757 = vadd.f32 %v3650, %v3752
        %v3758 = vmul.bf16 %v3446, %v533
        %v3759 = vmul.bf16 %v3447, %v533
        %v3761 = vsel %vm558, %v3758, 0
        %3763 = vmatprep.subr.bf16.mxu0 0
        %3764 = vmatpush1.bf16.xpose.msra.mxu0 0
        %3765 = vmatprep.subr.bf16.mxu0 0
        %3766 = vmatpush1.bf16.xpose.msra.mxu0 0
        %3767 = vmatprep.subr.bf16.mxu0 0
        %3768 = vmatpush1.bf16.xpose.msra.mxu0 0
        %3769 = vmatprep.subr.bf16.mxu0 0
        %3770 = vmatpush1.bf16.xpose.msra.mxu0 0
        %3771 = vmatprep.subr.bf16.mxu0 0
        %3772 = vmatpush1.bf16.xpose.msra.mxu0 0
        %3773 = vmatprep.subr.bf16.mxu0 0
        %3774 = vmatpush1.bf16.xpose.msra.mxu0 0
        %3775 = vmatprep.subr.bf16.mxu0 0
        %3776 = vmatpush1.bf16.xpose.msra.mxu0 0
        %3777 = vmatprep.subr.bf16.mxu0 0
        %3778 = vmatpush1.bf16.xpose.msra.mxu0 %v3761
        %3779 = vmatprep.subr.bf16.mxu0 0
        %3780 = vmatpush2.bf16.xpose.msra.mxu0 0
        %3781 = vmatprep.subr.bf16.mxu0 0
        %3782 = vmatpush2.bf16.xpose.msra.mxu0 0
        %3783 = vmatprep.subr.bf16.mxu0 0
        %3784 = vmatpush2.bf16.xpose.msra.mxu0 0
        %3785 = vmatprep.subr.bf16.mxu0 0
        %3786 = vmatpush2.bf16.xpose.msra.mxu0 0
        %3787 = vmatprep.subr.bf16.mxu0 0
        %3788 = vmatpush2.bf16.xpose.msra.mxu0 0
        %3789 = vmatprep.subr.bf16.mxu0 0
        %3790 = vmatpush2.bf16.xpose.msra.mxu0 0
        %3791 = vmatprep.subr.bf16.mxu0 0
        %3792 = vmatpush2.bf16.xpose.msra.mxu0 0
        %3793 = vmatprep.subr.bf16.mxu0 0
        %3794 = vmatpush2.bf16.xpose.msra.mxu0 0
        %3795 = vmatprep.mubr.bf16.mxu0 0
        %3796 = vmatmul.mubr.bf16.gmra.mxu0 %v3451
        %v3797 = vpop.f32.mrf.mxu0
        %v3798 = vadd.f32 0.0, %v3797
        %v3799 = vpop.f32.mrf.mxu0
        %v3800 = vpop.f32.mrf.mxu0
        %v3801 = vpop.f32.mrf.mxu0
        %3802 = vdwg.mxu0
        %v3803 = vmul.f32 %v3798, 0.35355338
        %v3804 = vadd.f32 %v3803, %v740
        %v3805 = vsel %vm795, %v3804, -inf
        %3806 = vmax.xlane.f32.xlu0 %v3805
        %v3807 = vpop.xlane.xlu0 %3806
        %v3808 = vsub.f32 %v3804, %v3807
        %v3809 = vmul.f32 %v3808, 1.442695
        %v3810 = vpow.pop %v3809
        %v3811 = vsel %vm795, %v3810, 0.0
        %3812 = vadd.xlane.f32.xlu0 %v3811
        %v3813 = vpop.xlane.xlu0 %3812
        %v3814 = vrcp.pop %v3813
        %v3815 = vmul.f32 %v3810, %v3814
        %v3816 = vpack.c.bf16 %v3815, %v3815
        %v3818 = vsel %vm795, %v3816, 0
        %3820 = vmatprep.subr.bf16.mxu0 0
        %3821 = vmatpush1.bf16.msra.mxu0 0
        %3822 = vmatprep.subr.bf16.mxu0 0
        %3823 = vmatpush1.bf16.msra.mxu0 0
        %3824 = vmatprep.subr.bf16.mxu0 0
        %3825 = vmatpush1.bf16.msra.mxu0 0
        %3826 = vmatprep.subr.bf16.mxu0 0
        %3827 = vmatpush1.bf16.msra.mxu0 0
        %3828 = vmatprep.subr.bf16.mxu0 0
        %3829 = vmatpush1.bf16.msra.mxu0 0
        %3830 = vmatprep.subr.bf16.mxu0 0
        %3831 = vmatpush1.bf16.msra.mxu0 0
        %3832 = vmatprep.subr.bf16.mxu0 0
        %3833 = vmatpush1.bf16.msra.mxu0 0
        %3834 = vmatprep.subr.bf16.mxu0 0
        %3835 = vmatpush1.bf16.msra.mxu0 %v3759
        %3836 = vmatprep.subr.bf16.mxu0 0
        %3837 = vmatpush2.bf16.msra.mxu0 0
        %3838 = vmatprep.subr.bf16.mxu0 0
        %3839 = vmatpush2.bf16.msra.mxu0 0
        %3840 = vmatprep.subr.bf16.mxu0 0
        %3841 = vmatpush2.bf16.msra.mxu0 0
        %3842 = vmatprep.subr.bf16.mxu0 0
        %3843 = vmatpush2.bf16.msra.mxu0 0
        %3844 = vmatprep.subr.bf16.mxu0 0
        %3845 = vmatpush2.bf16.msra.mxu0 0
        %3846 = vmatprep.subr.bf16.mxu0 0
        %3847 = vmatpush2.bf16.msra.mxu0 0
        %3848 = vmatprep.subr.bf16.mxu0 0
        %3849 = vmatpush2.bf16.msra.mxu0 0
        %3850 = vmatprep.subr.bf16.mxu0 0
        %3851 = vmatpush2.bf16.msra.mxu0 0
        %3852 = vmatprep.mubr.bf16.mxu0 0
        %3853 = vmatmul.mubr.bf16.gmra.mxu0 %v3818
        %v3854 = vpop.f32.mrf.mxu0
        %v3855 = vadd.f32 0.0, %v3854
        %v3856 = vpop.f32.mrf.mxu0
        %v3857 = vpop.f32.mrf.mxu0
        %v3858 = vpop.f32.mrf.mxu0
        %3859 = vdwg.mxu0
        %v3860 = vadd.f32 %v3757, %v3855
        %s3861 = scalar_lea.vmem %s4, 240
        %v3862 = vld [vmem:[%s3861] sm:$0xf]
        %v3863 = vld [vmem:[%s3861 + $0x4] sm:$0xf]
        %v3864 = vld [vmem:[%s3861 + $0x8] sm:$0xf]
        %v3865 = vld [vmem:[%s3861 + $0xc] sm:$0xf]
        %v3866 = vld [vmem:[%s5 + $0xf] sm:$0x1]
        %v3867 = vpack.c.bf16 %v3860, %v3860
        %v3868 = vlaneseq
        %v3869 = vshrl.u32 %v3868, 7
        %v3870 = vsub.s32 0, %v3869
        %v3871 = vrot.slane %v3866, %v3870
        %v3876 = vunpack.c.l.b16 %v3862
        %v3877 = vunpack.c.l.b16 %v3863
        %v3878 = vunpack.c.l.b16 %v3864
        %v3879 = vunpack.c.l.b16 %v3865
        %v3880 = vpack.c.b16 %v3877, %v3876
        %v3881 = vpack.c.b16 %v3879, %v3878
        %v3885 = vsel %vm558, %v3867, 0
        %3887 = vmatprep.subr.bf16.mxu0 0
        %3888 = vmatpush1.bf16.msra.mxu0 0
        %3889 = vmatprep.subr.bf16.mxu0 0
        %3890 = vmatpush1.bf16.msra.mxu0 0
        %3891 = vmatprep.subr.bf16.mxu0 0
        %3892 = vmatpush1.bf16.msra.mxu0 0
        %3893 = vmatprep.subr.bf16.mxu0 0
        %3894 = vmatpush1.bf16.msra.mxu0 0
        %3895 = vmatprep.subr.bf16.mxu0 0
        %3896 = vmatpush1.bf16.msra.mxu0 0
        %3897 = vmatprep.subr.bf16.mxu0 0
        %3898 = vmatpush1.bf16.msra.mxu0 0
        %3899 = vmatprep.subr.bf16.mxu0 0
        %3900 = vmatpush1.bf16.msra.mxu0 %v3881
        %3901 = vmatprep.subr.bf16.mxu0 0
        %3902 = vmatpush1.bf16.msra.mxu0 %v3880
        %3903 = vmatprep.subr.bf16.mxu0 0
        %3904 = vmatpush2.bf16.msra.mxu0 0
        %3905 = vmatprep.subr.bf16.mxu0 0
        %3906 = vmatpush2.bf16.msra.mxu0 0
        %3907 = vmatprep.subr.bf16.mxu0 0
        %3908 = vmatpush2.bf16.msra.mxu0 0
        %3909 = vmatprep.subr.bf16.mxu0 0
        %3910 = vmatpush2.bf16.msra.mxu0 0
        %3911 = vmatprep.subr.bf16.mxu0 0
        %3912 = vmatpush2.bf16.msra.mxu0 0
        %3913 = vmatprep.subr.bf16.mxu0 0
        %3914 = vmatpush2.bf16.msra.mxu0 0
        %3915 = vmatprep.subr.bf16.mxu0 0
        %3916 = vmatpush2.bf16.msra.mxu0 0
        %3917 = vmatprep.subr.bf16.mxu0 0
        %3918 = vmatpush2.bf16.msra.mxu0 0
        %3919 = vmatprep.mubr.bf16.mxu0 0
        %3920 = vmatmul.mubr.bf16.gmra.mxu0 %v3885
        %v3921 = vpop.f32.mrf.mxu0
        %v3922 = vadd.f32 %v3871, %v3921
        %v3923 = vpop.f32.mrf.mxu0
        %v3924 = vpop.f32.mrf.mxu0
        %v3925 = vpop.f32.mrf.mxu0
        %3926 = vdwg.mxu0
        %v3927 = vadd.f32 %v3243, %v3922
        %v3928 = vld [vmem:[%s10 + $0x5] sm:$0x1]
        %v3929 = vld [vmem:[%s11 + $0x5] sm:$0x1]
        %v3930 = vsel %vm558, %v3927, 0.0
        %3931 = vadd.xlane.f32.xlu0 %v3930
        %v3932 = vpop.xlane.xlu0 %3931
        %v3933 = vmul.f32 %v3932, %v1295
        %v3934 = vmul.f32 %v3927, %v3927
        %v3935 = vsel %vm558, %v3934, 0.0
        %3936 = vadd.xlane.f32.xlu0 %v3935
        %v3937 = vpop.xlane.xlu0 %3936
        %v3938 = vmul.f32 %v3937, %v1295
        %v3939 = vmul.f32 %v3933, %v3933
        %v3940 = vsub.f32 %v3938, %v3939
        %v3941 = vmax.f32 %v3940, 0.0
        %v3942 = vsub.f32 %v3927, %v3933
        %v3943 = vadd.f32 %v3941, 1e-05
        %v3944 = vrsqrt.pop %v3943
        %v3945 = vmul.f32 %v3942, %v3944
        %v3946 = vlaneseq
        %v3947 = vshrl.u32 %v3946, 7
        %v3948 = vsub.s32 0, %v3947
        %v3949 = vrot.slane %v3928, %v3948
        %v3950 = vmul.f32 %v3945, %v3949
        %v3951 = vlaneseq
        %v3952 = vshrl.u32 %v3951, 7
        %v3953 = vsub.s32 0, %v3952
        %v3954 = vrot.slane %v3929, %v3953
        %v3955 = vadd.f32 %v3950, %v3954
        %s3956 = scalar_lea.vmem %s6, 32
        %v3957 = vld [vmem:[%s3956] sm:$0xf]
        %v3958 = vld [vmem:[%s3956 + $0x4] sm:$0xf]
        %v3959 = vld [vmem:[%s3956 + $0x8] sm:$0xf]
        %v3960 = vld [vmem:[%s3956 + $0xc] sm:$0xf]
        %v3961 = vld [vmem:[%s7 + $0x2] sm:$0x1]
        %v3962 = vpack.c.bf16 %v3955, %v3955
        %v3963 = vlaneseq
        %v3964 = vshrl.u32 %v3963, 7
        %v3965 = vsub.s32 0, %v3964
        %v3966 = vrot.slane %v3961, %v3965
        %v3971 = vunpack.c.l.b16 %v3957
        %v3972 = vunpack.c.l.b16 %v3958
        %v3973 = vunpack.c.l.b16 %v3959
        %v3974 = vunpack.c.l.b16 %v3960
        %v3975 = vpack.c.b16 %v3972, %v3971
        %v3976 = vpack.c.b16 %v3974, %v3973
        %v3980 = vsel %vm558, %v3962, 0
        %3982 = vmatprep.subr.bf16.mxu0 0
        %3983 = vmatpush1.bf16.msra.mxu0 0
        %3984 = vmatprep.subr.bf16.mxu0 0
        %3985 = vmatpush1.bf16.msra.mxu0 0
        %3986 = vmatprep.subr.bf16.mxu0 0
        %3987 = vmatpush1.bf16.msra.mxu0 0
        %3988 = vmatprep.subr.bf16.mxu0 0
        %3989 = vmatpush1.bf16.msra.mxu0 0
        %3990 = vmatprep.subr.bf16.mxu0 0
        %3991 = vmatpush1.bf16.msra.mxu0 0
        %3992 = vmatprep.subr.bf16.mxu0 0
        %3993 = vmatpush1.bf16.msra.mxu0 0
        %3994 = vmatprep.subr.bf16.mxu0 0
        %3995 = vmatpush1.bf16.msra.mxu0 %v3976
        %3996 = vmatprep.subr.bf16.mxu0 0
        %3997 = vmatpush1.bf16.msra.mxu0 %v3975
        %3998 = vmatprep.subr.bf16.mxu0 0
        %3999 = vmatpush2.bf16.msra.mxu0 0
        %4000 = vmatprep.subr.bf16.mxu0 0
        %4001 = vmatpush2.bf16.msra.mxu0 0
        %4002 = vmatprep.subr.bf16.mxu0 0
        %4003 = vmatpush2.bf16.msra.mxu0 0
        %4004 = vmatprep.subr.bf16.mxu0 0
        %4005 = vmatpush2.bf16.msra.mxu0 0
        %4006 = vmatprep.subr.bf16.mxu0 0
        %4007 = vmatpush2.bf16.msra.mxu0 0
        %4008 = vmatprep.subr.bf16.mxu0 0
        %4009 = vmatpush2.bf16.msra.mxu0 0
        %4010 = vmatprep.subr.bf16.mxu0 0
        %4011 = vmatpush2.bf16.msra.mxu0 0
        %4012 = vmatprep.subr.bf16.mxu0 0
        %4013 = vmatpush2.bf16.msra.mxu0 0
        %4014 = vmatprep.mubr.bf16.mxu0 0
        %4015 = vmatmul.mubr.bf16.gmra.mxu0 %v3980
        %v4016 = vpop.f32.mrf.mxu0
        %v4017 = vadd.f32 %v3966, %v4016
        %v4018 = vpop.f32.mrf.mxu0
        %v4019 = vpop.f32.mrf.mxu0
        %v4020 = vpop.f32.mrf.mxu0
        %4021 = vdwg.mxu0
        %v4022 = vmax.f32 %v4017, 0.0
        %s4023 = scalar_lea.vmem %s8, 64
        %v4024 = vld [vmem:[%s4023] sm:$0xf]
        %v4025 = vld [vmem:[%s4023 + $0x4] sm:$0xf]
        %v4026 = vld [vmem:[%s4023 + $0x8] sm:$0xf]
        %v4027 = vld [vmem:[%s4023 + $0xc] sm:$0xf]
        %v4028 = vld [vmem:[%s4023 + $0x10] sm:$0xf]
        %v4029 = vld [vmem:[%s4023 + $0x14] sm:$0xf]
        %v4030 = vld [vmem:[%s4023 + $0x18] sm:$0xf]
        %v4031 = vld [vmem:[%s4023 + $0x1c] sm:$0xf]
        %v4032 = vld [vmem:[%s9 + $0x2] sm:$0x1]
        %v4033 = vpack.c.bf16 %v4022, %v4022
        %v4034 = vlaneseq
        %v4035 = vshrl.u32 %v4034, 7
        %v4036 = vsub.s32 0, %v4035
        %v4037 = vrot.slane %v4032, %v4036
        %v4046 = vunpack.c.l.b16 %v4024
        %v4047 = vunpack.c.l.b16 %v4025
        %v4048 = vunpack.c.l.b16 %v4026
        %v4049 = vunpack.c.l.b16 %v4027
        %v4050 = vunpack.c.l.b16 %v4028
        %v4051 = vunpack.c.l.b16 %v4029
        %v4052 = vunpack.c.l.b16 %v4030
        %v4053 = vunpack.c.l.b16 %v4031
        %v4054 = vpack.c.b16 %v4047, %v4046
        %v4055 = vpack.c.b16 %v4049, %v4048
        %v4056 = vpack.c.b16 %v4051, %v4050
        %v4057 = vpack.c.b16 %v4053, %v4052
        %v4063 = vsel %vm1440, %v4033, 0
        %4065 = vmatprep.subr.bf16.mxu0 0
        %4066 = vmatpush1.bf16.msra.mxu0 0
        %4067 = vmatprep.subr.bf16.mxu0 0
        %4068 = vmatpush1.bf16.msra.mxu0 0
        %4069 = vmatprep.subr.bf16.mxu0 0
        %4070 = vmatpush1.bf16.msra.mxu0 0
        %4071 = vmatprep.subr.bf16.mxu0 0
        %4072 = vmatpush1.bf16.msra.mxu0 0
        %4073 = vmatprep.subr.bf16.mxu0 0
        %4074 = vmatpush1.bf16.msra.mxu0 %v4057
        %4075 = vmatprep.subr.bf16.mxu0 0
        %4076 = vmatpush1.bf16.msra.mxu0 %v4056
        %4077 = vmatprep.subr.bf16.mxu0 0
        %4078 = vmatpush1.bf16.msra.mxu0 %v4055
        %4079 = vmatprep.subr.bf16.mxu0 0
        %4080 = vmatpush1.bf16.msra.mxu0 %v4054
        %4081 = vmatprep.subr.bf16.mxu0 0
        %4082 = vmatpush2.bf16.msra.mxu0 0
        %4083 = vmatprep.subr.bf16.mxu0 0
        %4084 = vmatpush2.bf16.msra.mxu0 0
        %4085 = vmatprep.subr.bf16.mxu0 0
        %4086 = vmatpush2.bf16.msra.mxu0 0
        %4087 = vmatprep.subr.bf16.mxu0 0
        %4088 = vmatpush2.bf16.msra.mxu0 0
        %4089 = vmatprep.subr.bf16.mxu0 0
        %4090 = vmatpush2.bf16.msra.mxu0 0
        %4091 = vmatprep.subr.bf16.mxu0 0
        %4092 = vmatpush2.bf16.msra.mxu0 0
        %4093 = vmatprep.subr.bf16.mxu0 0
        %4094 = vmatpush2.bf16.msra.mxu0 0
        %4095 = vmatprep.subr.bf16.mxu0 0
        %4096 = vmatpush2.bf16.msra.mxu0 0
        %4097 = vmatprep.mubr.bf16.mxu0 0
        %4098 = vmatmul.mubr.bf16.gmra.mxu0 %v4063
        %v4099 = vpop.f32.mrf.mxu0
        %v4100 = vadd.f32 %v4037, %v4099
        %v4101 = vpop.f32.mrf.mxu0
        %v4102 = vpop.f32.mrf.mxu0
        %v4103 = vpop.f32.mrf.mxu0
        %4104 = vdwg.mxu0
        %v4105 = vadd.f32 %v3955, %v4100
        %v4106 = vld [vmem:[%s10 + $0x6] sm:$0x1]
        %v4107 = vld [vmem:[%s11 + $0x6] sm:$0x1]
        %v4108 = vsel %vm558, %v4105, 0.0
        %4109 = vadd.xlane.f32.xlu0 %v4108
        %v4110 = vpop.xlane.xlu0 %4109
        %v4111 = vmul.f32 %v4110, %v1295
        %v4112 = vmul.f32 %v4105, %v4105
        %v4113 = vsel %vm558, %v4112, 0.0
        %4114 = vadd.xlane.f32.xlu0 %v4113
        %v4115 = vpop.xlane.xlu0 %4114
        %v4116 = vmul.f32 %v4115, %v1295
        %v4117 = vmul.f32 %v4111, %v4111
        %v4118 = vsub.f32 %v4116, %v4117
        %v4119 = vmax.f32 %v4118, 0.0
        %v4120 = vsub.f32 %v4105, %v4111
        %v4121 = vadd.f32 %v4119, 1e-05
        %v4122 = vrsqrt.pop %v4121
        %v4123 = vmul.f32 %v4120, %v4122
        %v4124 = vlaneseq
        %v4125 = vshrl.u32 %v4124, 7
        %v4126 = vsub.s32 0, %v4125
        %v4127 = vrot.slane %v4106, %v4126
        %v4128 = vmul.f32 %v4123, %v4127
        %v4129 = vlaneseq
        %v4130 = vshrl.u32 %v4129, 7
        %v4131 = vsub.s32 0, %v4130
        %v4132 = vrot.slane %v4107, %v4131
        %v4133 = vadd.f32 %v4128, %v4132
        %v4134 = vadd.f32 %v4133, %v506
        %s4135 = scalar_lea.vmem %s4, 256
        %v4136 = vld [vmem:[%s4135] sm:$0xf]
        %v4137 = vld [vmem:[%s4135 + $0x4] sm:$0xf]
        %v4138 = vld [vmem:[%s4135 + $0x8] sm:$0xf]
        %v4139 = vld [vmem:[%s4135 + $0xc] sm:$0xf]
        %v4140 = vld [vmem:[%s5 + $0x10] sm:$0x1]
        %v4141 = vpack.c.bf16 %v4134, %v4134
        %v4142 = vlaneseq
        %v4143 = vshrl.u32 %v4142, 7
        %v4144 = vsub.s32 0, %v4143
        %v4145 = vrot.slane %v4140, %v4144
        %v4150 = vunpack.c.l.b16 %v4136
        %v4151 = vunpack.c.l.b16 %v4137
        %v4152 = vunpack.c.l.b16 %v4138
        %v4153 = vunpack.c.l.b16 %v4139
        %v4154 = vpack.c.b16 %v4151, %v4150
        %v4155 = vpack.c.b16 %v4153, %v4152
        %v4159 = vsel %vm558, %v4141, 0
        %4161 = vmatprep.subr.bf16.mxu0 0
        %4162 = vmatpush1.bf16.msra.mxu0 0
        %4163 = vmatprep.subr.bf16.mxu0 0
        %4164 = vmatpush1.bf16.msra.mxu0 0
        %4165 = vmatprep.subr.bf16.mxu0 0
        %4166 = vmatpush1.bf16.msra.mxu0 0
        %4167 = vmatprep.subr.bf16.mxu0 0
        %4168 = vmatpush1.bf16.msra.mxu0 0
        %4169 = vmatprep.subr.bf16.mxu0 0
        %4170 = vmatpush1.bf16.msra.mxu0 0
        %4171 = vmatprep.subr.bf16.mxu0 0
        %4172 = vmatpush1.bf16.msra.mxu0 0
        %4173 = vmatprep.subr.bf16.mxu0 0
        %4174 = vmatpush1.bf16.msra.mxu0 %v4155
        %4175 = vmatprep.subr.bf16.mxu0 0
        %4176 = vmatpush1.bf16.msra.mxu0 %v4154
        %4177 = vmatprep.subr.bf16.mxu0 0
        %4178 = vmatpush2.bf16.msra.mxu0 0
        %4179 = vmatprep.subr.bf16.mxu0 0
        %4180 = vmatpush2.bf16.msra.mxu0 0
        %4181 = vmatprep.subr.bf16.mxu0 0
        %4182 = vmatpush2.bf16.msra.mxu0 0
        %4183 = vmatprep.subr.bf16.mxu0 0
        %4184 = vmatpush2.bf16.msra.mxu0 0
        %4185 = vmatprep.subr.bf16.mxu0 0
        %4186 = vmatpush2.bf16.msra.mxu0 0
        %4187 = vmatprep.subr.bf16.mxu0 0
        %4188 = vmatpush2.bf16.msra.mxu0 0
        %4189 = vmatprep.subr.bf16.mxu0 0
        %4190 = vmatpush2.bf16.msra.mxu0 0
        %4191 = vmatprep.subr.bf16.mxu0 0
        %4192 = vmatpush2.bf16.msra.mxu0 0
        %4193 = vmatprep.mubr.bf16.mxu0 0
        %4194 = vmatmul.mubr.bf16.gmra.mxu0 %v4159
        %v4195 = vpop.f32.mrf.mxu0
        %v4196 = vadd.f32 %v4145, %v4195
        %v4197 = vpop.f32.mrf.mxu0
        %v4198 = vpop.f32.mrf.mxu0
        %v4199 = vpop.f32.mrf.mxu0
        %4200 = vdwg.mxu0
        %s4201 = scalar_lea.vmem %s4, 272
        %v4202 = vld [vmem:[%s4201] sm:$0xf]
        %v4203 = vld [vmem:[%s4201 + $0x4] sm:$0xf]
        %v4204 = vld [vmem:[%s4201 + $0x8] sm:$0xf]
        %v4205 = vld [vmem:[%s4201 + $0xc] sm:$0xf]
        %v4206 = vld [vmem:[%s5 + $0x11] sm:$0x1]
        %v4207 = vlaneseq
        %v4208 = vshrl.u32 %v4207, 7
        %v4209 = vsub.s32 0, %v4208
        %v4210 = vrot.slane %v4206, %v4209
        %v4215 = vunpack.c.l.b16 %v4202
        %v4216 = vunpack.c.l.b16 %v4203
        %v4217 = vunpack.c.l.b16 %v4204
        %v4218 = vunpack.c.l.b16 %v4205
        %v4219 = vpack.c.b16 %v4216, %v4215
        %v4220 = vpack.c.b16 %v4218, %v4217
        %4223 = vmatprep.subr.bf16.mxu0 0
        %4224 = vmatpush1.bf16.msra.mxu0 0
        %4225 = vmatprep.subr.bf16.mxu0 0
        %4226 = vmatpush1.bf16.msra.mxu0 0
        %4227 = vmatprep.subr.bf16.mxu0 0
        %4228 = vmatpush1.bf16.msra.mxu0 0
        %4229 = vmatprep.subr.bf16.mxu0 0
        %4230 = vmatpush1.bf16.msra.mxu0 0
        %4231 = vmatprep.subr.bf16.mxu0 0
        %4232 = vmatpush1.bf16.msra.mxu0 0
        %4233 = vmatprep.subr.bf16.mxu0 0
        %4234 = vmatpush1.bf16.msra.mxu0 0
        %4235 = vmatprep.subr.bf16.mxu0 0
        %4236 = vmatpush1.bf16.msra.mxu0 %v4220
        %4237 = vmatprep.subr.bf16.mxu0 0
        %4238 = vmatpush1.bf16.msra.mxu0 %v4219
        %4239 = vmatprep.subr.bf16.mxu0 0
        %4240 = vmatpush2.bf16.msra.mxu0 0
        %4241 = vmatprep.subr.bf16.mxu0 0
        %4242 = vmatpush2.bf16.msra.mxu0 0
        %4243 = vmatprep.subr.bf16.mxu0 0
        %4244 = vmatpush2.bf16.msra.mxu0 0
        %4245 = vmatprep.subr.bf16.mxu0 0
        %4246 = vmatpush2.bf16.msra.mxu0 0
        %4247 = vmatprep.subr.bf16.mxu0 0
        %4248 = vmatpush2.bf16.msra.mxu0 0
        %4249 = vmatprep.subr.bf16.mxu0 0
        %4250 = vmatpush2.bf16.msra.mxu0 0
        %4251 = vmatprep.subr.bf16.mxu0 0
        %4252 = vmatpush2.bf16.msra.mxu0 0
        %4253 = vmatprep.subr.bf16.mxu0 0
        %4254 = vmatpush2.bf16.msra.mxu0 0
        %4255 = vmatprep.mubr.bf16.mxu0 0
        %4256 = vmatmul.mubr.bf16.gmra.mxu0 %v4159
        %v4257 = vpop.f32.mrf.mxu0
        %v4258 = vadd.f32 %v4210, %v4257
        %v4259 = vpop.f32.mrf.mxu0
        %v4260 = vpop.f32.mrf.mxu0
        %v4261 = vpop.f32.mrf.mxu0
        %4262 = vdwg.mxu0
        %s4263 = scalar_lea.vmem %s4, 288
        %v4264 = vld [vmem:[%s4263] sm:$0xf]
        %v4265 = vld [vmem:[%s4263 + $0x4] sm:$0xf]
        %v4266 = vld [vmem:[%s4263 + $0x8] sm:$0xf]
        %v4267 = vld [vmem:[%s4263 + $0xc] sm:$0xf]
        %v4268 = vld [vmem:[%s5 + $0x12] sm:$0x1]
        %v4269 = vpack.c.bf16 %v4133, %v4133
        %v4270 = vlaneseq
        %v4271 = vshrl.u32 %v4270, 7
        %v4272 = vsub.s32 0, %v4271
        %v4273 = vrot.slane %v4268, %v4272
        %v4278 = vunpack.c.l.b16 %v4264
        %v4279 = vunpack.c.l.b16 %v4265
        %v4280 = vunpack.c.l.b16 %v4266
        %v4281 = vunpack.c.l.b16 %v4267
        %v4282 = vpack.c.b16 %v4279, %v4278
        %v4283 = vpack.c.b16 %v4281, %v4280
        %v4287 = vsel %vm558, %v4269, 0
        %4289 = vmatprep.subr.bf16.mxu0 0
        %4290 = vmatpush1.bf16.msra.mxu0 0
        %4291 = vmatprep.subr.bf16.mxu0 0
        %4292 = vmatpush1.bf16.msra.mxu0 0
        %4293 = vmatprep.subr.bf16.mxu0 0
        %4294 = vmatpush1.bf16.msra.mxu0 0
        %4295 = vmatprep.subr.bf16.mxu0 0
        %4296 = vmatpush1.bf16.msra.mxu0 0
        %4297 = vmatprep.subr.bf16.mxu0 0
        %4298 = vmatpush1.bf16.msra.mxu0 0
        %4299 = vmatprep.subr.bf16.mxu0 0
        %4300 = vmatpush1.bf16.msra.mxu0 0
        %4301 = vmatprep.subr.bf16.mxu0 0
        %4302 = vmatpush1.bf16.msra.mxu0 %v4283
        %4303 = vmatprep.subr.bf16.mxu0 0
        %4304 = vmatpush1.bf16.msra.mxu0 %v4282
        %4305 = vmatprep.subr.bf16.mxu0 0
        %4306 = vmatpush2.bf16.msra.mxu0 0
        %4307 = vmatprep.subr.bf16.mxu0 0
        %4308 = vmatpush2.bf16.msra.mxu0 0
        %4309 = vmatprep.subr.bf16.mxu0 0
        %4310 = vmatpush2.bf16.msra.mxu0 0
        %4311 = vmatprep.subr.bf16.mxu0 0
        %4312 = vmatpush2.bf16.msra.mxu0 0
        %4313 = vmatprep.subr.bf16.mxu0 0
        %4314 = vmatpush2.bf16.msra.mxu0 0
        %4315 = vmatprep.subr.bf16.mxu0 0
        %4316 = vmatpush2.bf16.msra.mxu0 0
        %4317 = vmatprep.subr.bf16.mxu0 0
        %4318 = vmatpush2.bf16.msra.mxu0 0
        %4319 = vmatprep.subr.bf16.mxu0 0
        %4320 = vmatpush2.bf16.msra.mxu0 0
        %4321 = vmatprep.mubr.bf16.mxu0 0
        %4322 = vmatmul.mubr.bf16.gmra.mxu0 %v4287
        %v4323 = vpop.f32.mrf.mxu0
        %v4324 = vadd.f32 %v4273, %v4323
        %v4325 = vpop.f32.mrf.mxu0
        %v4326 = vpop.f32.mrf.mxu0
        %v4327 = vpop.f32.mrf.mxu0
        %4328 = vdwg.mxu0
        %v4329 = vpack.c.bf16 %v4196, %v4196
        %v4330 = vpack.c.bf16 %v4258, %v4258
        %v4331 = vpack.c.bf16 %v4324, %v4324
        %v4332 = vmul.bf16 %v4330, %v515
        %v4333 = vmul.bf16 %v4331, %v515
        %v4335 = vsel %vm558, %v4329, 0
        %v4338 = vsel %vm558, %v4332, 0
        %4340 = vmatprep.subr.bf16.mxu0 0
        %4341 = vmatpush1.bf16.xpose.msra.mxu0 0
        %4342 = vmatprep.subr.bf16.mxu0 0
        %4343 = vmatpush1.bf16.xpose.msra.mxu0 0
        %4344 = vmatprep.subr.bf16.mxu0 0
        %4345 = vmatpush1.bf16.xpose.msra.mxu0 0
        %4346 = vmatprep.subr.bf16.mxu0 0
        %4347 = vmatpush1.bf16.xpose.msra.mxu0 0
        %4348 = vmatprep.subr.bf16.mxu0 0
        %4349 = vmatpush1.bf16.xpose.msra.mxu0 0
        %4350 = vmatprep.subr.bf16.mxu0 0
        %4351 = vmatpush1.bf16.xpose.msra.mxu0 0
        %4352 = vmatprep.subr.bf16.mxu0 0
        %4353 = vmatpush1.bf16.xpose.msra.mxu0 0
        %4354 = vmatprep.subr.bf16.mxu0 0
        %4355 = vmatpush1.bf16.xpose.msra.mxu0 %v4338
        %4356 = vmatprep.subr.bf16.mxu0 0
        %4357 = vmatpush2.bf16.xpose.msra.mxu0 0
        %4358 = vmatprep.subr.bf16.mxu0 0
        %4359 = vmatpush2.bf16.xpose.msra.mxu0 0
        %4360 = vmatprep.subr.bf16.mxu0 0
        %4361 = vmatpush2.bf16.xpose.msra.mxu0 0
        %4362 = vmatprep.subr.bf16.mxu0 0
        %4363 = vmatpush2.bf16.xpose.msra.mxu0 0
        %4364 = vmatprep.subr.bf16.mxu0 0
        %4365 = vmatpush2.bf16.xpose.msra.mxu0 0
        %4366 = vmatprep.subr.bf16.mxu0 0
        %4367 = vmatpush2.bf16.xpose.msra.mxu0 0
        %4368 = vmatprep.subr.bf16.mxu0 0
        %4369 = vmatpush2.bf16.xpose.msra.mxu0 0
        %4370 = vmatprep.subr.bf16.mxu0 0
        %4371 = vmatpush2.bf16.xpose.msra.mxu0 0
        %4372 = vmatprep.mubr.bf16.mxu0 0
        %4373 = vmatmul.mubr.bf16.gmra.mxu0 %v4335
        %v4374 = vpop.f32.mrf.mxu0
        %v4375 = vadd.f32 0.0, %v4374
        %v4376 = vpop.f32.mrf.mxu0
        %v4377 = vpop.f32.mrf.mxu0
        %v4378 = vpop.f32.mrf.mxu0
        %4379 = vdwg.mxu0
        %v4380 = vmul.f32 %v4375, 0.35355338
        %v4381 = vsel %vm2775, %v4380, -inf
        %4382 = vmax.xlane.f32.xlu0 %v4381
        %v4383 = vpop.xlane.xlu0 %4382
        %v4384 = vsub.f32 %v4380, %v4383
        %v4385 = vmul.f32 %v4384, 1.442695
        %v4386 = vpow.pop %v4385
        %v4387 = vsel %vm2775, %v4386, 0.0
        %4388 = vadd.xlane.f32.xlu0 %v4387
        %v4389 = vpop.xlane.xlu0 %4388
        %v4390 = vrcp.pop %v4389
        %v4391 = vmul.f32 %v4386, %v4390
        %v4392 = vpack.c.bf16 %v4391, %v4391
        %v4393 = vmul.bf16 %v4330, %v521
        %v4394 = vmul.bf16 %v4331, %v521
        %v4396 = vsel %vm558, %v4393, 0
        %4398 = vmatprep.subr.bf16.mxu0 0
        %4399 = vmatpush1.bf16.xpose.msra.mxu0 0
        %4400 = vmatprep.subr.bf16.mxu0 0
        %4401 = vmatpush1.bf16.xpose.msra.mxu0 0
        %4402 = vmatprep.subr.bf16.mxu0 0
        %4403 = vmatpush1.bf16.xpose.msra.mxu0 0
        %4404 = vmatprep.subr.bf16.mxu0 0
        %4405 = vmatpush1.bf16.xpose.msra.mxu0 0
        %4406 = vmatprep.subr.bf16.mxu0 0
        %4407 = vmatpush1.bf16.xpose.msra.mxu0 0
        %4408 = vmatprep.subr.bf16.mxu0 0
        %4409 = vmatpush1.bf16.xpose.msra.mxu0 0
        %4410 = vmatprep.subr.bf16.mxu0 0
        %4411 = vmatpush1.bf16.xpose.msra.mxu0 0
        %4412 = vmatprep.subr.bf16.mxu0 0
        %4413 = vmatpush1.bf16.xpose.msra.mxu0 %v4396
        %4414 = vmatprep.subr.bf16.mxu0 0
        %4415 = vmatpush2.bf16.xpose.msra.mxu0 0
        %4416 = vmatprep.subr.bf16.mxu0 0
        %4417 = vmatpush2.bf16.xpose.msra.mxu0 0
        %4418 = vmatprep.subr.bf16.mxu0 0
        %4419 = vmatpush2.bf16.xpose.msra.mxu0 0
        %4420 = vmatprep.subr.bf16.mxu0 0
        %4421 = vmatpush2.bf16.xpose.msra.mxu0 0
        %4422 = vmatprep.subr.bf16.mxu0 0
        %4423 = vmatpush2.bf16.xpose.msra.mxu0 0
        %4424 = vmatprep.subr.bf16.mxu0 0
        %4425 = vmatpush2.bf16.xpose.msra.mxu0 0
        %4426 = vmatprep.subr.bf16.mxu0 0
        %4427 = vmatpush2.bf16.xpose.msra.mxu0 0
        %4428 = vmatprep.subr.bf16.mxu0 0
        %4429 = vmatpush2.bf16.xpose.msra.mxu0 0
        %4430 = vmatprep.mubr.bf16.mxu0 0
        %4431 = vmatmul.mubr.bf16.gmra.mxu0 %v4335
        %v4432 = vpop.f32.mrf.mxu0
        %v4433 = vadd.f32 0.0, %v4432
        %v4434 = vpop.f32.mrf.mxu0
        %v4435 = vpop.f32.mrf.mxu0
        %v4436 = vpop.f32.mrf.mxu0
        %4437 = vdwg.mxu0
        %v4438 = vmul.f32 %v4433, 0.35355338
        %v4439 = vsel %vm2775, %v4438, -inf
        %4440 = vmax.xlane.f32.xlu0 %v4439
        %v4441 = vpop.xlane.xlu0 %4440
        %v4442 = vsub.f32 %v4438, %v4441
        %v4443 = vmul.f32 %v4442, 1.442695
        %v4444 = vpow.pop %v4443
        %v4445 = vsel %vm2775, %v4444, 0.0
        %4446 = vadd.xlane.f32.xlu0 %v4445
        %v4447 = vpop.xlane.xlu0 %4446
        %v4448 = vrcp.pop %v4447
        %v4449 = vmul.f32 %v4444, %v4448
        %v4450 = vpack.c.bf16 %v4449, %v4449
        %v4452 = vsel %vm2775, %v4450, 0
        %v4455 = vsel %vm2849, %v4394, 0
        %4457 = vmatprep.subr.bf16.mxu0 0
        %4458 = vmatpush1.bf16.msra.mxu0 0
        %4459 = vmatprep.subr.bf16.mxu0 0
        %4460 = vmatpush1.bf16.msra.mxu0 0
        %4461 = vmatprep.subr.bf16.mxu0 0
        %4462 = vmatpush1.bf16.msra.mxu0 0
        %4463 = vmatprep.subr.bf16.mxu0 0
        %4464 = vmatpush1.bf16.msra.mxu0 0
        %4465 = vmatprep.subr.bf16.mxu0 0
        %4466 = vmatpush1.bf16.msra.mxu0 0
        %4467 = vmatprep.subr.bf16.mxu0 0
        %4468 = vmatpush1.bf16.msra.mxu0 0
        %4469 = vmatprep.subr.bf16.mxu0 0
        %4470 = vmatpush1.bf16.msra.mxu0 0
        %4471 = vmatprep.subr.bf16.mxu0 0
        %4472 = vmatpush1.bf16.msra.mxu0 %v4455
        %4473 = vmatprep.subr.bf16.mxu0 0
        %4474 = vmatpush2.bf16.msra.mxu0 0
        %4475 = vmatprep.subr.bf16.mxu0 0
        %4476 = vmatpush2.bf16.msra.mxu0 0
        %4477 = vmatprep.subr.bf16.mxu0 0
        %4478 = vmatpush2.bf16.msra.mxu0 0
        %4479 = vmatprep.subr.bf16.mxu0 0
        %4480 = vmatpush2.bf16.msra.mxu0 0
        %4481 = vmatprep.subr.bf16.mxu0 0
        %4482 = vmatpush2.bf16.msra.mxu0 0
        %4483 = vmatprep.subr.bf16.mxu0 0
        %4484 = vmatpush2.bf16.msra.mxu0 0
        %4485 = vmatprep.subr.bf16.mxu0 0
        %4486 = vmatpush2.bf16.msra.mxu0 0
        %4487 = vmatprep.subr.bf16.mxu0 0
        %4488 = vmatpush2.bf16.msra.mxu0 0
        %4489 = vmatprep.mubr.bf16.mxu0 0
        %4490 = vmatmul.mubr.bf16.gmra.mxu0 %v4452
        %v4491 = vpop.f32.mrf.mxu0
        %v4492 = vadd.f32 0.0, %v4491
        %v4493 = vpop.f32.mrf.mxu0
        %v4494 = vpop.f32.mrf.mxu0
        %v4495 = vpop.f32.mrf.mxu0
        %4496 = vdwg.mxu0
        %v4498 = vsel %vm2775, %v4392, 0
        %v4501 = vsel %vm2849, %v4333, 0
        %4503 = vmatprep.subr.bf16.mxu0 0
        %4504 = vmatpush1.bf16.msra.mxu0 0
        %4505 = vmatprep.subr.bf16.mxu0 0
        %4506 = vmatpush1.bf16.msra.mxu0 0
        %4507 = vmatprep.subr.bf16.mxu0 0
        %4508 = vmatpush1.bf16.msra.mxu0 0
        %4509 = vmatprep.subr.bf16.mxu0 0
        %4510 = vmatpush1.bf16.msra.mxu0 0
        %4511 = vmatprep.subr.bf16.mxu0 0
        %4512 = vmatpush1.bf16.msra.mxu0 0
        %4513 = vmatprep.subr.bf16.mxu0 0
        %4514 = vmatpush1.bf16.msra.mxu0 0
        %4515 = vmatprep.subr.bf16.mxu0 0
        %4516 = vmatpush1.bf16.msra.mxu0 0
        %4517 = vmatprep.subr.bf16.mxu0 0
        %4518 = vmatpush1.bf16.msra.mxu0 %v4501
        %4519 = vmatprep.subr.bf16.mxu0 0
        %4520 = vmatpush2.bf16.msra.mxu0 0
        %4521 = vmatprep.subr.bf16.mxu0 0
        %4522 = vmatpush2.bf16.msra.mxu0 0
        %4523 = vmatprep.subr.bf16.mxu0 0
        %4524 = vmatpush2.bf16.msra.mxu0 0
        %4525 = vmatprep.subr.bf16.mxu0 0
        %4526 = vmatpush2.bf16.msra.mxu0 0
        %4527 = vmatprep.subr.bf16.mxu0 0
        %4528 = vmatpush2.bf16.msra.mxu0 0
        %4529 = vmatprep.subr.bf16.mxu0 0
        %4530 = vmatpush2.bf16.msra.mxu0 0
        %4531 = vmatprep.subr.bf16.mxu0 0
        %4532 = vmatpush2.bf16.msra.mxu0 0
        %4533 = vmatprep.subr.bf16.mxu0 0
        %4534 = vmatpush2.bf16.msra.mxu0 0
        %4535 = vmatprep.mubr.bf16.mxu0 0
        %4536 = vmatmul.mubr.bf16.gmra.mxu0 %v4498
        %v4537 = vpop.f32.mrf.mxu0
        %v4538 = vadd.f32 %v4492, %v4537
        %v4539 = vpop.f32.mrf.mxu0
        %v4540 = vpop.f32.mrf.mxu0
        %v4541 = vpop.f32.mrf.mxu0
        %4542 = vdwg.mxu0
        %v4543 = vmul.bf16 %v4330, %v527
        %v4544 = vmul.bf16 %v4331, %v527
        %v4546 = vsel %vm558, %v4543, 0
        %4548 = vmatprep.subr.bf16.mxu0 0
        %4549 = vmatpush1.bf16.xpose.msra.mxu0 0
        %4550 = vmatprep.subr.bf16.mxu0 0
        %4551 = vmatpush1.bf16.xpose.msra.mxu0 0
        %4552 = vmatprep.subr.bf16.mxu0 0
        %4553 = vmatpush1.bf16.xpose.msra.mxu0 0
        %4554 = vmatprep.subr.bf16.mxu0 0
        %4555 = vmatpush1.bf16.xpose.msra.mxu0 0
        %4556 = vmatprep.subr.bf16.mxu0 0
        %4557 = vmatpush1.bf16.xpose.msra.mxu0 0
        %4558 = vmatprep.subr.bf16.mxu0 0
        %4559 = vmatpush1.bf16.xpose.msra.mxu0 0
        %4560 = vmatprep.subr.bf16.mxu0 0
        %4561 = vmatpush1.bf16.xpose.msra.mxu0 0
        %4562 = vmatprep.subr.bf16.mxu0 0
        %4563 = vmatpush1.bf16.xpose.msra.mxu0 %v4546
        %4564 = vmatprep.subr.bf16.mxu0 0
        %4565 = vmatpush2.bf16.xpose.msra.mxu0 0
        %4566 = vmatprep.subr.bf16.mxu0 0
        %4567 = vmatpush2.bf16.xpose.msra.mxu0 0
        %4568 = vmatprep.subr.bf16.mxu0 0
        %4569 = vmatpush2.bf16.xpose.msra.mxu0 0
        %4570 = vmatprep.subr.bf16.mxu0 0
        %4571 = vmatpush2.bf16.xpose.msra.mxu0 0
        %4572 = vmatprep.subr.bf16.mxu0 0
        %4573 = vmatpush2.bf16.xpose.msra.mxu0 0
        %4574 = vmatprep.subr.bf16.mxu0 0
        %4575 = vmatpush2.bf16.xpose.msra.mxu0 0
        %4576 = vmatprep.subr.bf16.mxu0 0
        %4577 = vmatpush2.bf16.xpose.msra.mxu0 0
        %4578 = vmatprep.subr.bf16.mxu0 0
        %4579 = vmatpush2.bf16.xpose.msra.mxu0 0
        %4580 = vmatprep.mubr.bf16.mxu0 0
        %4581 = vmatmul.mubr.bf16.gmra.mxu0 %v4335
        %v4582 = vpop.f32.mrf.mxu0
        %v4583 = vadd.f32 0.0, %v4582
        %v4584 = vpop.f32.mrf.mxu0
        %v4585 = vpop.f32.mrf.mxu0
        %v4586 = vpop.f32.mrf.mxu0
        %4587 = vdwg.mxu0
        %v4588 = vmul.f32 %v4583, 0.35355338
        %v4589 = vsel %vm2775, %v4588, -inf
        %4590 = vmax.xlane.f32.xlu0 %v4589
        %v4591 = vpop.xlane.xlu0 %4590
        %v4592 = vsub.f32 %v4588, %v4591
        %v4593 = vmul.f32 %v4592, 1.442695
        %v4594 = vpow.pop %v4593
        %v4595 = vsel %vm2775, %v4594, 0.0
        %4596 = vadd.xlane.f32.xlu0 %v4595
        %v4597 = vpop.xlane.xlu0 %4596
        %v4598 = vrcp.pop %v4597
        %v4599 = vmul.f32 %v4594, %v4598
        %v4600 = vpack.c.bf16 %v4599, %v4599
        %v4602 = vsel %vm2775, %v4600, 0
        %v4605 = vsel %vm2849, %v4544, 0
        %4607 = vmatprep.subr.bf16.mxu0 0
        %4608 = vmatpush1.bf16.msra.mxu0 0
        %4609 = vmatprep.subr.bf16.mxu0 0
        %4610 = vmatpush1.bf16.msra.mxu0 0
        %4611 = vmatprep.subr.bf16.mxu0 0
        %4612 = vmatpush1.bf16.msra.mxu0 0
        %4613 = vmatprep.subr.bf16.mxu0 0
        %4614 = vmatpush1.bf16.msra.mxu0 0
        %4615 = vmatprep.subr.bf16.mxu0 0
        %4616 = vmatpush1.bf16.msra.mxu0 0
        %4617 = vmatprep.subr.bf16.mxu0 0
        %4618 = vmatpush1.bf16.msra.mxu0 0
        %4619 = vmatprep.subr.bf16.mxu0 0
        %4620 = vmatpush1.bf16.msra.mxu0 0
        %4621 = vmatprep.subr.bf16.mxu0 0
        %4622 = vmatpush1.bf16.msra.mxu0 %v4605
        %4623 = vmatprep.subr.bf16.mxu0 0
        %4624 = vmatpush2.bf16.msra.mxu0 0
        %4625 = vmatprep.subr.bf16.mxu0 0
        %4626 = vmatpush2.bf16.msra.mxu0 0
        %4627 = vmatprep.subr.bf16.mxu0 0
        %4628 = vmatpush2.bf16.msra.mxu0 0
        %4629 = vmatprep.subr.bf16.mxu0 0
        %4630 = vmatpush2.bf16.msra.mxu0 0
        %4631 = vmatprep.subr.bf16.mxu0 0
        %4632 = vmatpush2.bf16.msra.mxu0 0
        %4633 = vmatprep.subr.bf16.mxu0 0
        %4634 = vmatpush2.bf16.msra.mxu0 0
        %4635 = vmatprep.subr.bf16.mxu0 0
        %4636 = vmatpush2.bf16.msra.mxu0 0
        %4637 = vmatprep.subr.bf16.mxu0 0
        %4638 = vmatpush2.bf16.msra.mxu0 0
        %4639 = vmatprep.mubr.bf16.mxu0 0
        %4640 = vmatmul.mubr.bf16.gmra.mxu0 %v4602
        %v4641 = vpop.f32.mrf.mxu0
        %v4642 = vadd.f32 0.0, %v4641
        %v4643 = vpop.f32.mrf.mxu0
        %v4644 = vpop.f32.mrf.mxu0
        %v4645 = vpop.f32.mrf.mxu0
        %4646 = vdwg.mxu0
        %v4647 = vadd.f32 %v4538, %v4642
        %v4648 = vmul.bf16 %v4330, %v533
        %v4649 = vmul.bf16 %v4331, %v533
        %v4651 = vsel %vm558, %v4648, 0
        %4653 = vmatprep.subr.bf16.mxu0 0
        %4654 = vmatpush1.bf16.xpose.msra.mxu0 0
        %4655 = vmatprep.subr.bf16.mxu0 0
        %4656 = vmatpush1.bf16.xpose.msra.mxu0 0
        %4657 = vmatprep.subr.bf16.mxu0 0
        %4658 = vmatpush1.bf16.xpose.msra.mxu0 0
        %4659 = vmatprep.subr.bf16.mxu0 0
        %4660 = vmatpush1.bf16.xpose.msra.mxu0 0
        %4661 = vmatprep.subr.bf16.mxu0 0
        %4662 = vmatpush1.bf16.xpose.msra.mxu0 0
        %4663 = vmatprep.subr.bf16.mxu0 0
        %4664 = vmatpush1.bf16.xpose.msra.mxu0 0
        %4665 = vmatprep.subr.bf16.mxu0 0
        %4666 = vmatpush1.bf16.xpose.msra.mxu0 0
        %4667 = vmatprep.subr.bf16.mxu0 0
        %4668 = vmatpush1.bf16.xpose.msra.mxu0 %v4651
        %4669 = vmatprep.subr.bf16.mxu0 0
        %4670 = vmatpush2.bf16.xpose.msra.mxu0 0
        %4671 = vmatprep.subr.bf16.mxu0 0
        %4672 = vmatpush2.bf16.xpose.msra.mxu0 0
        %4673 = vmatprep.subr.bf16.mxu0 0
        %4674 = vmatpush2.bf16.xpose.msra.mxu0 0
        %4675 = vmatprep.subr.bf16.mxu0 0
        %4676 = vmatpush2.bf16.xpose.msra.mxu0 0
        %4677 = vmatprep.subr.bf16.mxu0 0
        %4678 = vmatpush2.bf16.xpose.msra.mxu0 0
        %4679 = vmatprep.subr.bf16.mxu0 0
        %4680 = vmatpush2.bf16.xpose.msra.mxu0 0
        %4681 = vmatprep.subr.bf16.mxu0 0
        %4682 = vmatpush2.bf16.xpose.msra.mxu0 0
        %4683 = vmatprep.subr.bf16.mxu0 0
        %4684 = vmatpush2.bf16.xpose.msra.mxu0 0
        %4685 = vmatprep.mubr.bf16.mxu0 0
        %4686 = vmatmul.mubr.bf16.gmra.mxu0 %v4335
        %v4687 = vpop.f32.mrf.mxu0
        %v4688 = vadd.f32 0.0, %v4687
        %v4689 = vpop.f32.mrf.mxu0
        %v4690 = vpop.f32.mrf.mxu0
        %v4691 = vpop.f32.mrf.mxu0
        %4692 = vdwg.mxu0
        %v4693 = vmul.f32 %v4688, 0.35355338
        %v4694 = vsel %vm2775, %v4693, -inf
        %4695 = vmax.xlane.f32.xlu0 %v4694
        %v4696 = vpop.xlane.xlu0 %4695
        %v4697 = vsub.f32 %v4693, %v4696
        %v4698 = vmul.f32 %v4697, 1.442695
        %v4699 = vpow.pop %v4698
        %v4700 = vsel %vm2775, %v4699, 0.0
        %4701 = vadd.xlane.f32.xlu0 %v4700
        %v4702 = vpop.xlane.xlu0 %4701
        %v4703 = vrcp.pop %v4702
        %v4704 = vmul.f32 %v4699, %v4703
        %v4705 = vpack.c.bf16 %v4704, %v4704
        %v4707 = vsel %vm2775, %v4705, 0
        %v4710 = vsel %vm2849, %v4649, 0
        %4712 = vmatprep.subr.bf16.mxu0 0
        %4713 = vmatpush1.bf16.msra.mxu0 0
        %4714 = vmatprep.subr.bf16.mxu0 0
        %4715 = vmatpush1.bf16.msra.mxu0 0
        %4716 = vmatprep.subr.bf16.mxu0 0
        %4717 = vmatpush1.bf16.msra.mxu0 0
        %4718 = vmatprep.subr.bf16.mxu0 0
        %4719 = vmatpush1.bf16.msra.mxu0 0
        %4720 = vmatprep.subr.bf16.mxu0 0
        %4721 = vmatpush1.bf16.msra.mxu0 0
        %4722 = vmatprep.subr.bf16.mxu0 0
        %4723 = vmatpush1.bf16.msra.mxu0 0
        %4724 = vmatprep.subr.bf16.mxu0 0
        %4725 = vmatpush1.bf16.msra.mxu0 0
        %4726 = vmatprep.subr.bf16.mxu0 0
        %4727 = vmatpush1.bf16.msra.mxu0 %v4710
        %4728 = vmatprep.subr.bf16.mxu0 0
        %4729 = vmatpush2.bf16.msra.mxu0 0
        %4730 = vmatprep.subr.bf16.mxu0 0
        %4731 = vmatpush2.bf16.msra.mxu0 0
        %4732 = vmatprep.subr.bf16.mxu0 0
        %4733 = vmatpush2.bf16.msra.mxu0 0
        %4734 = vmatprep.subr.bf16.mxu0 0
        %4735 = vmatpush2.bf16.msra.mxu0 0
        %4736 = vmatprep.subr.bf16.mxu0 0
        %4737 = vmatpush2.bf16.msra.mxu0 0
        %4738 = vmatprep.subr.bf16.mxu0 0
        %4739 = vmatpush2.bf16.msra.mxu0 0
        %4740 = vmatprep.subr.bf16.mxu0 0
        %4741 = vmatpush2.bf16.msra.mxu0 0
        %4742 = vmatprep.subr.bf16.mxu0 0
        %4743 = vmatpush2.bf16.msra.mxu0 0
        %4744 = vmatprep.mubr.bf16.mxu0 0
        %4745 = vmatmul.mubr.bf16.gmra.mxu0 %v4707
        %v4746 = vpop.f32.mrf.mxu0
        %v4747 = vadd.f32 0.0, %v4746
        %v4748 = vpop.f32.mrf.mxu0
        %v4749 = vpop.f32.mrf.mxu0
        %v4750 = vpop.f32.mrf.mxu0
        %4751 = vdwg.mxu0
        %v4752 = vadd.f32 %v4647, %v4747
        %s4753 = scalar_lea.vmem %s4, 304
        %v4754 = vld [vmem:[%s4753] sm:$0xf]
        %v4755 = vld [vmem:[%s4753 + $0x4] sm:$0xf]
        %v4756 = vld [vmem:[%s4753 + $0x8] sm:$0xf]
        %v4757 = vld [vmem:[%s4753 + $0xc] sm:$0xf]
        %v4758 = vld [vmem:[%s5 + $0x13] sm:$0x1]
        %v4759 = vpack.c.bf16 %v4752, %v4752
        %v4760 = vlaneseq
        %v4761 = vshrl.u32 %v4760, 7
        %v4762 = vsub.s32 0, %v4761
        %v4763 = vrot.slane %v4758, %v4762
        %v4768 = vunpack.c.l.b16 %v4754
        %v4769 = vunpack.c.l.b16 %v4755
        %v4770 = vunpack.c.l.b16 %v4756
        %v4771 = vunpack.c.l.b16 %v4757
        %v4772 = vpack.c.b16 %v4769, %v4768
        %v4773 = vpack.c.b16 %v4771, %v4770
        %v4777 = vsel %vm558, %v4759, 0
        %4779 = vmatprep.subr.bf16.mxu0 0
        %4780 = vmatpush1.bf16.msra.mxu0 0
        %4781 = vmatprep.subr.bf16.mxu0 0
        %4782 = vmatpush1.bf16.msra.mxu0 0
        %4783 = vmatprep.subr.bf16.mxu0 0
        %4784 = vmatpush1.bf16.msra.mxu0 0
        %4785 = vmatprep.subr.bf16.mxu0 0
        %4786 = vmatpush1.bf16.msra.mxu0 0
        %4787 = vmatprep.subr.bf16.mxu0 0
        %4788 = vmatpush1.bf16.msra.mxu0 0
        %4789 = vmatprep.subr.bf16.mxu0 0
        %4790 = vmatpush1.bf16.msra.mxu0 0
        %4791 = vmatprep.subr.bf16.mxu0 0
        %4792 = vmatpush1.bf16.msra.mxu0 %v4773
        %4793 = vmatprep.subr.bf16.mxu0 0
        %4794 = vmatpush1.bf16.msra.mxu0 %v4772
        %4795 = vmatprep.subr.bf16.mxu0 0
        %4796 = vmatpush2.bf16.msra.mxu0 0
        %4797 = vmatprep.subr.bf16.mxu0 0
        %4798 = vmatpush2.bf16.msra.mxu0 0
        %4799 = vmatprep.subr.bf16.mxu0 0
        %4800 = vmatpush2.bf16.msra.mxu0 0
        %4801 = vmatprep.subr.bf16.mxu0 0
        %4802 = vmatpush2.bf16.msra.mxu0 0
        %4803 = vmatprep.subr.bf16.mxu0 0
        %4804 = vmatpush2.bf16.msra.mxu0 0
        %4805 = vmatprep.subr.bf16.mxu0 0
        %4806 = vmatpush2.bf16.msra.mxu0 0
        %4807 = vmatprep.subr.bf16.mxu0 0
        %4808 = vmatpush2.bf16.msra.mxu0 0
        %4809 = vmatprep.subr.bf16.mxu0 0
        %4810 = vmatpush2.bf16.msra.mxu0 0
        %4811 = vmatprep.mubr.bf16.mxu0 0
        %4812 = vmatmul.mubr.bf16.gmra.mxu0 %v4777
        %v4813 = vpop.f32.mrf.mxu0
        %v4814 = vadd.f32 %v4763, %v4813
        %v4815 = vpop.f32.mrf.mxu0
        %v4816 = vpop.f32.mrf.mxu0
        %v4817 = vpop.f32.mrf.mxu0
        %4818 = vdwg.mxu0
        %v4819 = vadd.f32 %v4133, %v4814
        %v4820 = vld [vmem:[%s10 + $0x7] sm:$0x1]
        %v4821 = vld [vmem:[%s11 + $0x7] sm:$0x1]
        %v4822 = vsel %vm558, %v4819, 0.0
        %4823 = vadd.xlane.f32.xlu0 %v4822
        %v4824 = vpop.xlane.xlu0 %4823
        %v4825 = vmul.f32 %v4824, %v1295
        %v4826 = vmul.f32 %v4819, %v4819
        %v4827 = vsel %vm558, %v4826, 0.0
        %4828 = vadd.xlane.f32.xlu0 %v4827
        %v4829 = vpop.xlane.xlu0 %4828
        %v4830 = vmul.f32 %v4829, %v1295
        %v4831 = vmul.f32 %v4825, %v4825
        %v4832 = vsub.f32 %v4830, %v4831
        %v4833 = vmax.f32 %v4832, 0.0
        %v4834 = vsub.f32 %v4819, %v4825
        %v4835 = vadd.f32 %v4833, 1e-05
        %v4836 = vrsqrt.pop %v4835
        %v4837 = vmul.f32 %v4834, %v4836
        %v4838 = vlaneseq
        %v4839 = vshrl.u32 %v4838, 7
        %v4840 = vsub.s32 0, %v4839
        %v4841 = vrot.slane %v4820, %v4840
        %v4842 = vmul.f32 %v4837, %v4841
        %v4843 = vlaneseq
        %v4844 = vshrl.u32 %v4843, 7
        %v4845 = vsub.s32 0, %v4844
        %v4846 = vrot.slane %v4821, %v4845
        %v4847 = vadd.f32 %v4842, %v4846
        %v4848 = vadd.f32 %v4847, %v506
        %s4849 = scalar_lea.vmem %s4, 320
        %v4850 = vld [vmem:[%s4849] sm:$0xf]
        %v4851 = vld [vmem:[%s4849 + $0x4] sm:$0xf]
        %v4852 = vld [vmem:[%s4849 + $0x8] sm:$0xf]
        %v4853 = vld [vmem:[%s4849 + $0xc] sm:$0xf]
        %v4854 = vld [vmem:[%s5 + $0x14] sm:$0x1]
        %v4855 = vpack.c.bf16 %v4848, %v4848
        %v4856 = vlaneseq
        %v4857 = vshrl.u32 %v4856, 7
        %v4858 = vsub.s32 0, %v4857
        %v4859 = vrot.slane %v4854, %v4858
        %v4864 = vunpack.c.l.b16 %v4850
        %v4865 = vunpack.c.l.b16 %v4851
        %v4866 = vunpack.c.l.b16 %v4852
        %v4867 = vunpack.c.l.b16 %v4853
        %v4868 = vpack.c.b16 %v4865, %v4864
        %v4869 = vpack.c.b16 %v4867, %v4866
        %v4873 = vsel %vm558, %v4855, 0
        %4875 = vmatprep.subr.bf16.mxu0 0
        %4876 = vmatpush1.bf16.msra.mxu0 0
        %4877 = vmatprep.subr.bf16.mxu0 0
        %4878 = vmatpush1.bf16.msra.mxu0 0
        %4879 = vmatprep.subr.bf16.mxu0 0
        %4880 = vmatpush1.bf16.msra.mxu0 0
        %4881 = vmatprep.subr.bf16.mxu0 0
        %4882 = vmatpush1.bf16.msra.mxu0 0
        %4883 = vmatprep.subr.bf16.mxu0 0
        %4884 = vmatpush1.bf16.msra.mxu0 0
        %4885 = vmatprep.subr.bf16.mxu0 0
        %4886 = vmatpush1.bf16.msra.mxu0 0
        %4887 = vmatprep.subr.bf16.mxu0 0
        %4888 = vmatpush1.bf16.msra.mxu0 %v4869
        %4889 = vmatprep.subr.bf16.mxu0 0
        %4890 = vmatpush1.bf16.msra.mxu0 %v4868
        %4891 = vmatprep.subr.bf16.mxu0 0
        %4892 = vmatpush2.bf16.msra.mxu0 0
        %4893 = vmatprep.subr.bf16.mxu0 0
        %4894 = vmatpush2.bf16.msra.mxu0 0
        %4895 = vmatprep.subr.bf16.mxu0 0
        %4896 = vmatpush2.bf16.msra.mxu0 0
        %4897 = vmatprep.subr.bf16.mxu0 0
        %4898 = vmatpush2.bf16.msra.mxu0 0
        %4899 = vmatprep.subr.bf16.mxu0 0
        %4900 = vmatpush2.bf16.msra.mxu0 0
        %4901 = vmatprep.subr.bf16.mxu0 0
        %4902 = vmatpush2.bf16.msra.mxu0 0
        %4903 = vmatprep.subr.bf16.mxu0 0
        %4904 = vmatpush2.bf16.msra.mxu0 0
        %4905 = vmatprep.subr.bf16.mxu0 0
        %4906 = vmatpush2.bf16.msra.mxu0 0
        %4907 = vmatprep.mubr.bf16.mxu0 0
        %4908 = vmatmul.mubr.bf16.gmra.mxu0 %v4873
        %v4909 = vpop.f32.mrf.mxu0
        %v4910 = vadd.f32 %v4859, %v4909
        %v4911 = vpop.f32.mrf.mxu0
        %v4912 = vpop.f32.mrf.mxu0
        %v4913 = vpop.f32.mrf.mxu0
        %4914 = vdwg.mxu0
        %s4915 = scalar_lea.vmem %s4, 336
        %v4916 = vld [vmem:[%s4915] sm:$0xf]
        %v4917 = vld [vmem:[%s4915 + $0x4] sm:$0xf]
        %v4918 = vld [vmem:[%s4915 + $0x8] sm:$0xf]
        %v4919 = vld [vmem:[%s4915 + $0xc] sm:$0xf]
        %v4920 = vld [vmem:[%s5 + $0x15] sm:$0x1]
        %v4921 = vlaneseq
        %v4922 = vshrl.u32 %v4921, 7
        %v4923 = vsub.s32 0, %v4922
        %v4924 = vrot.slane %v4920, %v4923
        %v4929 = vunpack.c.l.b16 %v4916
        %v4930 = vunpack.c.l.b16 %v4917
        %v4931 = vunpack.c.l.b16 %v4918
        %v4932 = vunpack.c.l.b16 %v4919
        %v4933 = vpack.c.b16 %v4930, %v4929
        %v4934 = vpack.c.b16 %v4932, %v4931
        %4937 = vmatprep.subr.bf16.mxu0 0
        %4938 = vmatpush1.bf16.msra.mxu0 0
        %4939 = vmatprep.subr.bf16.mxu0 0
        %4940 = vmatpush1.bf16.msra.mxu0 0
        %4941 = vmatprep.subr.bf16.mxu0 0
        %4942 = vmatpush1.bf16.msra.mxu0 0
        %4943 = vmatprep.subr.bf16.mxu0 0
        %4944 = vmatpush1.bf16.msra.mxu0 0
        %4945 = vmatprep.subr.bf16.mxu0 0
        %4946 = vmatpush1.bf16.msra.mxu0 0
        %4947 = vmatprep.subr.bf16.mxu0 0
        %4948 = vmatpush1.bf16.msra.mxu0 0
        %4949 = vmatprep.subr.bf16.mxu0 0
        %4950 = vmatpush1.bf16.msra.mxu0 %v4934
        %4951 = vmatprep.subr.bf16.mxu0 0
        %4952 = vmatpush1.bf16.msra.mxu0 %v4933
        %4953 = vmatprep.subr.bf16.mxu0 0
        %4954 = vmatpush2.bf16.msra.mxu0 0
        %4955 = vmatprep.subr.bf16.mxu0 0
        %4956 = vmatpush2.bf16.msra.mxu0 0
        %4957 = vmatprep.subr.bf16.mxu0 0
        %4958 = vmatpush2.bf16.msra.mxu0 0
        %4959 = vmatprep.subr.bf16.mxu0 0
        %4960 = vmatpush2.bf16.msra.mxu0 0
        %4961 = vmatprep.subr.bf16.mxu0 0
        %4962 = vmatpush2.bf16.msra.mxu0 0
        %4963 = vmatprep.subr.bf16.mxu0 0
        %4964 = vmatpush2.bf16.msra.mxu0 0
        %4965 = vmatprep.subr.bf16.mxu0 0
        %4966 = vmatpush2.bf16.msra.mxu0 0
        %4967 = vmatprep.subr.bf16.mxu0 0
        %4968 = vmatpush2.bf16.msra.mxu0 0
        %4969 = vmatprep.mubr.bf16.mxu0 0
        %4970 = vmatmul.mubr.bf16.gmra.mxu0 %v3335
        %v4971 = vpop.f32.mrf.mxu0
        %v4972 = vadd.f32 %v4924, %v4971
        %v4973 = vpop.f32.mrf.mxu0
        %v4974 = vpop.f32.mrf.mxu0
        %v4975 = vadd.f32 %v4924, %v4974
        %v4976 = vpop.f32.mrf.mxu0
        %4977 = vdwg.mxu0
        %s4978 = scalar_lea.vmem %s4, 352
        %v4979 = vld [vmem:[%s4978] sm:$0xf]
        %v4980 = vld [vmem:[%s4978 + $0x4] sm:$0xf]
        %v4981 = vld [vmem:[%s4978 + $0x8] sm:$0xf]
        %v4982 = vld [vmem:[%s4978 + $0xc] sm:$0xf]
        %v4983 = vld [vmem:[%s5 + $0x16] sm:$0x1]
        %v4984 = vlaneseq
        %v4985 = vshrl.u32 %v4984, 7
        %v4986 = vsub.s32 0, %v4985
        %v4987 = vrot.slane %v4983, %v4986
        %v4992 = vunpack.c.l.b16 %v4979
        %v4993 = vunpack.c.l.b16 %v4980
        %v4994 = vunpack.c.l.b16 %v4981
        %v4995 = vunpack.c.l.b16 %v4982
        %v4996 = vpack.c.b16 %v4993, %v4992
        %v4997 = vpack.c.b16 %v4995, %v4994
        %5000 = vmatprep.subr.bf16.mxu0 0
        %5001 = vmatpush1.bf16.msra.mxu0 0
        %5002 = vmatprep.subr.bf16.mxu0 0
        %5003 = vmatpush1.bf16.msra.mxu0 0
        %5004 = vmatprep.subr.bf16.mxu0 0
        %5005 = vmatpush1.bf16.msra.mxu0 0
        %5006 = vmatprep.subr.bf16.mxu0 0
        %5007 = vmatpush1.bf16.msra.mxu0 0
        %5008 = vmatprep.subr.bf16.mxu0 0
        %5009 = vmatpush1.bf16.msra.mxu0 0
        %5010 = vmatprep.subr.bf16.mxu0 0
        %5011 = vmatpush1.bf16.msra.mxu0 0
        %5012 = vmatprep.subr.bf16.mxu0 0
        %5013 = vmatpush1.bf16.msra.mxu0 %v4997
        %5014 = vmatprep.subr.bf16.mxu0 0
        %5015 = vmatpush1.bf16.msra.mxu0 %v4996
        %5016 = vmatprep.subr.bf16.mxu0 0
        %5017 = vmatpush2.bf16.msra.mxu0 0
        %5018 = vmatprep.subr.bf16.mxu0 0
        %5019 = vmatpush2.bf16.msra.mxu0 0
        %5020 = vmatprep.subr.bf16.mxu0 0
        %5021 = vmatpush2.bf16.msra.mxu0 0
        %5022 = vmatprep.subr.bf16.mxu0 0
        %5023 = vmatpush2.bf16.msra.mxu0 0
        %5024 = vmatprep.subr.bf16.mxu0 0
        %5025 = vmatpush2.bf16.msra.mxu0 0
        %5026 = vmatprep.subr.bf16.mxu0 0
        %5027 = vmatpush2.bf16.msra.mxu0 0
        %5028 = vmatprep.subr.bf16.mxu0 0
        %5029 = vmatpush2.bf16.msra.mxu0 0
        %5030 = vmatprep.subr.bf16.mxu0 0
        %5031 = vmatpush2.bf16.msra.mxu0 0
        %5032 = vmatprep.mubr.bf16.mxu0 0
        %5033 = vmatmul.mubr.bf16.gmra.mxu0 %v3402
        %v5034 = vpop.f32.mrf.mxu0
        %v5035 = vadd.f32 %v4987, %v5034
        %v5036 = vpop.f32.mrf.mxu0
        %v5037 = vpop.f32.mrf.mxu0
        %v5038 = vadd.f32 %v4987, %v5037
        %v5039 = vpop.f32.mrf.mxu0
        %5040 = vdwg.mxu0
        %v5041 = vpack.c.bf16 %v4910, %v4910
        %v5042 = vpack.c.bf16 %v4975, %v4972
        %v5043 = vpack.c.bf16 %v5038, %v5035
        %v5044 = vmul.bf16 %v5042, %v515
        %v5045 = vmul.bf16 %v5043, %v515
        %v5047 = vsel %vm558, %v5041, 0
        %v5050 = vsel %vm558, %v5044, 0
        %5052 = vmatprep.subr.bf16.mxu0 0
        %5053 = vmatpush1.bf16.xpose.msra.mxu0 0
        %5054 = vmatprep.subr.bf16.mxu0 0
        %5055 = vmatpush1.bf16.xpose.msra.mxu0 0
        %5056 = vmatprep.subr.bf16.mxu0 0
        %5057 = vmatpush1.bf16.xpose.msra.mxu0 0
        %5058 = vmatprep.subr.bf16.mxu0 0
        %5059 = vmatpush1.bf16.xpose.msra.mxu0 0
        %5060 = vmatprep.subr.bf16.mxu0 0
        %5061 = vmatpush1.bf16.xpose.msra.mxu0 0
        %5062 = vmatprep.subr.bf16.mxu0 0
        %5063 = vmatpush1.bf16.xpose.msra.mxu0 0
        %5064 = vmatprep.subr.bf16.mxu0 0
        %5065 = vmatpush1.bf16.xpose.msra.mxu0 0
        %5066 = vmatprep.subr.bf16.mxu0 0
        %5067 = vmatpush1.bf16.xpose.msra.mxu0 %v5050
        %5068 = vmatprep.subr.bf16.mxu0 0
        %5069 = vmatpush2.bf16.xpose.msra.mxu0 0
        %5070 = vmatprep.subr.bf16.mxu0 0
        %5071 = vmatpush2.bf16.xpose.msra.mxu0 0
        %5072 = vmatprep.subr.bf16.mxu0 0
        %5073 = vmatpush2.bf16.xpose.msra.mxu0 0
        %5074 = vmatprep.subr.bf16.mxu0 0
        %5075 = vmatpush2.bf16.xpose.msra.mxu0 0
        %5076 = vmatprep.subr.bf16.mxu0 0
        %5077 = vmatpush2.bf16.xpose.msra.mxu0 0
        %5078 = vmatprep.subr.bf16.mxu0 0
        %5079 = vmatpush2.bf16.xpose.msra.mxu0 0
        %5080 = vmatprep.subr.bf16.mxu0 0
        %5081 = vmatpush2.bf16.xpose.msra.mxu0 0
        %5082 = vmatprep.subr.bf16.mxu0 0
        %5083 = vmatpush2.bf16.xpose.msra.mxu0 0
        %5084 = vmatprep.mubr.bf16.mxu0 0
        %5085 = vmatmul.mubr.bf16.gmra.mxu0 %v5047
        %v5086 = vpop.f32.mrf.mxu0
        %v5087 = vadd.f32 0.0, %v5086
        %v5088 = vpop.f32.mrf.mxu0
        %v5089 = vpop.f32.mrf.mxu0
        %v5090 = vpop.f32.mrf.mxu0
        %5091 = vdwg.mxu0
        %v5092 = vmul.f32 %v5087, 0.35355338
        %v5093 = vadd.f32 %v5092, %v740
        %v5094 = vsel %vm795, %v5093, -inf
        %5095 = vmax.xlane.f32.xlu0 %v5094
        %v5096 = vpop.xlane.xlu0 %5095
        %v5097 = vsub.f32 %v5093, %v5096
        %v5098 = vmul.f32 %v5097, 1.442695
        %v5099 = vpow.pop %v5098
        %v5100 = vsel %vm795, %v5099, 0.0
        %5101 = vadd.xlane.f32.xlu0 %v5100
        %v5102 = vpop.xlane.xlu0 %5101
        %v5103 = vrcp.pop %v5102
        %v5104 = vmul.f32 %v5099, %v5103
        %v5105 = vpack.c.bf16 %v5104, %v5104
        %v5106 = vmul.bf16 %v5042, %v521
        %v5107 = vmul.bf16 %v5043, %v521
        %v5109 = vsel %vm558, %v5106, 0
        %5111 = vmatprep.subr.bf16.mxu0 0
        %5112 = vmatpush1.bf16.xpose.msra.mxu0 0
        %5113 = vmatprep.subr.bf16.mxu0 0
        %5114 = vmatpush1.bf16.xpose.msra.mxu0 0
        %5115 = vmatprep.subr.bf16.mxu0 0
        %5116 = vmatpush1.bf16.xpose.msra.mxu0 0
        %5117 = vmatprep.subr.bf16.mxu0 0
        %5118 = vmatpush1.bf16.xpose.msra.mxu0 0
        %5119 = vmatprep.subr.bf16.mxu0 0
        %5120 = vmatpush1.bf16.xpose.msra.mxu0 0
        %5121 = vmatprep.subr.bf16.mxu0 0
        %5122 = vmatpush1.bf16.xpose.msra.mxu0 0
        %5123 = vmatprep.subr.bf16.mxu0 0
        %5124 = vmatpush1.bf16.xpose.msra.mxu0 0
        %5125 = vmatprep.subr.bf16.mxu0 0
        %5126 = vmatpush1.bf16.xpose.msra.mxu0 %v5109
        %5127 = vmatprep.subr.bf16.mxu0 0
        %5128 = vmatpush2.bf16.xpose.msra.mxu0 0
        %5129 = vmatprep.subr.bf16.mxu0 0
        %5130 = vmatpush2.bf16.xpose.msra.mxu0 0
        %5131 = vmatprep.subr.bf16.mxu0 0
        %5132 = vmatpush2.bf16.xpose.msra.mxu0 0
        %5133 = vmatprep.subr.bf16.mxu0 0
        %5134 = vmatpush2.bf16.xpose.msra.mxu0 0
        %5135 = vmatprep.subr.bf16.mxu0 0
        %5136 = vmatpush2.bf16.xpose.msra.mxu0 0
        %5137 = vmatprep.subr.bf16.mxu0 0
        %5138 = vmatpush2.bf16.xpose.msra.mxu0 0
        %5139 = vmatprep.subr.bf16.mxu0 0
        %5140 = vmatpush2.bf16.xpose.msra.mxu0 0
        %5141 = vmatprep.subr.bf16.mxu0 0
        %5142 = vmatpush2.bf16.xpose.msra.mxu0 0
        %5143 = vmatprep.mubr.bf16.mxu0 0
        %5144 = vmatmul.mubr.bf16.gmra.mxu0 %v5047
        %v5145 = vpop.f32.mrf.mxu0
        %v5146 = vadd.f32 0.0, %v5145
        %v5147 = vpop.f32.mrf.mxu0
        %v5148 = vpop.f32.mrf.mxu0
        %v5149 = vpop.f32.mrf.mxu0
        %5150 = vdwg.mxu0
        %v5151 = vmul.f32 %v5146, 0.35355338
        %v5152 = vadd.f32 %v5151, %v740
        %v5153 = vsel %vm795, %v5152, -inf
        %5154 = vmax.xlane.f32.xlu0 %v5153
        %v5155 = vpop.xlane.xlu0 %5154
        %v5156 = vsub.f32 %v5152, %v5155
        %v5157 = vmul.f32 %v5156, 1.442695
        %v5158 = vpow.pop %v5157
        %v5159 = vsel %vm795, %v5158, 0.0
        %5160 = vadd.xlane.f32.xlu0 %v5159
        %v5161 = vpop.xlane.xlu0 %5160
        %v5162 = vrcp.pop %v5161
        %v5163 = vmul.f32 %v5158, %v5162
        %v5164 = vpack.c.bf16 %v5163, %v5163
        %v5166 = vsel %vm795, %v5164, 0
        %5168 = vmatprep.subr.bf16.mxu0 0
        %5169 = vmatpush1.bf16.msra.mxu0 0
        %5170 = vmatprep.subr.bf16.mxu0 0
        %5171 = vmatpush1.bf16.msra.mxu0 0
        %5172 = vmatprep.subr.bf16.mxu0 0
        %5173 = vmatpush1.bf16.msra.mxu0 0
        %5174 = vmatprep.subr.bf16.mxu0 0
        %5175 = vmatpush1.bf16.msra.mxu0 0
        %5176 = vmatprep.subr.bf16.mxu0 0
        %5177 = vmatpush1.bf16.msra.mxu0 0
        %5178 = vmatprep.subr.bf16.mxu0 0
        %5179 = vmatpush1.bf16.msra.mxu0 0
        %5180 = vmatprep.subr.bf16.mxu0 0
        %5181 = vmatpush1.bf16.msra.mxu0 0
        %5182 = vmatprep.subr.bf16.mxu0 0
        %5183 = vmatpush1.bf16.msra.mxu0 %v5107
        %5184 = vmatprep.subr.bf16.mxu0 0
        %5185 = vmatpush2.bf16.msra.mxu0 0
        %5186 = vmatprep.subr.bf16.mxu0 0
        %5187 = vmatpush2.bf16.msra.mxu0 0
        %5188 = vmatprep.subr.bf16.mxu0 0
        %5189 = vmatpush2.bf16.msra.mxu0 0
        %5190 = vmatprep.subr.bf16.mxu0 0
        %5191 = vmatpush2.bf16.msra.mxu0 0
        %5192 = vmatprep.subr.bf16.mxu0 0
        %5193 = vmatpush2.bf16.msra.mxu0 0
        %5194 = vmatprep.subr.bf16.mxu0 0
        %5195 = vmatpush2.bf16.msra.mxu0 0
        %5196 = vmatprep.subr.bf16.mxu0 0
        %5197 = vmatpush2.bf16.msra.mxu0 0
        %5198 = vmatprep.subr.bf16.mxu0 0
        %5199 = vmatpush2.bf16.msra.mxu0 0
        %5200 = vmatprep.mubr.bf16.mxu0 0
        %5201 = vmatmul.mubr.bf16.gmra.mxu0 %v5166
        %v5202 = vpop.f32.mrf.mxu0
        %v5203 = vadd.f32 0.0, %v5202
        %v5204 = vpop.f32.mrf.mxu0
        %v5205 = vpop.f32.mrf.mxu0
        %v5206 = vpop.f32.mrf.mxu0
        %5207 = vdwg.mxu0
        %v5209 = vsel %vm795, %v5105, 0
        %5211 = vmatprep.subr.bf16.mxu0 0
        %5212 = vmatpush1.bf16.msra.mxu0 0
        %5213 = vmatprep.subr.bf16.mxu0 0
        %5214 = vmatpush1.bf16.msra.mxu0 0
        %5215 = vmatprep.subr.bf16.mxu0 0
        %5216 = vmatpush1.bf16.msra.mxu0 0
        %5217 = vmatprep.subr.bf16.mxu0 0
        %5218 = vmatpush1.bf16.msra.mxu0 0
        %5219 = vmatprep.subr.bf16.mxu0 0
        %5220 = vmatpush1.bf16.msra.mxu0 0
        %5221 = vmatprep.subr.bf16.mxu0 0
        %5222 = vmatpush1.bf16.msra.mxu0 0
        %5223 = vmatprep.subr.bf16.mxu0 0
        %5224 = vmatpush1.bf16.msra.mxu0 0
        %5225 = vmatprep.subr.bf16.mxu0 0
        %5226 = vmatpush1.bf16.msra.mxu0 %v5045
        %5227 = vmatprep.subr.bf16.mxu0 0
        %5228 = vmatpush2.bf16.msra.mxu0 0
        %5229 = vmatprep.subr.bf16.mxu0 0
        %5230 = vmatpush2.bf16.msra.mxu0 0
        %5231 = vmatprep.subr.bf16.mxu0 0
        %5232 = vmatpush2.bf16.msra.mxu0 0
        %5233 = vmatprep.subr.bf16.mxu0 0
        %5234 = vmatpush2.bf16.msra.mxu0 0
        %5235 = vmatprep.subr.bf16.mxu0 0
        %5236 = vmatpush2.bf16.msra.mxu0 0
        %5237 = vmatprep.subr.bf16.mxu0 0
        %5238 = vmatpush2.bf16.msra.mxu0 0
        %5239 = vmatprep.subr.bf16.mxu0 0
        %5240 = vmatpush2.bf16.msra.mxu0 0
        %5241 = vmatprep.subr.bf16.mxu0 0
        %5242 = vmatpush2.bf16.msra.mxu0 0
        %5243 = vmatprep.mubr.bf16.mxu0 0
        %5244 = vmatmul.mubr.bf16.gmra.mxu0 %v5209
        %v5245 = vpop.f32.mrf.mxu0
        %v5246 = vadd.f32 %v5203, %v5245
        %v5247 = vpop.f32.mrf.mxu0
        %v5248 = vpop.f32.mrf.mxu0
        %v5249 = vpop.f32.mrf.mxu0
        %5250 = vdwg.mxu0
        %v5251 = vmul.bf16 %v5042, %v527
        %v5252 = vmul.bf16 %v5043, %v527
        %v5254 = vsel %vm558, %v5251, 0
        %5256 = vmatprep.subr.bf16.mxu0 0
        %5257 = vmatpush1.bf16.xpose.msra.mxu0 0
        %5258 = vmatprep.subr.bf16.mxu0 0
        %5259 = vmatpush1.bf16.xpose.msra.mxu0 0
        %5260 = vmatprep.subr.bf16.mxu0 0
        %5261 = vmatpush1.bf16.xpose.msra.mxu0 0
        %5262 = vmatprep.subr.bf16.mxu0 0
        %5263 = vmatpush1.bf16.xpose.msra.mxu0 0
        %5264 = vmatprep.subr.bf16.mxu0 0
        %5265 = vmatpush1.bf16.xpose.msra.mxu0 0
        %5266 = vmatprep.subr.bf16.mxu0 0
        %5267 = vmatpush1.bf16.xpose.msra.mxu0 0
        %5268 = vmatprep.subr.bf16.mxu0 0
        %5269 = vmatpush1.bf16.xpose.msra.mxu0 0
        %5270 = vmatprep.subr.bf16.mxu0 0
        %5271 = vmatpush1.bf16.xpose.msra.mxu0 %v5254
        %5272 = vmatprep.subr.bf16.mxu0 0
        %5273 = vmatpush2.bf16.xpose.msra.mxu0 0
        %5274 = vmatprep.subr.bf16.mxu0 0
        %5275 = vmatpush2.bf16.xpose.msra.mxu0 0
        %5276 = vmatprep.subr.bf16.mxu0 0
        %5277 = vmatpush2.bf16.xpose.msra.mxu0 0
        %5278 = vmatprep.subr.bf16.mxu0 0
        %5279 = vmatpush2.bf16.xpose.msra.mxu0 0
        %5280 = vmatprep.subr.bf16.mxu0 0
        %5281 = vmatpush2.bf16.xpose.msra.mxu0 0
        %5282 = vmatprep.subr.bf16.mxu0 0
        %5283 = vmatpush2.bf16.xpose.msra.mxu0 0
        %5284 = vmatprep.subr.bf16.mxu0 0
        %5285 = vmatpush2.bf16.xpose.msra.mxu0 0
        %5286 = vmatprep.subr.bf16.mxu0 0
        %5287 = vmatpush2.bf16.xpose.msra.mxu0 0
        %5288 = vmatprep.mubr.bf16.mxu0 0
        %5289 = vmatmul.mubr.bf16.gmra.mxu0 %v5047
        %v5290 = vpop.f32.mrf.mxu0
        %v5291 = vadd.f32 0.0, %v5290
        %v5292 = vpop.f32.mrf.mxu0
        %v5293 = vpop.f32.mrf.mxu0
        %v5294 = vpop.f32.mrf.mxu0
        %5295 = vdwg.mxu0
        %v5296 = vmul.f32 %v5291, 0.35355338
        %v5297 = vadd.f32 %v5296, %v740
        %v5298 = vsel %vm795, %v5297, -inf
        %5299 = vmax.xlane.f32.xlu0 %v5298
        %v5300 = vpop.xlane.xlu0 %5299
        %v5301 = vsub.f32 %v5297, %v5300
        %v5302 = vmul.f32 %v5301, 1.442695
        %v5303 = vpow.pop %v5302
        %v5304 = vsel %vm795, %v5303, 0.0
        %5305 = vadd.xlane.f32.xlu0 %v5304
        %v5306 = vpop.xlane.xlu0 %5305
        %v5307 = vrcp.pop %v5306
        %v5308 = vmul.f32 %v5303, %v5307
        %v5309 = vpack.c.bf16 %v5308, %v5308
        %v5311 = vsel %vm795, %v5309, 0
        %5313 = vmatprep.subr.bf16.mxu0 0
        %5314 = vmatpush1.bf16.msra.mxu0 0
        %5315 = vmatprep.subr.bf16.mxu0 0
        %5316 = vmatpush1.bf16.msra.mxu0 0
        %5317 = vmatprep.subr.bf16.mxu0 0
        %5318 = vmatpush1.bf16.msra.mxu0 0
        %5319 = vmatprep.subr.bf16.mxu0 0
        %5320 = vmatpush1.bf16.msra.mxu0 0
        %5321 = vmatprep.subr.bf16.mxu0 0
        %5322 = vmatpush1.bf16.msra.mxu0 0
        %5323 = vmatprep.subr.bf16.mxu0 0
        %5324 = vmatpush1.bf16.msra.mxu0 0
        %5325 = vmatprep.subr.bf16.mxu0 0
        %5326 = vmatpush1.bf16.msra.mxu0 0
        %5327 = vmatprep.subr.bf16.mxu0 0
        %5328 = vmatpush1.bf16.msra.mxu0 %v5252
        %5329 = vmatprep.subr.bf16.mxu0 0
        %5330 = vmatpush2.bf16.msra.mxu0 0
        %5331 = vmatprep.subr.bf16.mxu0 0
        %5332 = vmatpush2.bf16.msra.mxu0 0
        %5333 = vmatprep.subr.bf16.mxu0 0
        %5334 = vmatpush2.bf16.msra.mxu0 0
        %5335 = vmatprep.subr.bf16.mxu0 0
        %5336 = vmatpush2.bf16.msra.mxu0 0
        %5337 = vmatprep.subr.bf16.mxu0 0
        %5338 = vmatpush2.bf16.msra.mxu0 0
        %5339 = vmatprep.subr.bf16.mxu0 0
        %5340 = vmatpush2.bf16.msra.mxu0 0
        %5341 = vmatprep.subr.bf16.mxu0 0
        %5342 = vmatpush2.bf16.msra.mxu0 0
        %5343 = vmatprep.subr.bf16.mxu0 0
        %5344 = vmatpush2.bf16.msra.mxu0 0
        %5345 = vmatprep.mubr.bf16.mxu0 0
        %5346 = vmatmul.mubr.bf16.gmra.mxu0 %v5311
        %v5347 = vpop.f32.mrf.mxu0
        %v5348 = vadd.f32 0.0, %v5347
        %v5349 = vpop.f32.mrf.mxu0
        %v5350 = vpop.f32.mrf.mxu0
        %v5351 = vpop.f32.mrf.mxu0
        %5352 = vdwg.mxu0
        %v5353 = vadd.f32 %v5246, %v5348
        %v5354 = vmul.bf16 %v5042, %v533
        %v5355 = vmul.bf16 %v5043, %v533
        %v5357 = vsel %vm558, %v5354, 0
        %5359 = vmatprep.subr.bf16.mxu0 0
        %5360 = vmatpush1.bf16.xpose.msra.mxu0 0
        %5361 = vmatprep.subr.bf16.mxu0 0
        %5362 = vmatpush1.bf16.xpose.msra.mxu0 0
        %5363 = vmatprep.subr.bf16.mxu0 0
        %5364 = vmatpush1.bf16.xpose.msra.mxu0 0
        %5365 = vmatprep.subr.bf16.mxu0 0
        %5366 = vmatpush1.bf16.xpose.msra.mxu0 0
        %5367 = vmatprep.subr.bf16.mxu0 0
        %5368 = vmatpush1.bf16.xpose.msra.mxu0 0
        %5369 = vmatprep.subr.bf16.mxu0 0
        %5370 = vmatpush1.bf16.xpose.msra.mxu0 0
        %5371 = vmatprep.subr.bf16.mxu0 0
        %5372 = vmatpush1.bf16.xpose.msra.mxu0 0
        %5373 = vmatprep.subr.bf16.mxu0 0
        %5374 = vmatpush1.bf16.xpose.msra.mxu0 %v5357
        %5375 = vmatprep.subr.bf16.mxu0 0
        %5376 = vmatpush2.bf16.xpose.msra.mxu0 0
        %5377 = vmatprep.subr.bf16.mxu0 0
        %5378 = vmatpush2.bf16.xpose.msra.mxu0 0
        %5379 = vmatprep.subr.bf16.mxu0 0
        %5380 = vmatpush2.bf16.xpose.msra.mxu0 0
        %5381 = vmatprep.subr.bf16.mxu0 0
        %5382 = vmatpush2.bf16.xpose.msra.mxu0 0
        %5383 = vmatprep.subr.bf16.mxu0 0
        %5384 = vmatpush2.bf16.xpose.msra.mxu0 0
        %5385 = vmatprep.subr.bf16.mxu0 0
        %5386 = vmatpush2.bf16.xpose.msra.mxu0 0
        %5387 = vmatprep.subr.bf16.mxu0 0
        %5388 = vmatpush2.bf16.xpose.msra.mxu0 0
        %5389 = vmatprep.subr.bf16.mxu0 0
        %5390 = vmatpush2.bf16.xpose.msra.mxu0 0
        %5391 = vmatprep.mubr.bf16.mxu0 0
        %5392 = vmatmul.mubr.bf16.gmra.mxu0 %v5047
        %v5393 = vpop.f32.mrf.mxu0
        %v5394 = vadd.f32 0.0, %v5393
        %v5395 = vpop.f32.mrf.mxu0
        %v5396 = vpop.f32.mrf.mxu0
        %v5397 = vpop.f32.mrf.mxu0
        %5398 = vdwg.mxu0
        %v5399 = vmul.f32 %v5394, 0.35355338
        %v5400 = vadd.f32 %v5399, %v740
        %v5401 = vsel %vm795, %v5400, -inf
        %5402 = vmax.xlane.f32.xlu0 %v5401
        %v5403 = vpop.xlane.xlu0 %5402
        %v5404 = vsub.f32 %v5400, %v5403
        %v5405 = vmul.f32 %v5404, 1.442695
        %v5406 = vpow.pop %v5405
        %v5407 = vsel %vm795, %v5406, 0.0
        %5408 = vadd.xlane.f32.xlu0 %v5407
        %v5409 = vpop.xlane.xlu0 %5408
        %v5410 = vrcp.pop %v5409
        %v5411 = vmul.f32 %v5406, %v5410
        %v5412 = vpack.c.bf16 %v5411, %v5411
        %v5414 = vsel %vm795, %v5412, 0
        %5416 = vmatprep.subr.bf16.mxu0 0
        %5417 = vmatpush1.bf16.msra.mxu0 0
        %5418 = vmatprep.subr.bf16.mxu0 0
        %5419 = vmatpush1.bf16.msra.mxu0 0
        %5420 = vmatprep.subr.bf16.mxu0 0
        %5421 = vmatpush1.bf16.msra.mxu0 0
        %5422 = vmatprep.subr.bf16.mxu0 0
        %5423 = vmatpush1.bf16.msra.mxu0 0
        %5424 = vmatprep.subr.bf16.mxu0 0
        %5425 = vmatpush1.bf16.msra.mxu0 0
        %5426 = vmatprep.subr.bf16.mxu0 0
        %5427 = vmatpush1.bf16.msra.mxu0 0
        %5428 = vmatprep.subr.bf16.mxu0 0
        %5429 = vmatpush1.bf16.msra.mxu0 0
        %5430 = vmatprep.subr.bf16.mxu0 0
        %5431 = vmatpush1.bf16.msra.mxu0 %v5355
        %5432 = vmatprep.subr.bf16.mxu0 0
        %5433 = vmatpush2.bf16.msra.mxu0 0
        %5434 = vmatprep.subr.bf16.mxu0 0
        %5435 = vmatpush2.bf16.msra.mxu0 0
        %5436 = vmatprep.subr.bf16.mxu0 0
        %5437 = vmatpush2.bf16.msra.mxu0 0
        %5438 = vmatprep.subr.bf16.mxu0 0
        %5439 = vmatpush2.bf16.msra.mxu0 0
        %5440 = vmatprep.subr.bf16.mxu0 0
        %5441 = vmatpush2.bf16.msra.mxu0 0
        %5442 = vmatprep.subr.bf16.mxu0 0
        %5443 = vmatpush2.bf16.msra.mxu0 0
        %5444 = vmatprep.subr.bf16.mxu0 0
        %5445 = vmatpush2.bf16.msra.mxu0 0
        %5446 = vmatprep.subr.bf16.mxu0 0
        %5447 = vmatpush2.bf16.msra.mxu0 0
        %5448 = vmatprep.mubr.bf16.mxu0 0
        %5449 = vmatmul.mubr.bf16.gmra.mxu0 %v5414
        %v5450 = vpop.f32.mrf.mxu0
        %v5451 = vadd.f32 0.0, %v5450
        %v5452 = vpop.f32.mrf.mxu0
        %v5453 = vpop.f32.mrf.mxu0
        %v5454 = vpop.f32.mrf.mxu0
        %5455 = vdwg.mxu0
        %v5456 = vadd.f32 %v5353, %v5451
        %s5457 = scalar_lea.vmem %s4, 368
        %v5458 = vld [vmem:[%s5457] sm:$0xf]
        %v5459 = vld [vmem:[%s5457 + $0x4] sm:$0xf]
        %v5460 = vld [vmem:[%s5457 + $0x8] sm:$0xf]
        %v5461 = vld [vmem:[%s5457 + $0xc] sm:$0xf]
        %v5462 = vld [vmem:[%s5 + $0x17] sm:$0x1]
        %v5463 = vpack.c.bf16 %v5456, %v5456
        %v5464 = vlaneseq
        %v5465 = vshrl.u32 %v5464, 7
        %v5466 = vsub.s32 0, %v5465
        %v5467 = vrot.slane %v5462, %v5466
        %v5472 = vunpack.c.l.b16 %v5458
        %v5473 = vunpack.c.l.b16 %v5459
        %v5474 = vunpack.c.l.b16 %v5460
        %v5475 = vunpack.c.l.b16 %v5461
        %v5476 = vpack.c.b16 %v5473, %v5472
        %v5477 = vpack.c.b16 %v5475, %v5474
        %v5481 = vsel %vm558, %v5463, 0
        %5483 = vmatprep.subr.bf16.mxu0 0
        %5484 = vmatpush1.bf16.msra.mxu0 0
        %5485 = vmatprep.subr.bf16.mxu0 0
        %5486 = vmatpush1.bf16.msra.mxu0 0
        %5487 = vmatprep.subr.bf16.mxu0 0
        %5488 = vmatpush1.bf16.msra.mxu0 0
        %5489 = vmatprep.subr.bf16.mxu0 0
        %5490 = vmatpush1.bf16.msra.mxu0 0
        %5491 = vmatprep.subr.bf16.mxu0 0
        %5492 = vmatpush1.bf16.msra.mxu0 0
        %5493 = vmatprep.subr.bf16.mxu0 0
        %5494 = vmatpush1.bf16.msra.mxu0 0
        %5495 = vmatprep.subr.bf16.mxu0 0
        %5496 = vmatpush1.bf16.msra.mxu0 %v5477
        %5497 = vmatprep.subr.bf16.mxu0 0
        %5498 = vmatpush1.bf16.msra.mxu0 %v5476
        %5499 = vmatprep.subr.bf16.mxu0 0
        %5500 = vmatpush2.bf16.msra.mxu0 0
        %5501 = vmatprep.subr.bf16.mxu0 0
        %5502 = vmatpush2.bf16.msra.mxu0 0
        %5503 = vmatprep.subr.bf16.mxu0 0
        %5504 = vmatpush2.bf16.msra.mxu0 0
        %5505 = vmatprep.subr.bf16.mxu0 0
        %5506 = vmatpush2.bf16.msra.mxu0 0
        %5507 = vmatprep.subr.bf16.mxu0 0
        %5508 = vmatpush2.bf16.msra.mxu0 0
        %5509 = vmatprep.subr.bf16.mxu0 0
        %5510 = vmatpush2.bf16.msra.mxu0 0
        %5511 = vmatprep.subr.bf16.mxu0 0
        %5512 = vmatpush2.bf16.msra.mxu0 0
        %5513 = vmatprep.subr.bf16.mxu0 0
        %5514 = vmatpush2.bf16.msra.mxu0 0
        %5515 = vmatprep.mubr.bf16.mxu0 0
        %5516 = vmatmul.mubr.bf16.gmra.mxu0 %v5481
        %v5517 = vpop.f32.mrf.mxu0
        %v5518 = vadd.f32 %v5467, %v5517
        %v5519 = vpop.f32.mrf.mxu0
        %v5520 = vpop.f32.mrf.mxu0
        %v5521 = vpop.f32.mrf.mxu0
        %5522 = vdwg.mxu0
        %v5523 = vadd.f32 %v4847, %v5518
        %v5524 = vld [vmem:[%s10 + $0x8] sm:$0x1]
        %v5525 = vld [vmem:[%s11 + $0x8] sm:$0x1]
        %v5526 = vsel %vm558, %v5523, 0.0
        %5527 = vadd.xlane.f32.xlu0 %v5526
        %v5528 = vpop.xlane.xlu0 %5527
        %v5529 = vmul.f32 %v5528, %v1295
        %v5530 = vmul.f32 %v5523, %v5523
        %v5531 = vsel %vm558, %v5530, 0.0
        %5532 = vadd.xlane.f32.xlu0 %v5531
        %v5533 = vpop.xlane.xlu0 %5532
        %v5534 = vmul.f32 %v5533, %v1295
        %v5535 = vmul.f32 %v5529, %v5529
        %v5536 = vsub.f32 %v5534, %v5535
        %v5537 = vmax.f32 %v5536, 0.0
        %v5538 = vsub.f32 %v5523, %v5529
        %v5539 = vadd.f32 %v5537, 1e-05
        %v5540 = vrsqrt.pop %v5539
        %v5541 = vmul.f32 %v5538, %v5540
        %v5542 = vlaneseq
        %v5543 = vshrl.u32 %v5542, 7
        %v5544 = vsub.s32 0, %v5543
        %v5545 = vrot.slane %v5524, %v5544
        %v5546 = vmul.f32 %v5541, %v5545
        %v5547 = vlaneseq
        %v5548 = vshrl.u32 %v5547, 7
        %v5549 = vsub.s32 0, %v5548
        %v5550 = vrot.slane %v5525, %v5549
        %v5551 = vadd.f32 %v5546, %v5550
        %s5552 = scalar_lea.vmem %s6, 48
        %v5553 = vld [vmem:[%s5552] sm:$0xf]
        %v5554 = vld [vmem:[%s5552 + $0x4] sm:$0xf]
        %v5555 = vld [vmem:[%s5552 + $0x8] sm:$0xf]
        %v5556 = vld [vmem:[%s5552 + $0xc] sm:$0xf]
        %v5557 = vld [vmem:[%s7 + $0x3] sm:$0x1]
        %v5558 = vpack.c.bf16 %v5551, %v5551
        %v5559 = vlaneseq
        %v5560 = vshrl.u32 %v5559, 7
        %v5561 = vsub.s32 0, %v5560
        %v5562 = vrot.slane %v5557, %v5561
        %v5567 = vunpack.c.l.b16 %v5553
        %v5568 = vunpack.c.l.b16 %v5554
        %v5569 = vunpack.c.l.b16 %v5555
        %v5570 = vunpack.c.l.b16 %v5556
        %v5571 = vpack.c.b16 %v5568, %v5567
        %v5572 = vpack.c.b16 %v5570, %v5569
        %v5576 = vsel %vm558, %v5558, 0
        %5578 = vmatprep.subr.bf16.mxu0 0
        %5579 = vmatpush1.bf16.msra.mxu0 0
        %5580 = vmatprep.subr.bf16.mxu0 0
        %5581 = vmatpush1.bf16.msra.mxu0 0
        %5582 = vmatprep.subr.bf16.mxu0 0
        %5583 = vmatpush1.bf16.msra.mxu0 0
        %5584 = vmatprep.subr.bf16.mxu0 0
        %5585 = vmatpush1.bf16.msra.mxu0 0
        %5586 = vmatprep.subr.bf16.mxu0 0
        %5587 = vmatpush1.bf16.msra.mxu0 0
        %5588 = vmatprep.subr.bf16.mxu0 0
        %5589 = vmatpush1.bf16.msra.mxu0 0
        %5590 = vmatprep.subr.bf16.mxu0 0
        %5591 = vmatpush1.bf16.msra.mxu0 %v5572
        %5592 = vmatprep.subr.bf16.mxu0 0
        %5593 = vmatpush1.bf16.msra.mxu0 %v5571
        %5594 = vmatprep.subr.bf16.mxu0 0
        %5595 = vmatpush2.bf16.msra.mxu0 0
        %5596 = vmatprep.subr.bf16.mxu0 0
        %5597 = vmatpush2.bf16.msra.mxu0 0
        %5598 = vmatprep.subr.bf16.mxu0 0
        %5599 = vmatpush2.bf16.msra.mxu0 0
        %5600 = vmatprep.subr.bf16.mxu0 0
        %5601 = vmatpush2.bf16.msra.mxu0 0
        %5602 = vmatprep.subr.bf16.mxu0 0
        %5603 = vmatpush2.bf16.msra.mxu0 0
        %5604 = vmatprep.subr.bf16.mxu0 0
        %5605 = vmatpush2.bf16.msra.mxu0 0
        %5606 = vmatprep.subr.bf16.mxu0 0
        %5607 = vmatpush2.bf16.msra.mxu0 0
        %5608 = vmatprep.subr.bf16.mxu0 0
        %5609 = vmatpush2.bf16.msra.mxu0 0
        %5610 = vmatprep.mubr.bf16.mxu0 0
        %5611 = vmatmul.mubr.bf16.gmra.mxu0 %v5576
        %v5612 = vpop.f32.mrf.mxu0
        %v5613 = vadd.f32 %v5562, %v5612
        %v5614 = vpop.f32.mrf.mxu0
        %v5615 = vpop.f32.mrf.mxu0
        %v5616 = vpop.f32.mrf.mxu0
        %5617 = vdwg.mxu0
        %v5618 = vmax.f32 %v5613, 0.0
        %s5619 = scalar_lea.vmem %s8, 96
        %v5620 = vld [vmem:[%s5619] sm:$0xf]
        %v5621 = vld [vmem:[%s5619 + $0x4] sm:$0xf]
        %v5622 = vld [vmem:[%s5619 + $0x8] sm:$0xf]
        %v5623 = vld [vmem:[%s5619 + $0xc] sm:$0xf]
        %v5624 = vld [vmem:[%s5619 + $0x10] sm:$0xf]
        %v5625 = vld [vmem:[%s5619 + $0x14] sm:$0xf]
        %v5626 = vld [vmem:[%s5619 + $0x18] sm:$0xf]
        %v5627 = vld [vmem:[%s5619 + $0x1c] sm:$0xf]
        %v5628 = vld [vmem:[%s9 + $0x3] sm:$0x1]
        %v5629 = vpack.c.bf16 %v5618, %v5618
        %v5630 = vlaneseq
        %v5631 = vshrl.u32 %v5630, 7
        %v5632 = vsub.s32 0, %v5631
        %v5633 = vrot.slane %v5628, %v5632
        %v5642 = vunpack.c.l.b16 %v5620
        %v5643 = vunpack.c.l.b16 %v5621
        %v5644 = vunpack.c.l.b16 %v5622
        %v5645 = vunpack.c.l.b16 %v5623
        %v5646 = vunpack.c.l.b16 %v5624
        %v5647 = vunpack.c.l.b16 %v5625
        %v5648 = vunpack.c.l.b16 %v5626
        %v5649 = vunpack.c.l.b16 %v5627
        %v5650 = vpack.c.b16 %v5643, %v5642
        %v5651 = vpack.c.b16 %v5645, %v5644
        %v5652 = vpack.c.b16 %v5647, %v5646
        %v5653 = vpack.c.b16 %v5649, %v5648
        %v5659 = vsel %vm1440, %v5629, 0
        %5661 = vmatprep.subr.bf16.mxu0 0
        %5662 = vmatpush1.bf16.msra.mxu0 0
        %5663 = vmatprep.subr.bf16.mxu0 0
        %5664 = vmatpush1.bf16.msra.mxu0 0
        %5665 = vmatprep.subr.bf16.mxu0 0
        %5666 = vmatpush1.bf16.msra.mxu0 0
        %5667 = vmatprep.subr.bf16.mxu0 0
        %5668 = vmatpush1.bf16.msra.mxu0 0
        %5669 = vmatprep.subr.bf16.mxu0 0
        %5670 = vmatpush1.bf16.msra.mxu0 %v5653
        %5671 = vmatprep.subr.bf16.mxu0 0
        %5672 = vmatpush1.bf16.msra.mxu0 %v5652
        %5673 = vmatprep.subr.bf16.mxu0 0
        %5674 = vmatpush1.bf16.msra.mxu0 %v5651
        %5675 = vmatprep.subr.bf16.mxu0 0
        %5676 = vmatpush1.bf16.msra.mxu0 %v5650
        %5677 = vmatprep.subr.bf16.mxu0 0
        %5678 = vmatpush2.bf16.msra.mxu0 0
        %5679 = vmatprep.subr.bf16.mxu0 0
        %5680 = vmatpush2.bf16.msra.mxu0 0
        %5681 = vmatprep.subr.bf16.mxu0 0
        %5682 = vmatpush2.bf16.msra.mxu0 0
        %5683 = vmatprep.subr.bf16.mxu0 0
        %5684 = vmatpush2.bf16.msra.mxu0 0
        %5685 = vmatprep.subr.bf16.mxu0 0
        %5686 = vmatpush2.bf16.msra.mxu0 0
        %5687 = vmatprep.subr.bf16.mxu0 0
        %5688 = vmatpush2.bf16.msra.mxu0 0
        %5689 = vmatprep.subr.bf16.mxu0 0
        %5690 = vmatpush2.bf16.msra.mxu0 0
        %5691 = vmatprep.subr.bf16.mxu0 0
        %5692 = vmatpush2.bf16.msra.mxu0 0
        %5693 = vmatprep.mubr.bf16.mxu0 0
        %5694 = vmatmul.mubr.bf16.gmra.mxu0 %v5659
        %v5695 = vpop.f32.mrf.mxu0
        %v5696 = vadd.f32 %v5633, %v5695
        %v5697 = vpop.f32.mrf.mxu0
        %v5698 = vpop.f32.mrf.mxu0
        %v5699 = vpop.f32.mrf.mxu0
        %5700 = vdwg.mxu0
        %v5701 = vadd.f32 %v5551, %v5696
        %v5702 = vld [vmem:[%s10 + $0x9] sm:$0x1]
        %v5703 = vld [vmem:[%s11 + $0x9] sm:$0x1]
        %v5704 = vsel %vm558, %v5701, 0.0
        %5705 = vadd.xlane.f32.xlu0 %v5704
        %v5706 = vpop.xlane.xlu0 %5705
        %v5707 = vmul.f32 %v5706, %v1295
        %v5708 = vmul.f32 %v5701, %v5701
        %v5709 = vsel %vm558, %v5708, 0.0
        %5710 = vadd.xlane.f32.xlu0 %v5709
        %v5711 = vpop.xlane.xlu0 %5710
        %v5712 = vmul.f32 %v5711, %v1295
        %v5713 = vmul.f32 %v5707, %v5707
        %v5714 = vsub.f32 %v5712, %v5713
        %v5715 = vmax.f32 %v5714, 0.0
        %v5716 = vsub.f32 %v5701, %v5707
        %v5717 = vadd.f32 %v5715, 1e-05
        %v5718 = vrsqrt.pop %v5717
        %v5719 = vmul.f32 %v5716, %v5718
        %v5720 = vlaneseq
        %v5721 = vshrl.u32 %v5720, 7
        %v5722 = vsub.s32 0, %v5721
        %v5723 = vrot.slane %v5702, %v5722
        %v5724 = vmul.f32 %v5719, %v5723
        %v5725 = vlaneseq
        %v5726 = vshrl.u32 %v5725, 7
        %v5727 = vsub.s32 0, %v5726
        %v5728 = vrot.slane %v5703, %v5727
        %v5729 = vadd.f32 %v5724, %v5728
        %v5730 = vld [vmem:[%s10 + $0xa] sm:$0x1]
        %v5731 = vld [vmem:[%s11 + $0xa] sm:$0x1]
        %v5732 = vsel %vm558, %v5729, 0.0
        %5733 = vadd.xlane.f32.xlu0 %v5732
        %v5734 = vpop.xlane.xlu0 %5733
        %v5735 = vmul.f32 %v5734, %v1295
        %v5736 = vmul.f32 %v5729, %v5729
        %v5737 = vsel %vm558, %v5736, 0.0
        %5738 = vadd.xlane.f32.xlu0 %v5737
        %v5739 = vpop.xlane.xlu0 %5738
        %v5740 = vmul.f32 %v5739, %v1295
        %v5741 = vmul.f32 %v5735, %v5735
        %v5742 = vsub.f32 %v5740, %v5741
        %v5743 = vmax.f32 %v5742, 0.0
        %v5744 = vsub.f32 %v5729, %v5735
        %v5745 = vadd.f32 %v5743, 1e-05
        %v5746 = vrsqrt.pop %v5745
        %v5747 = vmul.f32 %v5744, %v5746
        %v5748 = vlaneseq
        %v5749 = vshrl.u32 %v5748, 7
        %v5750 = vsub.s32 0, %v5749
        %v5751 = vrot.slane %v5730, %v5750
        %v5752 = vmul.f32 %v5747, %v5751
        %v5753 = vlaneseq
        %v5754 = vshrl.u32 %v5753, 7
        %v5755 = vsub.s32 0, %v5754
        %v5756 = vrot.slane %v5731, %v5755
        %v5757 = vadd.f32 %v5752, %v5756
        %5758 = vst.msk [vmem:[%s483] sm:$0xff] %vm558, %v5757
        %s5759 = sand.u32 %s311, 1
        %s5760 = scalar_lea.sflag [#allocation3], %s5759
        %s5761 = sand.u32 %s311, 1
        %s5762 = smul.addr %s5761, 16
        %s5763 = scalar_lea.vmem [#allocation2], %s5762
        %s5764 = sand.u32 %s337, 1
        %s5765 = scalar_lea.sflag [#allocation5], %s5764
        %s5766 = sand.u32 %s337, 1
        %s5767 = smul.addr %s5766, 8
        %s5768 = scalar_lea.vmem [#allocation4], %s5767
        // Predicated region
        $region69: #{transformer_forward.1} parent=67 // pred_check
          %p5769 = pneg %p321
        $region70: #{transformer_forward.1} parent=67 // pred_check_branch
          %5771 = sbr.rel (%p5769) target = $region72
        $region71: #{transformer_forward.1} parent=67 // pred_region
          %s5773 = ssub.s32 256, 256
          %5774 = vsyncadd %s5760, %s5773
          %s5775 = smul.addr %s31, 2
          %s5776 = smul.addr %s5775, 128
          %s5777 = scalar_lea.hbm %s12, %s5776
          %s5778 = sshll.u32 %s5763, 4
          %s5779 = int_to_ptr.vmem [resolvable:$true] %s5778
          %5784 = dma.vmem_to_hbm [thread:$0]  %s5779, 256, %s5777, %s5760, 128, 128, 8
        $region72: #{transformer_forward.1} parent=67 // pred_fallthru
          _
        // Predicated region
        $region73: #{transformer_forward.1} parent=67 // pred_check
          %p5785 = pneg %p347
        $region74: #{transformer_forward.1} parent=67 // pred_check_branch
          %5787 = sbr.rel (%p5785) target = $region76
        $region75: #{transformer_forward.1} parent=67 // pred_region
          %s5789 = ssub.s32 128, 128
          %5790 = vsyncadd %s5765, %s5789
          %s5791 = smul.addr %s31, 128
          %s5792 = scalar_lea.hbm %s13, %s5791
          %s5794 = sshll.u32 %s5768, 4
          %s5795 = int_to_ptr.vmem [resolvable:$true] %s5794
          %5797 = dma.vmem_to_hbm [thread:$0]  %s5795, 128, %s5792, %s5765
        $region76: #{transformer_forward.1} parent=67 // pred_fallthru
          _
      $region68: #{transformer_forward.1} parent=5 // pred_fallthru
        _
      %p5798 = scmp.le.s32.totalorder 2, %s26
      // Predicated region
      $region77: #{transformer_forward.1} parent=5 // pred_check
        %p5799 = pneg %p5798
      $region78: #{transformer_forward.1} parent=5 // pred_check_branch
        %5801 = sbr.rel (%p5799) target = $region80
      $region79: #{transformer_forward.1} parent=5 // pred_region
        %s5802 = ssub.s32 %s26, 2
        // Predicated region
        $region81: #{transformer_forward.1} parent=79 // pred_check
          %p5803 = pneg %p327
        $region82: #{transformer_forward.1} parent=79 // pred_check_branch
          %5805 = sbr.rel (%p5803) target = $region84
        $region83: #{transformer_forward.1} parent=79 // pred_region
          %s5806 = sand.u32 %s312, 1
          %s5807 = scalar_lea.sflag [#allocation3], %s5806
          %s5808 = sand.u32 %s312, 1
          %s5809 = smul.addr %s5808, 16
          %s5810 = scalar_lea.vmem [#allocation2], %s5809
          %5811 = dma.done %s5807, 256
        $region84: #{transformer_forward.1} parent=79 // pred_fallthru
          _
        // Predicated region
        $region85: #{transformer_forward.1} parent=79 // pred_check
          %p5812 = pneg %p353
        $region86: #{transformer_forward.1} parent=79 // pred_check_branch
          %5814 = sbr.rel (%p5812) target = $region88
        $region87: #{transformer_forward.1} parent=79 // pred_region
          %s5815 = sand.u32 %s338, 1
          %s5816 = scalar_lea.sflag [#allocation5], %s5815
          %s5817 = sand.u32 %s338, 1
          %s5818 = smul.addr %s5817, 8
          %s5819 = scalar_lea.vmem [#allocation4], %s5818
          %5820 = dma.done %s5816, 128
        $region88: #{transformer_forward.1} parent=79 // pred_fallthru
          _
      $region80: #{transformer_forward.1} parent=5 // pred_fallthru
        _
    $region6: #{transformer_forward.1} parent=1 // loop_footer
      %s30 = sadd.s32 1, %s26
    $region7: #{transformer_forward.1} parent=1 // loop_footer_branch
      %25 = sbr.rel target = $region3
    $region8: #{transformer_forward.1} parent=1 // loop_exit
      _
    %5821 = vsyncpa [#allocation3], 1
    %s5822 = scalar_lea.sflag [#allocation3], 1
    %5823 = vsyncpa %s5822, 1
    %5824 = vsyncpa [#allocation5], 1
    %s5825 = scalar_lea.sflag [#allocation5], 1
    %5826 = vsyncpa %s5825, 1

</llo_original>
